<compile_context>
chip_gen: v7x
topology: tpu7x:2x2x1
jax: 0.10.0
libtpu: 0.0.40
codegen_flags: <defaults>
</compile_context>

<pallas_src>
import functools

import numpy as np
import jax
import jax.numpy as jnp
from jax.experimental import pallas as pl
from jax.experimental.pallas import tpu as pltpu

# Model dims (synthetic small backbone; convnet.out_dim == feature_dim == 16)
C_IN, C_STEM, C_OUT = 4, 8, 16
C_IN_PAD = 8                      # pad input channels 4 -> 8 (MXU-friendly K)
NB_CLASSES = 10
K = 3

_VMEM = pl.BlockSpec(memory_space=pltpu.MemorySpace.VMEM)


# ----------------------------------------------------------------------------
# Fused forward kernel: all layers, VMEM-resident intermediates
# ----------------------------------------------------------------------------
def _fused_forward_kernel(
    x_ref, mask_ref, gap_ref,
    w0_ref, b0_ref, w1_ref, b1_ref, w2_ref, b2_ref, w3_ref, b3_ref,
    fcw_ref, fcb_ref,
    f1_ref, f2_ref, f3_ref, feat_ref, logit_ref,
    *, wp, npad, nbatch,
):
    mask = mask_ref[...]                    # (1, NP) f32; 1 at valid pixels, 0 on pad ring

    def conv3x3(a_f32, w_ref, b_ref, *, relu=True, residual=None):
        # a_f32: (Cin, NP) padded-flat activation (zeros on the padding ring).
        # 3x3 conv == 9 lane-shifted matmuls accumulated in f32.  The lane roll
        # only wraps garbage into padding positions (<= Wp+1 of them at each
        # end), which are re-zeroed by `mask` below.
        acc = None
        for t in range(9):
            di, dj = t // 3, t % 3
            s = (di - 1) * wp + (dj - 1)                      # flat tap offset
            a_s = a_f32 if s == 0 else pltpu.roll(a_f32, shift=(-s) % npad, axis=1)
            p = jnp.dot(w_ref[t], a_s.astype(jnp.bfloat16),   # bf16 MXU, f32 acc
                        preferred_element_type=jnp.float32)
            acc = p if acc is None else acc + p
        acc = acc + b_ref[...]                                # (Cout,1) bias
        if residual is not None:
            acc = acc + residual                              # fused residual add
        if relu:
            acc = jnp.maximum(acc, 0.0)
        return acc * mask                                     # re-zero padding ring

    x = x_ref[...]                                            # (8, NP) f32
    f1 = conv3x3(x, w0_ref, b0_ref)                           # (8, NP)
    h = conv3x3(f1, w1_ref, b1_ref)                           # (8, NP)
    f2 = conv3x3(h, w2_ref, b2_ref, residual=f1)              # (8, NP) add+relu fused
    # Downsample conv computed at stride 1 over the padded flat space; the
    # stride-2 sample positions are picked out by the GAP weights / wrapper.
    f3 = conv3x3(f2, w3_ref, b3_ref)                          # (16, NP)

    f1_ref[...] = f1
    f2_ref[...] = f2
    f3_ref[...] = f3

    # Fused GAP: per-batch masked lane reduction over the 64 stride-2 positions
    # (gap_ref carries 1/64 at those positions, 0 elsewhere).
    gap = gap_ref[...]                                        # (B, NP) f32
    cols = [jnp.sum(f3 * gap[bb:bb + 1, :], axis=1, keepdims=True)
            for bb in range(nbatch)]                          # each (C_OUT, 1)
    feat = jnp.concatenate(cols, axis=1)                      # (C_OUT, B)
    feat_ref[...] = feat

    # Fused fc head (SimpleLinear): logits = W @ features + b
    logit_ref[...] = jnp.dot(fcw_ref[...], feat,
                             preferred_element_type=jnp.float32) + fcb_ref[...]


# ----------------------------------------------------------------------------
# Host-side constants (padding mask, stride-2 GAP selection weights)
# ----------------------------------------------------------------------------
def _make_consts(b, h, w):
    hp, wp = h + 2, w + 2
    npad = b * hp * wp
    ho, wo = h // 2, w // 2
    mask = np.zeros((1, npad), np.float32)
    gap = np.zeros((b, npad), np.float32)
    for bb in range(b):
        base = bb * hp * wp
        for r in range(1, h + 1):
            for c in range(1, w + 1):
                idx = base + r * wp + c
                mask[0, idx] = 1.0
                if (r % 2 == 1) and (c % 2 == 1):             # stride-2 tap centers
                    gap[bb, idx] = 1.0 / (ho * wo)
    return jnp.asarray(mask), jnp.asarray(gap)


# ----------------------------------------------------------------------------
# Parameters (deterministic synthetic backbone + SimpleLinear fc head)
# ----------------------------------------------------------------------------
def init_params(key):
    ks = jax.random.split(key, 6)

    def conv_w(k_, cin, cout):
        w = jax.random.normal(k_, (K * K, cout, cin), jnp.float32) * 0.1
        return w.astype(jnp.bfloat16)

    stem_w = conv_w(ks[0], C_IN, C_STEM)                      # (9, 8, 4)
    stem_w = jnp.pad(stem_w, ((0, 0), (0, 0), (0, C_IN_PAD - C_IN)))  # Cin -> 8

    return {
        "stem_w": stem_w,
        "stem_b": jnp.zeros((C_STEM, 1), jnp.float32),
        "blk_w1": conv_w(ks[1], C_STEM, C_STEM),
        "blk_b1": jnp.zeros((C_STEM, 1), jnp.float32),
        "blk_w2": conv_w(ks[2], C_STEM, C_STEM),
        "blk_b2": jnp.zeros((C_STEM, 1), jnp.float32),
        "down_w": conv_w(ks[3], C_STEM, C_OUT),
        "down_b": jnp.zeros((C_OUT, 1), jnp.float32),
        # SimpleLinear fc: weight stored (out_dim, in_dim), logits = W @ f + b
        "fc_w": jax.random.normal(ks[4], (NB_CLASSES, C_OUT), jnp.float32) * 0.1,
        "fc_b": jnp.zeros((NB_CLASSES, 1), jnp.float32),
    }


# ----------------------------------------------------------------------------
# IncrementalNet.forward
# ----------------------------------------------------------------------------
def incremental_net_forward(params, x_nchw):
    b, c, h, w = x_nchw.shape
    hp, wp = h + 2, w + 2
    npad = b * hp * wp

    # Pad spatially (zeros) + pad channels to 8, flatten to (C, B*Hp*Wp).
    xp = jnp.pad(x_nchw, ((0, 0), (0, C_IN_PAD - c), (1, 1), (1, 1)))
    x_flat = jnp.transpose(xp, (1, 0, 2, 3)).reshape(C_IN_PAD, npad)

    mask, gap = _make_consts(b, h, w)

    kernel = functools.partial(_fused_forward_kernel, wp=wp, npad=npad, nbatch=b)
    f1p, f2p, f3f, feat_cb, logit_kb = pl.pallas_call(
        kernel,
        out_shape=(
            jax.ShapeDtypeStruct((C_STEM, npad), jnp.float32),
            jax.ShapeDtypeStruct((C_STEM, npad), jnp.float32),
            jax.ShapeDtypeStruct((C_OUT, npad), jnp.float32),
            jax.ShapeDtypeStruct((C_OUT, b), jnp.float32),
            jax.ShapeDtypeStruct((NB_CLASSES, b), jnp.float32),
        ),
        in_specs=[_VMEM] * 13,
        out_specs=(_VMEM, _VMEM, _VMEM, _VMEM, _VMEM),
    )(
        x_flat, mask, gap,
        params["stem_w"], params["stem_b"],
        params["blk_w1"], params["blk_b1"],
        params["blk_w2"], params["blk_b2"],
        params["down_w"], params["down_b"],
        params["fc_w"], params["fc_b"],
    )

    # Cheap XLA-side layout plumbing back to PyTorch's NCHW views.
    def unpad(fp, cc):
        return fp.reshape(cc, b, hp, wp)[:, :, 1:hp - 1, 1:wp - 1].transpose(1, 0, 2, 3)

    f1 = unpad(f1p, C_STEM)                                               # (B,8,16,16)
    f2 = unpad(f2p, C_STEM)                                               # (B,8,16,16)
    f3 = f3f.reshape(C_OUT, b, hp, wp)[:, :, 1:hp - 1:2, 1:wp - 1:2]      # stride-2 taps
    f3 = f3.transpose(1, 0, 2, 3)                                         # (B,16,8,8)

    out = {
        "logits": logit_kb.T,      # (B, nb_classes)
        "features": feat_cb.T,     # (B, feature_dim)
        "fmaps": [f1, f2, f3],     # NCHW, like the PyTorch convnet dict
    }
    # TODO(synk): gradcam forward/backward hooks capture autograd state; no Pallas equivalent.
    return out


if __name__ == "__main__":
    key = jax.random.PRNGKey(0)
    kx, kp = jax.random.split(key)
    x = jax.random.normal(kx, (2, 4, 16, 16), jnp.float32)     # NCHW, like PyTorch
    params = init_params(kp)

    fwd = jax.jit(incremental_net_forward)
    out = fwd(params, x)
    jax.block_until_ready(out["logits"])

    assert out["logits"].shape == (2, NB_CLASSES)
    assert out["features"].shape == (2, C_OUT)
    assert out["fmaps"][0].shape == (2, C_STEM, 16, 16)
    assert out["fmaps"][1].shape == (2, C_STEM, 16, 16)
    assert out["fmaps"][2].shape == (2, C_OUT, 8, 8)
    print("KERNEL_OK")
</pallas_src>

<mosaic_0001>
module attributes {stable_mosaic.version = 11 : i64} {
  func.func @_fused_forward_kernel(%arg0: memref<8x648xf32, #tpu.memory_space<vmem>>, %arg1: memref<1x648xf32, #tpu.memory_space<vmem>>, %arg2: memref<2x648xf32, #tpu.memory_space<vmem>>, %arg3: memref<9x8x8xbf16, #tpu.memory_space<vmem>>, %arg4: memref<8x1xf32, #tpu.memory_space<vmem>>, %arg5: memref<9x8x8xbf16, #tpu.memory_space<vmem>>, %arg6: memref<8x1xf32, #tpu.memory_space<vmem>>, %arg7: memref<9x8x8xbf16, #tpu.memory_space<vmem>>, %arg8: memref<8x1xf32, #tpu.memory_space<vmem>>, %arg9: memref<9x16x8xbf16, #tpu.memory_space<vmem>>, %arg10: memref<16x1xf32, #tpu.memory_space<vmem>>, %arg11: memref<10x16xf32, #tpu.memory_space<vmem>>, %arg12: memref<10x1xf32, #tpu.memory_space<vmem>>, %arg13: memref<8x648xf32, #tpu.memory_space<vmem>>, %arg14: memref<8x648xf32, #tpu.memory_space<vmem>>, %arg15: memref<16x648xf32, #tpu.memory_space<vmem>>, %arg16: memref<16x2xf32, #tpu.memory_space<vmem>>, %arg17: memref<10x2xf32, #tpu.memory_space<vmem>>) attributes {dimension_semantics = [], scalar_prefetch = 0 : i64, scratch_operands = 0 : i64, tpu.core_type = #tpu.core_type<tc>} {
    %c0 = arith.constant 0 : index
    %c0_0 = arith.constant 0 : index
    %0 = vector.load %arg1[%c0, %c0_0] : memref<1x648xf32, #tpu.memory_space<vmem>>, vector<1x648xf32>
    %c0_1 = arith.constant 0 : index
    %c0_2 = arith.constant 0 : index
    %1 = vector.load %arg0[%c0_1, %c0_2] : memref<8x648xf32, #tpu.memory_space<vmem>>, vector<8x648xf32>
    %c19_i32 = arith.constant 19 : i32
    %2 = tpu.dynamic_rotate %1 by %c19_i32 dim 1 : vector<8x648xf32>, i32 -> vector<8x648xf32>
    %c0_3 = arith.constant 0 : index
    %c0_4 = arith.constant 0 : index
    %c0_5 = arith.constant 0 : index
    %3 = vector.load %arg3[%c0_3, %c0_4, %c0_5] : memref<9x8x8xbf16, #tpu.memory_space<vmem>>, vector<1x8x8xbf16>
    %4 = vector.shape_cast %3 : vector<1x8x8xbf16> to vector<8x8xbf16>
    %5 = arith.truncf %2 : vector<8x648xf32> to vector<8x648xbf16>
    %cst = arith.constant dense<0.000000e+00> : vector<8x648xf32>
    %6 = tpu.matmul %4, %5, %cst {dimension_numbers = #tpu.dot_dimension_numbers<[1], [0], [0], [1], [0, 0, 1, 1], [], []>} : vector<8x8xbf16>, vector<8x648xbf16>, vector<8x648xf32> -> vector<8x648xf32>
    %c18_i32 = arith.constant 18 : i32
    %7 = tpu.dynamic_rotate %1 by %c18_i32 dim 1 : vector<8x648xf32>, i32 -> vector<8x648xf32>
    %c1 = arith.constant 1 : index
    %c0_6 = arith.constant 0 : index
    %c0_7 = arith.constant 0 : index
    %8 = vector.load %arg3[%c1, %c0_6, %c0_7] : memref<9x8x8xbf16, #tpu.memory_space<vmem>>, vector<1x8x8xbf16>
    %9 = vector.shape_cast %8 : vector<1x8x8xbf16> to vector<8x8xbf16>
    %10 = arith.truncf %7 : vector<8x648xf32> to vector<8x648xbf16>
    %cst_8 = arith.constant dense<0.000000e+00> : vector<8x648xf32>
    %11 = tpu.matmul %9, %10, %cst_8 {dimension_numbers = #tpu.dot_dimension_numbers<[1], [0], [0], [1], [0, 0, 1, 1], [], []>} : vector<8x8xbf16>, vector<8x648xbf16>, vector<8x648xf32> -> vector<8x648xf32>
    %12 = arith.addf %6, %11 : vector<8x648xf32>
    %c17_i32 = arith.constant 17 : i32
    %13 = tpu.dynamic_rotate %1 by %c17_i32 dim 1 : vector<8x648xf32>, i32 -> vector<8x648xf32>
    %c2 = arith.constant 2 : index
    %c0_9 = arith.constant 0 : index
    %c0_10 = arith.constant 0 : index
    %14 = vector.load %arg3[%c2, %c0_9, %c0_10] : memref<9x8x8xbf16, #tpu.memory_space<vmem>>, vector<1x8x8xbf16>
    %15 = vector.shape_cast %14 : vector<1x8x8xbf16> to vector<8x8xbf16>
    %16 = arith.truncf %13 : vector<8x648xf32> to vector<8x648xbf16>
    %cst_11 = arith.constant dense<0.000000e+00> : vector<8x648xf32>
    %17 = tpu.matmul %15, %16, %cst_11 {dimension_numbers = #tpu.dot_dimension_numbers<[1], [0], [0], [1], [0, 0, 1, 1], [], []>} : vector<8x8xbf16>, vector<8x648xbf16>, vector<8x648xf32> -> vector<8x648xf32>
    %18 = arith.addf %12, %17 : vector<8x648xf32>
    %c1_i32 = arith.constant 1 : i32
    %19 = tpu.dynamic_rotate %1 by %c1_i32 dim 1 : vector<8x648xf32>, i32 -> vector<8x648xf32>
    %c3 = arith.constant 3 : index
    %c0_12 = arith.constant 0 : index
    %c0_13 = arith.constant 0 : index
    %20 = vector.load %arg3[%c3, %c0_12, %c0_13] : memref<9x8x8xbf16, #tpu.memory_space<vmem>>, vector<1x8x8xbf16>
    %21 = vector.shape_cast %20 : vector<1x8x8xbf16> to vector<8x8xbf16>
    %22 = arith.truncf %19 : vector<8x648xf32> to vector<8x648xbf16>
    %cst_14 = arith.constant dense<0.000000e+00> : vector<8x648xf32>
    %23 = tpu.matmul %21, %22, %cst_14 {dimension_numbers = #tpu.dot_dimension_numbers<[1], [0], [0], [1], [0, 0, 1, 1], [], []>} : vector<8x8xbf16>, vector<8x648xbf16>, vector<8x648xf32> -> vector<8x648xf32>
    %24 = arith.addf %18, %23 : vector<8x648xf32>
    %c4 = arith.constant 4 : index
    %c0_15 = arith.constant 0 : index
    %c0_16 = arith.constant 0 : index
    %25 = vector.load %arg3[%c4, %c0_15, %c0_16] : memref<9x8x8xbf16, #tpu.memory_space<vmem>>, vector<1x8x8xbf16>
    %26 = vector.shape_cast %25 : vector<1x8x8xbf16> to vector<8x8xbf16>
    %27 = arith.truncf %1 : vector<8x648xf32> to vector<8x648xbf16>
    %cst_17 = arith.constant dense<0.000000e+00> : vector<8x648xf32>
    %28 = tpu.matmul %26, %27, %cst_17 {dimension_numbers = #tpu.dot_dimension_numbers<[1], [0], [0], [1], [0, 0, 1, 1], [], []>} : vector<8x8xbf16>, vector<8x648xbf16>, vector<8x648xf32> -> vector<8x648xf32>
    %29 = arith.addf %24, %28 : vector<8x648xf32>
    %c647_i32 = arith.constant 647 : i32
    %30 = tpu.dynamic_rotate %1 by %c647_i32 dim 1 : vector<8x648xf32>, i32 -> vector<8x648xf32>
    %c5 = arith.constant 5 : index
    %c0_18 = arith.constant 0 : index
    %c0_19 = arith.constant 0 : index
    %31 = vector.load %arg3[%c5, %c0_18, %c0_19] : memref<9x8x8xbf16, #tpu.memory_space<vmem>>, vector<1x8x8xbf16>
    %32 = vector.shape_cast %31 : vector<1x8x8xbf16> to vector<8x8xbf16>
    %33 = arith.truncf %30 : vector<8x648xf32> to vector<8x648xbf16>
    %cst_20 = arith.constant dense<0.000000e+00> : vector<8x648xf32>
    %34 = tpu.matmul %32, %33, %cst_20 {dimension_numbers = #tpu.dot_dimension_numbers<[1], [0], [0], [1], [0, 0, 1, 1], [], []>} : vector<8x8xbf16>, vector<8x648xbf16>, vector<8x648xf32> -> vector<8x648xf32>
    %35 = arith.addf %29, %34 : vector<8x648xf32>
    %c631_i32 = arith.constant 631 : i32
    %36 = tpu.dynamic_rotate %1 by %c631_i32 dim 1 : vector<8x648xf32>, i32 -> vector<8x648xf32>
    %c6 = arith.constant 6 : index
    %c0_21 = arith.constant 0 : index
    %c0_22 = arith.constant 0 : index
    %37 = vector.load %arg3[%c6, %c0_21, %c0_22] : memref<9x8x8xbf16, #tpu.memory_space<vmem>>, vector<1x8x8xbf16>
    %38 = vector.shape_cast %37 : vector<1x8x8xbf16> to vector<8x8xbf16>
    %39 = arith.truncf %36 : vector<8x648xf32> to vector<8x648xbf16>
    %cst_23 = arith.constant dense<0.000000e+00> : vector<8x648xf32>
    %40 = tpu.matmul %38, %39, %cst_23 {dimension_numbers = #tpu.dot_dimension_numbers<[1], [0], [0], [1], [0, 0, 1, 1], [], []>} : vector<8x8xbf16>, vector<8x648xbf16>, vector<8x648xf32> -> vector<8x648xf32>
    %41 = arith.addf %35, %40 : vector<8x648xf32>
    %c630_i32 = arith.constant 630 : i32
    %42 = tpu.dynamic_rotate %1 by %c630_i32 dim 1 : vector<8x648xf32>, i32 -> vector<8x648xf32>
    %c7 = arith.constant 7 : index
    %c0_24 = arith.constant 0 : index
    %c0_25 = arith.constant 0 : index
    %43 = vector.load %arg3[%c7, %c0_24, %c0_25] : memref<9x8x8xbf16, #tpu.memory_space<vmem>>, vector<1x8x8xbf16>
    %44 = vector.shape_cast %43 : vector<1x8x8xbf16> to vector<8x8xbf16>
    %45 = arith.truncf %42 : vector<8x648xf32> to vector<8x648xbf16>
    %cst_26 = arith.constant dense<0.000000e+00> : vector<8x648xf32>
    %46 = tpu.matmul %44, %45, %cst_26 {dimension_numbers = #tpu.dot_dimension_numbers<[1], [0], [0], [1], [0, 0, 1, 1], [], []>} : vector<8x8xbf16>, vector<8x648xbf16>, vector<8x648xf32> -> vector<8x648xf32>
    %47 = arith.addf %41, %46 : vector<8x648xf32>
    %c629_i32 = arith.constant 629 : i32
    %48 = tpu.dynamic_rotate %1 by %c629_i32 dim 1 : vector<8x648xf32>, i32 -> vector<8x648xf32>
    %c8 = arith.constant 8 : index
    %c0_27 = arith.constant 0 : index
    %c0_28 = arith.constant 0 : index
    %49 = vector.load %arg3[%c8, %c0_27, %c0_28] : memref<9x8x8xbf16, #tpu.memory_space<vmem>>, vector<1x8x8xbf16>
    %50 = vector.shape_cast %49 : vector<1x8x8xbf16> to vector<8x8xbf16>
    %51 = arith.truncf %48 : vector<8x648xf32> to vector<8x648xbf16>
    %cst_29 = arith.constant dense<0.000000e+00> : vector<8x648xf32>
    %52 = tpu.matmul %50, %51, %cst_29 {dimension_numbers = #tpu.dot_dimension_numbers<[1], [0], [0], [1], [0, 0, 1, 1], [], []>} : vector<8x8xbf16>, vector<8x648xbf16>, vector<8x648xf32> -> vector<8x648xf32>
    %53 = arith.addf %47, %52 : vector<8x648xf32>
    %c0_30 = arith.constant 0 : index
    %c0_31 = arith.constant 0 : index
    %54 = vector.load %arg4[%c0_30, %c0_31] : memref<8x1xf32, #tpu.memory_space<vmem>>, vector<8x1xf32>
    %55 = vector.broadcast %54 : vector<8x1xf32> to vector<8x648xf32>
    %56 = arith.addf %53, %55 : vector<8x648xf32>
    %cst_32 = arith.constant 0.000000e+00 : f32
    %57 = vector.broadcast %cst_32 : f32 to vector<8x648xf32>
    %58 = arith.maximumf %56, %57 : vector<8x648xf32>
    %59 = vector.broadcast %0 : vector<1x648xf32> to vector<8x648xf32>
    %60 = arith.mulf %58, %59 : vector<8x648xf32>
    %c19_i32_33 = arith.constant 19 : i32
    %61 = tpu.dynamic_rotate %60 by %c19_i32_33 dim 1 : vector<8x648xf32>, i32 -> vector<8x648xf32>
    %c0_34 = arith.constant 0 : index
    %c0_35 = arith.constant 0 : index
    %c0_36 = arith.constant 0 : index
    %62 = vector.load %arg5[%c0_34, %c0_35, %c0_36] : memref<9x8x8xbf16, #tpu.memory_space<vmem>>, vector<1x8x8xbf16>
    %63 = vector.shape_cast %62 : vector<1x8x8xbf16> to vector<8x8xbf16>
    %64 = arith.truncf %61 : vector<8x648xf32> to vector<8x648xbf16>
    %cst_37 = arith.constant dense<0.000000e+00> : vector<8x648xf32>
    %65 = tpu.matmul %63, %64, %cst_37 {dimension_numbers = #tpu.dot_dimension_numbers<[1], [0], [0], [1], [0, 0, 1, 1], [], []>} : vector<8x8xbf16>, vector<8x648xbf16>, vector<8x648xf32> -> vector<8x648xf32>
    %c18_i32_38 = arith.constant 18 : i32
    %66 = tpu.dynamic_rotate %60 by %c18_i32_38 dim 1 : vector<8x648xf32>, i32 -> vector<8x648xf32>
    %c1_39 = arith.constant 1 : index
    %c0_40 = arith.constant 0 : index
    %c0_41 = arith.constant 0 : index
    %67 = vector.load %arg5[%c1_39, %c0_40, %c0_41] : memref<9x8x8xbf16, #tpu.memory_space<vmem>>, vector<1x8x8xbf16>
    %68 = vector.shape_cast %67 : vector<1x8x8xbf16> to vector<8x8xbf16>
    %69 = arith.truncf %66 : vector<8x648xf32> to vector<8x648xbf16>
    %cst_42 = arith.constant dense<0.000000e+00> : vector<8x648xf32>
    %70 = tpu.matmul %68, %69, %cst_42 {dimension_numbers = #tpu.dot_dimension_numbers<[1], [0], [0], [1], [0, 0, 1, 1], [], []>} : vector<8x8xbf16>, vector<8x648xbf16>, vector<8x648xf32> -> vector<8x648xf32>
    %71 = arith.addf %65, %70 : vector<8x648xf32>
    %c17_i32_43 = arith.constant 17 : i32
    %72 = tpu.dynamic_rotate %60 by %c17_i32_43 dim 1 : vector<8x648xf32>, i32 -> vector<8x648xf32>
    %c2_44 = arith.constant 2 : index
    %c0_45 = arith.constant 0 : index
    %c0_46 = arith.constant 0 : index
    %73 = vector.load %arg5[%c2_44, %c0_45, %c0_46] : memref<9x8x8xbf16, #tpu.memory_space<vmem>>, vector<1x8x8xbf16>
    %74 = vector.shape_cast %73 : vector<1x8x8xbf16> to vector<8x8xbf16>
    %75 = arith.truncf %72 : vector<8x648xf32> to vector<8x648xbf16>
    %cst_47 = arith.constant dense<0.000000e+00> : vector<8x648xf32>
    %76 = tpu.matmul %74, %75, %cst_47 {dimension_numbers = #tpu.dot_dimension_numbers<[1], [0], [0], [1], [0, 0, 1, 1], [], []>} : vector<8x8xbf16>, vector<8x648xbf16>, vector<8x648xf32> -> vector<8x648xf32>
    %77 = arith.addf %71, %76 : vector<8x648xf32>
    %c1_i32_48 = arith.constant 1 : i32
    %78 = tpu.dynamic_rotate %60 by %c1_i32_48 dim 1 : vector<8x648xf32>, i32 -> vector<8x648xf32>
    %c3_49 = arith.constant 3 : index
    %c0_50 = arith.constant 0 : index
    %c0_51 = arith.constant 0 : index
    %79 = vector.load %arg5[%c3_49, %c0_50, %c0_51] : memref<9x8x8xbf16, #tpu.memory_space<vmem>>, vector<1x8x8xbf16>
    %80 = vector.shape_cast %79 : vector<1x8x8xbf16> to vector<8x8xbf16>
    %81 = arith.truncf %78 : vector<8x648xf32> to vector<8x648xbf16>
    %cst_52 = arith.constant dense<0.000000e+00> : vector<8x648xf32>
    %82 = tpu.matmul %80, %81, %cst_52 {dimension_numbers = #tpu.dot_dimension_numbers<[1], [0], [0], [1], [0, 0, 1, 1], [], []>} : vector<8x8xbf16>, vector<8x648xbf16>, vector<8x648xf32> -> vector<8x648xf32>
    %83 = arith.addf %77, %82 : vector<8x648xf32>
    %c4_53 = arith.constant 4 : index
    %c0_54 = arith.constant 0 : index
    %c0_55 = arith.constant 0 : index
    %84 = vector.load %arg5[%c4_53, %c0_54, %c0_55] : memref<9x8x8xbf16, #tpu.memory_space<vmem>>, vector<1x8x8xbf16>
    %85 = vector.shape_cast %84 : vector<1x8x8xbf16> to vector<8x8xbf16>
    %86 = arith.truncf %60 : vector<8x648xf32> to vector<8x648xbf16>
    %cst_56 = arith.constant dense<0.000000e+00> : vector<8x648xf32>
    %87 = tpu.matmul %85, %86, %cst_56 {dimension_numbers = #tpu.dot_dimension_numbers<[1], [0], [0], [1], [0, 0, 1, 1], [], []>} : vector<8x8xbf16>, vector<8x648xbf16>, vector<8x648xf32> -> vector<8x648xf32>
    %88 = arith.addf %83, %87 : vector<8x648xf32>
    %c647_i32_57 = arith.constant 647 : i32
    %89 = tpu.dynamic_rotate %60 by %c647_i32_57 dim 1 : vector<8x648xf32>, i32 -> vector<8x648xf32>
    %c5_58 = arith.constant 5 : index
    %c0_59 = arith.constant 0 : index
    %c0_60 = arith.constant 0 : index
    %90 = vector.load %arg5[%c5_58, %c0_59, %c0_60] : memref<9x8x8xbf16, #tpu.memory_space<vmem>>, vector<1x8x8xbf16>
    %91 = vector.shape_cast %90 : vector<1x8x8xbf16> to vector<8x8xbf16>
    %92 = arith.truncf %89 : vector<8x648xf32> to vector<8x648xbf16>
    %cst_61 = arith.constant dense<0.000000e+00> : vector<8x648xf32>
    %93 = tpu.matmul %91, %92, %cst_61 {dimension_numbers = #tpu.dot_dimension_numbers<[1], [0], [0], [1], [0, 0, 1, 1], [], []>} : vector<8x8xbf16>, vector<8x648xbf16>, vector<8x648xf32> -> vector<8x648xf32>
    %94 = arith.addf %88, %93 : vector<8x648xf32>
    %c631_i32_62 = arith.constant 631 : i32
    %95 = tpu.dynamic_rotate %60 by %c631_i32_62 dim 1 : vector<8x648xf32>, i32 -> vector<8x648xf32>
    %c6_63 = arith.constant 6 : index
    %c0_64 = arith.constant 0 : index
    %c0_65 = arith.constant 0 : index
    %96 = vector.load %arg5[%c6_63, %c0_64, %c0_65] : memref<9x8x8xbf16, #tpu.memory_space<vmem>>, vector<1x8x8xbf16>
    %97 = vector.shape_cast %96 : vector<1x8x8xbf16> to vector<8x8xbf16>
    %98 = arith.truncf %95 : vector<8x648xf32> to vector<8x648xbf16>
    %cst_66 = arith.constant dense<0.000000e+00> : vector<8x648xf32>
    %99 = tpu.matmul %97, %98, %cst_66 {dimension_numbers = #tpu.dot_dimension_numbers<[1], [0], [0], [1], [0, 0, 1, 1], [], []>} : vector<8x8xbf16>, vector<8x648xbf16>, vector<8x648xf32> -> vector<8x648xf32>
    %100 = arith.addf %94, %99 : vector<8x648xf32>
    %c630_i32_67 = arith.constant 630 : i32
    %101 = tpu.dynamic_rotate %60 by %c630_i32_67 dim 1 : vector<8x648xf32>, i32 -> vector<8x648xf32>
    %c7_68 = arith.constant 7 : index
    %c0_69 = arith.constant 0 : index
    %c0_70 = arith.constant 0 : index
    %102 = vector.load %arg5[%c7_68, %c0_69, %c0_70] : memref<9x8x8xbf16, #tpu.memory_space<vmem>>, vector<1x8x8xbf16>
    %103 = vector.shape_cast %102 : vector<1x8x8xbf16> to vector<8x8xbf16>
    %104 = arith.truncf %101 : vector<8x648xf32> to vector<8x648xbf16>
    %cst_71 = arith.constant dense<0.000000e+00> : vector<8x648xf32>
    %105 = tpu.matmul %103, %104, %cst_71 {dimension_numbers = #tpu.dot_dimension_numbers<[1], [0], [0], [1], [0, 0, 1, 1], [], []>} : vector<8x8xbf16>, vector<8x648xbf16>, vector<8x648xf32> -> vector<8x648xf32>
    %106 = arith.addf %100, %105 : vector<8x648xf32>
    %c629_i32_72 = arith.constant 629 : i32
    %107 = tpu.dynamic_rotate %60 by %c629_i32_72 dim 1 : vector<8x648xf32>, i32 -> vector<8x648xf32>
    %c8_73 = arith.constant 8 : index
    %c0_74 = arith.constant 0 : index
    %c0_75 = arith.constant 0 : index
    %108 = vector.load %arg5[%c8_73, %c0_74, %c0_75] : memref<9x8x8xbf16, #tpu.memory_space<vmem>>, vector<1x8x8xbf16>
    %109 = vector.shape_cast %108 : vector<1x8x8xbf16> to vector<8x8xbf16>
    %110 = arith.truncf %107 : vector<8x648xf32> to vector<8x648xbf16>
    %cst_76 = arith.constant dense<0.000000e+00> : vector<8x648xf32>
    %111 = tpu.matmul %109, %110, %cst_76 {dimension_numbers = #tpu.dot_dimension_numbers<[1], [0], [0], [1], [0, 0, 1, 1], [], []>} : vector<8x8xbf16>, vector<8x648xbf16>, vector<8x648xf32> -> vector<8x648xf32>
    %112 = arith.addf %106, %111 : vector<8x648xf32>
    %c0_77 = arith.constant 0 : index
    %c0_78 = arith.constant 0 : index
    %113 = vector.load %arg6[%c0_77, %c0_78] : memref<8x1xf32, #tpu.memory_space<vmem>>, vector<8x1xf32>
    %114 = vector.broadcast %113 : vector<8x1xf32> to vector<8x648xf32>
    %115 = arith.addf %112, %114 : vector<8x648xf32>
    %cst_79 = arith.constant 0.000000e+00 : f32
    %116 = vector.broadcast %cst_79 : f32 to vector<8x648xf32>
    %117 = arith.maximumf %115, %116 : vector<8x648xf32>
    %118 = vector.broadcast %0 : vector<1x648xf32> to vector<8x648xf32>
    %119 = arith.mulf %117, %118 : vector<8x648xf32>
    %c19_i32_80 = arith.constant 19 : i32
    %120 = tpu.dynamic_rotate %119 by %c19_i32_80 dim 1 : vector<8x648xf32>, i32 -> vector<8x648xf32>
    %c0_81 = arith.constant 0 : index
    %c0_82 = arith.constant 0 : index
    %c0_83 = arith.constant 0 : index
    %121 = vector.load %arg7[%c0_81, %c0_82, %c0_83] : memref<9x8x8xbf16, #tpu.memory_space<vmem>>, vector<1x8x8xbf16>
    %122 = vector.shape_cast %121 : vector<1x8x8xbf16> to vector<8x8xbf16>
    %123 = arith.truncf %120 : vector<8x648xf32> to vector<8x648xbf16>
    %cst_84 = arith.constant dense<0.000000e+00> : vector<8x648xf32>
    %124 = tpu.matmul %122, %123, %cst_84 {dimension_numbers = #tpu.dot_dimension_numbers<[1], [0], [0], [1], [0, 0, 1, 1], [], []>} : vector<8x8xbf16>, vector<8x648xbf16>, vector<8x648xf32> -> vector<8x648xf32>
    %c18_i32_85 = arith.constant 18 : i32
    %125 = tpu.dynamic_rotate %119 by %c18_i32_85 dim 1 : vector<8x648xf32>, i32 -> vector<8x648xf32>
    %c1_86 = arith.constant 1 : index
    %c0_87 = arith.constant 0 : index
    %c0_88 = arith.constant 0 : index
    %126 = vector.load %arg7[%c1_86, %c0_87, %c0_88] : memref<9x8x8xbf16, #tpu.memory_space<vmem>>, vector<1x8x8xbf16>
    %127 = vector.shape_cast %126 : vector<1x8x8xbf16> to vector<8x8xbf16>
    %128 = arith.truncf %125 : vector<8x648xf32> to vector<8x648xbf16>
    %cst_89 = arith.constant dense<0.000000e+00> : vector<8x648xf32>
    %129 = tpu.matmul %127, %128, %cst_89 {dimension_numbers = #tpu.dot_dimension_numbers<[1], [0], [0], [1], [0, 0, 1, 1], [], []>} : vector<8x8xbf16>, vector<8x648xbf16>, vector<8x648xf32> -> vector<8x648xf32>
    %130 = arith.addf %124, %129 : vector<8x648xf32>
    %c17_i32_90 = arith.constant 17 : i32
    %131 = tpu.dynamic_rotate %119 by %c17_i32_90 dim 1 : vector<8x648xf32>, i32 -> vector<8x648xf32>
    %c2_91 = arith.constant 2 : index
    %c0_92 = arith.constant 0 : index
    %c0_93 = arith.constant 0 : index
    %132 = vector.load %arg7[%c2_91, %c0_92, %c0_93] : memref<9x8x8xbf16, #tpu.memory_space<vmem>>, vector<1x8x8xbf16>
    %133 = vector.shape_cast %132 : vector<1x8x8xbf16> to vector<8x8xbf16>
    %134 = arith.truncf %131 : vector<8x648xf32> to vector<8x648xbf16>
    %cst_94 = arith.constant dense<0.000000e+00> : vector<8x648xf32>
    %135 = tpu.matmul %133, %134, %cst_94 {dimension_numbers = #tpu.dot_dimension_numbers<[1], [0], [0], [1], [0, 0, 1, 1], [], []>} : vector<8x8xbf16>, vector<8x648xbf16>, vector<8x648xf32> -> vector<8x648xf32>
    %136 = arith.addf %130, %135 : vector<8x648xf32>
    %c1_i32_95 = arith.constant 1 : i32
    %137 = tpu.dynamic_rotate %119 by %c1_i32_95 dim 1 : vector<8x648xf32>, i32 -> vector<8x648xf32>
    %c3_96 = arith.constant 3 : index
    %c0_97 = arith.constant 0 : index
    %c0_98 = arith.constant 0 : index
    %138 = vector.load %arg7[%c3_96, %c0_97, %c0_98] : memref<9x8x8xbf16, #tpu.memory_space<vmem>>, vector<1x8x8xbf16>
    %139 = vector.shape_cast %138 : vector<1x8x8xbf16> to vector<8x8xbf16>
    %140 = arith.truncf %137 : vector<8x648xf32> to vector<8x648xbf16>
    %cst_99 = arith.constant dense<0.000000e+00> : vector<8x648xf32>
    %141 = tpu.matmul %139, %140, %cst_99 {dimension_numbers = #tpu.dot_dimension_numbers<[1], [0], [0], [1], [0, 0, 1, 1], [], []>} : vector<8x8xbf16>, vector<8x648xbf16>, vector<8x648xf32> -> vector<8x648xf32>
    %142 = arith.addf %136, %141 : vector<8x648xf32>
    %c4_100 = arith.constant 4 : index
    %c0_101 = arith.constant 0 : index
    %c0_102 = arith.constant 0 : index
    %143 = vector.load %arg7[%c4_100, %c0_101, %c0_102] : memref<9x8x8xbf16, #tpu.memory_space<vmem>>, vector<1x8x8xbf16>
    %144 = vector.shape_cast %143 : vector<1x8x8xbf16> to vector<8x8xbf16>
    %145 = arith.truncf %119 : vector<8x648xf32> to vector<8x648xbf16>
    %cst_103 = arith.constant dense<0.000000e+00> : vector<8x648xf32>
    %146 = tpu.matmul %144, %145, %cst_103 {dimension_numbers = #tpu.dot_dimension_numbers<[1], [0], [0], [1], [0, 0, 1, 1], [], []>} : vector<8x8xbf16>, vector<8x648xbf16>, vector<8x648xf32> -> vector<8x648xf32>
    %147 = arith.addf %142, %146 : vector<8x648xf32>
    %c647_i32_104 = arith.constant 647 : i32
    %148 = tpu.dynamic_rotate %119 by %c647_i32_104 dim 1 : vector<8x648xf32>, i32 -> vector<8x648xf32>
    %c5_105 = arith.constant 5 : index
    %c0_106 = arith.constant 0 : index
    %c0_107 = arith.constant 0 : index
    %149 = vector.load %arg7[%c5_105, %c0_106, %c0_107] : memref<9x8x8xbf16, #tpu.memory_space<vmem>>, vector<1x8x8xbf16>
    %150 = vector.shape_cast %149 : vector<1x8x8xbf16> to vector<8x8xbf16>
    %151 = arith.truncf %148 : vector<8x648xf32> to vector<8x648xbf16>
    %cst_108 = arith.constant dense<0.000000e+00> : vector<8x648xf32>
    %152 = tpu.matmul %150, %151, %cst_108 {dimension_numbers = #tpu.dot_dimension_numbers<[1], [0], [0], [1], [0, 0, 1, 1], [], []>} : vector<8x8xbf16>, vector<8x648xbf16>, vector<8x648xf32> -> vector<8x648xf32>
    %153 = arith.addf %147, %152 : vector<8x648xf32>
    %c631_i32_109 = arith.constant 631 : i32
    %154 = tpu.dynamic_rotate %119 by %c631_i32_109 dim 1 : vector<8x648xf32>, i32 -> vector<8x648xf32>
    %c6_110 = arith.constant 6 : index
    %c0_111 = arith.constant 0 : index
    %c0_112 = arith.constant 0 : index
    %155 = vector.load %arg7[%c6_110, %c0_111, %c0_112] : memref<9x8x8xbf16, #tpu.memory_space<vmem>>, vector<1x8x8xbf16>
    %156 = vector.shape_cast %155 : vector<1x8x8xbf16> to vector<8x8xbf16>
    %157 = arith.truncf %154 : vector<8x648xf32> to vector<8x648xbf16>
    %cst_113 = arith.constant dense<0.000000e+00> : vector<8x648xf32>
    %158 = tpu.matmul %156, %157, %cst_113 {dimension_numbers = #tpu.dot_dimension_numbers<[1], [0], [0], [1], [0, 0, 1, 1], [], []>} : vector<8x8xbf16>, vector<8x648xbf16>, vector<8x648xf32> -> vector<8x648xf32>
    %159 = arith.addf %153, %158 : vector<8x648xf32>
    %c630_i32_114 = arith.constant 630 : i32
    %160 = tpu.dynamic_rotate %119 by %c630_i32_114 dim 1 : vector<8x648xf32>, i32 -> vector<8x648xf32>
    %c7_115 = arith.constant 7 : index
    %c0_116 = arith.constant 0 : index
    %c0_117 = arith.constant 0 : index
    %161 = vector.load %arg7[%c7_115, %c0_116, %c0_117] : memref<9x8x8xbf16, #tpu.memory_space<vmem>>, vector<1x8x8xbf16>
    %162 = vector.shape_cast %161 : vector<1x8x8xbf16> to vector<8x8xbf16>
    %163 = arith.truncf %160 : vector<8x648xf32> to vector<8x648xbf16>
    %cst_118 = arith.constant dense<0.000000e+00> : vector<8x648xf32>
    %164 = tpu.matmul %162, %163, %cst_118 {dimension_numbers = #tpu.dot_dimension_numbers<[1], [0], [0], [1], [0, 0, 1, 1], [], []>} : vector<8x8xbf16>, vector<8x648xbf16>, vector<8x648xf32> -> vector<8x648xf32>
    %165 = arith.addf %159, %164 : vector<8x648xf32>
    %c629_i32_119 = arith.constant 629 : i32
    %166 = tpu.dynamic_rotate %119 by %c629_i32_119 dim 1 : vector<8x648xf32>, i32 -> vector<8x648xf32>
    %c8_120 = arith.constant 8 : index
    %c0_121 = arith.constant 0 : index
    %c0_122 = arith.constant 0 : index
    %167 = vector.load %arg7[%c8_120, %c0_121, %c0_122] : memref<9x8x8xbf16, #tpu.memory_space<vmem>>, vector<1x8x8xbf16>
    %168 = vector.shape_cast %167 : vector<1x8x8xbf16> to vector<8x8xbf16>
    %169 = arith.truncf %166 : vector<8x648xf32> to vector<8x648xbf16>
    %cst_123 = arith.constant dense<0.000000e+00> : vector<8x648xf32>
    %170 = tpu.matmul %168, %169, %cst_123 {dimension_numbers = #tpu.dot_dimension_numbers<[1], [0], [0], [1], [0, 0, 1, 1], [], []>} : vector<8x8xbf16>, vector<8x648xbf16>, vector<8x648xf32> -> vector<8x648xf32>
    %171 = arith.addf %165, %170 : vector<8x648xf32>
    %c0_124 = arith.constant 0 : index
    %c0_125 = arith.constant 0 : index
    %172 = vector.load %arg8[%c0_124, %c0_125] : memref<8x1xf32, #tpu.memory_space<vmem>>, vector<8x1xf32>
    %173 = vector.broadcast %172 : vector<8x1xf32> to vector<8x648xf32>
    %174 = arith.addf %171, %173 : vector<8x648xf32>
    %175 = arith.addf %174, %60 : vector<8x648xf32>
    %cst_126 = arith.constant 0.000000e+00 : f32
    %176 = vector.broadcast %cst_126 : f32 to vector<8x648xf32>
    %177 = arith.maximumf %175, %176 : vector<8x648xf32>
    %178 = vector.broadcast %0 : vector<1x648xf32> to vector<8x648xf32>
    %179 = arith.mulf %177, %178 : vector<8x648xf32>
    %c19_i32_127 = arith.constant 19 : i32
    %180 = tpu.dynamic_rotate %179 by %c19_i32_127 dim 1 : vector<8x648xf32>, i32 -> vector<8x648xf32>
    %c0_128 = arith.constant 0 : index
    %c0_129 = arith.constant 0 : index
    %c0_130 = arith.constant 0 : index
    %181 = vector.load %arg9[%c0_128, %c0_129, %c0_130] : memref<9x16x8xbf16, #tpu.memory_space<vmem>>, vector<1x16x8xbf16>
    %182 = vector.shape_cast %181 : vector<1x16x8xbf16> to vector<16x8xbf16>
    %183 = arith.truncf %180 : vector<8x648xf32> to vector<8x648xbf16>
    %cst_131 = arith.constant dense<0.000000e+00> : vector<16x648xf32>
    %184 = tpu.matmul %182, %183, %cst_131 {dimension_numbers = #tpu.dot_dimension_numbers<[1], [0], [0], [1], [0, 0, 1, 1], [], []>} : vector<16x8xbf16>, vector<8x648xbf16>, vector<16x648xf32> -> vector<16x648xf32>
    %c18_i32_132 = arith.constant 18 : i32
    %185 = tpu.dynamic_rotate %179 by %c18_i32_132 dim 1 : vector<8x648xf32>, i32 -> vector<8x648xf32>
    %c1_133 = arith.constant 1 : index
    %c0_134 = arith.constant 0 : index
    %c0_135 = arith.constant 0 : index
    %186 = vector.load %arg9[%c1_133, %c0_134, %c0_135] : memref<9x16x8xbf16, #tpu.memory_space<vmem>>, vector<1x16x8xbf16>
    %187 = vector.shape_cast %186 : vector<1x16x8xbf16> to vector<16x8xbf16>
    %188 = arith.truncf %185 : vector<8x648xf32> to vector<8x648xbf16>
    %cst_136 = arith.constant dense<0.000000e+00> : vector<16x648xf32>
    %189 = tpu.matmul %187, %188, %cst_136 {dimension_numbers = #tpu.dot_dimension_numbers<[1], [0], [0], [1], [0, 0, 1, 1], [], []>} : vector<16x8xbf16>, vector<8x648xbf16>, vector<16x648xf32> -> vector<16x648xf32>
    %190 = arith.addf %184, %189 : vector<16x648xf32>
    %c17_i32_137 = arith.constant 17 : i32
    %191 = tpu.dynamic_rotate %179 by %c17_i32_137 dim 1 : vector<8x648xf32>, i32 -> vector<8x648xf32>
    %c2_138 = arith.constant 2 : index
    %c0_139 = arith.constant 0 : index
    %c0_140 = arith.constant 0 : index
    %192 = vector.load %arg9[%c2_138, %c0_139, %c0_140] : memref<9x16x8xbf16, #tpu.memory_space<vmem>>, vector<1x16x8xbf16>
    %193 = vector.shape_cast %192 : vector<1x16x8xbf16> to vector<16x8xbf16>
    %194 = arith.truncf %191 : vector<8x648xf32> to vector<8x648xbf16>
    %cst_141 = arith.constant dense<0.000000e+00> : vector<16x648xf32>
    %195 = tpu.matmul %193, %194, %cst_141 {dimension_numbers = #tpu.dot_dimension_numbers<[1], [0], [0], [1], [0, 0, 1, 1], [], []>} : vector<16x8xbf16>, vector<8x648xbf16>, vector<16x648xf32> -> vector<16x648xf32>
    %196 = arith.addf %190, %195 : vector<16x648xf32>
    %c1_i32_142 = arith.constant 1 : i32
    %197 = tpu.dynamic_rotate %179 by %c1_i32_142 dim 1 : vector<8x648xf32>, i32 -> vector<8x648xf32>
    %c3_143 = arith.constant 3 : index
    %c0_144 = arith.constant 0 : index
    %c0_145 = arith.constant 0 : index
    %198 = vector.load %arg9[%c3_143, %c0_144, %c0_145] : memref<9x16x8xbf16, #tpu.memory_space<vmem>>, vector<1x16x8xbf16>
    %199 = vector.shape_cast %198 : vector<1x16x8xbf16> to vector<16x8xbf16>
    %200 = arith.truncf %197 : vector<8x648xf32> to vector<8x648xbf16>
    %cst_146 = arith.constant dense<0.000000e+00> : vector<16x648xf32>
    %201 = tpu.matmul %199, %200, %cst_146 {dimension_numbers = #tpu.dot_dimension_numbers<[1], [0], [0], [1], [0, 0, 1, 1], [], []>} : vector<16x8xbf16>, vector<8x648xbf16>, vector<16x648xf32> -> vector<16x648xf32>
    %202 = arith.addf %196, %201 : vector<16x648xf32>
    %c4_147 = arith.constant 4 : index
    %c0_148 = arith.constant 0 : index
    %c0_149 = arith.constant 0 : index
    %203 = vector.load %arg9[%c4_147, %c0_148, %c0_149] : memref<9x16x8xbf16, #tpu.memory_space<vmem>>, vector<1x16x8xbf16>
    %204 = vector.shape_cast %203 : vector<1x16x8xbf16> to vector<16x8xbf16>
    %205 = arith.truncf %179 : vector<8x648xf32> to vector<8x648xbf16>
    %cst_150 = arith.constant dense<0.000000e+00> : vector<16x648xf32>
    %206 = tpu.matmul %204, %205, %cst_150 {dimension_numbers = #tpu.dot_dimension_numbers<[1], [0], [0], [1], [0, 0, 1, 1], [], []>} : vector<16x8xbf16>, vector<8x648xbf16>, vector<16x648xf32> -> vector<16x648xf32>
    %207 = arith.addf %202, %206 : vector<16x648xf32>
    %c647_i32_151 = arith.constant 647 : i32
    %208 = tpu.dynamic_rotate %179 by %c647_i32_151 dim 1 : vector<8x648xf32>, i32 -> vector<8x648xf32>
    %c5_152 = arith.constant 5 : index
    %c0_153 = arith.constant 0 : index
    %c0_154 = arith.constant 0 : index
    %209 = vector.load %arg9[%c5_152, %c0_153, %c0_154] : memref<9x16x8xbf16, #tpu.memory_space<vmem>>, vector<1x16x8xbf16>
    %210 = vector.shape_cast %209 : vector<1x16x8xbf16> to vector<16x8xbf16>
    %211 = arith.truncf %208 : vector<8x648xf32> to vector<8x648xbf16>
    %cst_155 = arith.constant dense<0.000000e+00> : vector<16x648xf32>
    %212 = tpu.matmul %210, %211, %cst_155 {dimension_numbers = #tpu.dot_dimension_numbers<[1], [0], [0], [1], [0, 0, 1, 1], [], []>} : vector<16x8xbf16>, vector<8x648xbf16>, vector<16x648xf32> -> vector<16x648xf32>
    %213 = arith.addf %207, %212 : vector<16x648xf32>
    %c631_i32_156 = arith.constant 631 : i32
    %214 = tpu.dynamic_rotate %179 by %c631_i32_156 dim 1 : vector<8x648xf32>, i32 -> vector<8x648xf32>
    %c6_157 = arith.constant 6 : index
    %c0_158 = arith.constant 0 : index
    %c0_159 = arith.constant 0 : index
    %215 = vector.load %arg9[%c6_157, %c0_158, %c0_159] : memref<9x16x8xbf16, #tpu.memory_space<vmem>>, vector<1x16x8xbf16>
    %216 = vector.shape_cast %215 : vector<1x16x8xbf16> to vector<16x8xbf16>
    %217 = arith.truncf %214 : vector<8x648xf32> to vector<8x648xbf16>
    %cst_160 = arith.constant dense<0.000000e+00> : vector<16x648xf32>
    %218 = tpu.matmul %216, %217, %cst_160 {dimension_numbers = #tpu.dot_dimension_numbers<[1], [0], [0], [1], [0, 0, 1, 1], [], []>} : vector<16x8xbf16>, vector<8x648xbf16>, vector<16x648xf32> -> vector<16x648xf32>
    %219 = arith.addf %213, %218 : vector<16x648xf32>
    %c630_i32_161 = arith.constant 630 : i32
    %220 = tpu.dynamic_rotate %179 by %c630_i32_161 dim 1 : vector<8x648xf32>, i32 -> vector<8x648xf32>
    %c7_162 = arith.constant 7 : index
    %c0_163 = arith.constant 0 : index
    %c0_164 = arith.constant 0 : index
    %221 = vector.load %arg9[%c7_162, %c0_163, %c0_164] : memref<9x16x8xbf16, #tpu.memory_space<vmem>>, vector<1x16x8xbf16>
    %222 = vector.shape_cast %221 : vector<1x16x8xbf16> to vector<16x8xbf16>
    %223 = arith.truncf %220 : vector<8x648xf32> to vector<8x648xbf16>
    %cst_165 = arith.constant dense<0.000000e+00> : vector<16x648xf32>
    %224 = tpu.matmul %222, %223, %cst_165 {dimension_numbers = #tpu.dot_dimension_numbers<[1], [0], [0], [1], [0, 0, 1, 1], [], []>} : vector<16x8xbf16>, vector<8x648xbf16>, vector<16x648xf32> -> vector<16x648xf32>
    %225 = arith.addf %219, %224 : vector<16x648xf32>
    %c629_i32_166 = arith.constant 629 : i32
    %226 = tpu.dynamic_rotate %179 by %c629_i32_166 dim 1 : vector<8x648xf32>, i32 -> vector<8x648xf32>
    %c8_167 = arith.constant 8 : index
    %c0_168 = arith.constant 0 : index
    %c0_169 = arith.constant 0 : index
    %227 = vector.load %arg9[%c8_167, %c0_168, %c0_169] : memref<9x16x8xbf16, #tpu.memory_space<vmem>>, vector<1x16x8xbf16>
    %228 = vector.shape_cast %227 : vector<1x16x8xbf16> to vector<16x8xbf16>
    %229 = arith.truncf %226 : vector<8x648xf32> to vector<8x648xbf16>
    %cst_170 = arith.constant dense<0.000000e+00> : vector<16x648xf32>
    %230 = tpu.matmul %228, %229, %cst_170 {dimension_numbers = #tpu.dot_dimension_numbers<[1], [0], [0], [1], [0, 0, 1, 1], [], []>} : vector<16x8xbf16>, vector<8x648xbf16>, vector<16x648xf32> -> vector<16x648xf32>
    %231 = arith.addf %225, %230 : vector<16x648xf32>
    %c0_171 = arith.constant 0 : index
    %c0_172 = arith.constant 0 : index
    %232 = vector.load %arg10[%c0_171, %c0_172] : memref<16x1xf32, #tpu.memory_space<vmem>>, vector<16x1xf32>
    %233 = vector.broadcast %232 : vector<16x1xf32> to vector<16x648xf32>
    %234 = arith.addf %231, %233 : vector<16x648xf32>
    %cst_173 = arith.constant 0.000000e+00 : f32
    %235 = vector.broadcast %cst_173 : f32 to vector<16x648xf32>
    %236 = arith.maximumf %234, %235 : vector<16x648xf32>
    %237 = vector.broadcast %0 : vector<1x648xf32> to vector<16x648xf32>
    %238 = arith.mulf %236, %237 : vector<16x648xf32>
    %c0_174 = arith.constant 0 : index
    %c0_175 = arith.constant 0 : index
    %239 = vector.load %arg13[%c0_174, %c0_175] : memref<8x648xf32, #tpu.memory_space<vmem>>, vector<8x648xf32>
    tpu.vector_store %arg13[%c0_174, %c0_175], %60 {strides = array<i32>} : memref<8x648xf32, #tpu.memory_space<vmem>>, vector<8x648xf32>,
    %c0_176 = arith.constant 0 : index
    %c0_177 = arith.constant 0 : index
    %240 = vector.load %arg14[%c0_176, %c0_177] : memref<8x648xf32, #tpu.memory_space<vmem>>, vector<8x648xf32>
    tpu.vector_store %arg14[%c0_176, %c0_177], %179 {strides = array<i32>} : memref<8x648xf32, #tpu.memory_space<vmem>>, vector<8x648xf32>,
    %c0_178 = arith.constant 0 : index
    %c0_179 = arith.constant 0 : index
    %241 = vector.load %arg15[%c0_178, %c0_179] : memref<16x648xf32, #tpu.memory_space<vmem>>, vector<16x648xf32>
    tpu.vector_store %arg15[%c0_178, %c0_179], %238 {strides = array<i32>} : memref<16x648xf32, #tpu.memory_space<vmem>>, vector<16x648xf32>,
    %c0_180 = arith.constant 0 : index
    %c0_181 = arith.constant 0 : index
    %242 = vector.load %arg2[%c0_180, %c0_181] : memref<2x648xf32, #tpu.memory_space<vmem>>, vector<2x648xf32>
    %243 = vector.extract_strided_slice %242 {offsets = [0, 0], sizes = [1, 648], strides = [1, 1]} : vector<2x648xf32> to vector<1x648xf32>
    %244 = vector.broadcast %243 : vector<1x648xf32> to vector<16x648xf32>
    %245 = arith.mulf %238, %244 : vector<16x648xf32>
    %cst_182 = arith.constant dense<0.000000e+00> : vector<16xf32>
    %246 = vector.multi_reduction <add>, %245, %cst_182 [1] : vector<16x648xf32> to vector<16xf32>
    %247 = vector.shape_cast %246 : vector<16xf32> to vector<16x1xf32>
    %248 = vector.extract_strided_slice %242 {offsets = [1, 0], sizes = [1, 648], strides = [1, 1]} : vector<2x648xf32> to vector<1x648xf32>
    %249 = vector.broadcast %248 : vector<1x648xf32> to vector<16x648xf32>
    %250 = arith.mulf %238, %249 : vector<16x648xf32>
    %cst_183 = arith.constant dense<0.000000e+00> : vector<16xf32>
    %251 = vector.multi_reduction <add>, %250, %cst_183 [1] : vector<16x648xf32> to vector<16xf32>
    %252 = vector.shape_cast %251 : vector<16xf32> to vector<16x1xf32>
    %253 = tpu.concatenate %247, %252 in 1 : vector<16x1xf32>, vector<16x1xf32> -> vector<16x2xf32>
    %c0_184 = arith.constant 0 : index
    %c0_185 = arith.constant 0 : index
    %254 = vector.load %arg16[%c0_184, %c0_185] : memref<16x2xf32, #tpu.memory_space<vmem>>, vector<16x2xf32>
    tpu.vector_store %arg16[%c0_184, %c0_185], %253 {strides = array<i32>} : memref<16x2xf32, #tpu.memory_space<vmem>>, vector<16x2xf32>,
    %c0_186 = arith.constant 0 : index
    %c0_187 = arith.constant 0 : index
    %255 = vector.load %arg11[%c0_186, %c0_187] : memref<10x16xf32, #tpu.memory_space<vmem>>, vector<10x16xf32>
    %cst_188 = arith.constant dense<0.000000e+00> : vector<10x2xf32>
    %256 = tpu.matmul %255, %253, %cst_188 {dimension_numbers = #tpu.dot_dimension_numbers<[1], [0], [0], [1], [0, 0, 1, 1], [], []>} : vector<10x16xf32>, vector<16x2xf32>, vector<10x2xf32> -> vector<10x2xf32>
    %c0_189 = arith.constant 0 : index
    %c0_190 = arith.constant 0 : index
    %257 = vector.load %arg12[%c0_189, %c0_190] : memref<10x1xf32, #tpu.memory_space<vmem>>, vector<10x1xf32>
    %258 = vector.broadcast %257 : vector<10x1xf32> to vector<10x2xf32>
    %259 = arith.addf %256, %258 : vector<10x2xf32>
    %c0_191 = arith.constant 0 : index
    %c0_192 = arith.constant 0 : index
    %260 = vector.load %arg17[%c0_191, %c0_192] : memref<10x2xf32, #tpu.memory_space<vmem>>, vector<10x2xf32>
    tpu.vector_store %arg17[%c0_191, %c0_192], %259 {strides = array<i32>} : memref<10x2xf32, #tpu.memory_space<vmem>>, vector<10x2xf32>,
    return
  }
}

</mosaic_0001>

<llo_original>
// kernel: incremental_net_forward.1
$region0: #{incremental_net_forward.1}
  #allocation0 [shape = 'u32[]', space=smem, size = 0x4, offset = 0x4, fixed_abs, tag = 'smem constant byte address 0x4 - core index']
  #allocation1 [shape = 'u32[144,128]{1,0:T(1,128)}', space=vmem, size = 0x12000, scoped, tag = 'internal scratch']
  %s0 = inlined_call_operand.vmem [shape: f32[8,648], index: 0, kind: input, shape index: {}]
  %s1 = inlined_call_operand.vmem [shape: f32[1,648], index: 1, kind: input, shape index: {}]
  %s2 = inlined_call_operand.vmem [shape: f32[2,648], index: 2, kind: input, shape index: {}]
  %s3 = inlined_call_operand.vmem [shape: bf16[9,8,8], index: 3, kind: input, shape index: {}]
  %s4 = inlined_call_operand.vmem [shape: f32[8,1], index: 4, kind: input, shape index: {}]
  %s5 = inlined_call_operand.vmem [shape: bf16[9,8,8], index: 5, kind: input, shape index: {}]
  %s6 = inlined_call_operand.vmem [shape: f32[8,1], index: 6, kind: input, shape index: {}]
  %s7 = inlined_call_operand.vmem [shape: bf16[9,8,8], index: 7, kind: input, shape index: {}]
  %s8 = inlined_call_operand.vmem [shape: f32[8,1], index: 8, kind: input, shape index: {}]
  %s9 = inlined_call_operand.vmem [shape: bf16[9,16,8], index: 9, kind: input, shape index: {}]
  %s10 = inlined_call_operand.vmem [shape: f32[16,1], index: 10, kind: input, shape index: {}]
  %s11 = inlined_call_operand.vmem [shape: f32[10,16], index: 11, kind: input, shape index: {}]
  %s12 = inlined_call_operand.vmem [shape: f32[10,1], index: 12, kind: input, shape index: {}]
  %s13 = inlined_call_operand.vmem [shape: f32[8,648], index: 13, kind: output, shape index: {0}]
  %s14 = inlined_call_operand.vmem [shape: f32[8,648], index: 14, kind: output, shape index: {1}]
  %s15 = inlined_call_operand.vmem [shape: f32[16,648], index: 15, kind: output, shape index: {2}]
  %s16 = inlined_call_operand.vmem [shape: f32[16,2], index: 16, kind: output, shape index: {3}]
  %s17 = inlined_call_operand.vmem [shape: f32[10,2], index: 17, kind: output, shape index: {4}]
  %18 = xla_tuple %s13, %s14, %s15, %s16, %s17
  %s19 = sld [smem:[#allocation0]]
  $region94: #{incremental_net_forward.1} parent=0
    _
  %s21 = ssub.s32 1, %s19
  %s22 = scalar_select 0, %s21, %s19
  // Predicated region
  $region2: #{incremental_net_forward.1} parent=0 // pred_check
    _
  $region3: #{incremental_net_forward.1} parent=0 // pred_check_branch
    %24 = sbr.rel (0) target = $region5
  $region4: #{incremental_net_forward.1} parent=0 // pred_region
    _
  $region5: #{incremental_net_forward.1} parent=0 // pred_fallthru
    _
  // Predicated region
  $region6: #{incremental_net_forward.1} parent=0 // pred_check
    _
  $region7: #{incremental_net_forward.1} parent=0 // pred_check_branch
    %26 = sbr.rel (0) target = $region9
  $region8: #{incremental_net_forward.1} parent=0 // pred_region
    _
  $region9: #{incremental_net_forward.1} parent=0 // pred_fallthru
    _
  // Predicated region
  $region10: #{incremental_net_forward.1} parent=0 // pred_check
    _
  $region11: #{incremental_net_forward.1} parent=0 // pred_check_branch
    %28 = sbr.rel (0) target = $region13
  $region12: #{incremental_net_forward.1} parent=0 // pred_region
    _
  $region13: #{incremental_net_forward.1} parent=0 // pred_fallthru
    _
  // Predicated region
  $region14: #{incremental_net_forward.1} parent=0 // pred_check
    _
  $region15: #{incremental_net_forward.1} parent=0 // pred_check_branch
    %30 = sbr.rel (0) target = $region17
  $region16: #{incremental_net_forward.1} parent=0 // pred_region
    _
  $region17: #{incremental_net_forward.1} parent=0 // pred_fallthru
    _
  // Predicated region
  $region18: #{incremental_net_forward.1} parent=0 // pred_check
    _
  $region19: #{incremental_net_forward.1} parent=0 // pred_check_branch
    %32 = sbr.rel (0) target = $region21
  $region20: #{incremental_net_forward.1} parent=0 // pred_region
    _
  $region21: #{incremental_net_forward.1} parent=0 // pred_fallthru
    _
  // Predicated region
  $region22: #{incremental_net_forward.1} parent=0 // pred_check
    _
  $region23: #{incremental_net_forward.1} parent=0 // pred_check_branch
    %34 = sbr.rel (0) target = $region25
  $region24: #{incremental_net_forward.1} parent=0 // pred_region
    _
  $region25: #{incremental_net_forward.1} parent=0 // pred_fallthru
    _
  // Predicated region
  $region26: #{incremental_net_forward.1} parent=0 // pred_check
    _
  $region27: #{incremental_net_forward.1} parent=0 // pred_check_branch
    %36 = sbr.rel (0) target = $region29
  $region28: #{incremental_net_forward.1} parent=0 // pred_region
    _
  $region29: #{incremental_net_forward.1} parent=0 // pred_fallthru
    _
  // Predicated region
  $region30: #{incremental_net_forward.1} parent=0 // pred_check
    _
  $region31: #{incremental_net_forward.1} parent=0 // pred_check_branch
    %38 = sbr.rel (0) target = $region33
  $region32: #{incremental_net_forward.1} parent=0 // pred_region
    _
  $region33: #{incremental_net_forward.1} parent=0 // pred_fallthru
    _
  // Predicated region
  $region34: #{incremental_net_forward.1} parent=0 // pred_check
    _
  $region35: #{incremental_net_forward.1} parent=0 // pred_check_branch
    %40 = sbr.rel (0) target = $region37
  $region36: #{incremental_net_forward.1} parent=0 // pred_region
    _
  $region37: #{incremental_net_forward.1} parent=0 // pred_fallthru
    _
  // Predicated region
  $region38: #{incremental_net_forward.1} parent=0 // pred_check
    _
  $region39: #{incremental_net_forward.1} parent=0 // pred_check_branch
    %42 = sbr.rel (0) target = $region41
  $region40: #{incremental_net_forward.1} parent=0 // pred_region
    _
  $region41: #{incremental_net_forward.1} parent=0 // pred_fallthru
    _
  // Predicated region
  $region42: #{incremental_net_forward.1} parent=0 // pred_check
    _
  $region43: #{incremental_net_forward.1} parent=0 // pred_check_branch
    %44 = sbr.rel (0) target = $region45
  $region44: #{incremental_net_forward.1} parent=0 // pred_region
    _
  $region45: #{incremental_net_forward.1} parent=0 // pred_fallthru
    _
  // Predicated region
  $region46: #{incremental_net_forward.1} parent=0 // pred_check
    _
  $region47: #{incremental_net_forward.1} parent=0 // pred_check_branch
    %46 = sbr.rel (0) target = $region49
  $region48: #{incremental_net_forward.1} parent=0 // pred_region
    _
  $region49: #{incremental_net_forward.1} parent=0 // pred_fallthru
    _
  // Predicated region
  $region50: #{incremental_net_forward.1} parent=0 // pred_check
    _
  $region51: #{incremental_net_forward.1} parent=0 // pred_check_branch
    %48 = sbr.rel (0) target = $region53
  $region52: #{incremental_net_forward.1} parent=0 // pred_region
    _
  $region53: #{incremental_net_forward.1} parent=0 // pred_fallthru
    _
  %v50 = vld [vmem:[%s1] sm:$0x3f]
  %v51 = vld [vmem:[%s0] sm:$0xff]
  %v52 = vld [vmem:[%s0 + $0x8] sm:$0xff]
  %v53 = vld [vmem:[%s0 + $0x10] sm:$0xff]
  %v54 = vld [vmem:[%s0 + $0x18] sm:$0xff]
  %v55 = vld [vmem:[%s0 + $0x20] sm:$0xff]
  %v56 = vld [vmem:[%s0 + $0x28] sm:$0xff]
  %vm57 = vcmask 1047616
  %58 = vrot.lane.b32.xlu0 %v51, 8
  %v59 = vpop.permute.xlu0 %58
  %60 = vrot.lane.b32.xlu0 %v52, 8
  %v61 = vpop.permute.xlu0 %60
  %62 = vrot.lane.b32.xlu0 %v53, 8
  %v63 = vpop.permute.xlu0 %62
  %64 = vrot.lane.b32.xlu0 %v54, 8
  %v65 = vpop.permute.xlu0 %64
  %66 = vrot.lane.b32.xlu0 %v55, 8
  %v67 = vpop.permute.xlu0 %66
  %v68 = vsel %vm57, %v59, %v56
  %v69 = vsel %vm57, %v61, %v59
  %v70 = vsel %vm57, %v63, %v61
  %v71 = vsel %vm57, %v65, %v63
  %v72 = vsel %vm57, %v67, %v65
  %v73 = vld [vmem:[%s3] sm:$0xf]
  %v74 = vpack.c.bf16 %v55, %v55
  %v75 = vpack.c.bf16 %v68, %v68
  %v76 = vpack.c.bf16 %v69, %v69
  %v77 = vpack.c.bf16 %v70, %v70
  %v78 = vpack.c.bf16 %v71, %v71
  %v79 = vpack.c.bf16 %v72, %v72
  %s80 = scalar_lea.vmem %s3, 4
  %v81 = vld [vmem:[%s80] sm:$0xf]
  %88 = vrot.lane.b32.xlu0 %v74, 10
  %v89 = vpop.permute.xlu0 %88
  %90 = vrot.lane.b32.xlu0 %v75, 10
  %v91 = vpop.permute.xlu0 %90
  %92 = vrot.lane.b32.xlu0 %v76, 10
  %v93 = vpop.permute.xlu0 %92
  %94 = vrot.lane.b32.xlu0 %v77, 10
  %v95 = vpop.permute.xlu0 %94
  %96 = vrot.lane.b32.xlu0 %v78, 10
  %v97 = vpop.permute.xlu0 %96
  %98 = vrot.lane.b32.xlu0 %v79, 10
  %v99 = vpop.permute.xlu0 %98
  %vm100 = vcmask 80896
  %v101 = vsel %vm100, %v89, %v91
  %v102 = vsel %vm100, %v91, %v93
  %v103 = vsel %vm100, %v93, %v95
  %v104 = vsel %vm100, %v95, %v97
  %v105 = vsel %vm100, %v97, %v99
  %vm106 = vcmask 64512
  %v108 = vsel %vm106, %v81, 0
  %vm110 = vcmask 1043456
  %v112 = vsel %vm110, %v101, 0
  %v115 = vsel %vm110, %v102, 0
  %v118 = vsel %vm110, %v103, 0
  %v121 = vsel %vm110, %v104, 0
  %v124 = vsel %vm110, %v105, 0
  %v127 = vsel %vm110, %v99, 0
  %129 = vmatprep.subr.bf16.mxu0 %v115
  %130 = vmatpush1.bf16.msra.mxu0 %v112
  %131 = vmatprep.subr.bf16.mxu0 0
  %132 = vmatpush1.bf16.msra.mxu0 0
  %133 = vmatprep.subr.bf16.mxu0 0
  %134 = vmatpush1.bf16.msra.mxu0 0
  %135 = vmatprep.subr.bf16.mxu0 0
  %136 = vmatpush1.bf16.msra.mxu0 0
  %137 = vmatprep.subr.bf16.mxu0 0
  %138 = vmatpush1.bf16.msra.mxu0 0
  %139 = vmatprep.subr.bf16.mxu0 0
  %140 = vmatpush1.bf16.msra.mxu0 0
  %141 = vmatprep.subr.bf16.mxu0 0
  %142 = vmatpush1.bf16.msra.mxu0 0
  %143 = vmatprep.subr.bf16.mxu0 0
  %144 = vmatpush1.bf16.msra.mxu0 0
  %145 = vmatprep.subr.bf16.mxu0 0
  %146 = vmatpush1.bf16.msra.mxu0 0
  %147 = vmatprep.subr.bf16.mxu0 0
  %148 = vmatpush1.bf16.msra.mxu0 0
  %149 = vmatprep.subr.bf16.mxu0 0
  %150 = vmatpush1.bf16.msra.mxu0 0
  %151 = vmatprep.subr.bf16.mxu0 0
  %152 = vmatpush1.bf16.msra.mxu0 0
  %153 = vmatprep.subr.bf16.mxu0 0
  %154 = vmatpush1.bf16.msra.mxu0 0
  %155 = vmatprep.subr.bf16.mxu0 0
  %156 = vmatpush1.bf16.msra.mxu0 0
  %157 = vmatprep.subr.bf16.mxu0 0
  %158 = vmatpush1.bf16.msra.mxu0 0
  %159 = vmatprep.subr.bf16.mxu0 0
  %160 = vmatpush1.bf16.msra.mxu0 0
  %161 = vmatprep.mubr.bf16.mxu0 0
  %162 = vmatmul.mubr.bf16.gmra.mrb[0].mxu0 %v108
  %v163 = vpop.f32.mrb[0].mxu0
  %v164 = vadd.f32 0.0, %v163
  %v165 = vpop.f32.mrb[0].mxu0
  %v166 = vadd.f32 0.0, %v165
  %v167 = vpop.f32.mrb[0].mxu0
  %v168 = vpop.f32.mrb[0].mxu0
  %169 = vdwg.mxu0
  %170 = vmatprep.subr.bf16.mxu0 %v121
  %171 = vmatpush1.bf16.msra.mxu0 %v118
  %172 = vmatprep.subr.bf16.mxu0 0
  %173 = vmatpush1.bf16.msra.mxu0 0
  %174 = vmatprep.subr.bf16.mxu0 0
  %175 = vmatpush1.bf16.msra.mxu0 0
  %176 = vmatprep.subr.bf16.mxu0 0
  %177 = vmatpush1.bf16.msra.mxu0 0
  %178 = vmatprep.subr.bf16.mxu0 0
  %179 = vmatpush1.bf16.msra.mxu0 0
  %180 = vmatprep.subr.bf16.mxu0 0
  %181 = vmatpush1.bf16.msra.mxu0 0
  %182 = vmatprep.subr.bf16.mxu0 0
  %183 = vmatpush1.bf16.msra.mxu0 0
  %184 = vmatprep.subr.bf16.mxu0 0
  %185 = vmatpush1.bf16.msra.mxu0 0
  %186 = vmatprep.subr.bf16.mxu0 0
  %187 = vmatpush1.bf16.msra.mxu0 0
  %188 = vmatprep.subr.bf16.mxu0 0
  %189 = vmatpush1.bf16.msra.mxu0 0
  %190 = vmatprep.subr.bf16.mxu0 0
  %191 = vmatpush1.bf16.msra.mxu0 0
  %192 = vmatprep.subr.bf16.mxu0 0
  %193 = vmatpush1.bf16.msra.mxu0 0
  %194 = vmatprep.subr.bf16.mxu0 0
  %195 = vmatpush1.bf16.msra.mxu0 0
  %196 = vmatprep.subr.bf16.mxu0 0
  %197 = vmatpush1.bf16.msra.mxu0 0
  %198 = vmatprep.subr.bf16.mxu0 0
  %199 = vmatpush1.bf16.msra.mxu0 0
  %200 = vmatprep.subr.bf16.mxu0 0
  %201 = vmatpush1.bf16.msra.mxu0 0
  %202 = vmatprep.mubr.bf16.mxu0 0
  %203 = vmatmul.mubr.bf16.gmra.mrb[0].mxu0 %v108
  %v204 = vpop.f32.mrb[0].mxu0
  %v205 = vadd.f32 0.0, %v204
  %v206 = vpop.f32.mrb[0].mxu0
  %v207 = vadd.f32 0.0, %v206
  %v208 = vpop.f32.mrb[0].mxu0
  %v209 = vpop.f32.mrb[0].mxu0
  %210 = vdwg.mxu0
  %211 = vmatprep.subr.bf16.mxu0 %v127
  %212 = vmatpush1.bf16.msra.mxu0 %v124
  %213 = vmatprep.subr.bf16.mxu0 0
  %214 = vmatpush1.bf16.msra.mxu0 0
  %215 = vmatprep.subr.bf16.mxu0 0
  %216 = vmatpush1.bf16.msra.mxu0 0
  %217 = vmatprep.subr.bf16.mxu0 0
  %218 = vmatpush1.bf16.msra.mxu0 0
  %219 = vmatprep.subr.bf16.mxu0 0
  %220 = vmatpush1.bf16.msra.mxu0 0
  %221 = vmatprep.subr.bf16.mxu0 0
  %222 = vmatpush1.bf16.msra.mxu0 0
  %223 = vmatprep.subr.bf16.mxu0 0
  %224 = vmatpush1.bf16.msra.mxu0 0
  %225 = vmatprep.subr.bf16.mxu0 0
  %226 = vmatpush1.bf16.msra.mxu0 0
  %227 = vmatprep.subr.bf16.mxu0 0
  %228 = vmatpush1.bf16.msra.mxu0 0
  %229 = vmatprep.subr.bf16.mxu0 0
  %230 = vmatpush1.bf16.msra.mxu0 0
  %231 = vmatprep.subr.bf16.mxu0 0
  %232 = vmatpush1.bf16.msra.mxu0 0
  %233 = vmatprep.subr.bf16.mxu0 0
  %234 = vmatpush1.bf16.msra.mxu0 0
  %235 = vmatprep.subr.bf16.mxu0 0
  %236 = vmatpush1.bf16.msra.mxu0 0
  %237 = vmatprep.subr.bf16.mxu0 0
  %238 = vmatpush1.bf16.msra.mxu0 0
  %239 = vmatprep.subr.bf16.mxu0 0
  %240 = vmatpush1.bf16.msra.mxu0 0
  %241 = vmatprep.subr.bf16.mxu0 0
  %242 = vmatpush1.bf16.msra.mxu0 0
  %243 = vmatprep.mubr.bf16.mxu0 0
  %244 = vmatmul.mubr.bf16.gmra.mrb[0].mxu0 %v108
  %v245 = vpop.f32.mrb[0].mxu0
  %v246 = vadd.f32 0.0, %v245
  %v247 = vpop.f32.mrb[0].mxu0
  %v248 = vadd.f32 0.0, %v247
  %v249 = vpop.f32.mrb[0].mxu0
  %v250 = vpop.f32.mrb[0].mxu0
  %251 = vdwg.mxu0
  %252 = vrot.lane.b32.xlu0 %v74, 11
  %v253 = vpop.permute.xlu0 %252
  %254 = vrot.lane.b32.xlu0 %v75, 11
  %v255 = vpop.permute.xlu0 %254
  %256 = vrot.lane.b32.xlu0 %v76, 11
  %v257 = vpop.permute.xlu0 %256
  %258 = vrot.lane.b32.xlu0 %v77, 11
  %v259 = vpop.permute.xlu0 %258
  %260 = vrot.lane.b32.xlu0 %v78, 11
  %v261 = vpop.permute.xlu0 %260
  %262 = vrot.lane.b32.xlu0 %v79, 11
  %v263 = vpop.permute.xlu0 %262
  %vm264 = vcmask 89088
  %v265 = vsel %vm264, %v253, %v255
  %v266 = vsel %vm264, %v255, %v257
  %v267 = vsel %vm264, %v257, %v259
  %v268 = vsel %vm264, %v259, %v261
  %v269 = vsel %vm264, %v261, %v263
  %v271 = vsel %vm106, %v73, 0
  %v274 = vsel %vm110, %v265, 0
  %v277 = vsel %vm110, %v266, 0
  %v280 = vsel %vm110, %v267, 0
  %v283 = vsel %vm110, %v268, 0
  %v286 = vsel %vm110, %v269, 0
  %v289 = vsel %vm110, %v263, 0
  %291 = vmatprep.subr.bf16.mxu0 %v277
  %292 = vmatpush1.bf16.msra.mxu0 %v274
  %293 = vmatprep.subr.bf16.mxu0 0
  %294 = vmatpush1.bf16.msra.mxu0 0
  %295 = vmatprep.subr.bf16.mxu0 0
  %296 = vmatpush1.bf16.msra.mxu0 0
  %297 = vmatprep.subr.bf16.mxu0 0
  %298 = vmatpush1.bf16.msra.mxu0 0
  %299 = vmatprep.subr.bf16.mxu0 0
  %300 = vmatpush1.bf16.msra.mxu0 0
  %301 = vmatprep.subr.bf16.mxu0 0
  %302 = vmatpush1.bf16.msra.mxu0 0
  %303 = vmatprep.subr.bf16.mxu0 0
  %304 = vmatpush1.bf16.msra.mxu0 0
  %305 = vmatprep.subr.bf16.mxu0 0
  %306 = vmatpush1.bf16.msra.mxu0 0
  %307 = vmatprep.subr.bf16.mxu0 0
  %308 = vmatpush1.bf16.msra.mxu0 0
  %309 = vmatprep.subr.bf16.mxu0 0
  %310 = vmatpush1.bf16.msra.mxu0 0
  %311 = vmatprep.subr.bf16.mxu0 0
  %312 = vmatpush1.bf16.msra.mxu0 0
  %313 = vmatprep.subr.bf16.mxu0 0
  %314 = vmatpush1.bf16.msra.mxu0 0
  %315 = vmatprep.subr.bf16.mxu0 0
  %316 = vmatpush1.bf16.msra.mxu0 0
  %317 = vmatprep.subr.bf16.mxu0 0
  %318 = vmatpush1.bf16.msra.mxu0 0
  %319 = vmatprep.subr.bf16.mxu0 0
  %320 = vmatpush1.bf16.msra.mxu0 0
  %321 = vmatprep.subr.bf16.mxu0 0
  %322 = vmatpush1.bf16.msra.mxu0 0
  %323 = vmatprep.mubr.bf16.mxu0 0
  %324 = vmatmul.mubr.bf16.gmra.mrb[0].mxu0 %v271
  %v325 = vpop.f32.mrb[0].mxu0
  %v326 = vadd.f32 %v164, %v325
  %v327 = vpop.f32.mrb[0].mxu0
  %v328 = vadd.f32 %v166, %v327
  %v329 = vpop.f32.mrb[0].mxu0
  %v330 = vpop.f32.mrb[0].mxu0
  %331 = vdwg.mxu0
  %332 = vmatprep.subr.bf16.mxu0 %v283
  %333 = vmatpush1.bf16.msra.mxu0 %v280
  %334 = vmatprep.subr.bf16.mxu0 0
  %335 = vmatpush1.bf16.msra.mxu0 0
  %336 = vmatprep.subr.bf16.mxu0 0
  %337 = vmatpush1.bf16.msra.mxu0 0
  %338 = vmatprep.subr.bf16.mxu0 0
  %339 = vmatpush1.bf16.msra.mxu0 0
  %340 = vmatprep.subr.bf16.mxu0 0
  %341 = vmatpush1.bf16.msra.mxu0 0
  %342 = vmatprep.subr.bf16.mxu0 0
  %343 = vmatpush1.bf16.msra.mxu0 0
  %344 = vmatprep.subr.bf16.mxu0 0
  %345 = vmatpush1.bf16.msra.mxu0 0
  %346 = vmatprep.subr.bf16.mxu0 0
  %347 = vmatpush1.bf16.msra.mxu0 0
  %348 = vmatprep.subr.bf16.mxu0 0
  %349 = vmatpush1.bf16.msra.mxu0 0
  %350 = vmatprep.subr.bf16.mxu0 0
  %351 = vmatpush1.bf16.msra.mxu0 0
  %352 = vmatprep.subr.bf16.mxu0 0
  %353 = vmatpush1.bf16.msra.mxu0 0
  %354 = vmatprep.subr.bf16.mxu0 0
  %355 = vmatpush1.bf16.msra.mxu0 0
  %356 = vmatprep.subr.bf16.mxu0 0
  %357 = vmatpush1.bf16.msra.mxu0 0
  %358 = vmatprep.subr.bf16.mxu0 0
  %359 = vmatpush1.bf16.msra.mxu0 0
  %360 = vmatprep.subr.bf16.mxu0 0
  %361 = vmatpush1.bf16.msra.mxu0 0
  %362 = vmatprep.subr.bf16.mxu0 0
  %363 = vmatpush1.bf16.msra.mxu0 0
  %364 = vmatprep.mubr.bf16.mxu0 0
  %365 = vmatmul.mubr.bf16.gmra.mrb[0].mxu0 %v271
  %v366 = vpop.f32.mrb[0].mxu0
  %v367 = vadd.f32 %v205, %v366
  %v368 = vpop.f32.mrb[0].mxu0
  %v369 = vadd.f32 %v207, %v368
  %v370 = vpop.f32.mrb[0].mxu0
  %v371 = vpop.f32.mrb[0].mxu0
  %372 = vdwg.mxu0
  %373 = vmatprep.subr.bf16.mxu0 %v289
  %374 = vmatpush1.bf16.msra.mxu0 %v286
  %375 = vmatprep.subr.bf16.mxu0 0
  %376 = vmatpush1.bf16.msra.mxu0 0
  %377 = vmatprep.subr.bf16.mxu0 0
  %378 = vmatpush1.bf16.msra.mxu0 0
  %379 = vmatprep.subr.bf16.mxu0 0
  %380 = vmatpush1.bf16.msra.mxu0 0
  %381 = vmatprep.subr.bf16.mxu0 0
  %382 = vmatpush1.bf16.msra.mxu0 0
  %383 = vmatprep.subr.bf16.mxu0 0
  %384 = vmatpush1.bf16.msra.mxu0 0
  %385 = vmatprep.subr.bf16.mxu0 0
  %386 = vmatpush1.bf16.msra.mxu0 0
  %387 = vmatprep.subr.bf16.mxu0 0
  %388 = vmatpush1.bf16.msra.mxu0 0
  %389 = vmatprep.subr.bf16.mxu0 0
  %390 = vmatpush1.bf16.msra.mxu0 0
  %391 = vmatprep.subr.bf16.mxu0 0
  %392 = vmatpush1.bf16.msra.mxu0 0
  %393 = vmatprep.subr.bf16.mxu0 0
  %394 = vmatpush1.bf16.msra.mxu0 0
  %395 = vmatprep.subr.bf16.mxu0 0
  %396 = vmatpush1.bf16.msra.mxu0 0
  %397 = vmatprep.subr.bf16.mxu0 0
  %398 = vmatpush1.bf16.msra.mxu0 0
  %399 = vmatprep.subr.bf16.mxu0 0
  %400 = vmatpush1.bf16.msra.mxu0 0
  %401 = vmatprep.subr.bf16.mxu0 0
  %402 = vmatpush1.bf16.msra.mxu0 0
  %403 = vmatprep.subr.bf16.mxu0 0
  %404 = vmatpush1.bf16.msra.mxu0 0
  %405 = vmatprep.mubr.bf16.mxu0 0
  %406 = vmatmul.mubr.bf16.gmra.mrb[0].mxu0 %v271
  %v407 = vpop.f32.mrb[0].mxu0
  %v408 = vadd.f32 %v246, %v407
  %v409 = vpop.f32.mrb[0].mxu0
  %v410 = vadd.f32 %v248, %v409
  %v411 = vpop.f32.mrb[0].mxu0
  %v412 = vpop.f32.mrb[0].mxu0
  %413 = vdwg.mxu0
  %s414 = scalar_lea.vmem %s3, 8
  %v415 = vld [vmem:[%s414] sm:$0xf]
  %416 = vrot.lane.b32.xlu0 %v74, 9
  %v417 = vpop.permute.xlu0 %416
  %418 = vrot.lane.b32.xlu0 %v75, 9
  %v419 = vpop.permute.xlu0 %418
  %420 = vrot.lane.b32.xlu0 %v76, 9
  %v421 = vpop.permute.xlu0 %420
  %422 = vrot.lane.b32.xlu0 %v77, 9
  %v423 = vpop.permute.xlu0 %422
  %424 = vrot.lane.b32.xlu0 %v78, 9
  %v425 = vpop.permute.xlu0 %424
  %426 = vrot.lane.b32.xlu0 %v79, 9
  %v427 = vpop.permute.xlu0 %426
  %vm428 = vcmask 72704
  %v429 = vsel %vm428, %v417, %v419
  %v430 = vsel %vm428, %v419, %v421
  %v431 = vsel %vm428, %v421, %v423
  %v432 = vsel %vm428, %v423, %v425
  %v433 = vsel %vm428, %v425, %v427
  %v435 = vsel %vm106, %v415, 0
  %v438 = vsel %vm110, %v429, 0
  %v441 = vsel %vm110, %v430, 0
  %v444 = vsel %vm110, %v431, 0
  %v447 = vsel %vm110, %v432, 0
  %v450 = vsel %vm110, %v433, 0
  %v453 = vsel %vm110, %v427, 0
  %455 = vmatprep.subr.bf16.mxu0 %v441
  %456 = vmatpush1.bf16.msra.mxu0 %v438
  %457 = vmatprep.subr.bf16.mxu0 0
  %458 = vmatpush1.bf16.msra.mxu0 0
  %459 = vmatprep.subr.bf16.mxu0 0
  %460 = vmatpush1.bf16.msra.mxu0 0
  %461 = vmatprep.subr.bf16.mxu0 0
  %462 = vmatpush1.bf16.msra.mxu0 0
  %463 = vmatprep.subr.bf16.mxu0 0
  %464 = vmatpush1.bf16.msra.mxu0 0
  %465 = vmatprep.subr.bf16.mxu0 0
  %466 = vmatpush1.bf16.msra.mxu0 0
  %467 = vmatprep.subr.bf16.mxu0 0
  %468 = vmatpush1.bf16.msra.mxu0 0
  %469 = vmatprep.subr.bf16.mxu0 0
  %470 = vmatpush1.bf16.msra.mxu0 0
  %471 = vmatprep.subr.bf16.mxu0 0
  %472 = vmatpush1.bf16.msra.mxu0 0
  %473 = vmatprep.subr.bf16.mxu0 0
  %474 = vmatpush1.bf16.msra.mxu0 0
  %475 = vmatprep.subr.bf16.mxu0 0
  %476 = vmatpush1.bf16.msra.mxu0 0
  %477 = vmatprep.subr.bf16.mxu0 0
  %478 = vmatpush1.bf16.msra.mxu0 0
  %479 = vmatprep.subr.bf16.mxu0 0
  %480 = vmatpush1.bf16.msra.mxu0 0
  %481 = vmatprep.subr.bf16.mxu0 0
  %482 = vmatpush1.bf16.msra.mxu0 0
  %483 = vmatprep.subr.bf16.mxu0 0
  %484 = vmatpush1.bf16.msra.mxu0 0
  %485 = vmatprep.subr.bf16.mxu0 0
  %486 = vmatpush1.bf16.msra.mxu0 0
  %487 = vmatprep.mubr.bf16.mxu0 0
  %488 = vmatmul.mubr.bf16.gmra.mrb[0].mxu0 %v435
  %v489 = vpop.f32.mrb[0].mxu0
  %v490 = vadd.f32 0.0, %v489
  %v491 = vpop.f32.mrb[0].mxu0
  %v492 = vadd.f32 0.0, %v491
  %v493 = vpop.f32.mrb[0].mxu0
  %v494 = vpop.f32.mrb[0].mxu0
  %495 = vdwg.mxu0
  %496 = vmatprep.subr.bf16.mxu0 %v447
  %497 = vmatpush1.bf16.msra.mxu0 %v444
  %498 = vmatprep.subr.bf16.mxu0 0
  %499 = vmatpush1.bf16.msra.mxu0 0
  %500 = vmatprep.subr.bf16.mxu0 0
  %501 = vmatpush1.bf16.msra.mxu0 0
  %502 = vmatprep.subr.bf16.mxu0 0
  %503 = vmatpush1.bf16.msra.mxu0 0
  %504 = vmatprep.subr.bf16.mxu0 0
  %505 = vmatpush1.bf16.msra.mxu0 0
  %506 = vmatprep.subr.bf16.mxu0 0
  %507 = vmatpush1.bf16.msra.mxu0 0
  %508 = vmatprep.subr.bf16.mxu0 0
  %509 = vmatpush1.bf16.msra.mxu0 0
  %510 = vmatprep.subr.bf16.mxu0 0
  %511 = vmatpush1.bf16.msra.mxu0 0
  %512 = vmatprep.subr.bf16.mxu0 0
  %513 = vmatpush1.bf16.msra.mxu0 0
  %514 = vmatprep.subr.bf16.mxu0 0
  %515 = vmatpush1.bf16.msra.mxu0 0
  %516 = vmatprep.subr.bf16.mxu0 0
  %517 = vmatpush1.bf16.msra.mxu0 0
  %518 = vmatprep.subr.bf16.mxu0 0
  %519 = vmatpush1.bf16.msra.mxu0 0
  %520 = vmatprep.subr.bf16.mxu0 0
  %521 = vmatpush1.bf16.msra.mxu0 0
  %522 = vmatprep.subr.bf16.mxu0 0
  %523 = vmatpush1.bf16.msra.mxu0 0
  %524 = vmatprep.subr.bf16.mxu0 0
  %525 = vmatpush1.bf16.msra.mxu0 0
  %526 = vmatprep.subr.bf16.mxu0 0
  %527 = vmatpush1.bf16.msra.mxu0 0
  %528 = vmatprep.mubr.bf16.mxu0 0
  %529 = vmatmul.mubr.bf16.gmra.mrb[0].mxu0 %v435
  %v530 = vpop.f32.mrb[0].mxu0
  %v531 = vadd.f32 0.0, %v530
  %v532 = vpop.f32.mrb[0].mxu0
  %v533 = vadd.f32 0.0, %v532
  %v534 = vpop.f32.mrb[0].mxu0
  %v535 = vpop.f32.mrb[0].mxu0
  %536 = vdwg.mxu0
  %537 = vmatprep.subr.bf16.mxu0 %v453
  %538 = vmatpush1.bf16.msra.mxu0 %v450
  %539 = vmatprep.subr.bf16.mxu0 0
  %540 = vmatpush1.bf16.msra.mxu0 0
  %541 = vmatprep.subr.bf16.mxu0 0
  %542 = vmatpush1.bf16.msra.mxu0 0
  %543 = vmatprep.subr.bf16.mxu0 0
  %544 = vmatpush1.bf16.msra.mxu0 0
  %545 = vmatprep.subr.bf16.mxu0 0
  %546 = vmatpush1.bf16.msra.mxu0 0
  %547 = vmatprep.subr.bf16.mxu0 0
  %548 = vmatpush1.bf16.msra.mxu0 0
  %549 = vmatprep.subr.bf16.mxu0 0
  %550 = vmatpush1.bf16.msra.mxu0 0
  %551 = vmatprep.subr.bf16.mxu0 0
  %552 = vmatpush1.bf16.msra.mxu0 0
  %553 = vmatprep.subr.bf16.mxu0 0
  %554 = vmatpush1.bf16.msra.mxu0 0
  %555 = vmatprep.subr.bf16.mxu0 0
  %556 = vmatpush1.bf16.msra.mxu0 0
  %557 = vmatprep.subr.bf16.mxu0 0
  %558 = vmatpush1.bf16.msra.mxu0 0
  %559 = vmatprep.subr.bf16.mxu0 0
  %560 = vmatpush1.bf16.msra.mxu0 0
  %561 = vmatprep.subr.bf16.mxu0 0
  %562 = vmatpush1.bf16.msra.mxu0 0
  %563 = vmatprep.subr.bf16.mxu0 0
  %564 = vmatpush1.bf16.msra.mxu0 0
  %565 = vmatprep.subr.bf16.mxu0 0
  %566 = vmatpush1.bf16.msra.mxu0 0
  %567 = vmatprep.subr.bf16.mxu0 0
  %568 = vmatpush1.bf16.msra.mxu0 0
  %569 = vmatprep.mubr.bf16.mxu0 0
  %570 = vmatmul.mubr.bf16.gmra.mrb[0].mxu0 %v435
  %v571 = vpop.f32.mrb[0].mxu0
  %v572 = vadd.f32 0.0, %v571
  %v573 = vpop.f32.mrb[0].mxu0
  %v574 = vadd.f32 0.0, %v573
  %v575 = vpop.f32.mrb[0].mxu0
  %v576 = vpop.f32.mrb[0].mxu0
  %577 = vdwg.mxu0
  %v578 = vadd.f32 %v326, %v490
  %v579 = vadd.f32 %v328, %v492
  %v580 = vadd.f32 %v367, %v531
  %v581 = vadd.f32 %v369, %v533
  %v582 = vadd.f32 %v408, %v572
  %v583 = vadd.f32 %v410, %v574
  %584 = vrot.lane.b32.xlu0 %v68, 8
  %v585 = vpop.permute.xlu0 %584
  %v586 = vsel %vm57, %v585, %v67
  %s587 = scalar_lea.vmem %s3, 12
  %v588 = vld [vmem:[%s587] sm:$0xf]
  %v589 = vpack.c.bf16 %v586, %v586
  %591 = vrot.lane.b32.xlu0 %v75, 121
  %v592 = vpop.permute.xlu0 %591
  %593 = vrot.lane.b32.xlu0 %v76, 121
  %v594 = vpop.permute.xlu0 %593
  %595 = vrot.lane.b32.xlu0 %v77, 121
  %v596 = vpop.permute.xlu0 %595
  %597 = vrot.lane.b32.xlu0 %v78, 121
  %v598 = vpop.permute.xlu0 %597
  %599 = vrot.lane.b32.xlu0 %v79, 121
  %v600 = vpop.permute.xlu0 %599
  %601 = vrot.lane.b32.xlu0 %v589, 121
  %v602 = vpop.permute.xlu0 %601
  %vm603 = vcmask 990208
  %v604 = vsel %vm603, %v592, %v594
  %v605 = vsel %vm603, %v594, %v596
  %v606 = vsel %vm603, %v596, %v598
  %v607 = vsel %vm603, %v598, %v600
  %v608 = vsel %vm603, %v600, %v602
  %v610 = vsel %vm106, %v588, 0
  %v613 = vsel %vm110, %v604, 0
  %v616 = vsel %vm110, %v605, 0
  %v619 = vsel %vm110, %v606, 0
  %v622 = vsel %vm110, %v607, 0
  %v625 = vsel %vm110, %v608, 0
  %v628 = vsel %vm110, %v602, 0
  %630 = vmatprep.subr.bf16.mxu0 %v616
  %631 = vmatpush1.bf16.msra.mxu0 %v613
  %632 = vmatprep.subr.bf16.mxu0 0
  %633 = vmatpush1.bf16.msra.mxu0 0
  %634 = vmatprep.subr.bf16.mxu0 0
  %635 = vmatpush1.bf16.msra.mxu0 0
  %636 = vmatprep.subr.bf16.mxu0 0
  %637 = vmatpush1.bf16.msra.mxu0 0
  %638 = vmatprep.subr.bf16.mxu0 0
  %639 = vmatpush1.bf16.msra.mxu0 0
  %640 = vmatprep.subr.bf16.mxu0 0
  %641 = vmatpush1.bf16.msra.mxu0 0
  %642 = vmatprep.subr.bf16.mxu0 0
  %643 = vmatpush1.bf16.msra.mxu0 0
  %644 = vmatprep.subr.bf16.mxu0 0
  %645 = vmatpush1.bf16.msra.mxu0 0
  %646 = vmatprep.subr.bf16.mxu0 0
  %647 = vmatpush1.bf16.msra.mxu0 0
  %648 = vmatprep.subr.bf16.mxu0 0
  %649 = vmatpush1.bf16.msra.mxu0 0
  %650 = vmatprep.subr.bf16.mxu0 0
  %651 = vmatpush1.bf16.msra.mxu0 0
  %652 = vmatprep.subr.bf16.mxu0 0
  %653 = vmatpush1.bf16.msra.mxu0 0
  %654 = vmatprep.subr.bf16.mxu0 0
  %655 = vmatpush1.bf16.msra.mxu0 0
  %656 = vmatprep.subr.bf16.mxu0 0
  %657 = vmatpush1.bf16.msra.mxu0 0
  %658 = vmatprep.subr.bf16.mxu0 0
  %659 = vmatpush1.bf16.msra.mxu0 0
  %660 = vmatprep.subr.bf16.mxu0 0
  %661 = vmatpush1.bf16.msra.mxu0 0
  %662 = vmatprep.mubr.bf16.mxu0 0
  %663 = vmatmul.mubr.bf16.gmra.mrb[0].mxu0 %v610
  %v664 = vpop.f32.mrb[0].mxu0
  %v665 = vadd.f32 0.0, %v664
  %v666 = vpop.f32.mrb[0].mxu0
  %v667 = vadd.f32 0.0, %v666
  %v668 = vpop.f32.mrb[0].mxu0
  %v669 = vpop.f32.mrb[0].mxu0
  %670 = vdwg.mxu0
  %671 = vmatprep.subr.bf16.mxu0 %v622
  %672 = vmatpush1.bf16.msra.mxu0 %v619
  %673 = vmatprep.subr.bf16.mxu0 0
  %674 = vmatpush1.bf16.msra.mxu0 0
  %675 = vmatprep.subr.bf16.mxu0 0
  %676 = vmatpush1.bf16.msra.mxu0 0
  %677 = vmatprep.subr.bf16.mxu0 0
  %678 = vmatpush1.bf16.msra.mxu0 0
  %679 = vmatprep.subr.bf16.mxu0 0
  %680 = vmatpush1.bf16.msra.mxu0 0
  %681 = vmatprep.subr.bf16.mxu0 0
  %682 = vmatpush1.bf16.msra.mxu0 0
  %683 = vmatprep.subr.bf16.mxu0 0
  %684 = vmatpush1.bf16.msra.mxu0 0
  %685 = vmatprep.subr.bf16.mxu0 0
  %686 = vmatpush1.bf16.msra.mxu0 0
  %687 = vmatprep.subr.bf16.mxu0 0
  %688 = vmatpush1.bf16.msra.mxu0 0
  %689 = vmatprep.subr.bf16.mxu0 0
  %690 = vmatpush1.bf16.msra.mxu0 0
  %691 = vmatprep.subr.bf16.mxu0 0
  %692 = vmatpush1.bf16.msra.mxu0 0
  %693 = vmatprep.subr.bf16.mxu0 0
  %694 = vmatpush1.bf16.msra.mxu0 0
  %695 = vmatprep.subr.bf16.mxu0 0
  %696 = vmatpush1.bf16.msra.mxu0 0
  %697 = vmatprep.subr.bf16.mxu0 0
  %698 = vmatpush1.bf16.msra.mxu0 0
  %699 = vmatprep.subr.bf16.mxu0 0
  %700 = vmatpush1.bf16.msra.mxu0 0
  %701 = vmatprep.subr.bf16.mxu0 0
  %702 = vmatpush1.bf16.msra.mxu0 0
  %703 = vmatprep.mubr.bf16.mxu0 0
  %704 = vmatmul.mubr.bf16.gmra.mrb[0].mxu0 %v610
  %v705 = vpop.f32.mrb[0].mxu0
  %v706 = vadd.f32 0.0, %v705
  %v707 = vpop.f32.mrb[0].mxu0
  %v708 = vadd.f32 0.0, %v707
  %v709 = vpop.f32.mrb[0].mxu0
  %v710 = vpop.f32.mrb[0].mxu0
  %711 = vdwg.mxu0
  %712 = vmatprep.subr.bf16.mxu0 %v628
  %713 = vmatpush1.bf16.msra.mxu0 %v625
  %714 = vmatprep.subr.bf16.mxu0 0
  %715 = vmatpush1.bf16.msra.mxu0 0
  %716 = vmatprep.subr.bf16.mxu0 0
  %717 = vmatpush1.bf16.msra.mxu0 0
  %718 = vmatprep.subr.bf16.mxu0 0
  %719 = vmatpush1.bf16.msra.mxu0 0
  %720 = vmatprep.subr.bf16.mxu0 0
  %721 = vmatpush1.bf16.msra.mxu0 0
  %722 = vmatprep.subr.bf16.mxu0 0
  %723 = vmatpush1.bf16.msra.mxu0 0
  %724 = vmatprep.subr.bf16.mxu0 0
  %725 = vmatpush1.bf16.msra.mxu0 0
  %726 = vmatprep.subr.bf16.mxu0 0
  %727 = vmatpush1.bf16.msra.mxu0 0
  %728 = vmatprep.subr.bf16.mxu0 0
  %729 = vmatpush1.bf16.msra.mxu0 0
  %730 = vmatprep.subr.bf16.mxu0 0
  %731 = vmatpush1.bf16.msra.mxu0 0
  %732 = vmatprep.subr.bf16.mxu0 0
  %733 = vmatpush1.bf16.msra.mxu0 0
  %734 = vmatprep.subr.bf16.mxu0 0
  %735 = vmatpush1.bf16.msra.mxu0 0
  %736 = vmatprep.subr.bf16.mxu0 0
  %737 = vmatpush1.bf16.msra.mxu0 0
  %738 = vmatprep.subr.bf16.mxu0 0
  %739 = vmatpush1.bf16.msra.mxu0 0
  %740 = vmatprep.subr.bf16.mxu0 0
  %741 = vmatpush1.bf16.msra.mxu0 0
  %742 = vmatprep.subr.bf16.mxu0 0
  %743 = vmatpush1.bf16.msra.mxu0 0
  %744 = vmatprep.mubr.bf16.mxu0 0
  %745 = vmatmul.mubr.bf16.gmra.mrb[0].mxu0 %v610
  %v746 = vpop.f32.mrb[0].mxu0
  %v747 = vadd.f32 0.0, %v746
  %v748 = vpop.f32.mrb[0].mxu0
  %v749 = vadd.f32 0.0, %v748
  %v750 = vpop.f32.mrb[0].mxu0
  %v751 = vpop.f32.mrb[0].mxu0
  %752 = vdwg.mxu0
  %v753 = vadd.f32 %v578, %v665
  %v754 = vadd.f32 %v579, %v667
  %v755 = vadd.f32 %v580, %v706
  %v756 = vadd.f32 %v581, %v708
  %v757 = vadd.f32 %v582, %v747
  %v758 = vadd.f32 %v583, %v749
  %s759 = scalar_lea.vmem %s3, 16
  %v760 = vld [vmem:[%s759] sm:$0xf]
  %v761 = vpack.c.bf16 %v51, %v51
  %v762 = vpack.c.bf16 %v52, %v52
  %v763 = vpack.c.bf16 %v53, %v53
  %v764 = vpack.c.bf16 %v54, %v54
  %v765 = vpack.c.bf16 %v56, %v56
  %v767 = vsel %vm106, %v760, 0
  %v770 = vsel %vm110, %v761, 0
  %v773 = vsel %vm110, %v762, 0
  %v776 = vsel %vm110, %v763, 0
  %v779 = vsel %vm110, %v764, 0
  %v782 = vsel %vm110, %v74, 0
  %v785 = vsel %vm110, %v765, 0
  %787 = vmatprep.subr.bf16.mxu0 %v773
  %788 = vmatpush1.bf16.msra.mxu0 %v770
  %789 = vmatprep.subr.bf16.mxu0 0
  %790 = vmatpush1.bf16.msra.mxu0 0
  %791 = vmatprep.subr.bf16.mxu0 0
  %792 = vmatpush1.bf16.msra.mxu0 0
  %793 = vmatprep.subr.bf16.mxu0 0
  %794 = vmatpush1.bf16.msra.mxu0 0
  %795 = vmatprep.subr.bf16.mxu0 0
  %796 = vmatpush1.bf16.msra.mxu0 0
  %797 = vmatprep.subr.bf16.mxu0 0
  %798 = vmatpush1.bf16.msra.mxu0 0
  %799 = vmatprep.subr.bf16.mxu0 0
  %800 = vmatpush1.bf16.msra.mxu0 0
  %801 = vmatprep.subr.bf16.mxu0 0
  %802 = vmatpush1.bf16.msra.mxu0 0
  %803 = vmatprep.subr.bf16.mxu0 0
  %804 = vmatpush1.bf16.msra.mxu0 0
  %805 = vmatprep.subr.bf16.mxu0 0
  %806 = vmatpush1.bf16.msra.mxu0 0
  %807 = vmatprep.subr.bf16.mxu0 0
  %808 = vmatpush1.bf16.msra.mxu0 0
  %809 = vmatprep.subr.bf16.mxu0 0
  %810 = vmatpush1.bf16.msra.mxu0 0
  %811 = vmatprep.subr.bf16.mxu0 0
  %812 = vmatpush1.bf16.msra.mxu0 0
  %813 = vmatprep.subr.bf16.mxu0 0
  %814 = vmatpush1.bf16.msra.mxu0 0
  %815 = vmatprep.subr.bf16.mxu0 0
  %816 = vmatpush1.bf16.msra.mxu0 0
  %817 = vmatprep.subr.bf16.mxu0 0
  %818 = vmatpush1.bf16.msra.mxu0 0
  %819 = vmatprep.mubr.bf16.mxu0 0
  %820 = vmatmul.mubr.bf16.gmra.mrb[0].mxu0 %v767
  %v821 = vpop.f32.mrb[0].mxu0
  %v822 = vadd.f32 0.0, %v821
  %v823 = vpop.f32.mrb[0].mxu0
  %v824 = vadd.f32 0.0, %v823
  %v825 = vpop.f32.mrb[0].mxu0
  %v826 = vpop.f32.mrb[0].mxu0
  %827 = vdwg.mxu0
  %828 = vmatprep.subr.bf16.mxu0 %v779
  %829 = vmatpush1.bf16.msra.mxu0 %v776
  %830 = vmatprep.subr.bf16.mxu0 0
  %831 = vmatpush1.bf16.msra.mxu0 0
  %832 = vmatprep.subr.bf16.mxu0 0
  %833 = vmatpush1.bf16.msra.mxu0 0
  %834 = vmatprep.subr.bf16.mxu0 0
  %835 = vmatpush1.bf16.msra.mxu0 0
  %836 = vmatprep.subr.bf16.mxu0 0
  %837 = vmatpush1.bf16.msra.mxu0 0
  %838 = vmatprep.subr.bf16.mxu0 0
  %839 = vmatpush1.bf16.msra.mxu0 0
  %840 = vmatprep.subr.bf16.mxu0 0
  %841 = vmatpush1.bf16.msra.mxu0 0
  %842 = vmatprep.subr.bf16.mxu0 0
  %843 = vmatpush1.bf16.msra.mxu0 0
  %844 = vmatprep.subr.bf16.mxu0 0
  %845 = vmatpush1.bf16.msra.mxu0 0
  %846 = vmatprep.subr.bf16.mxu0 0
  %847 = vmatpush1.bf16.msra.mxu0 0
  %848 = vmatprep.subr.bf16.mxu0 0
  %849 = vmatpush1.bf16.msra.mxu0 0
  %850 = vmatprep.subr.bf16.mxu0 0
  %851 = vmatpush1.bf16.msra.mxu0 0
  %852 = vmatprep.subr.bf16.mxu0 0
  %853 = vmatpush1.bf16.msra.mxu0 0
  %854 = vmatprep.subr.bf16.mxu0 0
  %855 = vmatpush1.bf16.msra.mxu0 0
  %856 = vmatprep.subr.bf16.mxu0 0
  %857 = vmatpush1.bf16.msra.mxu0 0
  %858 = vmatprep.subr.bf16.mxu0 0
  %859 = vmatpush1.bf16.msra.mxu0 0
  %860 = vmatprep.mubr.bf16.mxu0 0
  %861 = vmatmul.mubr.bf16.gmra.mrb[0].mxu0 %v767
  %v862 = vpop.f32.mrb[0].mxu0
  %v863 = vadd.f32 0.0, %v862
  %v864 = vpop.f32.mrb[0].mxu0
  %v865 = vadd.f32 0.0, %v864
  %v866 = vpop.f32.mrb[0].mxu0
  %v867 = vpop.f32.mrb[0].mxu0
  %868 = vdwg.mxu0
  %869 = vmatprep.subr.bf16.mxu0 %v785
  %870 = vmatpush1.bf16.msra.mxu0 %v782
  %871 = vmatprep.subr.bf16.mxu0 0
  %872 = vmatpush1.bf16.msra.mxu0 0
  %873 = vmatprep.subr.bf16.mxu0 0
  %874 = vmatpush1.bf16.msra.mxu0 0
  %875 = vmatprep.subr.bf16.mxu0 0
  %876 = vmatpush1.bf16.msra.mxu0 0
  %877 = vmatprep.subr.bf16.mxu0 0
  %878 = vmatpush1.bf16.msra.mxu0 0
  %879 = vmatprep.subr.bf16.mxu0 0
  %880 = vmatpush1.bf16.msra.mxu0 0
  %881 = vmatprep.subr.bf16.mxu0 0
  %882 = vmatpush1.bf16.msra.mxu0 0
  %883 = vmatprep.subr.bf16.mxu0 0
  %884 = vmatpush1.bf16.msra.mxu0 0
  %885 = vmatprep.subr.bf16.mxu0 0
  %886 = vmatpush1.bf16.msra.mxu0 0
  %887 = vmatprep.subr.bf16.mxu0 0
  %888 = vmatpush1.bf16.msra.mxu0 0
  %889 = vmatprep.subr.bf16.mxu0 0
  %890 = vmatpush1.bf16.msra.mxu0 0
  %891 = vmatprep.subr.bf16.mxu0 0
  %892 = vmatpush1.bf16.msra.mxu0 0
  %893 = vmatprep.subr.bf16.mxu0 0
  %894 = vmatpush1.bf16.msra.mxu0 0
  %895 = vmatprep.subr.bf16.mxu0 0
  %896 = vmatpush1.bf16.msra.mxu0 0
  %897 = vmatprep.subr.bf16.mxu0 0
  %898 = vmatpush1.bf16.msra.mxu0 0
  %899 = vmatprep.subr.bf16.mxu0 0
  %900 = vmatpush1.bf16.msra.mxu0 0
  %901 = vmatprep.mubr.bf16.mxu0 0
  %902 = vmatmul.mubr.bf16.gmra.mrb[0].mxu0 %v767
  %v903 = vpop.f32.mrb[0].mxu0
  %v904 = vadd.f32 0.0, %v903
  %v905 = vpop.f32.mrb[0].mxu0
  %v906 = vadd.f32 0.0, %v905
  %v907 = vpop.f32.mrb[0].mxu0
  %v908 = vpop.f32.mrb[0].mxu0
  %909 = vdwg.mxu0
  %v910 = vadd.f32 %v753, %v822
  %v911 = vadd.f32 %v754, %v824
  %v912 = vadd.f32 %v755, %v863
  %v913 = vadd.f32 %v756, %v865
  %v914 = vadd.f32 %v757, %v904
  %v915 = vadd.f32 %v758, %v906
  %s916 = scalar_lea.vmem %s3, 20
  %v917 = vld [vmem:[%s916] sm:$0xf]
  %922 = vrot.lane.b32.xlu0 %v761, 127
  %v923 = vpop.permute.xlu0 %922
  %924 = vrot.lane.b32.xlu0 %v762, 127
  %v925 = vpop.permute.xlu0 %924
  %926 = vrot.lane.b32.xlu0 %v763, 127
  %v927 = vpop.permute.xlu0 %926
  %928 = vrot.lane.b32.xlu0 %v764, 127
  %v929 = vpop.permute.xlu0 %928
  %930 = vrot.lane.b32.xlu0 %v74, 127
  %v931 = vpop.permute.xlu0 %930
  %932 = vrot.lane.b32.xlu0 %v75, 127
  %v933 = vpop.permute.xlu0 %932
  %vm934 = vcmask 1039360
  %v935 = vsel %vm934, %v923, %v925
  %v936 = vsel %vm934, %v925, %v927
  %v937 = vsel %vm934, %v927, %v929
  %v938 = vsel %vm934, %v929, %v931
  %v939 = vsel %vm934, %v931, %v933
  %v941 = vsel %vm106, %v917, 0
  %v944 = vsel %vm110, %v935, 0
  %v947 = vsel %vm110, %v936, 0
  %v950 = vsel %vm110, %v937, 0
  %v953 = vsel %vm110, %v938, 0
  %v956 = vsel %vm110, %v939, 0
  %v959 = vsel %vm110, %v933, 0
  %961 = vmatprep.subr.bf16.mxu0 %v947
  %962 = vmatpush1.bf16.msra.mxu0 %v944
  %963 = vmatprep.subr.bf16.mxu0 0
  %964 = vmatpush1.bf16.msra.mxu0 0
  %965 = vmatprep.subr.bf16.mxu0 0
  %966 = vmatpush1.bf16.msra.mxu0 0
  %967 = vmatprep.subr.bf16.mxu0 0
  %968 = vmatpush1.bf16.msra.mxu0 0
  %969 = vmatprep.subr.bf16.mxu0 0
  %970 = vmatpush1.bf16.msra.mxu0 0
  %971 = vmatprep.subr.bf16.mxu0 0
  %972 = vmatpush1.bf16.msra.mxu0 0
  %973 = vmatprep.subr.bf16.mxu0 0
  %974 = vmatpush1.bf16.msra.mxu0 0
  %975 = vmatprep.subr.bf16.mxu0 0
  %976 = vmatpush1.bf16.msra.mxu0 0
  %977 = vmatprep.subr.bf16.mxu0 0
  %978 = vmatpush1.bf16.msra.mxu0 0
  %979 = vmatprep.subr.bf16.mxu0 0
  %980 = vmatpush1.bf16.msra.mxu0 0
  %981 = vmatprep.subr.bf16.mxu0 0
  %982 = vmatpush1.bf16.msra.mxu0 0
  %983 = vmatprep.subr.bf16.mxu0 0
  %984 = vmatpush1.bf16.msra.mxu0 0
  %985 = vmatprep.subr.bf16.mxu0 0
  %986 = vmatpush1.bf16.msra.mxu0 0
  %987 = vmatprep.subr.bf16.mxu0 0
  %988 = vmatpush1.bf16.msra.mxu0 0
  %989 = vmatprep.subr.bf16.mxu0 0
  %990 = vmatpush1.bf16.msra.mxu0 0
  %991 = vmatprep.subr.bf16.mxu0 0
  %992 = vmatpush1.bf16.msra.mxu0 0
  %993 = vmatprep.mubr.bf16.mxu0 0
  %994 = vmatmul.mubr.bf16.gmra.mrb[0].mxu0 %v941
  %v995 = vpop.f32.mrb[0].mxu0
  %v996 = vadd.f32 0.0, %v995
  %v997 = vpop.f32.mrb[0].mxu0
  %v998 = vadd.f32 0.0, %v997
  %v999 = vpop.f32.mrb[0].mxu0
  %v1000 = vpop.f32.mrb[0].mxu0
  %1001 = vdwg.mxu0
  %1002 = vmatprep.subr.bf16.mxu0 %v953
  %1003 = vmatpush1.bf16.msra.mxu0 %v950
  %1004 = vmatprep.subr.bf16.mxu0 0
  %1005 = vmatpush1.bf16.msra.mxu0 0
  %1006 = vmatprep.subr.bf16.mxu0 0
  %1007 = vmatpush1.bf16.msra.mxu0 0
  %1008 = vmatprep.subr.bf16.mxu0 0
  %1009 = vmatpush1.bf16.msra.mxu0 0
  %1010 = vmatprep.subr.bf16.mxu0 0
  %1011 = vmatpush1.bf16.msra.mxu0 0
  %1012 = vmatprep.subr.bf16.mxu0 0
  %1013 = vmatpush1.bf16.msra.mxu0 0
  %1014 = vmatprep.subr.bf16.mxu0 0
  %1015 = vmatpush1.bf16.msra.mxu0 0
  %1016 = vmatprep.subr.bf16.mxu0 0
  %1017 = vmatpush1.bf16.msra.mxu0 0
  %1018 = vmatprep.subr.bf16.mxu0 0
  %1019 = vmatpush1.bf16.msra.mxu0 0
  %1020 = vmatprep.subr.bf16.mxu0 0
  %1021 = vmatpush1.bf16.msra.mxu0 0
  %1022 = vmatprep.subr.bf16.mxu0 0
  %1023 = vmatpush1.bf16.msra.mxu0 0
  %1024 = vmatprep.subr.bf16.mxu0 0
  %1025 = vmatpush1.bf16.msra.mxu0 0
  %1026 = vmatprep.subr.bf16.mxu0 0
  %1027 = vmatpush1.bf16.msra.mxu0 0
  %1028 = vmatprep.subr.bf16.mxu0 0
  %1029 = vmatpush1.bf16.msra.mxu0 0
  %1030 = vmatprep.subr.bf16.mxu0 0
  %1031 = vmatpush1.bf16.msra.mxu0 0
  %1032 = vmatprep.subr.bf16.mxu0 0
  %1033 = vmatpush1.bf16.msra.mxu0 0
  %1034 = vmatprep.mubr.bf16.mxu0 0
  %1035 = vmatmul.mubr.bf16.gmra.mrb[0].mxu0 %v941
  %v1036 = vpop.f32.mrb[0].mxu0
  %v1037 = vadd.f32 0.0, %v1036
  %v1038 = vpop.f32.mrb[0].mxu0
  %v1039 = vadd.f32 0.0, %v1038
  %v1040 = vpop.f32.mrb[0].mxu0
  %v1041 = vpop.f32.mrb[0].mxu0
  %1042 = vdwg.mxu0
  %1043 = vmatprep.subr.bf16.mxu0 %v959
  %1044 = vmatpush1.bf16.msra.mxu0 %v956
  %1045 = vmatprep.subr.bf16.mxu0 0
  %1046 = vmatpush1.bf16.msra.mxu0 0
  %1047 = vmatprep.subr.bf16.mxu0 0
  %1048 = vmatpush1.bf16.msra.mxu0 0
  %1049 = vmatprep.subr.bf16.mxu0 0
  %1050 = vmatpush1.bf16.msra.mxu0 0
  %1051 = vmatprep.subr.bf16.mxu0 0
  %1052 = vmatpush1.bf16.msra.mxu0 0
  %1053 = vmatprep.subr.bf16.mxu0 0
  %1054 = vmatpush1.bf16.msra.mxu0 0
  %1055 = vmatprep.subr.bf16.mxu0 0
  %1056 = vmatpush1.bf16.msra.mxu0 0
  %1057 = vmatprep.subr.bf16.mxu0 0
  %1058 = vmatpush1.bf16.msra.mxu0 0
  %1059 = vmatprep.subr.bf16.mxu0 0
  %1060 = vmatpush1.bf16.msra.mxu0 0
  %1061 = vmatprep.subr.bf16.mxu0 0
  %1062 = vmatpush1.bf16.msra.mxu0 0
  %1063 = vmatprep.subr.bf16.mxu0 0
  %1064 = vmatpush1.bf16.msra.mxu0 0
  %1065 = vmatprep.subr.bf16.mxu0 0
  %1066 = vmatpush1.bf16.msra.mxu0 0
  %1067 = vmatprep.subr.bf16.mxu0 0
  %1068 = vmatpush1.bf16.msra.mxu0 0
  %1069 = vmatprep.subr.bf16.mxu0 0
  %1070 = vmatpush1.bf16.msra.mxu0 0
  %1071 = vmatprep.subr.bf16.mxu0 0
  %1072 = vmatpush1.bf16.msra.mxu0 0
  %1073 = vmatprep.subr.bf16.mxu0 0
  %1074 = vmatpush1.bf16.msra.mxu0 0
  %1075 = vmatprep.mubr.bf16.mxu0 0
  %1076 = vmatmul.mubr.bf16.gmra.mrb[0].mxu0 %v941
  %v1077 = vpop.f32.mrb[0].mxu0
  %v1078 = vadd.f32 0.0, %v1077
  %v1079 = vpop.f32.mrb[0].mxu0
  %v1080 = vadd.f32 0.0, %v1079
  %v1081 = vpop.f32.mrb[0].mxu0
  %v1082 = vpop.f32.mrb[0].mxu0
  %1083 = vdwg.mxu0
  %v1084 = vadd.f32 %v910, %v996
  %v1085 = vadd.f32 %v911, %v998
  %v1086 = vadd.f32 %v912, %v1037
  %v1087 = vadd.f32 %v913, %v1039
  %v1088 = vadd.f32 %v914, %v1078
  %v1089 = vadd.f32 %v915, %v1080
  %s1090 = scalar_lea.vmem %s3, 24
  %v1091 = vld [vmem:[%s1090] sm:$0xf]
  %1092 = vrot.lane.b32.xlu0 %v761, 111
  %v1093 = vpop.permute.xlu0 %1092
  %1094 = vrot.lane.b32.xlu0 %v762, 111
  %v1095 = vpop.permute.xlu0 %1094
  %1096 = vrot.lane.b32.xlu0 %v763, 111
  %v1097 = vpop.permute.xlu0 %1096
  %1098 = vrot.lane.b32.xlu0 %v764, 111
  %v1099 = vpop.permute.xlu0 %1098
  %1100 = vrot.lane.b32.xlu0 %v74, 111
  %v1101 = vpop.permute.xlu0 %1100
  %1102 = vrot.lane.b32.xlu0 %v75, 111
  %v1103 = vpop.permute.xlu0 %1102
  %vm1104 = vcmask 908288
  %v1105 = vsel %vm1104, %v1093, %v1095
  %v1106 = vsel %vm1104, %v1095, %v1097
  %v1107 = vsel %vm1104, %v1097, %v1099
  %v1108 = vsel %vm1104, %v1099, %v1101
  %v1109 = vsel %vm1104, %v1101, %v1103
  %v1111 = vsel %vm106, %v1091, 0
  %v1114 = vsel %vm110, %v1105, 0
  %v1117 = vsel %vm110, %v1106, 0
  %v1120 = vsel %vm110, %v1107, 0
  %v1123 = vsel %vm110, %v1108, 0
  %v1126 = vsel %vm110, %v1109, 0
  %v1129 = vsel %vm110, %v1103, 0
  %1131 = vmatprep.subr.bf16.mxu0 %v1117
  %1132 = vmatpush1.bf16.msra.mxu0 %v1114
  %1133 = vmatprep.subr.bf16.mxu0 0
  %1134 = vmatpush1.bf16.msra.mxu0 0
  %1135 = vmatprep.subr.bf16.mxu0 0
  %1136 = vmatpush1.bf16.msra.mxu0 0
  %1137 = vmatprep.subr.bf16.mxu0 0
  %1138 = vmatpush1.bf16.msra.mxu0 0
  %1139 = vmatprep.subr.bf16.mxu0 0
  %1140 = vmatpush1.bf16.msra.mxu0 0
  %1141 = vmatprep.subr.bf16.mxu0 0
  %1142 = vmatpush1.bf16.msra.mxu0 0
  %1143 = vmatprep.subr.bf16.mxu0 0
  %1144 = vmatpush1.bf16.msra.mxu0 0
  %1145 = vmatprep.subr.bf16.mxu0 0
  %1146 = vmatpush1.bf16.msra.mxu0 0
  %1147 = vmatprep.subr.bf16.mxu0 0
  %1148 = vmatpush1.bf16.msra.mxu0 0
  %1149 = vmatprep.subr.bf16.mxu0 0
  %1150 = vmatpush1.bf16.msra.mxu0 0
  %1151 = vmatprep.subr.bf16.mxu0 0
  %1152 = vmatpush1.bf16.msra.mxu0 0
  %1153 = vmatprep.subr.bf16.mxu0 0
  %1154 = vmatpush1.bf16.msra.mxu0 0
  %1155 = vmatprep.subr.bf16.mxu0 0
  %1156 = vmatpush1.bf16.msra.mxu0 0
  %1157 = vmatprep.subr.bf16.mxu0 0
  %1158 = vmatpush1.bf16.msra.mxu0 0
  %1159 = vmatprep.subr.bf16.mxu0 0
  %1160 = vmatpush1.bf16.msra.mxu0 0
  %1161 = vmatprep.subr.bf16.mxu0 0
  %1162 = vmatpush1.bf16.msra.mxu0 0
  %1163 = vmatprep.mubr.bf16.mxu0 0
  %1164 = vmatmul.mubr.bf16.gmra.mrb[0].mxu0 %v1111
  %v1165 = vpop.f32.mrb[0].mxu0
  %v1166 = vadd.f32 0.0, %v1165
  %v1167 = vpop.f32.mrb[0].mxu0
  %v1168 = vadd.f32 0.0, %v1167
  %v1169 = vpop.f32.mrb[0].mxu0
  %v1170 = vpop.f32.mrb[0].mxu0
  %1171 = vdwg.mxu0
  %1172 = vmatprep.subr.bf16.mxu0 %v1123
  %1173 = vmatpush1.bf16.msra.mxu0 %v1120
  %1174 = vmatprep.subr.bf16.mxu0 0
  %1175 = vmatpush1.bf16.msra.mxu0 0
  %1176 = vmatprep.subr.bf16.mxu0 0
  %1177 = vmatpush1.bf16.msra.mxu0 0
  %1178 = vmatprep.subr.bf16.mxu0 0
  %1179 = vmatpush1.bf16.msra.mxu0 0
  %1180 = vmatprep.subr.bf16.mxu0 0
  %1181 = vmatpush1.bf16.msra.mxu0 0
  %1182 = vmatprep.subr.bf16.mxu0 0
  %1183 = vmatpush1.bf16.msra.mxu0 0
  %1184 = vmatprep.subr.bf16.mxu0 0
  %1185 = vmatpush1.bf16.msra.mxu0 0
  %1186 = vmatprep.subr.bf16.mxu0 0
  %1187 = vmatpush1.bf16.msra.mxu0 0
  %1188 = vmatprep.subr.bf16.mxu0 0
  %1189 = vmatpush1.bf16.msra.mxu0 0
  %1190 = vmatprep.subr.bf16.mxu0 0
  %1191 = vmatpush1.bf16.msra.mxu0 0
  %1192 = vmatprep.subr.bf16.mxu0 0
  %1193 = vmatpush1.bf16.msra.mxu0 0
  %1194 = vmatprep.subr.bf16.mxu0 0
  %1195 = vmatpush1.bf16.msra.mxu0 0
  %1196 = vmatprep.subr.bf16.mxu0 0
  %1197 = vmatpush1.bf16.msra.mxu0 0
  %1198 = vmatprep.subr.bf16.mxu0 0
  %1199 = vmatpush1.bf16.msra.mxu0 0
  %1200 = vmatprep.subr.bf16.mxu0 0
  %1201 = vmatpush1.bf16.msra.mxu0 0
  %1202 = vmatprep.subr.bf16.mxu0 0
  %1203 = vmatpush1.bf16.msra.mxu0 0
  %1204 = vmatprep.mubr.bf16.mxu0 0
  %1205 = vmatmul.mubr.bf16.gmra.mrb[0].mxu0 %v1111
  %v1206 = vpop.f32.mrb[0].mxu0
  %v1207 = vadd.f32 0.0, %v1206
  %v1208 = vpop.f32.mrb[0].mxu0
  %v1209 = vadd.f32 0.0, %v1208
  %v1210 = vpop.f32.mrb[0].mxu0
  %v1211 = vpop.f32.mrb[0].mxu0
  %1212 = vdwg.mxu0
  %1213 = vmatprep.subr.bf16.mxu0 %v1129
  %1214 = vmatpush1.bf16.msra.mxu0 %v1126
  %1215 = vmatprep.subr.bf16.mxu0 0
  %1216 = vmatpush1.bf16.msra.mxu0 0
  %1217 = vmatprep.subr.bf16.mxu0 0
  %1218 = vmatpush1.bf16.msra.mxu0 0
  %1219 = vmatprep.subr.bf16.mxu0 0
  %1220 = vmatpush1.bf16.msra.mxu0 0
  %1221 = vmatprep.subr.bf16.mxu0 0
  %1222 = vmatpush1.bf16.msra.mxu0 0
  %1223 = vmatprep.subr.bf16.mxu0 0
  %1224 = vmatpush1.bf16.msra.mxu0 0
  %1225 = vmatprep.subr.bf16.mxu0 0
  %1226 = vmatpush1.bf16.msra.mxu0 0
  %1227 = vmatprep.subr.bf16.mxu0 0
  %1228 = vmatpush1.bf16.msra.mxu0 0
  %1229 = vmatprep.subr.bf16.mxu0 0
  %1230 = vmatpush1.bf16.msra.mxu0 0
  %1231 = vmatprep.subr.bf16.mxu0 0
  %1232 = vmatpush1.bf16.msra.mxu0 0
  %1233 = vmatprep.subr.bf16.mxu0 0
  %1234 = vmatpush1.bf16.msra.mxu0 0
  %1235 = vmatprep.subr.bf16.mxu0 0
  %1236 = vmatpush1.bf16.msra.mxu0 0
  %1237 = vmatprep.subr.bf16.mxu0 0
  %1238 = vmatpush1.bf16.msra.mxu0 0
  %1239 = vmatprep.subr.bf16.mxu0 0
  %1240 = vmatpush1.bf16.msra.mxu0 0
  %1241 = vmatprep.subr.bf16.mxu0 0
  %1242 = vmatpush1.bf16.msra.mxu0 0
  %1243 = vmatprep.subr.bf16.mxu0 0
  %1244 = vmatpush1.bf16.msra.mxu0 0
  %1245 = vmatprep.mubr.bf16.mxu0 0
  %1246 = vmatmul.mubr.bf16.gmra.mrb[0].mxu0 %v1111
  %v1247 = vpop.f32.mrb[0].mxu0
  %v1248 = vadd.f32 0.0, %v1247
  %v1249 = vpop.f32.mrb[0].mxu0
  %v1250 = vadd.f32 0.0, %v1249
  %v1251 = vpop.f32.mrb[0].mxu0
  %v1252 = vpop.f32.mrb[0].mxu0
  %1253 = vdwg.mxu0
  %v1254 = vadd.f32 %v1084, %v1166
  %v1255 = vadd.f32 %v1085, %v1168
  %v1256 = vadd.f32 %v1086, %v1207
  %v1257 = vadd.f32 %v1087, %v1209
  %v1258 = vadd.f32 %v1088, %v1248
  %v1259 = vadd.f32 %v1089, %v1250
  %s1260 = scalar_lea.vmem %s3, 28
  %v1261 = vld [vmem:[%s1260] sm:$0xf]
  %1262 = vrot.lane.b32.xlu0 %v761, 110
  %v1263 = vpop.permute.xlu0 %1262
  %1264 = vrot.lane.b32.xlu0 %v762, 110
  %v1265 = vpop.permute.xlu0 %1264
  %1266 = vrot.lane.b32.xlu0 %v763, 110
  %v1267 = vpop.permute.xlu0 %1266
  %1268 = vrot.lane.b32.xlu0 %v764, 110
  %v1269 = vpop.permute.xlu0 %1268
  %1270 = vrot.lane.b32.xlu0 %v74, 110
  %v1271 = vpop.permute.xlu0 %1270
  %1272 = vrot.lane.b32.xlu0 %v75, 110
  %v1273 = vpop.permute.xlu0 %1272
  %vm1274 = vcmask 900096
  %v1275 = vsel %vm1274, %v1263, %v1265
  %v1276 = vsel %vm1274, %v1265, %v1267
  %v1277 = vsel %vm1274, %v1267, %v1269
  %v1278 = vsel %vm1274, %v1269, %v1271
  %v1279 = vsel %vm1274, %v1271, %v1273
  %v1281 = vsel %vm106, %v1261, 0
  %v1284 = vsel %vm110, %v1275, 0
  %v1287 = vsel %vm110, %v1276, 0
  %v1290 = vsel %vm110, %v1277, 0
  %v1293 = vsel %vm110, %v1278, 0
  %v1296 = vsel %vm110, %v1279, 0
  %v1299 = vsel %vm110, %v1273, 0
  %1301 = vmatprep.subr.bf16.mxu0 %v1287
  %1302 = vmatpush1.bf16.msra.mxu0 %v1284
  %1303 = vmatprep.subr.bf16.mxu0 0
  %1304 = vmatpush1.bf16.msra.mxu0 0
  %1305 = vmatprep.subr.bf16.mxu0 0
  %1306 = vmatpush1.bf16.msra.mxu0 0
  %1307 = vmatprep.subr.bf16.mxu0 0
  %1308 = vmatpush1.bf16.msra.mxu0 0
  %1309 = vmatprep.subr.bf16.mxu0 0
  %1310 = vmatpush1.bf16.msra.mxu0 0
  %1311 = vmatprep.subr.bf16.mxu0 0
  %1312 = vmatpush1.bf16.msra.mxu0 0
  %1313 = vmatprep.subr.bf16.mxu0 0
  %1314 = vmatpush1.bf16.msra.mxu0 0
  %1315 = vmatprep.subr.bf16.mxu0 0
  %1316 = vmatpush1.bf16.msra.mxu0 0
  %1317 = vmatprep.subr.bf16.mxu0 0
  %1318 = vmatpush1.bf16.msra.mxu0 0
  %1319 = vmatprep.subr.bf16.mxu0 0
  %1320 = vmatpush1.bf16.msra.mxu0 0
  %1321 = vmatprep.subr.bf16.mxu0 0
  %1322 = vmatpush1.bf16.msra.mxu0 0
  %1323 = vmatprep.subr.bf16.mxu0 0
  %1324 = vmatpush1.bf16.msra.mxu0 0
  %1325 = vmatprep.subr.bf16.mxu0 0
  %1326 = vmatpush1.bf16.msra.mxu0 0
  %1327 = vmatprep.subr.bf16.mxu0 0
  %1328 = vmatpush1.bf16.msra.mxu0 0
  %1329 = vmatprep.subr.bf16.mxu0 0
  %1330 = vmatpush1.bf16.msra.mxu0 0
  %1331 = vmatprep.subr.bf16.mxu0 0
  %1332 = vmatpush1.bf16.msra.mxu0 0
  %1333 = vmatprep.mubr.bf16.mxu0 0
  %1334 = vmatmul.mubr.bf16.gmra.mrb[0].mxu0 %v1281
  %v1335 = vpop.f32.mrb[0].mxu0
  %v1336 = vadd.f32 0.0, %v1335
  %v1337 = vpop.f32.mrb[0].mxu0
  %v1338 = vadd.f32 0.0, %v1337
  %v1339 = vpop.f32.mrb[0].mxu0
  %v1340 = vpop.f32.mrb[0].mxu0
  %1341 = vdwg.mxu0
  %1342 = vmatprep.subr.bf16.mxu0 %v1293
  %1343 = vmatpush1.bf16.msra.mxu0 %v1290
  %1344 = vmatprep.subr.bf16.mxu0 0
  %1345 = vmatpush1.bf16.msra.mxu0 0
  %1346 = vmatprep.subr.bf16.mxu0 0
  %1347 = vmatpush1.bf16.msra.mxu0 0
  %1348 = vmatprep.subr.bf16.mxu0 0
  %1349 = vmatpush1.bf16.msra.mxu0 0
  %1350 = vmatprep.subr.bf16.mxu0 0
  %1351 = vmatpush1.bf16.msra.mxu0 0
  %1352 = vmatprep.subr.bf16.mxu0 0
  %1353 = vmatpush1.bf16.msra.mxu0 0
  %1354 = vmatprep.subr.bf16.mxu0 0
  %1355 = vmatpush1.bf16.msra.mxu0 0
  %1356 = vmatprep.subr.bf16.mxu0 0
  %1357 = vmatpush1.bf16.msra.mxu0 0
  %1358 = vmatprep.subr.bf16.mxu0 0
  %1359 = vmatpush1.bf16.msra.mxu0 0
  %1360 = vmatprep.subr.bf16.mxu0 0
  %1361 = vmatpush1.bf16.msra.mxu0 0
  %1362 = vmatprep.subr.bf16.mxu0 0
  %1363 = vmatpush1.bf16.msra.mxu0 0
  %1364 = vmatprep.subr.bf16.mxu0 0
  %1365 = vmatpush1.bf16.msra.mxu0 0
  %1366 = vmatprep.subr.bf16.mxu0 0
  %1367 = vmatpush1.bf16.msra.mxu0 0
  %1368 = vmatprep.subr.bf16.mxu0 0
  %1369 = vmatpush1.bf16.msra.mxu0 0
  %1370 = vmatprep.subr.bf16.mxu0 0
  %1371 = vmatpush1.bf16.msra.mxu0 0
  %1372 = vmatprep.subr.bf16.mxu0 0
  %1373 = vmatpush1.bf16.msra.mxu0 0
  %1374 = vmatprep.mubr.bf16.mxu0 0
  %1375 = vmatmul.mubr.bf16.gmra.mrb[0].mxu0 %v1281
  %v1376 = vpop.f32.mrb[0].mxu0
  %v1377 = vadd.f32 0.0, %v1376
  %v1378 = vpop.f32.mrb[0].mxu0
  %v1379 = vadd.f32 0.0, %v1378
  %v1380 = vpop.f32.mrb[0].mxu0
  %v1381 = vpop.f32.mrb[0].mxu0
  %1382 = vdwg.mxu0
  %1383 = vmatprep.subr.bf16.mxu0 %v1299
  %1384 = vmatpush1.bf16.msra.mxu0 %v1296
  %1385 = vmatprep.subr.bf16.mxu0 0
  %1386 = vmatpush1.bf16.msra.mxu0 0
  %1387 = vmatprep.subr.bf16.mxu0 0
  %1388 = vmatpush1.bf16.msra.mxu0 0
  %1389 = vmatprep.subr.bf16.mxu0 0
  %1390 = vmatpush1.bf16.msra.mxu0 0
  %1391 = vmatprep.subr.bf16.mxu0 0
  %1392 = vmatpush1.bf16.msra.mxu0 0
  %1393 = vmatprep.subr.bf16.mxu0 0
  %1394 = vmatpush1.bf16.msra.mxu0 0
  %1395 = vmatprep.subr.bf16.mxu0 0
  %1396 = vmatpush1.bf16.msra.mxu0 0
  %1397 = vmatprep.subr.bf16.mxu0 0
  %1398 = vmatpush1.bf16.msra.mxu0 0
  %1399 = vmatprep.subr.bf16.mxu0 0
  %1400 = vmatpush1.bf16.msra.mxu0 0
  %1401 = vmatprep.subr.bf16.mxu0 0
  %1402 = vmatpush1.bf16.msra.mxu0 0
  %1403 = vmatprep.subr.bf16.mxu0 0
  %1404 = vmatpush1.bf16.msra.mxu0 0
  %1405 = vmatprep.subr.bf16.mxu0 0
  %1406 = vmatpush1.bf16.msra.mxu0 0
  %1407 = vmatprep.subr.bf16.mxu0 0
  %1408 = vmatpush1.bf16.msra.mxu0 0
  %1409 = vmatprep.subr.bf16.mxu0 0
  %1410 = vmatpush1.bf16.msra.mxu0 0
  %1411 = vmatprep.subr.bf16.mxu0 0
  %1412 = vmatpush1.bf16.msra.mxu0 0
  %1413 = vmatprep.subr.bf16.mxu0 0
  %1414 = vmatpush1.bf16.msra.mxu0 0
  %1415 = vmatprep.mubr.bf16.mxu0 0
  %1416 = vmatmul.mubr.bf16.gmra.mrb[0].mxu0 %v1281
  %v1417 = vpop.f32.mrb[0].mxu0
  %v1418 = vadd.f32 0.0, %v1417
  %v1419 = vpop.f32.mrb[0].mxu0
  %v1420 = vadd.f32 0.0, %v1419
  %v1421 = vpop.f32.mrb[0].mxu0
  %v1422 = vpop.f32.mrb[0].mxu0
  %1423 = vdwg.mxu0
  %v1424 = vadd.f32 %v1254, %v1336
  %v1425 = vadd.f32 %v1255, %v1338
  %v1426 = vadd.f32 %v1256, %v1377
  %v1427 = vadd.f32 %v1257, %v1379
  %v1428 = vadd.f32 %v1258, %v1418
  %v1429 = vadd.f32 %v1259, %v1420
  %s1430 = scalar_lea.vmem %s3, 32
  %v1431 = vld [vmem:[%s1430] sm:$0xf]
  %1432 = vrot.lane.b32.xlu0 %v761, 109
  %v1433 = vpop.permute.xlu0 %1432
  %1434 = vrot.lane.b32.xlu0 %v762, 109
  %v1435 = vpop.permute.xlu0 %1434
  %1436 = vrot.lane.b32.xlu0 %v763, 109
  %v1437 = vpop.permute.xlu0 %1436
  %1438 = vrot.lane.b32.xlu0 %v764, 109
  %v1439 = vpop.permute.xlu0 %1438
  %1440 = vrot.lane.b32.xlu0 %v74, 109
  %v1441 = vpop.permute.xlu0 %1440
  %1442 = vrot.lane.b32.xlu0 %v75, 109
  %v1443 = vpop.permute.xlu0 %1442
  %vm1444 = vcmask 891904
  %v1445 = vsel %vm1444, %v1433, %v1435
  %v1446 = vsel %vm1444, %v1435, %v1437
  %v1447 = vsel %vm1444, %v1437, %v1439
  %v1448 = vsel %vm1444, %v1439, %v1441
  %v1449 = vsel %vm1444, %v1441, %v1443
  %v1451 = vsel %vm106, %v1431, 0
  %v1454 = vsel %vm110, %v1445, 0
  %v1457 = vsel %vm110, %v1446, 0
  %v1460 = vsel %vm110, %v1447, 0
  %v1463 = vsel %vm110, %v1448, 0
  %v1466 = vsel %vm110, %v1449, 0
  %v1469 = vsel %vm110, %v1443, 0
  %1471 = vmatprep.subr.bf16.mxu0 %v1457
  %1472 = vmatpush1.bf16.msra.mxu0 %v1454
  %1473 = vmatprep.subr.bf16.mxu0 0
  %1474 = vmatpush1.bf16.msra.mxu0 0
  %1475 = vmatprep.subr.bf16.mxu0 0
  %1476 = vmatpush1.bf16.msra.mxu0 0
  %1477 = vmatprep.subr.bf16.mxu0 0
  %1478 = vmatpush1.bf16.msra.mxu0 0
  %1479 = vmatprep.subr.bf16.mxu0 0
  %1480 = vmatpush1.bf16.msra.mxu0 0
  %1481 = vmatprep.subr.bf16.mxu0 0
  %1482 = vmatpush1.bf16.msra.mxu0 0
  %1483 = vmatprep.subr.bf16.mxu0 0
  %1484 = vmatpush1.bf16.msra.mxu0 0
  %1485 = vmatprep.subr.bf16.mxu0 0
  %1486 = vmatpush1.bf16.msra.mxu0 0
  %1487 = vmatprep.subr.bf16.mxu0 0
  %1488 = vmatpush1.bf16.msra.mxu0 0
  %1489 = vmatprep.subr.bf16.mxu0 0
  %1490 = vmatpush1.bf16.msra.mxu0 0
  %1491 = vmatprep.subr.bf16.mxu0 0
  %1492 = vmatpush1.bf16.msra.mxu0 0
  %1493 = vmatprep.subr.bf16.mxu0 0
  %1494 = vmatpush1.bf16.msra.mxu0 0
  %1495 = vmatprep.subr.bf16.mxu0 0
  %1496 = vmatpush1.bf16.msra.mxu0 0
  %1497 = vmatprep.subr.bf16.mxu0 0
  %1498 = vmatpush1.bf16.msra.mxu0 0
  %1499 = vmatprep.subr.bf16.mxu0 0
  %1500 = vmatpush1.bf16.msra.mxu0 0
  %1501 = vmatprep.subr.bf16.mxu0 0
  %1502 = vmatpush1.bf16.msra.mxu0 0
  %1503 = vmatprep.mubr.bf16.mxu0 0
  %1504 = vmatmul.mubr.bf16.gmra.mrb[0].mxu0 %v1451
  %v1505 = vpop.f32.mrb[0].mxu0
  %v1506 = vadd.f32 0.0, %v1505
  %v1507 = vpop.f32.mrb[0].mxu0
  %v1508 = vadd.f32 0.0, %v1507
  %v1509 = vpop.f32.mrb[0].mxu0
  %v1510 = vpop.f32.mrb[0].mxu0
  %1511 = vdwg.mxu0
  %1512 = vmatprep.subr.bf16.mxu0 %v1463
  %1513 = vmatpush1.bf16.msra.mxu0 %v1460
  %1514 = vmatprep.subr.bf16.mxu0 0
  %1515 = vmatpush1.bf16.msra.mxu0 0
  %1516 = vmatprep.subr.bf16.mxu0 0
  %1517 = vmatpush1.bf16.msra.mxu0 0
  %1518 = vmatprep.subr.bf16.mxu0 0
  %1519 = vmatpush1.bf16.msra.mxu0 0
  %1520 = vmatprep.subr.bf16.mxu0 0
  %1521 = vmatpush1.bf16.msra.mxu0 0
  %1522 = vmatprep.subr.bf16.mxu0 0
  %1523 = vmatpush1.bf16.msra.mxu0 0
  %1524 = vmatprep.subr.bf16.mxu0 0
  %1525 = vmatpush1.bf16.msra.mxu0 0
  %1526 = vmatprep.subr.bf16.mxu0 0
  %1527 = vmatpush1.bf16.msra.mxu0 0
  %1528 = vmatprep.subr.bf16.mxu0 0
  %1529 = vmatpush1.bf16.msra.mxu0 0
  %1530 = vmatprep.subr.bf16.mxu0 0
  %1531 = vmatpush1.bf16.msra.mxu0 0
  %1532 = vmatprep.subr.bf16.mxu0 0
  %1533 = vmatpush1.bf16.msra.mxu0 0
  %1534 = vmatprep.subr.bf16.mxu0 0
  %1535 = vmatpush1.bf16.msra.mxu0 0
  %1536 = vmatprep.subr.bf16.mxu0 0
  %1537 = vmatpush1.bf16.msra.mxu0 0
  %1538 = vmatprep.subr.bf16.mxu0 0
  %1539 = vmatpush1.bf16.msra.mxu0 0
  %1540 = vmatprep.subr.bf16.mxu0 0
  %1541 = vmatpush1.bf16.msra.mxu0 0
  %1542 = vmatprep.subr.bf16.mxu0 0
  %1543 = vmatpush1.bf16.msra.mxu0 0
  %1544 = vmatprep.mubr.bf16.mxu0 0
  %1545 = vmatmul.mubr.bf16.gmra.mrb[0].mxu0 %v1451
  %v1546 = vpop.f32.mrb[0].mxu0
  %v1547 = vadd.f32 0.0, %v1546
  %v1548 = vpop.f32.mrb[0].mxu0
  %v1549 = vadd.f32 0.0, %v1548
  %v1550 = vpop.f32.mrb[0].mxu0
  %v1551 = vpop.f32.mrb[0].mxu0
  %1552 = vdwg.mxu0
  %1553 = vmatprep.subr.bf16.mxu0 %v1469
  %1554 = vmatpush1.bf16.msra.mxu0 %v1466
  %1555 = vmatprep.subr.bf16.mxu0 0
  %1556 = vmatpush1.bf16.msra.mxu0 0
  %1557 = vmatprep.subr.bf16.mxu0 0
  %1558 = vmatpush1.bf16.msra.mxu0 0
  %1559 = vmatprep.subr.bf16.mxu0 0
  %1560 = vmatpush1.bf16.msra.mxu0 0
  %1561 = vmatprep.subr.bf16.mxu0 0
  %1562 = vmatpush1.bf16.msra.mxu0 0
  %1563 = vmatprep.subr.bf16.mxu0 0
  %1564 = vmatpush1.bf16.msra.mxu0 0
  %1565 = vmatprep.subr.bf16.mxu0 0
  %1566 = vmatpush1.bf16.msra.mxu0 0
  %1567 = vmatprep.subr.bf16.mxu0 0
  %1568 = vmatpush1.bf16.msra.mxu0 0
  %1569 = vmatprep.subr.bf16.mxu0 0
  %1570 = vmatpush1.bf16.msra.mxu0 0
  %1571 = vmatprep.subr.bf16.mxu0 0
  %1572 = vmatpush1.bf16.msra.mxu0 0
  %1573 = vmatprep.subr.bf16.mxu0 0
  %1574 = vmatpush1.bf16.msra.mxu0 0
  %1575 = vmatprep.subr.bf16.mxu0 0
  %1576 = vmatpush1.bf16.msra.mxu0 0
  %1577 = vmatprep.subr.bf16.mxu0 0
  %1578 = vmatpush1.bf16.msra.mxu0 0
  %1579 = vmatprep.subr.bf16.mxu0 0
  %1580 = vmatpush1.bf16.msra.mxu0 0
  %1581 = vmatprep.subr.bf16.mxu0 0
  %1582 = vmatpush1.bf16.msra.mxu0 0
  %1583 = vmatprep.subr.bf16.mxu0 0
  %1584 = vmatpush1.bf16.msra.mxu0 0
  %1585 = vmatprep.mubr.bf16.mxu0 0
  %1586 = vmatmul.mubr.bf16.gmra.mrb[0].mxu0 %v1451
  %v1587 = vpop.f32.mrb[0].mxu0
  %v1588 = vadd.f32 0.0, %v1587
  %v1589 = vpop.f32.mrb[0].mxu0
  %v1590 = vadd.f32 0.0, %v1589
  %v1591 = vpop.f32.mrb[0].mxu0
  %v1592 = vpop.f32.mrb[0].mxu0
  %1593 = vdwg.mxu0
  %v1594 = vadd.f32 %v1424, %v1506
  %v1595 = vadd.f32 %v1425, %v1508
  %v1596 = vadd.f32 %v1426, %v1547
  %v1597 = vadd.f32 %v1427, %v1549
  %v1598 = vadd.f32 %v1428, %v1588
  %v1599 = vadd.f32 %v1429, %v1590
  %v1600 = vld [vmem:[%s4] sm:$0xff]
  %1602 = vset.pattern.permute.xlu0 0
  %1603 = vperm.xlu0 %1602, %v1600
  %v1604 = vpop.permute.xlu0 %1603
  %v1606 = vadd.f32 %v1594, %v1604
  %v1607 = vadd.f32 %v1595, %v1604
  %v1608 = vadd.f32 %v1596, %v1604
  %v1609 = vadd.f32 %v1597, %v1604
  %v1610 = vadd.f32 %v1598, %v1604
  %v1611 = vadd.f32 %v1599, %v1604
  %v1612 = vmax.f32 %v1606, 0.0
  %v1613 = vmax.f32 %v1607, 0.0
  %v1614 = vmax.f32 %v1608, 0.0
  %v1615 = vmax.f32 %v1609, 0.0
  %v1616 = vmax.f32 %v1610, 0.0
  %v1617 = vmax.f32 %v1611, 0.0
  %v1619 = vlaneseq
  %v1620 = vshrl.u32 %v1619, 7
  %v1621 = vsub.s32 0, %v1620
  %v1622 = vrot.slane %v50, %v1621
  %v1623 = vlaneseq
  %v1624 = vshrl.u32 %v1623, 7
  %v1625 = vsub.s32 1, %v1624
  %v1626 = vrot.slane %v50, %v1625
  %v1627 = vlaneseq
  %v1628 = vshrl.u32 %v1627, 7
  %v1629 = vsub.s32 2, %v1628
  %v1630 = vrot.slane %v50, %v1629
  %v1631 = vlaneseq
  %v1632 = vshrl.u32 %v1631, 7
  %v1633 = vsub.s32 3, %v1632
  %v1634 = vrot.slane %v50, %v1633
  %v1635 = vlaneseq
  %v1636 = vshrl.u32 %v1635, 7
  %v1637 = vsub.s32 4, %v1636
  %v1638 = vrot.slane %v50, %v1637
  %v1639 = vlaneseq
  %v1640 = vshrl.u32 %v1639, 7
  %v1641 = vsub.s32 5, %v1640
  %v1642 = vrot.slane %v50, %v1641
  %v1649 = vmul.f32 %v1612, %v1622
  %v1650 = vmul.f32 %v1613, %v1626
  %v1651 = vmul.f32 %v1614, %v1630
  %v1652 = vmul.f32 %v1615, %v1634
  %v1653 = vmul.f32 %v1616, %v1638
  %v1654 = vmul.f32 %v1617, %v1642
  %1655 = vrot.lane.b32.xlu0 %v1649, 8
  %v1656 = vpop.permute.xlu0 %1655
  %1657 = vrot.lane.b32.xlu0 %v1650, 8
  %v1658 = vpop.permute.xlu0 %1657
  %1659 = vrot.lane.b32.xlu0 %v1651, 8
  %v1660 = vpop.permute.xlu0 %1659
  %1661 = vrot.lane.b32.xlu0 %v1652, 8
  %v1662 = vpop.permute.xlu0 %1661
  %1663 = vrot.lane.b32.xlu0 %v1653, 8
  %v1664 = vpop.permute.xlu0 %1663
  %v1665 = vsel %vm57, %v1656, %v1654
  %v1666 = vsel %vm57, %v1658, %v1656
  %v1667 = vsel %vm57, %v1660, %v1658
  %v1668 = vsel %vm57, %v1662, %v1660
  %v1669 = vsel %vm57, %v1664, %v1662
  %v1670 = vld [vmem:[%s5] sm:$0xf]
  %v1671 = vpack.c.bf16 %v1653, %v1653
  %v1672 = vpack.c.bf16 %v1665, %v1665
  %v1673 = vpack.c.bf16 %v1666, %v1666
  %v1674 = vpack.c.bf16 %v1667, %v1667
  %v1675 = vpack.c.bf16 %v1668, %v1668
  %v1676 = vpack.c.bf16 %v1669, %v1669
  %s1677 = scalar_lea.vmem %s5, 4
  %v1678 = vld [vmem:[%s1677] sm:$0xf]
  %1685 = vrot.lane.b32.xlu0 %v1671, 10
  %v1686 = vpop.permute.xlu0 %1685
  %1687 = vrot.lane.b32.xlu0 %v1672, 10
  %v1688 = vpop.permute.xlu0 %1687
  %1689 = vrot.lane.b32.xlu0 %v1673, 10
  %v1690 = vpop.permute.xlu0 %1689
  %1691 = vrot.lane.b32.xlu0 %v1674, 10
  %v1692 = vpop.permute.xlu0 %1691
  %1693 = vrot.lane.b32.xlu0 %v1675, 10
  %v1694 = vpop.permute.xlu0 %1693
  %1695 = vrot.lane.b32.xlu0 %v1676, 10
  %v1696 = vpop.permute.xlu0 %1695
  %v1697 = vsel %vm100, %v1686, %v1688
  %v1698 = vsel %vm100, %v1688, %v1690
  %v1699 = vsel %vm100, %v1690, %v1692
  %v1700 = vsel %vm100, %v1692, %v1694
  %v1701 = vsel %vm100, %v1694, %v1696
  %v1703 = vsel %vm106, %v1678, 0
  %v1706 = vsel %vm110, %v1697, 0
  %v1709 = vsel %vm110, %v1698, 0
  %v1712 = vsel %vm110, %v1699, 0
  %v1715 = vsel %vm110, %v1700, 0
  %v1718 = vsel %vm110, %v1701, 0
  %v1721 = vsel %vm110, %v1696, 0
  %1723 = vmatprep.subr.bf16.mxu0 %v1709
  %1724 = vmatpush1.bf16.msra.mxu0 %v1706
  %1725 = vmatprep.subr.bf16.mxu0 0
  %1726 = vmatpush1.bf16.msra.mxu0 0
  %1727 = vmatprep.subr.bf16.mxu0 0
  %1728 = vmatpush1.bf16.msra.mxu0 0
  %1729 = vmatprep.subr.bf16.mxu0 0
  %1730 = vmatpush1.bf16.msra.mxu0 0
  %1731 = vmatprep.subr.bf16.mxu0 0
  %1732 = vmatpush1.bf16.msra.mxu0 0
  %1733 = vmatprep.subr.bf16.mxu0 0
  %1734 = vmatpush1.bf16.msra.mxu0 0
  %1735 = vmatprep.subr.bf16.mxu0 0
  %1736 = vmatpush1.bf16.msra.mxu0 0
  %1737 = vmatprep.subr.bf16.mxu0 0
  %1738 = vmatpush1.bf16.msra.mxu0 0
  %1739 = vmatprep.subr.bf16.mxu0 0
  %1740 = vmatpush1.bf16.msra.mxu0 0
  %1741 = vmatprep.subr.bf16.mxu0 0
  %1742 = vmatpush1.bf16.msra.mxu0 0
  %1743 = vmatprep.subr.bf16.mxu0 0
  %1744 = vmatpush1.bf16.msra.mxu0 0
  %1745 = vmatprep.subr.bf16.mxu0 0
  %1746 = vmatpush1.bf16.msra.mxu0 0
  %1747 = vmatprep.subr.bf16.mxu0 0
  %1748 = vmatpush1.bf16.msra.mxu0 0
  %1749 = vmatprep.subr.bf16.mxu0 0
  %1750 = vmatpush1.bf16.msra.mxu0 0
  %1751 = vmatprep.subr.bf16.mxu0 0
  %1752 = vmatpush1.bf16.msra.mxu0 0
  %1753 = vmatprep.subr.bf16.mxu0 0
  %1754 = vmatpush1.bf16.msra.mxu0 0
  %1755 = vmatprep.mubr.bf16.mxu0 0
  %1756 = vmatmul.mubr.bf16.gmra.mrb[0].mxu0 %v1703
  %v1757 = vpop.f32.mrb[0].mxu0
  %v1758 = vadd.f32 0.0, %v1757
  %v1759 = vpop.f32.mrb[0].mxu0
  %v1760 = vadd.f32 0.0, %v1759
  %v1761 = vpop.f32.mrb[0].mxu0
  %v1762 = vpop.f32.mrb[0].mxu0
  %1763 = vdwg.mxu0
  %1764 = vmatprep.subr.bf16.mxu0 %v1715
  %1765 = vmatpush1.bf16.msra.mxu0 %v1712
  %1766 = vmatprep.subr.bf16.mxu0 0
  %1767 = vmatpush1.bf16.msra.mxu0 0
  %1768 = vmatprep.subr.bf16.mxu0 0
  %1769 = vmatpush1.bf16.msra.mxu0 0
  %1770 = vmatprep.subr.bf16.mxu0 0
  %1771 = vmatpush1.bf16.msra.mxu0 0
  %1772 = vmatprep.subr.bf16.mxu0 0
  %1773 = vmatpush1.bf16.msra.mxu0 0
  %1774 = vmatprep.subr.bf16.mxu0 0
  %1775 = vmatpush1.bf16.msra.mxu0 0
  %1776 = vmatprep.subr.bf16.mxu0 0
  %1777 = vmatpush1.bf16.msra.mxu0 0
  %1778 = vmatprep.subr.bf16.mxu0 0
  %1779 = vmatpush1.bf16.msra.mxu0 0
  %1780 = vmatprep.subr.bf16.mxu0 0
  %1781 = vmatpush1.bf16.msra.mxu0 0
  %1782 = vmatprep.subr.bf16.mxu0 0
  %1783 = vmatpush1.bf16.msra.mxu0 0
  %1784 = vmatprep.subr.bf16.mxu0 0
  %1785 = vmatpush1.bf16.msra.mxu0 0
  %1786 = vmatprep.subr.bf16.mxu0 0
  %1787 = vmatpush1.bf16.msra.mxu0 0
  %1788 = vmatprep.subr.bf16.mxu0 0
  %1789 = vmatpush1.bf16.msra.mxu0 0
  %1790 = vmatprep.subr.bf16.mxu0 0
  %1791 = vmatpush1.bf16.msra.mxu0 0
  %1792 = vmatprep.subr.bf16.mxu0 0
  %1793 = vmatpush1.bf16.msra.mxu0 0
  %1794 = vmatprep.subr.bf16.mxu0 0
  %1795 = vmatpush1.bf16.msra.mxu0 0
  %1796 = vmatprep.mubr.bf16.mxu0 0
  %1797 = vmatmul.mubr.bf16.gmra.mrb[0].mxu0 %v1703
  %v1798 = vpop.f32.mrb[0].mxu0
  %v1799 = vadd.f32 0.0, %v1798
  %v1800 = vpop.f32.mrb[0].mxu0
  %v1801 = vadd.f32 0.0, %v1800
  %v1802 = vpop.f32.mrb[0].mxu0
  %v1803 = vpop.f32.mrb[0].mxu0
  %1804 = vdwg.mxu0
  %1805 = vmatprep.subr.bf16.mxu0 %v1721
  %1806 = vmatpush1.bf16.msra.mxu0 %v1718
  %1807 = vmatprep.subr.bf16.mxu0 0
  %1808 = vmatpush1.bf16.msra.mxu0 0
  %1809 = vmatprep.subr.bf16.mxu0 0
  %1810 = vmatpush1.bf16.msra.mxu0 0
  %1811 = vmatprep.subr.bf16.mxu0 0
  %1812 = vmatpush1.bf16.msra.mxu0 0
  %1813 = vmatprep.subr.bf16.mxu0 0
  %1814 = vmatpush1.bf16.msra.mxu0 0
  %1815 = vmatprep.subr.bf16.mxu0 0
  %1816 = vmatpush1.bf16.msra.mxu0 0
  %1817 = vmatprep.subr.bf16.mxu0 0
  %1818 = vmatpush1.bf16.msra.mxu0 0
  %1819 = vmatprep.subr.bf16.mxu0 0
  %1820 = vmatpush1.bf16.msra.mxu0 0
  %1821 = vmatprep.subr.bf16.mxu0 0
  %1822 = vmatpush1.bf16.msra.mxu0 0
  %1823 = vmatprep.subr.bf16.mxu0 0
  %1824 = vmatpush1.bf16.msra.mxu0 0
  %1825 = vmatprep.subr.bf16.mxu0 0
  %1826 = vmatpush1.bf16.msra.mxu0 0
  %1827 = vmatprep.subr.bf16.mxu0 0
  %1828 = vmatpush1.bf16.msra.mxu0 0
  %1829 = vmatprep.subr.bf16.mxu0 0
  %1830 = vmatpush1.bf16.msra.mxu0 0
  %1831 = vmatprep.subr.bf16.mxu0 0
  %1832 = vmatpush1.bf16.msra.mxu0 0
  %1833 = vmatprep.subr.bf16.mxu0 0
  %1834 = vmatpush1.bf16.msra.mxu0 0
  %1835 = vmatprep.subr.bf16.mxu0 0
  %1836 = vmatpush1.bf16.msra.mxu0 0
  %1837 = vmatprep.mubr.bf16.mxu0 0
  %1838 = vmatmul.mubr.bf16.gmra.mrb[0].mxu0 %v1703
  %v1839 = vpop.f32.mrb[0].mxu0
  %v1840 = vadd.f32 0.0, %v1839
  %v1841 = vpop.f32.mrb[0].mxu0
  %v1842 = vadd.f32 0.0, %v1841
  %v1843 = vpop.f32.mrb[0].mxu0
  %v1844 = vpop.f32.mrb[0].mxu0
  %1845 = vdwg.mxu0
  %1846 = vrot.lane.b32.xlu0 %v1671, 11
  %v1847 = vpop.permute.xlu0 %1846
  %1848 = vrot.lane.b32.xlu0 %v1672, 11
  %v1849 = vpop.permute.xlu0 %1848
  %1850 = vrot.lane.b32.xlu0 %v1673, 11
  %v1851 = vpop.permute.xlu0 %1850
  %1852 = vrot.lane.b32.xlu0 %v1674, 11
  %v1853 = vpop.permute.xlu0 %1852
  %1854 = vrot.lane.b32.xlu0 %v1675, 11
  %v1855 = vpop.permute.xlu0 %1854
  %1856 = vrot.lane.b32.xlu0 %v1676, 11
  %v1857 = vpop.permute.xlu0 %1856
  %v1858 = vsel %vm264, %v1847, %v1849
  %v1859 = vsel %vm264, %v1849, %v1851
  %v1860 = vsel %vm264, %v1851, %v1853
  %v1861 = vsel %vm264, %v1853, %v1855
  %v1862 = vsel %vm264, %v1855, %v1857
  %v1864 = vsel %vm106, %v1670, 0
  %v1867 = vsel %vm110, %v1858, 0
  %v1870 = vsel %vm110, %v1859, 0
  %v1873 = vsel %vm110, %v1860, 0
  %v1876 = vsel %vm110, %v1861, 0
  %v1879 = vsel %vm110, %v1862, 0
  %v1882 = vsel %vm110, %v1857, 0
  %1884 = vmatprep.subr.bf16.mxu0 %v1870
  %1885 = vmatpush1.bf16.msra.mxu0 %v1867
  %1886 = vmatprep.subr.bf16.mxu0 0
  %1887 = vmatpush1.bf16.msra.mxu0 0
  %1888 = vmatprep.subr.bf16.mxu0 0
  %1889 = vmatpush1.bf16.msra.mxu0 0
  %1890 = vmatprep.subr.bf16.mxu0 0
  %1891 = vmatpush1.bf16.msra.mxu0 0
  %1892 = vmatprep.subr.bf16.mxu0 0
  %1893 = vmatpush1.bf16.msra.mxu0 0
  %1894 = vmatprep.subr.bf16.mxu0 0
  %1895 = vmatpush1.bf16.msra.mxu0 0
  %1896 = vmatprep.subr.bf16.mxu0 0
  %1897 = vmatpush1.bf16.msra.mxu0 0
  %1898 = vmatprep.subr.bf16.mxu0 0
  %1899 = vmatpush1.bf16.msra.mxu0 0
  %1900 = vmatprep.subr.bf16.mxu0 0
  %1901 = vmatpush1.bf16.msra.mxu0 0
  %1902 = vmatprep.subr.bf16.mxu0 0
  %1903 = vmatpush1.bf16.msra.mxu0 0
  %1904 = vmatprep.subr.bf16.mxu0 0
  %1905 = vmatpush1.bf16.msra.mxu0 0
  %1906 = vmatprep.subr.bf16.mxu0 0
  %1907 = vmatpush1.bf16.msra.mxu0 0
  %1908 = vmatprep.subr.bf16.mxu0 0
  %1909 = vmatpush1.bf16.msra.mxu0 0
  %1910 = vmatprep.subr.bf16.mxu0 0
  %1911 = vmatpush1.bf16.msra.mxu0 0
  %1912 = vmatprep.subr.bf16.mxu0 0
  %1913 = vmatpush1.bf16.msra.mxu0 0
  %1914 = vmatprep.subr.bf16.mxu0 0
  %1915 = vmatpush1.bf16.msra.mxu0 0
  %1916 = vmatprep.mubr.bf16.mxu0 0
  %1917 = vmatmul.mubr.bf16.gmra.mrb[0].mxu0 %v1864
  %v1918 = vpop.f32.mrb[0].mxu0
  %v1919 = vadd.f32 %v1758, %v1918
  %v1920 = vpop.f32.mrb[0].mxu0
  %v1921 = vadd.f32 %v1760, %v1920
  %v1922 = vpop.f32.mrb[0].mxu0
  %v1923 = vpop.f32.mrb[0].mxu0
  %1924 = vdwg.mxu0
  %1925 = vmatprep.subr.bf16.mxu0 %v1876
  %1926 = vmatpush1.bf16.msra.mxu0 %v1873
  %1927 = vmatprep.subr.bf16.mxu0 0
  %1928 = vmatpush1.bf16.msra.mxu0 0
  %1929 = vmatprep.subr.bf16.mxu0 0
  %1930 = vmatpush1.bf16.msra.mxu0 0
  %1931 = vmatprep.subr.bf16.mxu0 0
  %1932 = vmatpush1.bf16.msra.mxu0 0
  %1933 = vmatprep.subr.bf16.mxu0 0
  %1934 = vmatpush1.bf16.msra.mxu0 0
  %1935 = vmatprep.subr.bf16.mxu0 0
  %1936 = vmatpush1.bf16.msra.mxu0 0
  %1937 = vmatprep.subr.bf16.mxu0 0
  %1938 = vmatpush1.bf16.msra.mxu0 0
  %1939 = vmatprep.subr.bf16.mxu0 0
  %1940 = vmatpush1.bf16.msra.mxu0 0
  %1941 = vmatprep.subr.bf16.mxu0 0
  %1942 = vmatpush1.bf16.msra.mxu0 0
  %1943 = vmatprep.subr.bf16.mxu0 0
  %1944 = vmatpush1.bf16.msra.mxu0 0
  %1945 = vmatprep.subr.bf16.mxu0 0
  %1946 = vmatpush1.bf16.msra.mxu0 0
  %1947 = vmatprep.subr.bf16.mxu0 0
  %1948 = vmatpush1.bf16.msra.mxu0 0
  %1949 = vmatprep.subr.bf16.mxu0 0
  %1950 = vmatpush1.bf16.msra.mxu0 0
  %1951 = vmatprep.subr.bf16.mxu0 0
  %1952 = vmatpush1.bf16.msra.mxu0 0
  %1953 = vmatprep.subr.bf16.mxu0 0
  %1954 = vmatpush1.bf16.msra.mxu0 0
  %1955 = vmatprep.subr.bf16.mxu0 0
  %1956 = vmatpush1.bf16.msra.mxu0 0
  %1957 = vmatprep.mubr.bf16.mxu0 0
  %1958 = vmatmul.mubr.bf16.gmra.mrb[0].mxu0 %v1864
  %v1959 = vpop.f32.mrb[0].mxu0
  %v1960 = vadd.f32 %v1799, %v1959
  %v1961 = vpop.f32.mrb[0].mxu0
  %v1962 = vadd.f32 %v1801, %v1961
  %v1963 = vpop.f32.mrb[0].mxu0
  %v1964 = vpop.f32.mrb[0].mxu0
  %1965 = vdwg.mxu0
  %1966 = vmatprep.subr.bf16.mxu0 %v1882
  %1967 = vmatpush1.bf16.msra.mxu0 %v1879
  %1968 = vmatprep.subr.bf16.mxu0 0
  %1969 = vmatpush1.bf16.msra.mxu0 0
  %1970 = vmatprep.subr.bf16.mxu0 0
  %1971 = vmatpush1.bf16.msra.mxu0 0
  %1972 = vmatprep.subr.bf16.mxu0 0
  %1973 = vmatpush1.bf16.msra.mxu0 0
  %1974 = vmatprep.subr.bf16.mxu0 0
  %1975 = vmatpush1.bf16.msra.mxu0 0
  %1976 = vmatprep.subr.bf16.mxu0 0
  %1977 = vmatpush1.bf16.msra.mxu0 0
  %1978 = vmatprep.subr.bf16.mxu0 0
  %1979 = vmatpush1.bf16.msra.mxu0 0
  %1980 = vmatprep.subr.bf16.mxu0 0
  %1981 = vmatpush1.bf16.msra.mxu0 0
  %1982 = vmatprep.subr.bf16.mxu0 0
  %1983 = vmatpush1.bf16.msra.mxu0 0
  %1984 = vmatprep.subr.bf16.mxu0 0
  %1985 = vmatpush1.bf16.msra.mxu0 0
  %1986 = vmatprep.subr.bf16.mxu0 0
  %1987 = vmatpush1.bf16.msra.mxu0 0
  %1988 = vmatprep.subr.bf16.mxu0 0
  %1989 = vmatpush1.bf16.msra.mxu0 0
  %1990 = vmatprep.subr.bf16.mxu0 0
  %1991 = vmatpush1.bf16.msra.mxu0 0
  %1992 = vmatprep.subr.bf16.mxu0 0
  %1993 = vmatpush1.bf16.msra.mxu0 0
  %1994 = vmatprep.subr.bf16.mxu0 0
  %1995 = vmatpush1.bf16.msra.mxu0 0
  %1996 = vmatprep.subr.bf16.mxu0 0
  %1997 = vmatpush1.bf16.msra.mxu0 0
  %1998 = vmatprep.mubr.bf16.mxu0 0
  %1999 = vmatmul.mubr.bf16.gmra.mrb[0].mxu0 %v1864
  %v2000 = vpop.f32.mrb[0].mxu0
  %v2001 = vadd.f32 %v1840, %v2000
  %v2002 = vpop.f32.mrb[0].mxu0
  %v2003 = vadd.f32 %v1842, %v2002
  %v2004 = vpop.f32.mrb[0].mxu0
  %v2005 = vpop.f32.mrb[0].mxu0
  %2006 = vdwg.mxu0
  %s2007 = scalar_lea.vmem %s5, 8
  %v2008 = vld [vmem:[%s2007] sm:$0xf]
  %2009 = vrot.lane.b32.xlu0 %v1671, 9
  %v2010 = vpop.permute.xlu0 %2009
  %2011 = vrot.lane.b32.xlu0 %v1672, 9
  %v2012 = vpop.permute.xlu0 %2011
  %2013 = vrot.lane.b32.xlu0 %v1673, 9
  %v2014 = vpop.permute.xlu0 %2013
  %2015 = vrot.lane.b32.xlu0 %v1674, 9
  %v2016 = vpop.permute.xlu0 %2015
  %2017 = vrot.lane.b32.xlu0 %v1675, 9
  %v2018 = vpop.permute.xlu0 %2017
  %2019 = vrot.lane.b32.xlu0 %v1676, 9
  %v2020 = vpop.permute.xlu0 %2019
  %v2021 = vsel %vm428, %v2010, %v2012
  %v2022 = vsel %vm428, %v2012, %v2014
  %v2023 = vsel %vm428, %v2014, %v2016
  %v2024 = vsel %vm428, %v2016, %v2018
  %v2025 = vsel %vm428, %v2018, %v2020
  %v2027 = vsel %vm106, %v2008, 0
  %v2030 = vsel %vm110, %v2021, 0
  %v2033 = vsel %vm110, %v2022, 0
  %v2036 = vsel %vm110, %v2023, 0
  %v2039 = vsel %vm110, %v2024, 0
  %v2042 = vsel %vm110, %v2025, 0
  %v2045 = vsel %vm110, %v2020, 0
  %2047 = vmatprep.subr.bf16.mxu0 %v2033
  %2048 = vmatpush1.bf16.msra.mxu0 %v2030
  %2049 = vmatprep.subr.bf16.mxu0 0
  %2050 = vmatpush1.bf16.msra.mxu0 0
  %2051 = vmatprep.subr.bf16.mxu0 0
  %2052 = vmatpush1.bf16.msra.mxu0 0
  %2053 = vmatprep.subr.bf16.mxu0 0
  %2054 = vmatpush1.bf16.msra.mxu0 0
  %2055 = vmatprep.subr.bf16.mxu0 0
  %2056 = vmatpush1.bf16.msra.mxu0 0
  %2057 = vmatprep.subr.bf16.mxu0 0
  %2058 = vmatpush1.bf16.msra.mxu0 0
  %2059 = vmatprep.subr.bf16.mxu0 0
  %2060 = vmatpush1.bf16.msra.mxu0 0
  %2061 = vmatprep.subr.bf16.mxu0 0
  %2062 = vmatpush1.bf16.msra.mxu0 0
  %2063 = vmatprep.subr.bf16.mxu0 0
  %2064 = vmatpush1.bf16.msra.mxu0 0
  %2065 = vmatprep.subr.bf16.mxu0 0
  %2066 = vmatpush1.bf16.msra.mxu0 0
  %2067 = vmatprep.subr.bf16.mxu0 0
  %2068 = vmatpush1.bf16.msra.mxu0 0
  %2069 = vmatprep.subr.bf16.mxu0 0
  %2070 = vmatpush1.bf16.msra.mxu0 0
  %2071 = vmatprep.subr.bf16.mxu0 0
  %2072 = vmatpush1.bf16.msra.mxu0 0
  %2073 = vmatprep.subr.bf16.mxu0 0
  %2074 = vmatpush1.bf16.msra.mxu0 0
  %2075 = vmatprep.subr.bf16.mxu0 0
  %2076 = vmatpush1.bf16.msra.mxu0 0
  %2077 = vmatprep.subr.bf16.mxu0 0
  %2078 = vmatpush1.bf16.msra.mxu0 0
  %2079 = vmatprep.mubr.bf16.mxu0 0
  %2080 = vmatmul.mubr.bf16.gmra.mrb[0].mxu0 %v2027
  %v2081 = vpop.f32.mrb[0].mxu0
  %v2082 = vadd.f32 0.0, %v2081
  %v2083 = vpop.f32.mrb[0].mxu0
  %v2084 = vadd.f32 0.0, %v2083
  %v2085 = vpop.f32.mrb[0].mxu0
  %v2086 = vpop.f32.mrb[0].mxu0
  %2087 = vdwg.mxu0
  %2088 = vmatprep.subr.bf16.mxu0 %v2039
  %2089 = vmatpush1.bf16.msra.mxu0 %v2036
  %2090 = vmatprep.subr.bf16.mxu0 0
  %2091 = vmatpush1.bf16.msra.mxu0 0
  %2092 = vmatprep.subr.bf16.mxu0 0
  %2093 = vmatpush1.bf16.msra.mxu0 0
  %2094 = vmatprep.subr.bf16.mxu0 0
  %2095 = vmatpush1.bf16.msra.mxu0 0
  %2096 = vmatprep.subr.bf16.mxu0 0
  %2097 = vmatpush1.bf16.msra.mxu0 0
  %2098 = vmatprep.subr.bf16.mxu0 0
  %2099 = vmatpush1.bf16.msra.mxu0 0
  %2100 = vmatprep.subr.bf16.mxu0 0
  %2101 = vmatpush1.bf16.msra.mxu0 0
  %2102 = vmatprep.subr.bf16.mxu0 0
  %2103 = vmatpush1.bf16.msra.mxu0 0
  %2104 = vmatprep.subr.bf16.mxu0 0
  %2105 = vmatpush1.bf16.msra.mxu0 0
  %2106 = vmatprep.subr.bf16.mxu0 0
  %2107 = vmatpush1.bf16.msra.mxu0 0
  %2108 = vmatprep.subr.bf16.mxu0 0
  %2109 = vmatpush1.bf16.msra.mxu0 0
  %2110 = vmatprep.subr.bf16.mxu0 0
  %2111 = vmatpush1.bf16.msra.mxu0 0
  %2112 = vmatprep.subr.bf16.mxu0 0
  %2113 = vmatpush1.bf16.msra.mxu0 0
  %2114 = vmatprep.subr.bf16.mxu0 0
  %2115 = vmatpush1.bf16.msra.mxu0 0
  %2116 = vmatprep.subr.bf16.mxu0 0
  %2117 = vmatpush1.bf16.msra.mxu0 0
  %2118 = vmatprep.subr.bf16.mxu0 0
  %2119 = vmatpush1.bf16.msra.mxu0 0
  %2120 = vmatprep.mubr.bf16.mxu0 0
  %2121 = vmatmul.mubr.bf16.gmra.mrb[0].mxu0 %v2027
  %v2122 = vpop.f32.mrb[0].mxu0
  %v2123 = vadd.f32 0.0, %v2122
  %v2124 = vpop.f32.mrb[0].mxu0
  %v2125 = vadd.f32 0.0, %v2124
  %v2126 = vpop.f32.mrb[0].mxu0
  %v2127 = vpop.f32.mrb[0].mxu0
  %2128 = vdwg.mxu0
  %2129 = vmatprep.subr.bf16.mxu0 %v2045
  %2130 = vmatpush1.bf16.msra.mxu0 %v2042
  %2131 = vmatprep.subr.bf16.mxu0 0
  %2132 = vmatpush1.bf16.msra.mxu0 0
  %2133 = vmatprep.subr.bf16.mxu0 0
  %2134 = vmatpush1.bf16.msra.mxu0 0
  %2135 = vmatprep.subr.bf16.mxu0 0
  %2136 = vmatpush1.bf16.msra.mxu0 0
  %2137 = vmatprep.subr.bf16.mxu0 0
  %2138 = vmatpush1.bf16.msra.mxu0 0
  %2139 = vmatprep.subr.bf16.mxu0 0
  %2140 = vmatpush1.bf16.msra.mxu0 0
  %2141 = vmatprep.subr.bf16.mxu0 0
  %2142 = vmatpush1.bf16.msra.mxu0 0
  %2143 = vmatprep.subr.bf16.mxu0 0
  %2144 = vmatpush1.bf16.msra.mxu0 0
  %2145 = vmatprep.subr.bf16.mxu0 0
  %2146 = vmatpush1.bf16.msra.mxu0 0
  %2147 = vmatprep.subr.bf16.mxu0 0
  %2148 = vmatpush1.bf16.msra.mxu0 0
  %2149 = vmatprep.subr.bf16.mxu0 0
  %2150 = vmatpush1.bf16.msra.mxu0 0
  %2151 = vmatprep.subr.bf16.mxu0 0
  %2152 = vmatpush1.bf16.msra.mxu0 0
  %2153 = vmatprep.subr.bf16.mxu0 0
  %2154 = vmatpush1.bf16.msra.mxu0 0
  %2155 = vmatprep.subr.bf16.mxu0 0
  %2156 = vmatpush1.bf16.msra.mxu0 0
  %2157 = vmatprep.subr.bf16.mxu0 0
  %2158 = vmatpush1.bf16.msra.mxu0 0
  %2159 = vmatprep.subr.bf16.mxu0 0
  %2160 = vmatpush1.bf16.msra.mxu0 0
  %2161 = vmatprep.mubr.bf16.mxu0 0
  %2162 = vmatmul.mubr.bf16.gmra.mrb[0].mxu0 %v2027
  %v2163 = vpop.f32.mrb[0].mxu0
  %v2164 = vadd.f32 0.0, %v2163
  %v2165 = vpop.f32.mrb[0].mxu0
  %v2166 = vadd.f32 0.0, %v2165
  %v2167 = vpop.f32.mrb[0].mxu0
  %v2168 = vpop.f32.mrb[0].mxu0
  %2169 = vdwg.mxu0
  %v2170 = vadd.f32 %v1919, %v2082
  %v2171 = vadd.f32 %v1921, %v2084
  %v2172 = vadd.f32 %v1960, %v2123
  %v2173 = vadd.f32 %v1962, %v2125
  %v2174 = vadd.f32 %v2001, %v2164
  %v2175 = vadd.f32 %v2003, %v2166
  %2176 = vrot.lane.b32.xlu0 %v1665, 8
  %v2177 = vpop.permute.xlu0 %2176
  %v2178 = vsel %vm57, %v2177, %v1664
  %s2179 = scalar_lea.vmem %s5, 12
  %v2180 = vld [vmem:[%s2179] sm:$0xf]
  %v2181 = vpack.c.bf16 %v2178, %v2178
  %2183 = vrot.lane.b32.xlu0 %v1672, 121
  %v2184 = vpop.permute.xlu0 %2183
  %2185 = vrot.lane.b32.xlu0 %v1673, 121
  %v2186 = vpop.permute.xlu0 %2185
  %2187 = vrot.lane.b32.xlu0 %v1674, 121
  %v2188 = vpop.permute.xlu0 %2187
  %2189 = vrot.lane.b32.xlu0 %v1675, 121
  %v2190 = vpop.permute.xlu0 %2189
  %2191 = vrot.lane.b32.xlu0 %v1676, 121
  %v2192 = vpop.permute.xlu0 %2191
  %2193 = vrot.lane.b32.xlu0 %v2181, 121
  %v2194 = vpop.permute.xlu0 %2193
  %v2195 = vsel %vm603, %v2184, %v2186
  %v2196 = vsel %vm603, %v2186, %v2188
  %v2197 = vsel %vm603, %v2188, %v2190
  %v2198 = vsel %vm603, %v2190, %v2192
  %v2199 = vsel %vm603, %v2192, %v2194
  %v2201 = vsel %vm106, %v2180, 0
  %v2204 = vsel %vm110, %v2195, 0
  %v2207 = vsel %vm110, %v2196, 0
  %v2210 = vsel %vm110, %v2197, 0
  %v2213 = vsel %vm110, %v2198, 0
  %v2216 = vsel %vm110, %v2199, 0
  %v2219 = vsel %vm110, %v2194, 0
  %2221 = vmatprep.subr.bf16.mxu0 %v2207
  %2222 = vmatpush1.bf16.msra.mxu0 %v2204
  %2223 = vmatprep.subr.bf16.mxu0 0
  %2224 = vmatpush1.bf16.msra.mxu0 0
  %2225 = vmatprep.subr.bf16.mxu0 0
  %2226 = vmatpush1.bf16.msra.mxu0 0
  %2227 = vmatprep.subr.bf16.mxu0 0
  %2228 = vmatpush1.bf16.msra.mxu0 0
  %2229 = vmatprep.subr.bf16.mxu0 0
  %2230 = vmatpush1.bf16.msra.mxu0 0
  %2231 = vmatprep.subr.bf16.mxu0 0
  %2232 = vmatpush1.bf16.msra.mxu0 0
  %2233 = vmatprep.subr.bf16.mxu0 0
  %2234 = vmatpush1.bf16.msra.mxu0 0
  %2235 = vmatprep.subr.bf16.mxu0 0
  %2236 = vmatpush1.bf16.msra.mxu0 0
  %2237 = vmatprep.subr.bf16.mxu0 0
  %2238 = vmatpush1.bf16.msra.mxu0 0
  %2239 = vmatprep.subr.bf16.mxu0 0
  %2240 = vmatpush1.bf16.msra.mxu0 0
  %2241 = vmatprep.subr.bf16.mxu0 0
  %2242 = vmatpush1.bf16.msra.mxu0 0
  %2243 = vmatprep.subr.bf16.mxu0 0
  %2244 = vmatpush1.bf16.msra.mxu0 0
  %2245 = vmatprep.subr.bf16.mxu0 0
  %2246 = vmatpush1.bf16.msra.mxu0 0
  %2247 = vmatprep.subr.bf16.mxu0 0
  %2248 = vmatpush1.bf16.msra.mxu0 0
  %2249 = vmatprep.subr.bf16.mxu0 0
  %2250 = vmatpush1.bf16.msra.mxu0 0
  %2251 = vmatprep.subr.bf16.mxu0 0
  %2252 = vmatpush1.bf16.msra.mxu0 0
  %2253 = vmatprep.mubr.bf16.mxu0 0
  %2254 = vmatmul.mubr.bf16.gmra.mrb[0].mxu0 %v2201
  %v2255 = vpop.f32.mrb[0].mxu0
  %v2256 = vadd.f32 0.0, %v2255
  %v2257 = vpop.f32.mrb[0].mxu0
  %v2258 = vadd.f32 0.0, %v2257
  %v2259 = vpop.f32.mrb[0].mxu0
  %v2260 = vpop.f32.mrb[0].mxu0
  %2261 = vdwg.mxu0
  %2262 = vmatprep.subr.bf16.mxu0 %v2213
  %2263 = vmatpush1.bf16.msra.mxu0 %v2210
  %2264 = vmatprep.subr.bf16.mxu0 0
  %2265 = vmatpush1.bf16.msra.mxu0 0
  %2266 = vmatprep.subr.bf16.mxu0 0
  %2267 = vmatpush1.bf16.msra.mxu0 0
  %2268 = vmatprep.subr.bf16.mxu0 0
  %2269 = vmatpush1.bf16.msra.mxu0 0
  %2270 = vmatprep.subr.bf16.mxu0 0
  %2271 = vmatpush1.bf16.msra.mxu0 0
  %2272 = vmatprep.subr.bf16.mxu0 0
  %2273 = vmatpush1.bf16.msra.mxu0 0
  %2274 = vmatprep.subr.bf16.mxu0 0
  %2275 = vmatpush1.bf16.msra.mxu0 0
  %2276 = vmatprep.subr.bf16.mxu0 0
  %2277 = vmatpush1.bf16.msra.mxu0 0
  %2278 = vmatprep.subr.bf16.mxu0 0
  %2279 = vmatpush1.bf16.msra.mxu0 0
  %2280 = vmatprep.subr.bf16.mxu0 0
  %2281 = vmatpush1.bf16.msra.mxu0 0
  %2282 = vmatprep.subr.bf16.mxu0 0
  %2283 = vmatpush1.bf16.msra.mxu0 0
  %2284 = vmatprep.subr.bf16.mxu0 0
  %2285 = vmatpush1.bf16.msra.mxu0 0
  %2286 = vmatprep.subr.bf16.mxu0 0
  %2287 = vmatpush1.bf16.msra.mxu0 0
  %2288 = vmatprep.subr.bf16.mxu0 0
  %2289 = vmatpush1.bf16.msra.mxu0 0
  %2290 = vmatprep.subr.bf16.mxu0 0
  %2291 = vmatpush1.bf16.msra.mxu0 0
  %2292 = vmatprep.subr.bf16.mxu0 0
  %2293 = vmatpush1.bf16.msra.mxu0 0
  %2294 = vmatprep.mubr.bf16.mxu0 0
  %2295 = vmatmul.mubr.bf16.gmra.mrb[0].mxu0 %v2201
  %v2296 = vpop.f32.mrb[0].mxu0
  %v2297 = vadd.f32 0.0, %v2296
  %v2298 = vpop.f32.mrb[0].mxu0
  %v2299 = vadd.f32 0.0, %v2298
  %v2300 = vpop.f32.mrb[0].mxu0
  %v2301 = vpop.f32.mrb[0].mxu0
  %2302 = vdwg.mxu0
  %2303 = vmatprep.subr.bf16.mxu0 %v2219
  %2304 = vmatpush1.bf16.msra.mxu0 %v2216
  %2305 = vmatprep.subr.bf16.mxu0 0
  %2306 = vmatpush1.bf16.msra.mxu0 0
  %2307 = vmatprep.subr.bf16.mxu0 0
  %2308 = vmatpush1.bf16.msra.mxu0 0
  %2309 = vmatprep.subr.bf16.mxu0 0
  %2310 = vmatpush1.bf16.msra.mxu0 0
  %2311 = vmatprep.subr.bf16.mxu0 0
  %2312 = vmatpush1.bf16.msra.mxu0 0
  %2313 = vmatprep.subr.bf16.mxu0 0
  %2314 = vmatpush1.bf16.msra.mxu0 0
  %2315 = vmatprep.subr.bf16.mxu0 0
  %2316 = vmatpush1.bf16.msra.mxu0 0
  %2317 = vmatprep.subr.bf16.mxu0 0
  %2318 = vmatpush1.bf16.msra.mxu0 0
  %2319 = vmatprep.subr.bf16.mxu0 0
  %2320 = vmatpush1.bf16.msra.mxu0 0
  %2321 = vmatprep.subr.bf16.mxu0 0
  %2322 = vmatpush1.bf16.msra.mxu0 0
  %2323 = vmatprep.subr.bf16.mxu0 0
  %2324 = vmatpush1.bf16.msra.mxu0 0
  %2325 = vmatprep.subr.bf16.mxu0 0
  %2326 = vmatpush1.bf16.msra.mxu0 0
  %2327 = vmatprep.subr.bf16.mxu0 0
  %2328 = vmatpush1.bf16.msra.mxu0 0
  %2329 = vmatprep.subr.bf16.mxu0 0
  %2330 = vmatpush1.bf16.msra.mxu0 0
  %2331 = vmatprep.subr.bf16.mxu0 0
  %2332 = vmatpush1.bf16.msra.mxu0 0
  %2333 = vmatprep.subr.bf16.mxu0 0
  %2334 = vmatpush1.bf16.msra.mxu0 0
  %2335 = vmatprep.mubr.bf16.mxu0 0
  %2336 = vmatmul.mubr.bf16.gmra.mrb[0].mxu0 %v2201
  %v2337 = vpop.f32.mrb[0].mxu0
  %v2338 = vadd.f32 0.0, %v2337
  %v2339 = vpop.f32.mrb[0].mxu0
  %v2340 = vadd.f32 0.0, %v2339
  %v2341 = vpop.f32.mrb[0].mxu0
  %v2342 = vpop.f32.mrb[0].mxu0
  %2343 = vdwg.mxu0
  %v2344 = vadd.f32 %v2170, %v2256
  %v2345 = vadd.f32 %v2171, %v2258
  %v2346 = vadd.f32 %v2172, %v2297
  %v2347 = vadd.f32 %v2173, %v2299
  %v2348 = vadd.f32 %v2174, %v2338
  %v2349 = vadd.f32 %v2175, %v2340
  %s2350 = scalar_lea.vmem %s5, 16
  %v2351 = vld [vmem:[%s2350] sm:$0xf]
  %v2352 = vpack.c.bf16 %v1649, %v1649
  %v2353 = vpack.c.bf16 %v1650, %v1650
  %v2354 = vpack.c.bf16 %v1651, %v1651
  %v2355 = vpack.c.bf16 %v1652, %v1652
  %v2356 = vpack.c.bf16 %v1654, %v1654
  %v2358 = vsel %vm106, %v2351, 0
  %v2361 = vsel %vm110, %v2352, 0
  %v2364 = vsel %vm110, %v2353, 0
  %v2367 = vsel %vm110, %v2354, 0
  %v2370 = vsel %vm110, %v2355, 0
  %v2373 = vsel %vm110, %v1671, 0
  %v2376 = vsel %vm110, %v2356, 0
  %2378 = vmatprep.subr.bf16.mxu0 %v2364
  %2379 = vmatpush1.bf16.msra.mxu0 %v2361
  %2380 = vmatprep.subr.bf16.mxu0 0
  %2381 = vmatpush1.bf16.msra.mxu0 0
  %2382 = vmatprep.subr.bf16.mxu0 0
  %2383 = vmatpush1.bf16.msra.mxu0 0
  %2384 = vmatprep.subr.bf16.mxu0 0
  %2385 = vmatpush1.bf16.msra.mxu0 0
  %2386 = vmatprep.subr.bf16.mxu0 0
  %2387 = vmatpush1.bf16.msra.mxu0 0
  %2388 = vmatprep.subr.bf16.mxu0 0
  %2389 = vmatpush1.bf16.msra.mxu0 0
  %2390 = vmatprep.subr.bf16.mxu0 0
  %2391 = vmatpush1.bf16.msra.mxu0 0
  %2392 = vmatprep.subr.bf16.mxu0 0
  %2393 = vmatpush1.bf16.msra.mxu0 0
  %2394 = vmatprep.subr.bf16.mxu0 0
  %2395 = vmatpush1.bf16.msra.mxu0 0
  %2396 = vmatprep.subr.bf16.mxu0 0
  %2397 = vmatpush1.bf16.msra.mxu0 0
  %2398 = vmatprep.subr.bf16.mxu0 0
  %2399 = vmatpush1.bf16.msra.mxu0 0
  %2400 = vmatprep.subr.bf16.mxu0 0
  %2401 = vmatpush1.bf16.msra.mxu0 0
  %2402 = vmatprep.subr.bf16.mxu0 0
  %2403 = vmatpush1.bf16.msra.mxu0 0
  %2404 = vmatprep.subr.bf16.mxu0 0
  %2405 = vmatpush1.bf16.msra.mxu0 0
  %2406 = vmatprep.subr.bf16.mxu0 0
  %2407 = vmatpush1.bf16.msra.mxu0 0
  %2408 = vmatprep.subr.bf16.mxu0 0
  %2409 = vmatpush1.bf16.msra.mxu0 0
  %2410 = vmatprep.mubr.bf16.mxu0 0
  %2411 = vmatmul.mubr.bf16.gmra.mrb[0].mxu0 %v2358
  %v2412 = vpop.f32.mrb[0].mxu0
  %v2413 = vadd.f32 0.0, %v2412
  %v2414 = vpop.f32.mrb[0].mxu0
  %v2415 = vadd.f32 0.0, %v2414
  %v2416 = vpop.f32.mrb[0].mxu0
  %v2417 = vpop.f32.mrb[0].mxu0
  %2418 = vdwg.mxu0
  %2419 = vmatprep.subr.bf16.mxu0 %v2370
  %2420 = vmatpush1.bf16.msra.mxu0 %v2367
  %2421 = vmatprep.subr.bf16.mxu0 0
  %2422 = vmatpush1.bf16.msra.mxu0 0
  %2423 = vmatprep.subr.bf16.mxu0 0
  %2424 = vmatpush1.bf16.msra.mxu0 0
  %2425 = vmatprep.subr.bf16.mxu0 0
  %2426 = vmatpush1.bf16.msra.mxu0 0
  %2427 = vmatprep.subr.bf16.mxu0 0
  %2428 = vmatpush1.bf16.msra.mxu0 0
  %2429 = vmatprep.subr.bf16.mxu0 0
  %2430 = vmatpush1.bf16.msra.mxu0 0
  %2431 = vmatprep.subr.bf16.mxu0 0
  %2432 = vmatpush1.bf16.msra.mxu0 0
  %2433 = vmatprep.subr.bf16.mxu0 0
  %2434 = vmatpush1.bf16.msra.mxu0 0
  %2435 = vmatprep.subr.bf16.mxu0 0
  %2436 = vmatpush1.bf16.msra.mxu0 0
  %2437 = vmatprep.subr.bf16.mxu0 0
  %2438 = vmatpush1.bf16.msra.mxu0 0
  %2439 = vmatprep.subr.bf16.mxu0 0
  %2440 = vmatpush1.bf16.msra.mxu0 0
  %2441 = vmatprep.subr.bf16.mxu0 0
  %2442 = vmatpush1.bf16.msra.mxu0 0
  %2443 = vmatprep.subr.bf16.mxu0 0
  %2444 = vmatpush1.bf16.msra.mxu0 0
  %2445 = vmatprep.subr.bf16.mxu0 0
  %2446 = vmatpush1.bf16.msra.mxu0 0
  %2447 = vmatprep.subr.bf16.mxu0 0
  %2448 = vmatpush1.bf16.msra.mxu0 0
  %2449 = vmatprep.subr.bf16.mxu0 0
  %2450 = vmatpush1.bf16.msra.mxu0 0
  %2451 = vmatprep.mubr.bf16.mxu0 0
  %2452 = vmatmul.mubr.bf16.gmra.mrb[0].mxu0 %v2358
  %v2453 = vpop.f32.mrb[0].mxu0
  %v2454 = vadd.f32 0.0, %v2453
  %v2455 = vpop.f32.mrb[0].mxu0
  %v2456 = vadd.f32 0.0, %v2455
  %v2457 = vpop.f32.mrb[0].mxu0
  %v2458 = vpop.f32.mrb[0].mxu0
  %2459 = vdwg.mxu0
  %2460 = vmatprep.subr.bf16.mxu0 %v2376
  %2461 = vmatpush1.bf16.msra.mxu0 %v2373
  %2462 = vmatprep.subr.bf16.mxu0 0
  %2463 = vmatpush1.bf16.msra.mxu0 0
  %2464 = vmatprep.subr.bf16.mxu0 0
  %2465 = vmatpush1.bf16.msra.mxu0 0
  %2466 = vmatprep.subr.bf16.mxu0 0
  %2467 = vmatpush1.bf16.msra.mxu0 0
  %2468 = vmatprep.subr.bf16.mxu0 0
  %2469 = vmatpush1.bf16.msra.mxu0 0
  %2470 = vmatprep.subr.bf16.mxu0 0
  %2471 = vmatpush1.bf16.msra.mxu0 0
  %2472 = vmatprep.subr.bf16.mxu0 0
  %2473 = vmatpush1.bf16.msra.mxu0 0
  %2474 = vmatprep.subr.bf16.mxu0 0
  %2475 = vmatpush1.bf16.msra.mxu0 0
  %2476 = vmatprep.subr.bf16.mxu0 0
  %2477 = vmatpush1.bf16.msra.mxu0 0
  %2478 = vmatprep.subr.bf16.mxu0 0
  %2479 = vmatpush1.bf16.msra.mxu0 0
  %2480 = vmatprep.subr.bf16.mxu0 0
  %2481 = vmatpush1.bf16.msra.mxu0 0
  %2482 = vmatprep.subr.bf16.mxu0 0
  %2483 = vmatpush1.bf16.msra.mxu0 0
  %2484 = vmatprep.subr.bf16.mxu0 0
  %2485 = vmatpush1.bf16.msra.mxu0 0
  %2486 = vmatprep.subr.bf16.mxu0 0
  %2487 = vmatpush1.bf16.msra.mxu0 0
  %2488 = vmatprep.subr.bf16.mxu0 0
  %2489 = vmatpush1.bf16.msra.mxu0 0
  %2490 = vmatprep.subr.bf16.mxu0 0
  %2491 = vmatpush1.bf16.msra.mxu0 0
  %2492 = vmatprep.mubr.bf16.mxu0 0
  %2493 = vmatmul.mubr.bf16.gmra.mrb[0].mxu0 %v2358
  %v2494 = vpop.f32.mrb[0].mxu0
  %v2495 = vadd.f32 0.0, %v2494
  %v2496 = vpop.f32.mrb[0].mxu0
  %v2497 = vadd.f32 0.0, %v2496
  %v2498 = vpop.f32.mrb[0].mxu0
  %v2499 = vpop.f32.mrb[0].mxu0
  %2500 = vdwg.mxu0
  %v2501 = vadd.f32 %v2344, %v2413
  %v2502 = vadd.f32 %v2345, %v2415
  %v2503 = vadd.f32 %v2346, %v2454
  %v2504 = vadd.f32 %v2347, %v2456
  %v2505 = vadd.f32 %v2348, %v2495
  %v2506 = vadd.f32 %v2349, %v2497
  %s2507 = scalar_lea.vmem %s5, 20
  %v2508 = vld [vmem:[%s2507] sm:$0xf]
  %2513 = vrot.lane.b32.xlu0 %v2352, 127
  %v2514 = vpop.permute.xlu0 %2513
  %2515 = vrot.lane.b32.xlu0 %v2353, 127
  %v2516 = vpop.permute.xlu0 %2515
  %2517 = vrot.lane.b32.xlu0 %v2354, 127
  %v2518 = vpop.permute.xlu0 %2517
  %2519 = vrot.lane.b32.xlu0 %v2355, 127
  %v2520 = vpop.permute.xlu0 %2519
  %2521 = vrot.lane.b32.xlu0 %v1671, 127
  %v2522 = vpop.permute.xlu0 %2521
  %2523 = vrot.lane.b32.xlu0 %v1672, 127
  %v2524 = vpop.permute.xlu0 %2523
  %v2525 = vsel %vm934, %v2514, %v2516
  %v2526 = vsel %vm934, %v2516, %v2518
  %v2527 = vsel %vm934, %v2518, %v2520
  %v2528 = vsel %vm934, %v2520, %v2522
  %v2529 = vsel %vm934, %v2522, %v2524
  %v2531 = vsel %vm106, %v2508, 0
  %v2534 = vsel %vm110, %v2525, 0
  %v2537 = vsel %vm110, %v2526, 0
  %v2540 = vsel %vm110, %v2527, 0
  %v2543 = vsel %vm110, %v2528, 0
  %v2546 = vsel %vm110, %v2529, 0
  %v2549 = vsel %vm110, %v2524, 0
  %2551 = vmatprep.subr.bf16.mxu0 %v2537
  %2552 = vmatpush1.bf16.msra.mxu0 %v2534
  %2553 = vmatprep.subr.bf16.mxu0 0
  %2554 = vmatpush1.bf16.msra.mxu0 0
  %2555 = vmatprep.subr.bf16.mxu0 0
  %2556 = vmatpush1.bf16.msra.mxu0 0
  %2557 = vmatprep.subr.bf16.mxu0 0
  %2558 = vmatpush1.bf16.msra.mxu0 0
  %2559 = vmatprep.subr.bf16.mxu0 0
  %2560 = vmatpush1.bf16.msra.mxu0 0
  %2561 = vmatprep.subr.bf16.mxu0 0
  %2562 = vmatpush1.bf16.msra.mxu0 0
  %2563 = vmatprep.subr.bf16.mxu0 0
  %2564 = vmatpush1.bf16.msra.mxu0 0
  %2565 = vmatprep.subr.bf16.mxu0 0
  %2566 = vmatpush1.bf16.msra.mxu0 0
  %2567 = vmatprep.subr.bf16.mxu0 0
  %2568 = vmatpush1.bf16.msra.mxu0 0
  %2569 = vmatprep.subr.bf16.mxu0 0
  %2570 = vmatpush1.bf16.msra.mxu0 0
  %2571 = vmatprep.subr.bf16.mxu0 0
  %2572 = vmatpush1.bf16.msra.mxu0 0
  %2573 = vmatprep.subr.bf16.mxu0 0
  %2574 = vmatpush1.bf16.msra.mxu0 0
  %2575 = vmatprep.subr.bf16.mxu0 0
  %2576 = vmatpush1.bf16.msra.mxu0 0
  %2577 = vmatprep.subr.bf16.mxu0 0
  %2578 = vmatpush1.bf16.msra.mxu0 0
  %2579 = vmatprep.subr.bf16.mxu0 0
  %2580 = vmatpush1.bf16.msra.mxu0 0
  %2581 = vmatprep.subr.bf16.mxu0 0
  %2582 = vmatpush1.bf16.msra.mxu0 0
  %2583 = vmatprep.mubr.bf16.mxu0 0
  %2584 = vmatmul.mubr.bf16.gmra.mrb[0].mxu0 %v2531
  %v2585 = vpop.f32.mrb[0].mxu0
  %v2586 = vadd.f32 0.0, %v2585
  %v2587 = vpop.f32.mrb[0].mxu0
  %v2588 = vadd.f32 0.0, %v2587
  %v2589 = vpop.f32.mrb[0].mxu0
  %v2590 = vpop.f32.mrb[0].mxu0
  %2591 = vdwg.mxu0
  %2592 = vmatprep.subr.bf16.mxu0 %v2543
  %2593 = vmatpush1.bf16.msra.mxu0 %v2540
  %2594 = vmatprep.subr.bf16.mxu0 0
  %2595 = vmatpush1.bf16.msra.mxu0 0
  %2596 = vmatprep.subr.bf16.mxu0 0
  %2597 = vmatpush1.bf16.msra.mxu0 0
  %2598 = vmatprep.subr.bf16.mxu0 0
  %2599 = vmatpush1.bf16.msra.mxu0 0
  %2600 = vmatprep.subr.bf16.mxu0 0
  %2601 = vmatpush1.bf16.msra.mxu0 0
  %2602 = vmatprep.subr.bf16.mxu0 0
  %2603 = vmatpush1.bf16.msra.mxu0 0
  %2604 = vmatprep.subr.bf16.mxu0 0
  %2605 = vmatpush1.bf16.msra.mxu0 0
  %2606 = vmatprep.subr.bf16.mxu0 0
  %2607 = vmatpush1.bf16.msra.mxu0 0
  %2608 = vmatprep.subr.bf16.mxu0 0
  %2609 = vmatpush1.bf16.msra.mxu0 0
  %2610 = vmatprep.subr.bf16.mxu0 0
  %2611 = vmatpush1.bf16.msra.mxu0 0
  %2612 = vmatprep.subr.bf16.mxu0 0
  %2613 = vmatpush1.bf16.msra.mxu0 0
  %2614 = vmatprep.subr.bf16.mxu0 0
  %2615 = vmatpush1.bf16.msra.mxu0 0
  %2616 = vmatprep.subr.bf16.mxu0 0
  %2617 = vmatpush1.bf16.msra.mxu0 0
  %2618 = vmatprep.subr.bf16.mxu0 0
  %2619 = vmatpush1.bf16.msra.mxu0 0
  %2620 = vmatprep.subr.bf16.mxu0 0
  %2621 = vmatpush1.bf16.msra.mxu0 0
  %2622 = vmatprep.subr.bf16.mxu0 0
  %2623 = vmatpush1.bf16.msra.mxu0 0
  %2624 = vmatprep.mubr.bf16.mxu0 0
  %2625 = vmatmul.mubr.bf16.gmra.mrb[0].mxu0 %v2531
  %v2626 = vpop.f32.mrb[0].mxu0
  %v2627 = vadd.f32 0.0, %v2626
  %v2628 = vpop.f32.mrb[0].mxu0
  %v2629 = vadd.f32 0.0, %v2628
  %v2630 = vpop.f32.mrb[0].mxu0
  %v2631 = vpop.f32.mrb[0].mxu0
  %2632 = vdwg.mxu0
  %2633 = vmatprep.subr.bf16.mxu0 %v2549
  %2634 = vmatpush1.bf16.msra.mxu0 %v2546
  %2635 = vmatprep.subr.bf16.mxu0 0
  %2636 = vmatpush1.bf16.msra.mxu0 0
  %2637 = vmatprep.subr.bf16.mxu0 0
  %2638 = vmatpush1.bf16.msra.mxu0 0
  %2639 = vmatprep.subr.bf16.mxu0 0
  %2640 = vmatpush1.bf16.msra.mxu0 0
  %2641 = vmatprep.subr.bf16.mxu0 0
  %2642 = vmatpush1.bf16.msra.mxu0 0
  %2643 = vmatprep.subr.bf16.mxu0 0
  %2644 = vmatpush1.bf16.msra.mxu0 0
  %2645 = vmatprep.subr.bf16.mxu0 0
  %2646 = vmatpush1.bf16.msra.mxu0 0
  %2647 = vmatprep.subr.bf16.mxu0 0
  %2648 = vmatpush1.bf16.msra.mxu0 0
  %2649 = vmatprep.subr.bf16.mxu0 0
  %2650 = vmatpush1.bf16.msra.mxu0 0
  %2651 = vmatprep.subr.bf16.mxu0 0
  %2652 = vmatpush1.bf16.msra.mxu0 0
  %2653 = vmatprep.subr.bf16.mxu0 0
  %2654 = vmatpush1.bf16.msra.mxu0 0
  %2655 = vmatprep.subr.bf16.mxu0 0
  %2656 = vmatpush1.bf16.msra.mxu0 0
  %2657 = vmatprep.subr.bf16.mxu0 0
  %2658 = vmatpush1.bf16.msra.mxu0 0
  %2659 = vmatprep.subr.bf16.mxu0 0
  %2660 = vmatpush1.bf16.msra.mxu0 0
  %2661 = vmatprep.subr.bf16.mxu0 0
  %2662 = vmatpush1.bf16.msra.mxu0 0
  %2663 = vmatprep.subr.bf16.mxu0 0
  %2664 = vmatpush1.bf16.msra.mxu0 0
  %2665 = vmatprep.mubr.bf16.mxu0 0
  %2666 = vmatmul.mubr.bf16.gmra.mrb[0].mxu0 %v2531
  %v2667 = vpop.f32.mrb[0].mxu0
  %v2668 = vadd.f32 0.0, %v2667
  %v2669 = vpop.f32.mrb[0].mxu0
  %v2670 = vadd.f32 0.0, %v2669
  %v2671 = vpop.f32.mrb[0].mxu0
  %v2672 = vpop.f32.mrb[0].mxu0
  %2673 = vdwg.mxu0
  %v2674 = vadd.f32 %v2501, %v2586
  %v2675 = vadd.f32 %v2502, %v2588
  %v2676 = vadd.f32 %v2503, %v2627
  %v2677 = vadd.f32 %v2504, %v2629
  %v2678 = vadd.f32 %v2505, %v2668
  %v2679 = vadd.f32 %v2506, %v2670
  %s2680 = scalar_lea.vmem %s5, 24
  %v2681 = vld [vmem:[%s2680] sm:$0xf]
  %2682 = vrot.lane.b32.xlu0 %v2352, 111
  %v2683 = vpop.permute.xlu0 %2682
  %2684 = vrot.lane.b32.xlu0 %v2353, 111
  %v2685 = vpop.permute.xlu0 %2684
  %2686 = vrot.lane.b32.xlu0 %v2354, 111
  %v2687 = vpop.permute.xlu0 %2686
  %2688 = vrot.lane.b32.xlu0 %v2355, 111
  %v2689 = vpop.permute.xlu0 %2688
  %2690 = vrot.lane.b32.xlu0 %v1671, 111
  %v2691 = vpop.permute.xlu0 %2690
  %2692 = vrot.lane.b32.xlu0 %v1672, 111
  %v2693 = vpop.permute.xlu0 %2692
  %v2694 = vsel %vm1104, %v2683, %v2685
  %v2695 = vsel %vm1104, %v2685, %v2687
  %v2696 = vsel %vm1104, %v2687, %v2689
  %v2697 = vsel %vm1104, %v2689, %v2691
  %v2698 = vsel %vm1104, %v2691, %v2693
  %v2700 = vsel %vm106, %v2681, 0
  %v2703 = vsel %vm110, %v2694, 0
  %v2706 = vsel %vm110, %v2695, 0
  %v2709 = vsel %vm110, %v2696, 0
  %v2712 = vsel %vm110, %v2697, 0
  %v2715 = vsel %vm110, %v2698, 0
  %v2718 = vsel %vm110, %v2693, 0
  %2720 = vmatprep.subr.bf16.mxu0 %v2706
  %2721 = vmatpush1.bf16.msra.mxu0 %v2703
  %2722 = vmatprep.subr.bf16.mxu0 0
  %2723 = vmatpush1.bf16.msra.mxu0 0
  %2724 = vmatprep.subr.bf16.mxu0 0
  %2725 = vmatpush1.bf16.msra.mxu0 0
  %2726 = vmatprep.subr.bf16.mxu0 0
  %2727 = vmatpush1.bf16.msra.mxu0 0
  %2728 = vmatprep.subr.bf16.mxu0 0
  %2729 = vmatpush1.bf16.msra.mxu0 0
  %2730 = vmatprep.subr.bf16.mxu0 0
  %2731 = vmatpush1.bf16.msra.mxu0 0
  %2732 = vmatprep.subr.bf16.mxu0 0
  %2733 = vmatpush1.bf16.msra.mxu0 0
  %2734 = vmatprep.subr.bf16.mxu0 0
  %2735 = vmatpush1.bf16.msra.mxu0 0
  %2736 = vmatprep.subr.bf16.mxu0 0
  %2737 = vmatpush1.bf16.msra.mxu0 0
  %2738 = vmatprep.subr.bf16.mxu0 0
  %2739 = vmatpush1.bf16.msra.mxu0 0
  %2740 = vmatprep.subr.bf16.mxu0 0
  %2741 = vmatpush1.bf16.msra.mxu0 0
  %2742 = vmatprep.subr.bf16.mxu0 0
  %2743 = vmatpush1.bf16.msra.mxu0 0
  %2744 = vmatprep.subr.bf16.mxu0 0
  %2745 = vmatpush1.bf16.msra.mxu0 0
  %2746 = vmatprep.subr.bf16.mxu0 0
  %2747 = vmatpush1.bf16.msra.mxu0 0
  %2748 = vmatprep.subr.bf16.mxu0 0
  %2749 = vmatpush1.bf16.msra.mxu0 0
  %2750 = vmatprep.subr.bf16.mxu0 0
  %2751 = vmatpush1.bf16.msra.mxu0 0
  %2752 = vmatprep.mubr.bf16.mxu0 0
  %2753 = vmatmul.mubr.bf16.gmra.mrb[0].mxu0 %v2700
  %v2754 = vpop.f32.mrb[0].mxu0
  %v2755 = vadd.f32 0.0, %v2754
  %v2756 = vpop.f32.mrb[0].mxu0
  %v2757 = vadd.f32 0.0, %v2756
  %v2758 = vpop.f32.mrb[0].mxu0
  %v2759 = vpop.f32.mrb[0].mxu0
  %2760 = vdwg.mxu0
  %2761 = vmatprep.subr.bf16.mxu0 %v2712
  %2762 = vmatpush1.bf16.msra.mxu0 %v2709
  %2763 = vmatprep.subr.bf16.mxu0 0
  %2764 = vmatpush1.bf16.msra.mxu0 0
  %2765 = vmatprep.subr.bf16.mxu0 0
  %2766 = vmatpush1.bf16.msra.mxu0 0
  %2767 = vmatprep.subr.bf16.mxu0 0
  %2768 = vmatpush1.bf16.msra.mxu0 0
  %2769 = vmatprep.subr.bf16.mxu0 0
  %2770 = vmatpush1.bf16.msra.mxu0 0
  %2771 = vmatprep.subr.bf16.mxu0 0
  %2772 = vmatpush1.bf16.msra.mxu0 0
  %2773 = vmatprep.subr.bf16.mxu0 0
  %2774 = vmatpush1.bf16.msra.mxu0 0
  %2775 = vmatprep.subr.bf16.mxu0 0
  %2776 = vmatpush1.bf16.msra.mxu0 0
  %2777 = vmatprep.subr.bf16.mxu0 0
  %2778 = vmatpush1.bf16.msra.mxu0 0
  %2779 = vmatprep.subr.bf16.mxu0 0
  %2780 = vmatpush1.bf16.msra.mxu0 0
  %2781 = vmatprep.subr.bf16.mxu0 0
  %2782 = vmatpush1.bf16.msra.mxu0 0
  %2783 = vmatprep.subr.bf16.mxu0 0
  %2784 = vmatpush1.bf16.msra.mxu0 0
  %2785 = vmatprep.subr.bf16.mxu0 0
  %2786 = vmatpush1.bf16.msra.mxu0 0
  %2787 = vmatprep.subr.bf16.mxu0 0
  %2788 = vmatpush1.bf16.msra.mxu0 0
  %2789 = vmatprep.subr.bf16.mxu0 0
  %2790 = vmatpush1.bf16.msra.mxu0 0
  %2791 = vmatprep.subr.bf16.mxu0 0
  %2792 = vmatpush1.bf16.msra.mxu0 0
  %2793 = vmatprep.mubr.bf16.mxu0 0
  %2794 = vmatmul.mubr.bf16.gmra.mrb[0].mxu0 %v2700
  %v2795 = vpop.f32.mrb[0].mxu0
  %v2796 = vadd.f32 0.0, %v2795
  %v2797 = vpop.f32.mrb[0].mxu0
  %v2798 = vadd.f32 0.0, %v2797
  %v2799 = vpop.f32.mrb[0].mxu0
  %v2800 = vpop.f32.mrb[0].mxu0
  %2801 = vdwg.mxu0
  %2802 = vmatprep.subr.bf16.mxu0 %v2718
  %2803 = vmatpush1.bf16.msra.mxu0 %v2715
  %2804 = vmatprep.subr.bf16.mxu0 0
  %2805 = vmatpush1.bf16.msra.mxu0 0
  %2806 = vmatprep.subr.bf16.mxu0 0
  %2807 = vmatpush1.bf16.msra.mxu0 0
  %2808 = vmatprep.subr.bf16.mxu0 0
  %2809 = vmatpush1.bf16.msra.mxu0 0
  %2810 = vmatprep.subr.bf16.mxu0 0
  %2811 = vmatpush1.bf16.msra.mxu0 0
  %2812 = vmatprep.subr.bf16.mxu0 0
  %2813 = vmatpush1.bf16.msra.mxu0 0
  %2814 = vmatprep.subr.bf16.mxu0 0
  %2815 = vmatpush1.bf16.msra.mxu0 0
  %2816 = vmatprep.subr.bf16.mxu0 0
  %2817 = vmatpush1.bf16.msra.mxu0 0
  %2818 = vmatprep.subr.bf16.mxu0 0
  %2819 = vmatpush1.bf16.msra.mxu0 0
  %2820 = vmatprep.subr.bf16.mxu0 0
  %2821 = vmatpush1.bf16.msra.mxu0 0
  %2822 = vmatprep.subr.bf16.mxu0 0
  %2823 = vmatpush1.bf16.msra.mxu0 0
  %2824 = vmatprep.subr.bf16.mxu0 0
  %2825 = vmatpush1.bf16.msra.mxu0 0
  %2826 = vmatprep.subr.bf16.mxu0 0
  %2827 = vmatpush1.bf16.msra.mxu0 0
  %2828 = vmatprep.subr.bf16.mxu0 0
  %2829 = vmatpush1.bf16.msra.mxu0 0
  %2830 = vmatprep.subr.bf16.mxu0 0
  %2831 = vmatpush1.bf16.msra.mxu0 0
  %2832 = vmatprep.subr.bf16.mxu0 0
  %2833 = vmatpush1.bf16.msra.mxu0 0
  %2834 = vmatprep.mubr.bf16.mxu0 0
  %2835 = vmatmul.mubr.bf16.gmra.mrb[0].mxu0 %v2700
  %v2836 = vpop.f32.mrb[0].mxu0
  %v2837 = vadd.f32 0.0, %v2836
  %v2838 = vpop.f32.mrb[0].mxu0
  %v2839 = vadd.f32 0.0, %v2838
  %v2840 = vpop.f32.mrb[0].mxu0
  %v2841 = vpop.f32.mrb[0].mxu0
  %2842 = vdwg.mxu0
  %v2843 = vadd.f32 %v2674, %v2755
  %v2844 = vadd.f32 %v2675, %v2757
  %v2845 = vadd.f32 %v2676, %v2796
  %v2846 = vadd.f32 %v2677, %v2798
  %v2847 = vadd.f32 %v2678, %v2837
  %v2848 = vadd.f32 %v2679, %v2839
  %s2849 = scalar_lea.vmem %s5, 28
  %v2850 = vld [vmem:[%s2849] sm:$0xf]
  %2851 = vrot.lane.b32.xlu0 %v2352, 110
  %v2852 = vpop.permute.xlu0 %2851
  %2853 = vrot.lane.b32.xlu0 %v2353, 110
  %v2854 = vpop.permute.xlu0 %2853
  %2855 = vrot.lane.b32.xlu0 %v2354, 110
  %v2856 = vpop.permute.xlu0 %2855
  %2857 = vrot.lane.b32.xlu0 %v2355, 110
  %v2858 = vpop.permute.xlu0 %2857
  %2859 = vrot.lane.b32.xlu0 %v1671, 110
  %v2860 = vpop.permute.xlu0 %2859
  %2861 = vrot.lane.b32.xlu0 %v1672, 110
  %v2862 = vpop.permute.xlu0 %2861
  %v2863 = vsel %vm1274, %v2852, %v2854
  %v2864 = vsel %vm1274, %v2854, %v2856
  %v2865 = vsel %vm1274, %v2856, %v2858
  %v2866 = vsel %vm1274, %v2858, %v2860
  %v2867 = vsel %vm1274, %v2860, %v2862
  %v2869 = vsel %vm106, %v2850, 0
  %v2872 = vsel %vm110, %v2863, 0
  %v2875 = vsel %vm110, %v2864, 0
  %v2878 = vsel %vm110, %v2865, 0
  %v2881 = vsel %vm110, %v2866, 0
  %v2884 = vsel %vm110, %v2867, 0
  %v2887 = vsel %vm110, %v2862, 0
  %2889 = vmatprep.subr.bf16.mxu0 %v2875
  %2890 = vmatpush1.bf16.msra.mxu0 %v2872
  %2891 = vmatprep.subr.bf16.mxu0 0
  %2892 = vmatpush1.bf16.msra.mxu0 0
  %2893 = vmatprep.subr.bf16.mxu0 0
  %2894 = vmatpush1.bf16.msra.mxu0 0
  %2895 = vmatprep.subr.bf16.mxu0 0
  %2896 = vmatpush1.bf16.msra.mxu0 0
  %2897 = vmatprep.subr.bf16.mxu0 0
  %2898 = vmatpush1.bf16.msra.mxu0 0
  %2899 = vmatprep.subr.bf16.mxu0 0
  %2900 = vmatpush1.bf16.msra.mxu0 0
  %2901 = vmatprep.subr.bf16.mxu0 0
  %2902 = vmatpush1.bf16.msra.mxu0 0
  %2903 = vmatprep.subr.bf16.mxu0 0
  %2904 = vmatpush1.bf16.msra.mxu0 0
  %2905 = vmatprep.subr.bf16.mxu0 0
  %2906 = vmatpush1.bf16.msra.mxu0 0
  %2907 = vmatprep.subr.bf16.mxu0 0
  %2908 = vmatpush1.bf16.msra.mxu0 0
  %2909 = vmatprep.subr.bf16.mxu0 0
  %2910 = vmatpush1.bf16.msra.mxu0 0
  %2911 = vmatprep.subr.bf16.mxu0 0
  %2912 = vmatpush1.bf16.msra.mxu0 0
  %2913 = vmatprep.subr.bf16.mxu0 0
  %2914 = vmatpush1.bf16.msra.mxu0 0
  %2915 = vmatprep.subr.bf16.mxu0 0
  %2916 = vmatpush1.bf16.msra.mxu0 0
  %2917 = vmatprep.subr.bf16.mxu0 0
  %2918 = vmatpush1.bf16.msra.mxu0 0
  %2919 = vmatprep.subr.bf16.mxu0 0
  %2920 = vmatpush1.bf16.msra.mxu0 0
  %2921 = vmatprep.mubr.bf16.mxu0 0
  %2922 = vmatmul.mubr.bf16.gmra.mrb[0].mxu0 %v2869
  %v2923 = vpop.f32.mrb[0].mxu0
  %v2924 = vadd.f32 0.0, %v2923
  %v2925 = vpop.f32.mrb[0].mxu0
  %v2926 = vadd.f32 0.0, %v2925
  %v2927 = vpop.f32.mrb[0].mxu0
  %v2928 = vpop.f32.mrb[0].mxu0
  %2929 = vdwg.mxu0
  %2930 = vmatprep.subr.bf16.mxu0 %v2881
  %2931 = vmatpush1.bf16.msra.mxu0 %v2878
  %2932 = vmatprep.subr.bf16.mxu0 0
  %2933 = vmatpush1.bf16.msra.mxu0 0
  %2934 = vmatprep.subr.bf16.mxu0 0
  %2935 = vmatpush1.bf16.msra.mxu0 0
  %2936 = vmatprep.subr.bf16.mxu0 0
  %2937 = vmatpush1.bf16.msra.mxu0 0
  %2938 = vmatprep.subr.bf16.mxu0 0
  %2939 = vmatpush1.bf16.msra.mxu0 0
  %2940 = vmatprep.subr.bf16.mxu0 0
  %2941 = vmatpush1.bf16.msra.mxu0 0
  %2942 = vmatprep.subr.bf16.mxu0 0
  %2943 = vmatpush1.bf16.msra.mxu0 0
  %2944 = vmatprep.subr.bf16.mxu0 0
  %2945 = vmatpush1.bf16.msra.mxu0 0
  %2946 = vmatprep.subr.bf16.mxu0 0
  %2947 = vmatpush1.bf16.msra.mxu0 0
  %2948 = vmatprep.subr.bf16.mxu0 0
  %2949 = vmatpush1.bf16.msra.mxu0 0
  %2950 = vmatprep.subr.bf16.mxu0 0
  %2951 = vmatpush1.bf16.msra.mxu0 0
  %2952 = vmatprep.subr.bf16.mxu0 0
  %2953 = vmatpush1.bf16.msra.mxu0 0
  %2954 = vmatprep.subr.bf16.mxu0 0
  %2955 = vmatpush1.bf16.msra.mxu0 0
  %2956 = vmatprep.subr.bf16.mxu0 0
  %2957 = vmatpush1.bf16.msra.mxu0 0
  %2958 = vmatprep.subr.bf16.mxu0 0
  %2959 = vmatpush1.bf16.msra.mxu0 0
  %2960 = vmatprep.subr.bf16.mxu0 0
  %2961 = vmatpush1.bf16.msra.mxu0 0
  %2962 = vmatprep.mubr.bf16.mxu0 0
  %2963 = vmatmul.mubr.bf16.gmra.mrb[0].mxu0 %v2869
  %v2964 = vpop.f32.mrb[0].mxu0
  %v2965 = vadd.f32 0.0, %v2964
  %v2966 = vpop.f32.mrb[0].mxu0
  %v2967 = vadd.f32 0.0, %v2966
  %v2968 = vpop.f32.mrb[0].mxu0
  %v2969 = vpop.f32.mrb[0].mxu0
  %2970 = vdwg.mxu0
  %2971 = vmatprep.subr.bf16.mxu0 %v2887
  %2972 = vmatpush1.bf16.msra.mxu0 %v2884
  %2973 = vmatprep.subr.bf16.mxu0 0
  %2974 = vmatpush1.bf16.msra.mxu0 0
  %2975 = vmatprep.subr.bf16.mxu0 0
  %2976 = vmatpush1.bf16.msra.mxu0 0
  %2977 = vmatprep.subr.bf16.mxu0 0
  %2978 = vmatpush1.bf16.msra.mxu0 0
  %2979 = vmatprep.subr.bf16.mxu0 0
  %2980 = vmatpush1.bf16.msra.mxu0 0
  %2981 = vmatprep.subr.bf16.mxu0 0
  %2982 = vmatpush1.bf16.msra.mxu0 0
  %2983 = vmatprep.subr.bf16.mxu0 0
  %2984 = vmatpush1.bf16.msra.mxu0 0
  %2985 = vmatprep.subr.bf16.mxu0 0
  %2986 = vmatpush1.bf16.msra.mxu0 0
  %2987 = vmatprep.subr.bf16.mxu0 0
  %2988 = vmatpush1.bf16.msra.mxu0 0
  %2989 = vmatprep.subr.bf16.mxu0 0
  %2990 = vmatpush1.bf16.msra.mxu0 0
  %2991 = vmatprep.subr.bf16.mxu0 0
  %2992 = vmatpush1.bf16.msra.mxu0 0
  %2993 = vmatprep.subr.bf16.mxu0 0
  %2994 = vmatpush1.bf16.msra.mxu0 0
  %2995 = vmatprep.subr.bf16.mxu0 0
  %2996 = vmatpush1.bf16.msra.mxu0 0
  %2997 = vmatprep.subr.bf16.mxu0 0
  %2998 = vmatpush1.bf16.msra.mxu0 0
  %2999 = vmatprep.subr.bf16.mxu0 0
  %3000 = vmatpush1.bf16.msra.mxu0 0
  %3001 = vmatprep.subr.bf16.mxu0 0
  %3002 = vmatpush1.bf16.msra.mxu0 0
  %3003 = vmatprep.mubr.bf16.mxu0 0
  %3004 = vmatmul.mubr.bf16.gmra.mrb[0].mxu0 %v2869
  %v3005 = vpop.f32.mrb[0].mxu0
  %v3006 = vadd.f32 0.0, %v3005
  %v3007 = vpop.f32.mrb[0].mxu0
  %v3008 = vadd.f32 0.0, %v3007
  %v3009 = vpop.f32.mrb[0].mxu0
  %v3010 = vpop.f32.mrb[0].mxu0
  %3011 = vdwg.mxu0
  %v3012 = vadd.f32 %v2843, %v2924
  %v3013 = vadd.f32 %v2844, %v2926
  %v3014 = vadd.f32 %v2845, %v2965
  %v3015 = vadd.f32 %v2846, %v2967
  %v3016 = vadd.f32 %v2847, %v3006
  %v3017 = vadd.f32 %v2848, %v3008
  %s3018 = scalar_lea.vmem %s5, 32
  %v3019 = vld [vmem:[%s3018] sm:$0xf]
  %3020 = vrot.lane.b32.xlu0 %v2352, 109
  %v3021 = vpop.permute.xlu0 %3020
  %3022 = vrot.lane.b32.xlu0 %v2353, 109
  %v3023 = vpop.permute.xlu0 %3022
  %3024 = vrot.lane.b32.xlu0 %v2354, 109
  %v3025 = vpop.permute.xlu0 %3024
  %3026 = vrot.lane.b32.xlu0 %v2355, 109
  %v3027 = vpop.permute.xlu0 %3026
  %3028 = vrot.lane.b32.xlu0 %v1671, 109
  %v3029 = vpop.permute.xlu0 %3028
  %3030 = vrot.lane.b32.xlu0 %v1672, 109
  %v3031 = vpop.permute.xlu0 %3030
  %v3032 = vsel %vm1444, %v3021, %v3023
  %v3033 = vsel %vm1444, %v3023, %v3025
  %v3034 = vsel %vm1444, %v3025, %v3027
  %v3035 = vsel %vm1444, %v3027, %v3029
  %v3036 = vsel %vm1444, %v3029, %v3031
  %v3038 = vsel %vm106, %v3019, 0
  %v3041 = vsel %vm110, %v3032, 0
  %v3044 = vsel %vm110, %v3033, 0
  %v3047 = vsel %vm110, %v3034, 0
  %v3050 = vsel %vm110, %v3035, 0
  %v3053 = vsel %vm110, %v3036, 0
  %v3056 = vsel %vm110, %v3031, 0
  %3058 = vmatprep.subr.bf16.mxu0 %v3044
  %3059 = vmatpush1.bf16.msra.mxu0 %v3041
  %3060 = vmatprep.subr.bf16.mxu0 0
  %3061 = vmatpush1.bf16.msra.mxu0 0
  %3062 = vmatprep.subr.bf16.mxu0 0
  %3063 = vmatpush1.bf16.msra.mxu0 0
  %3064 = vmatprep.subr.bf16.mxu0 0
  %3065 = vmatpush1.bf16.msra.mxu0 0
  %3066 = vmatprep.subr.bf16.mxu0 0
  %3067 = vmatpush1.bf16.msra.mxu0 0
  %3068 = vmatprep.subr.bf16.mxu0 0
  %3069 = vmatpush1.bf16.msra.mxu0 0
  %3070 = vmatprep.subr.bf16.mxu0 0
  %3071 = vmatpush1.bf16.msra.mxu0 0
  %3072 = vmatprep.subr.bf16.mxu0 0
  %3073 = vmatpush1.bf16.msra.mxu0 0
  %3074 = vmatprep.subr.bf16.mxu0 0
  %3075 = vmatpush1.bf16.msra.mxu0 0
  %3076 = vmatprep.subr.bf16.mxu0 0
  %3077 = vmatpush1.bf16.msra.mxu0 0
  %3078 = vmatprep.subr.bf16.mxu0 0
  %3079 = vmatpush1.bf16.msra.mxu0 0
  %3080 = vmatprep.subr.bf16.mxu0 0
  %3081 = vmatpush1.bf16.msra.mxu0 0
  %3082 = vmatprep.subr.bf16.mxu0 0
  %3083 = vmatpush1.bf16.msra.mxu0 0
  %3084 = vmatprep.subr.bf16.mxu0 0
  %3085 = vmatpush1.bf16.msra.mxu0 0
  %3086 = vmatprep.subr.bf16.mxu0 0
  %3087 = vmatpush1.bf16.msra.mxu0 0
  %3088 = vmatprep.subr.bf16.mxu0 0
  %3089 = vmatpush1.bf16.msra.mxu0 0
  %3090 = vmatprep.mubr.bf16.mxu0 0
  %3091 = vmatmul.mubr.bf16.gmra.mrb[0].mxu0 %v3038
  %v3092 = vpop.f32.mrb[0].mxu0
  %v3093 = vadd.f32 0.0, %v3092
  %v3094 = vpop.f32.mrb[0].mxu0
  %v3095 = vadd.f32 0.0, %v3094
  %v3096 = vpop.f32.mrb[0].mxu0
  %v3097 = vpop.f32.mrb[0].mxu0
  %3098 = vdwg.mxu0
  %3099 = vmatprep.subr.bf16.mxu0 %v3050
  %3100 = vmatpush1.bf16.msra.mxu0 %v3047
  %3101 = vmatprep.subr.bf16.mxu0 0
  %3102 = vmatpush1.bf16.msra.mxu0 0
  %3103 = vmatprep.subr.bf16.mxu0 0
  %3104 = vmatpush1.bf16.msra.mxu0 0
  %3105 = vmatprep.subr.bf16.mxu0 0
  %3106 = vmatpush1.bf16.msra.mxu0 0
  %3107 = vmatprep.subr.bf16.mxu0 0
  %3108 = vmatpush1.bf16.msra.mxu0 0
  %3109 = vmatprep.subr.bf16.mxu0 0
  %3110 = vmatpush1.bf16.msra.mxu0 0
  %3111 = vmatprep.subr.bf16.mxu0 0
  %3112 = vmatpush1.bf16.msra.mxu0 0
  %3113 = vmatprep.subr.bf16.mxu0 0
  %3114 = vmatpush1.bf16.msra.mxu0 0
  %3115 = vmatprep.subr.bf16.mxu0 0
  %3116 = vmatpush1.bf16.msra.mxu0 0
  %3117 = vmatprep.subr.bf16.mxu0 0
  %3118 = vmatpush1.bf16.msra.mxu0 0
  %3119 = vmatprep.subr.bf16.mxu0 0
  %3120 = vmatpush1.bf16.msra.mxu0 0
  %3121 = vmatprep.subr.bf16.mxu0 0
  %3122 = vmatpush1.bf16.msra.mxu0 0
  %3123 = vmatprep.subr.bf16.mxu0 0
  %3124 = vmatpush1.bf16.msra.mxu0 0
  %3125 = vmatprep.subr.bf16.mxu0 0
  %3126 = vmatpush1.bf16.msra.mxu0 0
  %3127 = vmatprep.subr.bf16.mxu0 0
  %3128 = vmatpush1.bf16.msra.mxu0 0
  %3129 = vmatprep.subr.bf16.mxu0 0
  %3130 = vmatpush1.bf16.msra.mxu0 0
  %3131 = vmatprep.mubr.bf16.mxu0 0
  %3132 = vmatmul.mubr.bf16.gmra.mrb[0].mxu0 %v3038
  %v3133 = vpop.f32.mrb[0].mxu0
  %v3134 = vadd.f32 0.0, %v3133
  %v3135 = vpop.f32.mrb[0].mxu0
  %v3136 = vadd.f32 0.0, %v3135
  %v3137 = vpop.f32.mrb[0].mxu0
  %v3138 = vpop.f32.mrb[0].mxu0
  %3139 = vdwg.mxu0
  %3140 = vmatprep.subr.bf16.mxu0 %v3056
  %3141 = vmatpush1.bf16.msra.mxu0 %v3053
  %3142 = vmatprep.subr.bf16.mxu0 0
  %3143 = vmatpush1.bf16.msra.mxu0 0
  %3144 = vmatprep.subr.bf16.mxu0 0
  %3145 = vmatpush1.bf16.msra.mxu0 0
  %3146 = vmatprep.subr.bf16.mxu0 0
  %3147 = vmatpush1.bf16.msra.mxu0 0
  %3148 = vmatprep.subr.bf16.mxu0 0
  %3149 = vmatpush1.bf16.msra.mxu0 0
  %3150 = vmatprep.subr.bf16.mxu0 0
  %3151 = vmatpush1.bf16.msra.mxu0 0
  %3152 = vmatprep.subr.bf16.mxu0 0
  %3153 = vmatpush1.bf16.msra.mxu0 0
  %3154 = vmatprep.subr.bf16.mxu0 0
  %3155 = vmatpush1.bf16.msra.mxu0 0
  %3156 = vmatprep.subr.bf16.mxu0 0
  %3157 = vmatpush1.bf16.msra.mxu0 0
  %3158 = vmatprep.subr.bf16.mxu0 0
  %3159 = vmatpush1.bf16.msra.mxu0 0
  %3160 = vmatprep.subr.bf16.mxu0 0
  %3161 = vmatpush1.bf16.msra.mxu0 0
  %3162 = vmatprep.subr.bf16.mxu0 0
  %3163 = vmatpush1.bf16.msra.mxu0 0
  %3164 = vmatprep.subr.bf16.mxu0 0
  %3165 = vmatpush1.bf16.msra.mxu0 0
  %3166 = vmatprep.subr.bf16.mxu0 0
  %3167 = vmatpush1.bf16.msra.mxu0 0
  %3168 = vmatprep.subr.bf16.mxu0 0
  %3169 = vmatpush1.bf16.msra.mxu0 0
  %3170 = vmatprep.subr.bf16.mxu0 0
  %3171 = vmatpush1.bf16.msra.mxu0 0
  %3172 = vmatprep.mubr.bf16.mxu0 0
  %3173 = vmatmul.mubr.bf16.gmra.mrb[0].mxu0 %v3038
  %v3174 = vpop.f32.mrb[0].mxu0
  %v3175 = vadd.f32 0.0, %v3174
  %v3176 = vpop.f32.mrb[0].mxu0
  %v3177 = vadd.f32 0.0, %v3176
  %v3178 = vpop.f32.mrb[0].mxu0
  %v3179 = vpop.f32.mrb[0].mxu0
  %3180 = vdwg.mxu0
  %v3181 = vadd.f32 %v3012, %v3093
  %v3182 = vadd.f32 %v3013, %v3095
  %v3183 = vadd.f32 %v3014, %v3134
  %v3184 = vadd.f32 %v3015, %v3136
  %v3185 = vadd.f32 %v3016, %v3175
  %v3186 = vadd.f32 %v3017, %v3177
  %v3187 = vld [vmem:[%s6] sm:$0xff]
  %3189 = vset.pattern.permute.xlu0 0
  %3190 = vperm.xlu0 %3189, %v3187
  %v3191 = vpop.permute.xlu0 %3190
  %v3193 = vadd.f32 %v3181, %v3191
  %v3194 = vadd.f32 %v3182, %v3191
  %v3195 = vadd.f32 %v3183, %v3191
  %v3196 = vadd.f32 %v3184, %v3191
  %v3197 = vadd.f32 %v3185, %v3191
  %v3198 = vadd.f32 %v3186, %v3191
  %v3199 = vmax.f32 %v3193, 0.0
  %v3200 = vmax.f32 %v3194, 0.0
  %v3201 = vmax.f32 %v3195, 0.0
  %v3202 = vmax.f32 %v3196, 0.0
  %v3203 = vmax.f32 %v3197, 0.0
  %v3204 = vmax.f32 %v3198, 0.0
  %v3205 = vmul.f32 %v3199, %v1622
  %v3206 = vmul.f32 %v3200, %v1626
  %v3207 = vmul.f32 %v3201, %v1630
  %v3208 = vmul.f32 %v3202, %v1634
  %v3209 = vmul.f32 %v3203, %v1638
  %v3210 = vmul.f32 %v3204, %v1642
  %3211 = vrot.lane.b32.xlu0 %v3205, 8
  %v3212 = vpop.permute.xlu0 %3211
  %3213 = vrot.lane.b32.xlu0 %v3206, 8
  %v3214 = vpop.permute.xlu0 %3213
  %3215 = vrot.lane.b32.xlu0 %v3207, 8
  %v3216 = vpop.permute.xlu0 %3215
  %3217 = vrot.lane.b32.xlu0 %v3208, 8
  %v3218 = vpop.permute.xlu0 %3217
  %3219 = vrot.lane.b32.xlu0 %v3209, 8
  %v3220 = vpop.permute.xlu0 %3219
  %v3221 = vsel %vm57, %v3212, %v3210
  %v3222 = vsel %vm57, %v3214, %v3212
  %v3223 = vsel %vm57, %v3216, %v3214
  %v3224 = vsel %vm57, %v3218, %v3216
  %v3225 = vsel %vm57, %v3220, %v3218
  %v3226 = vld [vmem:[%s7] sm:$0xf]
  %v3227 = vpack.c.bf16 %v3209, %v3209
  %v3228 = vpack.c.bf16 %v3221, %v3221
  %v3229 = vpack.c.bf16 %v3222, %v3222
  %v3230 = vpack.c.bf16 %v3223, %v3223
  %v3231 = vpack.c.bf16 %v3224, %v3224
  %v3232 = vpack.c.bf16 %v3225, %v3225
  %s3233 = scalar_lea.vmem %s7, 4
  %v3234 = vld [vmem:[%s3233] sm:$0xf]
  %3241 = vrot.lane.b32.xlu0 %v3227, 10
  %v3242 = vpop.permute.xlu0 %3241
  %3243 = vrot.lane.b32.xlu0 %v3228, 10
  %v3244 = vpop.permute.xlu0 %3243
  %3245 = vrot.lane.b32.xlu0 %v3229, 10
  %v3246 = vpop.permute.xlu0 %3245
  %3247 = vrot.lane.b32.xlu0 %v3230, 10
  %v3248 = vpop.permute.xlu0 %3247
  %3249 = vrot.lane.b32.xlu0 %v3231, 10
  %v3250 = vpop.permute.xlu0 %3249
  %3251 = vrot.lane.b32.xlu0 %v3232, 10
  %v3252 = vpop.permute.xlu0 %3251
  %v3253 = vsel %vm100, %v3242, %v3244
  %v3254 = vsel %vm100, %v3244, %v3246
  %v3255 = vsel %vm100, %v3246, %v3248
  %v3256 = vsel %vm100, %v3248, %v3250
  %v3257 = vsel %vm100, %v3250, %v3252
  %v3259 = vsel %vm106, %v3234, 0
  %v3262 = vsel %vm110, %v3253, 0
  %v3265 = vsel %vm110, %v3254, 0
  %v3268 = vsel %vm110, %v3255, 0
  %v3271 = vsel %vm110, %v3256, 0
  %v3274 = vsel %vm110, %v3257, 0
  %v3277 = vsel %vm110, %v3252, 0
  %3279 = vmatprep.subr.bf16.mxu0 %v3265
  %3280 = vmatpush1.bf16.msra.mxu0 %v3262
  %3281 = vmatprep.subr.bf16.mxu0 0
  %3282 = vmatpush1.bf16.msra.mxu0 0
  %3283 = vmatprep.subr.bf16.mxu0 0
  %3284 = vmatpush1.bf16.msra.mxu0 0
  %3285 = vmatprep.subr.bf16.mxu0 0
  %3286 = vmatpush1.bf16.msra.mxu0 0
  %3287 = vmatprep.subr.bf16.mxu0 0
  %3288 = vmatpush1.bf16.msra.mxu0 0
  %3289 = vmatprep.subr.bf16.mxu0 0
  %3290 = vmatpush1.bf16.msra.mxu0 0
  %3291 = vmatprep.subr.bf16.mxu0 0
  %3292 = vmatpush1.bf16.msra.mxu0 0
  %3293 = vmatprep.subr.bf16.mxu0 0
  %3294 = vmatpush1.bf16.msra.mxu0 0
  %3295 = vmatprep.subr.bf16.mxu0 0
  %3296 = vmatpush1.bf16.msra.mxu0 0
  %3297 = vmatprep.subr.bf16.mxu0 0
  %3298 = vmatpush1.bf16.msra.mxu0 0
  %3299 = vmatprep.subr.bf16.mxu0 0
  %3300 = vmatpush1.bf16.msra.mxu0 0
  %3301 = vmatprep.subr.bf16.mxu0 0
  %3302 = vmatpush1.bf16.msra.mxu0 0
  %3303 = vmatprep.subr.bf16.mxu0 0
  %3304 = vmatpush1.bf16.msra.mxu0 0
  %3305 = vmatprep.subr.bf16.mxu0 0
  %3306 = vmatpush1.bf16.msra.mxu0 0
  %3307 = vmatprep.subr.bf16.mxu0 0
  %3308 = vmatpush1.bf16.msra.mxu0 0
  %3309 = vmatprep.subr.bf16.mxu0 0
  %3310 = vmatpush1.bf16.msra.mxu0 0
  %3311 = vmatprep.mubr.bf16.mxu0 0
  %3312 = vmatmul.mubr.bf16.gmra.mrb[0].mxu0 %v3259
  %v3313 = vpop.f32.mrb[0].mxu0
  %v3314 = vadd.f32 0.0, %v3313
  %v3315 = vpop.f32.mrb[0].mxu0
  %v3316 = vadd.f32 0.0, %v3315
  %v3317 = vpop.f32.mrb[0].mxu0
  %v3318 = vpop.f32.mrb[0].mxu0
  %3319 = vdwg.mxu0
  %3320 = vmatprep.subr.bf16.mxu0 %v3271
  %3321 = vmatpush1.bf16.msra.mxu0 %v3268
  %3322 = vmatprep.subr.bf16.mxu0 0
  %3323 = vmatpush1.bf16.msra.mxu0 0
  %3324 = vmatprep.subr.bf16.mxu0 0
  %3325 = vmatpush1.bf16.msra.mxu0 0
  %3326 = vmatprep.subr.bf16.mxu0 0
  %3327 = vmatpush1.bf16.msra.mxu0 0
  %3328 = vmatprep.subr.bf16.mxu0 0
  %3329 = vmatpush1.bf16.msra.mxu0 0
  %3330 = vmatprep.subr.bf16.mxu0 0
  %3331 = vmatpush1.bf16.msra.mxu0 0
  %3332 = vmatprep.subr.bf16.mxu0 0
  %3333 = vmatpush1.bf16.msra.mxu0 0
  %3334 = vmatprep.subr.bf16.mxu0 0
  %3335 = vmatpush1.bf16.msra.mxu0 0
  %3336 = vmatprep.subr.bf16.mxu0 0
  %3337 = vmatpush1.bf16.msra.mxu0 0
  %3338 = vmatprep.subr.bf16.mxu0 0
  %3339 = vmatpush1.bf16.msra.mxu0 0
  %3340 = vmatprep.subr.bf16.mxu0 0
  %3341 = vmatpush1.bf16.msra.mxu0 0
  %3342 = vmatprep.subr.bf16.mxu0 0
  %3343 = vmatpush1.bf16.msra.mxu0 0
  %3344 = vmatprep.subr.bf16.mxu0 0
  %3345 = vmatpush1.bf16.msra.mxu0 0
  %3346 = vmatprep.subr.bf16.mxu0 0
  %3347 = vmatpush1.bf16.msra.mxu0 0
  %3348 = vmatprep.subr.bf16.mxu0 0
  %3349 = vmatpush1.bf16.msra.mxu0 0
  %3350 = vmatprep.subr.bf16.mxu0 0
  %3351 = vmatpush1.bf16.msra.mxu0 0
  %3352 = vmatprep.mubr.bf16.mxu0 0
  %3353 = vmatmul.mubr.bf16.gmra.mrb[0].mxu0 %v3259
  %v3354 = vpop.f32.mrb[0].mxu0
  %v3355 = vadd.f32 0.0, %v3354
  %v3356 = vpop.f32.mrb[0].mxu0
  %v3357 = vadd.f32 0.0, %v3356
  %v3358 = vpop.f32.mrb[0].mxu0
  %v3359 = vpop.f32.mrb[0].mxu0
  %3360 = vdwg.mxu0
  %3361 = vmatprep.subr.bf16.mxu0 %v3277
  %3362 = vmatpush1.bf16.msra.mxu0 %v3274
  %3363 = vmatprep.subr.bf16.mxu0 0
  %3364 = vmatpush1.bf16.msra.mxu0 0
  %3365 = vmatprep.subr.bf16.mxu0 0
  %3366 = vmatpush1.bf16.msra.mxu0 0
  %3367 = vmatprep.subr.bf16.mxu0 0
  %3368 = vmatpush1.bf16.msra.mxu0 0
  %3369 = vmatprep.subr.bf16.mxu0 0
  %3370 = vmatpush1.bf16.msra.mxu0 0
  %3371 = vmatprep.subr.bf16.mxu0 0
  %3372 = vmatpush1.bf16.msra.mxu0 0
  %3373 = vmatprep.subr.bf16.mxu0 0
  %3374 = vmatpush1.bf16.msra.mxu0 0
  %3375 = vmatprep.subr.bf16.mxu0 0
  %3376 = vmatpush1.bf16.msra.mxu0 0
  %3377 = vmatprep.subr.bf16.mxu0 0
  %3378 = vmatpush1.bf16.msra.mxu0 0
  %3379 = vmatprep.subr.bf16.mxu0 0
  %3380 = vmatpush1.bf16.msra.mxu0 0
  %3381 = vmatprep.subr.bf16.mxu0 0
  %3382 = vmatpush1.bf16.msra.mxu0 0
  %3383 = vmatprep.subr.bf16.mxu0 0
  %3384 = vmatpush1.bf16.msra.mxu0 0
  %3385 = vmatprep.subr.bf16.mxu0 0
  %3386 = vmatpush1.bf16.msra.mxu0 0
  %3387 = vmatprep.subr.bf16.mxu0 0
  %3388 = vmatpush1.bf16.msra.mxu0 0
  %3389 = vmatprep.subr.bf16.mxu0 0
  %3390 = vmatpush1.bf16.msra.mxu0 0
  %3391 = vmatprep.subr.bf16.mxu0 0
  %3392 = vmatpush1.bf16.msra.mxu0 0
  %3393 = vmatprep.mubr.bf16.mxu0 0
  %3394 = vmatmul.mubr.bf16.gmra.mrb[0].mxu0 %v3259
  %v3395 = vpop.f32.mrb[0].mxu0
  %v3396 = vadd.f32 0.0, %v3395
  %v3397 = vpop.f32.mrb[0].mxu0
  %v3398 = vadd.f32 0.0, %v3397
  %v3399 = vpop.f32.mrb[0].mxu0
  %v3400 = vpop.f32.mrb[0].mxu0
  %3401 = vdwg.mxu0
  %3402 = vrot.lane.b32.xlu0 %v3227, 11
  %v3403 = vpop.permute.xlu0 %3402
  %3404 = vrot.lane.b32.xlu0 %v3228, 11
  %v3405 = vpop.permute.xlu0 %3404
  %3406 = vrot.lane.b32.xlu0 %v3229, 11
  %v3407 = vpop.permute.xlu0 %3406
  %3408 = vrot.lane.b32.xlu0 %v3230, 11
  %v3409 = vpop.permute.xlu0 %3408
  %3410 = vrot.lane.b32.xlu0 %v3231, 11
  %v3411 = vpop.permute.xlu0 %3410
  %3412 = vrot.lane.b32.xlu0 %v3232, 11
  %v3413 = vpop.permute.xlu0 %3412
  %v3414 = vsel %vm264, %v3403, %v3405
  %v3415 = vsel %vm264, %v3405, %v3407
  %v3416 = vsel %vm264, %v3407, %v3409
  %v3417 = vsel %vm264, %v3409, %v3411
  %v3418 = vsel %vm264, %v3411, %v3413
  %v3420 = vsel %vm106, %v3226, 0
  %v3423 = vsel %vm110, %v3414, 0
  %v3426 = vsel %vm110, %v3415, 0
  %v3429 = vsel %vm110, %v3416, 0
  %v3432 = vsel %vm110, %v3417, 0
  %v3435 = vsel %vm110, %v3418, 0
  %v3438 = vsel %vm110, %v3413, 0
  %3440 = vmatprep.subr.bf16.mxu0 %v3426
  %3441 = vmatpush1.bf16.msra.mxu0 %v3423
  %3442 = vmatprep.subr.bf16.mxu0 0
  %3443 = vmatpush1.bf16.msra.mxu0 0
  %3444 = vmatprep.subr.bf16.mxu0 0
  %3445 = vmatpush1.bf16.msra.mxu0 0
  %3446 = vmatprep.subr.bf16.mxu0 0
  %3447 = vmatpush1.bf16.msra.mxu0 0
  %3448 = vmatprep.subr.bf16.mxu0 0
  %3449 = vmatpush1.bf16.msra.mxu0 0
  %3450 = vmatprep.subr.bf16.mxu0 0
  %3451 = vmatpush1.bf16.msra.mxu0 0
  %3452 = vmatprep.subr.bf16.mxu0 0
  %3453 = vmatpush1.bf16.msra.mxu0 0
  %3454 = vmatprep.subr.bf16.mxu0 0
  %3455 = vmatpush1.bf16.msra.mxu0 0
  %3456 = vmatprep.subr.bf16.mxu0 0
  %3457 = vmatpush1.bf16.msra.mxu0 0
  %3458 = vmatprep.subr.bf16.mxu0 0
  %3459 = vmatpush1.bf16.msra.mxu0 0
  %3460 = vmatprep.subr.bf16.mxu0 0
  %3461 = vmatpush1.bf16.msra.mxu0 0
  %3462 = vmatprep.subr.bf16.mxu0 0
  %3463 = vmatpush1.bf16.msra.mxu0 0
  %3464 = vmatprep.subr.bf16.mxu0 0
  %3465 = vmatpush1.bf16.msra.mxu0 0
  %3466 = vmatprep.subr.bf16.mxu0 0
  %3467 = vmatpush1.bf16.msra.mxu0 0
  %3468 = vmatprep.subr.bf16.mxu0 0
  %3469 = vmatpush1.bf16.msra.mxu0 0
  %3470 = vmatprep.subr.bf16.mxu0 0
  %3471 = vmatpush1.bf16.msra.mxu0 0
  %3472 = vmatprep.mubr.bf16.mxu0 0
  %3473 = vmatmul.mubr.bf16.gmra.mrb[0].mxu0 %v3420
  %v3474 = vpop.f32.mrb[0].mxu0
  %v3475 = vadd.f32 %v3314, %v3474
  %v3476 = vpop.f32.mrb[0].mxu0
  %v3477 = vadd.f32 %v3316, %v3476
  %v3478 = vpop.f32.mrb[0].mxu0
  %v3479 = vpop.f32.mrb[0].mxu0
  %3480 = vdwg.mxu0
  %3481 = vmatprep.subr.bf16.mxu0 %v3432
  %3482 = vmatpush1.bf16.msra.mxu0 %v3429
  %3483 = vmatprep.subr.bf16.mxu0 0
  %3484 = vmatpush1.bf16.msra.mxu0 0
  %3485 = vmatprep.subr.bf16.mxu0 0
  %3486 = vmatpush1.bf16.msra.mxu0 0
  %3487 = vmatprep.subr.bf16.mxu0 0
  %3488 = vmatpush1.bf16.msra.mxu0 0
  %3489 = vmatprep.subr.bf16.mxu0 0
  %3490 = vmatpush1.bf16.msra.mxu0 0
  %3491 = vmatprep.subr.bf16.mxu0 0
  %3492 = vmatpush1.bf16.msra.mxu0 0
  %3493 = vmatprep.subr.bf16.mxu0 0
  %3494 = vmatpush1.bf16.msra.mxu0 0
  %3495 = vmatprep.subr.bf16.mxu0 0
  %3496 = vmatpush1.bf16.msra.mxu0 0
  %3497 = vmatprep.subr.bf16.mxu0 0
  %3498 = vmatpush1.bf16.msra.mxu0 0
  %3499 = vmatprep.subr.bf16.mxu0 0
  %3500 = vmatpush1.bf16.msra.mxu0 0
  %3501 = vmatprep.subr.bf16.mxu0 0
  %3502 = vmatpush1.bf16.msra.mxu0 0
  %3503 = vmatprep.subr.bf16.mxu0 0
  %3504 = vmatpush1.bf16.msra.mxu0 0
  %3505 = vmatprep.subr.bf16.mxu0 0
  %3506 = vmatpush1.bf16.msra.mxu0 0
  %3507 = vmatprep.subr.bf16.mxu0 0
  %3508 = vmatpush1.bf16.msra.mxu0 0
  %3509 = vmatprep.subr.bf16.mxu0 0
  %3510 = vmatpush1.bf16.msra.mxu0 0
  %3511 = vmatprep.subr.bf16.mxu0 0
  %3512 = vmatpush1.bf16.msra.mxu0 0
  %3513 = vmatprep.mubr.bf16.mxu0 0
  %3514 = vmatmul.mubr.bf16.gmra.mrb[0].mxu0 %v3420
  %v3515 = vpop.f32.mrb[0].mxu0
  %v3516 = vadd.f32 %v3355, %v3515
  %v3517 = vpop.f32.mrb[0].mxu0
  %v3518 = vadd.f32 %v3357, %v3517
  %v3519 = vpop.f32.mrb[0].mxu0
  %v3520 = vpop.f32.mrb[0].mxu0
  %3521 = vdwg.mxu0
  %3522 = vmatprep.subr.bf16.mxu0 %v3438
  %3523 = vmatpush1.bf16.msra.mxu0 %v3435
  %3524 = vmatprep.subr.bf16.mxu0 0
  %3525 = vmatpush1.bf16.msra.mxu0 0
  %3526 = vmatprep.subr.bf16.mxu0 0
  %3527 = vmatpush1.bf16.msra.mxu0 0
  %3528 = vmatprep.subr.bf16.mxu0 0
  %3529 = vmatpush1.bf16.msra.mxu0 0
  %3530 = vmatprep.subr.bf16.mxu0 0
  %3531 = vmatpush1.bf16.msra.mxu0 0
  %3532 = vmatprep.subr.bf16.mxu0 0
  %3533 = vmatpush1.bf16.msra.mxu0 0
  %3534 = vmatprep.subr.bf16.mxu0 0
  %3535 = vmatpush1.bf16.msra.mxu0 0
  %3536 = vmatprep.subr.bf16.mxu0 0
  %3537 = vmatpush1.bf16.msra.mxu0 0
  %3538 = vmatprep.subr.bf16.mxu0 0
  %3539 = vmatpush1.bf16.msra.mxu0 0
  %3540 = vmatprep.subr.bf16.mxu0 0
  %3541 = vmatpush1.bf16.msra.mxu0 0
  %3542 = vmatprep.subr.bf16.mxu0 0
  %3543 = vmatpush1.bf16.msra.mxu0 0
  %3544 = vmatprep.subr.bf16.mxu0 0
  %3545 = vmatpush1.bf16.msra.mxu0 0
  %3546 = vmatprep.subr.bf16.mxu0 0
  %3547 = vmatpush1.bf16.msra.mxu0 0
  %3548 = vmatprep.subr.bf16.mxu0 0
  %3549 = vmatpush1.bf16.msra.mxu0 0
  %3550 = vmatprep.subr.bf16.mxu0 0
  %3551 = vmatpush1.bf16.msra.mxu0 0
  %3552 = vmatprep.subr.bf16.mxu0 0
  %3553 = vmatpush1.bf16.msra.mxu0 0
  %3554 = vmatprep.mubr.bf16.mxu0 0
  %3555 = vmatmul.mubr.bf16.gmra.mrb[0].mxu0 %v3420
  %v3556 = vpop.f32.mrb[0].mxu0
  %v3557 = vadd.f32 %v3396, %v3556
  %v3558 = vpop.f32.mrb[0].mxu0
  %v3559 = vadd.f32 %v3398, %v3558
  %v3560 = vpop.f32.mrb[0].mxu0
  %v3561 = vpop.f32.mrb[0].mxu0
  %3562 = vdwg.mxu0
  %s3563 = scalar_lea.vmem %s7, 8
  %v3564 = vld [vmem:[%s3563] sm:$0xf]
  %3565 = vrot.lane.b32.xlu0 %v3227, 9
  %v3566 = vpop.permute.xlu0 %3565
  %3567 = vrot.lane.b32.xlu0 %v3228, 9
  %v3568 = vpop.permute.xlu0 %3567
  %3569 = vrot.lane.b32.xlu0 %v3229, 9
  %v3570 = vpop.permute.xlu0 %3569
  %3571 = vrot.lane.b32.xlu0 %v3230, 9
  %v3572 = vpop.permute.xlu0 %3571
  %3573 = vrot.lane.b32.xlu0 %v3231, 9
  %v3574 = vpop.permute.xlu0 %3573
  %3575 = vrot.lane.b32.xlu0 %v3232, 9
  %v3576 = vpop.permute.xlu0 %3575
  %v3577 = vsel %vm428, %v3566, %v3568
  %v3578 = vsel %vm428, %v3568, %v3570
  %v3579 = vsel %vm428, %v3570, %v3572
  %v3580 = vsel %vm428, %v3572, %v3574
  %v3581 = vsel %vm428, %v3574, %v3576
  %v3583 = vsel %vm106, %v3564, 0
  %v3586 = vsel %vm110, %v3577, 0
  %v3589 = vsel %vm110, %v3578, 0
  %v3592 = vsel %vm110, %v3579, 0
  %v3595 = vsel %vm110, %v3580, 0
  %v3598 = vsel %vm110, %v3581, 0
  %v3601 = vsel %vm110, %v3576, 0
  %3603 = vmatprep.subr.bf16.mxu0 %v3589
  %3604 = vmatpush1.bf16.msra.mxu0 %v3586
  %3605 = vmatprep.subr.bf16.mxu0 0
  %3606 = vmatpush1.bf16.msra.mxu0 0
  %3607 = vmatprep.subr.bf16.mxu0 0
  %3608 = vmatpush1.bf16.msra.mxu0 0
  %3609 = vmatprep.subr.bf16.mxu0 0
  %3610 = vmatpush1.bf16.msra.mxu0 0
  %3611 = vmatprep.subr.bf16.mxu0 0
  %3612 = vmatpush1.bf16.msra.mxu0 0
  %3613 = vmatprep.subr.bf16.mxu0 0
  %3614 = vmatpush1.bf16.msra.mxu0 0
  %3615 = vmatprep.subr.bf16.mxu0 0
  %3616 = vmatpush1.bf16.msra.mxu0 0
  %3617 = vmatprep.subr.bf16.mxu0 0
  %3618 = vmatpush1.bf16.msra.mxu0 0
  %3619 = vmatprep.subr.bf16.mxu0 0
  %3620 = vmatpush1.bf16.msra.mxu0 0
  %3621 = vmatprep.subr.bf16.mxu0 0
  %3622 = vmatpush1.bf16.msra.mxu0 0
  %3623 = vmatprep.subr.bf16.mxu0 0
  %3624 = vmatpush1.bf16.msra.mxu0 0
  %3625 = vmatprep.subr.bf16.mxu0 0
  %3626 = vmatpush1.bf16.msra.mxu0 0
  %3627 = vmatprep.subr.bf16.mxu0 0
  %3628 = vmatpush1.bf16.msra.mxu0 0
  %3629 = vmatprep.subr.bf16.mxu0 0
  %3630 = vmatpush1.bf16.msra.mxu0 0
  %3631 = vmatprep.subr.bf16.mxu0 0
  %3632 = vmatpush1.bf16.msra.mxu0 0
  %3633 = vmatprep.subr.bf16.mxu0 0
  %3634 = vmatpush1.bf16.msra.mxu0 0
  %3635 = vmatprep.mubr.bf16.mxu0 0
  %3636 = vmatmul.mubr.bf16.gmra.mrb[0].mxu0 %v3583
  %v3637 = vpop.f32.mrb[0].mxu0
  %v3638 = vadd.f32 0.0, %v3637
  %v3639 = vpop.f32.mrb[0].mxu0
  %v3640 = vadd.f32 0.0, %v3639
  %v3641 = vpop.f32.mrb[0].mxu0
  %v3642 = vpop.f32.mrb[0].mxu0
  %3643 = vdwg.mxu0
  %3644 = vmatprep.subr.bf16.mxu0 %v3595
  %3645 = vmatpush1.bf16.msra.mxu0 %v3592
  %3646 = vmatprep.subr.bf16.mxu0 0
  %3647 = vmatpush1.bf16.msra.mxu0 0
  %3648 = vmatprep.subr.bf16.mxu0 0
  %3649 = vmatpush1.bf16.msra.mxu0 0
  %3650 = vmatprep.subr.bf16.mxu0 0
  %3651 = vmatpush1.bf16.msra.mxu0 0
  %3652 = vmatprep.subr.bf16.mxu0 0
  %3653 = vmatpush1.bf16.msra.mxu0 0
  %3654 = vmatprep.subr.bf16.mxu0 0
  %3655 = vmatpush1.bf16.msra.mxu0 0
  %3656 = vmatprep.subr.bf16.mxu0 0
  %3657 = vmatpush1.bf16.msra.mxu0 0
  %3658 = vmatprep.subr.bf16.mxu0 0
  %3659 = vmatpush1.bf16.msra.mxu0 0
  %3660 = vmatprep.subr.bf16.mxu0 0
  %3661 = vmatpush1.bf16.msra.mxu0 0
  %3662 = vmatprep.subr.bf16.mxu0 0
  %3663 = vmatpush1.bf16.msra.mxu0 0
  %3664 = vmatprep.subr.bf16.mxu0 0
  %3665 = vmatpush1.bf16.msra.mxu0 0
  %3666 = vmatprep.subr.bf16.mxu0 0
  %3667 = vmatpush1.bf16.msra.mxu0 0
  %3668 = vmatprep.subr.bf16.mxu0 0
  %3669 = vmatpush1.bf16.msra.mxu0 0
  %3670 = vmatprep.subr.bf16.mxu0 0
  %3671 = vmatpush1.bf16.msra.mxu0 0
  %3672 = vmatprep.subr.bf16.mxu0 0
  %3673 = vmatpush1.bf16.msra.mxu0 0
  %3674 = vmatprep.subr.bf16.mxu0 0
  %3675 = vmatpush1.bf16.msra.mxu0 0
  %3676 = vmatprep.mubr.bf16.mxu0 0
  %3677 = vmatmul.mubr.bf16.gmra.mrb[0].mxu0 %v3583
  %v3678 = vpop.f32.mrb[0].mxu0
  %v3679 = vadd.f32 0.0, %v3678
  %v3680 = vpop.f32.mrb[0].mxu0
  %v3681 = vadd.f32 0.0, %v3680
  %v3682 = vpop.f32.mrb[0].mxu0
  %v3683 = vpop.f32.mrb[0].mxu0
  %3684 = vdwg.mxu0
  %3685 = vmatprep.subr.bf16.mxu0 %v3601
  %3686 = vmatpush1.bf16.msra.mxu0 %v3598
  %3687 = vmatprep.subr.bf16.mxu0 0
  %3688 = vmatpush1.bf16.msra.mxu0 0
  %3689 = vmatprep.subr.bf16.mxu0 0
  %3690 = vmatpush1.bf16.msra.mxu0 0
  %3691 = vmatprep.subr.bf16.mxu0 0
  %3692 = vmatpush1.bf16.msra.mxu0 0
  %3693 = vmatprep.subr.bf16.mxu0 0
  %3694 = vmatpush1.bf16.msra.mxu0 0
  %3695 = vmatprep.subr.bf16.mxu0 0
  %3696 = vmatpush1.bf16.msra.mxu0 0
  %3697 = vmatprep.subr.bf16.mxu0 0
  %3698 = vmatpush1.bf16.msra.mxu0 0
  %3699 = vmatprep.subr.bf16.mxu0 0
  %3700 = vmatpush1.bf16.msra.mxu0 0
  %3701 = vmatprep.subr.bf16.mxu0 0
  %3702 = vmatpush1.bf16.msra.mxu0 0
  %3703 = vmatprep.subr.bf16.mxu0 0
  %3704 = vmatpush1.bf16.msra.mxu0 0
  %3705 = vmatprep.subr.bf16.mxu0 0
  %3706 = vmatpush1.bf16.msra.mxu0 0
  %3707 = vmatprep.subr.bf16.mxu0 0
  %3708 = vmatpush1.bf16.msra.mxu0 0
  %3709 = vmatprep.subr.bf16.mxu0 0
  %3710 = vmatpush1.bf16.msra.mxu0 0
  %3711 = vmatprep.subr.bf16.mxu0 0
  %3712 = vmatpush1.bf16.msra.mxu0 0
  %3713 = vmatprep.subr.bf16.mxu0 0
  %3714 = vmatpush1.bf16.msra.mxu0 0
  %3715 = vmatprep.subr.bf16.mxu0 0
  %3716 = vmatpush1.bf16.msra.mxu0 0
  %3717 = vmatprep.mubr.bf16.mxu0 0
  %3718 = vmatmul.mubr.bf16.gmra.mrb[0].mxu0 %v3583
  %v3719 = vpop.f32.mrb[0].mxu0
  %v3720 = vadd.f32 0.0, %v3719
  %v3721 = vpop.f32.mrb[0].mxu0
  %v3722 = vadd.f32 0.0, %v3721
  %v3723 = vpop.f32.mrb[0].mxu0
  %v3724 = vpop.f32.mrb[0].mxu0
  %3725 = vdwg.mxu0
  %v3726 = vadd.f32 %v3475, %v3638
  %v3727 = vadd.f32 %v3477, %v3640
  %v3728 = vadd.f32 %v3516, %v3679
  %v3729 = vadd.f32 %v3518, %v3681
  %v3730 = vadd.f32 %v3557, %v3720
  %v3731 = vadd.f32 %v3559, %v3722
  %3732 = vrot.lane.b32.xlu0 %v3221, 8
  %v3733 = vpop.permute.xlu0 %3732
  %v3734 = vsel %vm57, %v3733, %v3220
  %s3735 = scalar_lea.vmem %s7, 12
  %v3736 = vld [vmem:[%s3735] sm:$0xf]
  %v3737 = vpack.c.bf16 %v3734, %v3734
  %3739 = vrot.lane.b32.xlu0 %v3228, 121
  %v3740 = vpop.permute.xlu0 %3739
  %3741 = vrot.lane.b32.xlu0 %v3229, 121
  %v3742 = vpop.permute.xlu0 %3741
  %3743 = vrot.lane.b32.xlu0 %v3230, 121
  %v3744 = vpop.permute.xlu0 %3743
  %3745 = vrot.lane.b32.xlu0 %v3231, 121
  %v3746 = vpop.permute.xlu0 %3745
  %3747 = vrot.lane.b32.xlu0 %v3232, 121
  %v3748 = vpop.permute.xlu0 %3747
  %3749 = vrot.lane.b32.xlu0 %v3737, 121
  %v3750 = vpop.permute.xlu0 %3749
  %v3751 = vsel %vm603, %v3740, %v3742
  %v3752 = vsel %vm603, %v3742, %v3744
  %v3753 = vsel %vm603, %v3744, %v3746
  %v3754 = vsel %vm603, %v3746, %v3748
  %v3755 = vsel %vm603, %v3748, %v3750
  %v3757 = vsel %vm106, %v3736, 0
  %v3760 = vsel %vm110, %v3751, 0
  %v3763 = vsel %vm110, %v3752, 0
  %v3766 = vsel %vm110, %v3753, 0
  %v3769 = vsel %vm110, %v3754, 0
  %v3772 = vsel %vm110, %v3755, 0
  %v3775 = vsel %vm110, %v3750, 0
  %3777 = vmatprep.subr.bf16.mxu0 %v3763
  %3778 = vmatpush1.bf16.msra.mxu0 %v3760
  %3779 = vmatprep.subr.bf16.mxu0 0
  %3780 = vmatpush1.bf16.msra.mxu0 0
  %3781 = vmatprep.subr.bf16.mxu0 0
  %3782 = vmatpush1.bf16.msra.mxu0 0
  %3783 = vmatprep.subr.bf16.mxu0 0
  %3784 = vmatpush1.bf16.msra.mxu0 0
  %3785 = vmatprep.subr.bf16.mxu0 0
  %3786 = vmatpush1.bf16.msra.mxu0 0
  %3787 = vmatprep.subr.bf16.mxu0 0
  %3788 = vmatpush1.bf16.msra.mxu0 0
  %3789 = vmatprep.subr.bf16.mxu0 0
  %3790 = vmatpush1.bf16.msra.mxu0 0
  %3791 = vmatprep.subr.bf16.mxu0 0
  %3792 = vmatpush1.bf16.msra.mxu0 0
  %3793 = vmatprep.subr.bf16.mxu0 0
  %3794 = vmatpush1.bf16.msra.mxu0 0
  %3795 = vmatprep.subr.bf16.mxu0 0
  %3796 = vmatpush1.bf16.msra.mxu0 0
  %3797 = vmatprep.subr.bf16.mxu0 0
  %3798 = vmatpush1.bf16.msra.mxu0 0
  %3799 = vmatprep.subr.bf16.mxu0 0
  %3800 = vmatpush1.bf16.msra.mxu0 0
  %3801 = vmatprep.subr.bf16.mxu0 0
  %3802 = vmatpush1.bf16.msra.mxu0 0
  %3803 = vmatprep.subr.bf16.mxu0 0
  %3804 = vmatpush1.bf16.msra.mxu0 0
  %3805 = vmatprep.subr.bf16.mxu0 0
  %3806 = vmatpush1.bf16.msra.mxu0 0
  %3807 = vmatprep.subr.bf16.mxu0 0
  %3808 = vmatpush1.bf16.msra.mxu0 0
  %3809 = vmatprep.mubr.bf16.mxu0 0
  %3810 = vmatmul.mubr.bf16.gmra.mrb[0].mxu0 %v3757
  %v3811 = vpop.f32.mrb[0].mxu0
  %v3812 = vadd.f32 0.0, %v3811
  %v3813 = vpop.f32.mrb[0].mxu0
  %v3814 = vadd.f32 0.0, %v3813
  %v3815 = vpop.f32.mrb[0].mxu0
  %v3816 = vpop.f32.mrb[0].mxu0
  %3817 = vdwg.mxu0
  %3818 = vmatprep.subr.bf16.mxu0 %v3769
  %3819 = vmatpush1.bf16.msra.mxu0 %v3766
  %3820 = vmatprep.subr.bf16.mxu0 0
  %3821 = vmatpush1.bf16.msra.mxu0 0
  %3822 = vmatprep.subr.bf16.mxu0 0
  %3823 = vmatpush1.bf16.msra.mxu0 0
  %3824 = vmatprep.subr.bf16.mxu0 0
  %3825 = vmatpush1.bf16.msra.mxu0 0
  %3826 = vmatprep.subr.bf16.mxu0 0
  %3827 = vmatpush1.bf16.msra.mxu0 0
  %3828 = vmatprep.subr.bf16.mxu0 0
  %3829 = vmatpush1.bf16.msra.mxu0 0
  %3830 = vmatprep.subr.bf16.mxu0 0
  %3831 = vmatpush1.bf16.msra.mxu0 0
  %3832 = vmatprep.subr.bf16.mxu0 0
  %3833 = vmatpush1.bf16.msra.mxu0 0
  %3834 = vmatprep.subr.bf16.mxu0 0
  %3835 = vmatpush1.bf16.msra.mxu0 0
  %3836 = vmatprep.subr.bf16.mxu0 0
  %3837 = vmatpush1.bf16.msra.mxu0 0
  %3838 = vmatprep.subr.bf16.mxu0 0
  %3839 = vmatpush1.bf16.msra.mxu0 0
  %3840 = vmatprep.subr.bf16.mxu0 0
  %3841 = vmatpush1.bf16.msra.mxu0 0
  %3842 = vmatprep.subr.bf16.mxu0 0
  %3843 = vmatpush1.bf16.msra.mxu0 0
  %3844 = vmatprep.subr.bf16.mxu0 0
  %3845 = vmatpush1.bf16.msra.mxu0 0
  %3846 = vmatprep.subr.bf16.mxu0 0
  %3847 = vmatpush1.bf16.msra.mxu0 0
  %3848 = vmatprep.subr.bf16.mxu0 0
  %3849 = vmatpush1.bf16.msra.mxu0 0
  %3850 = vmatprep.mubr.bf16.mxu0 0
  %3851 = vmatmul.mubr.bf16.gmra.mrb[0].mxu0 %v3757
  %v3852 = vpop.f32.mrb[0].mxu0
  %v3853 = vadd.f32 0.0, %v3852
  %v3854 = vpop.f32.mrb[0].mxu0
  %v3855 = vadd.f32 0.0, %v3854
  %v3856 = vpop.f32.mrb[0].mxu0
  %v3857 = vpop.f32.mrb[0].mxu0
  %3858 = vdwg.mxu0
  %3859 = vmatprep.subr.bf16.mxu0 %v3775
  %3860 = vmatpush1.bf16.msra.mxu0 %v3772
  %3861 = vmatprep.subr.bf16.mxu0 0
  %3862 = vmatpush1.bf16.msra.mxu0 0
  %3863 = vmatprep.subr.bf16.mxu0 0
  %3864 = vmatpush1.bf16.msra.mxu0 0
  %3865 = vmatprep.subr.bf16.mxu0 0
  %3866 = vmatpush1.bf16.msra.mxu0 0
  %3867 = vmatprep.subr.bf16.mxu0 0
  %3868 = vmatpush1.bf16.msra.mxu0 0
  %3869 = vmatprep.subr.bf16.mxu0 0
  %3870 = vmatpush1.bf16.msra.mxu0 0
  %3871 = vmatprep.subr.bf16.mxu0 0
  %3872 = vmatpush1.bf16.msra.mxu0 0
  %3873 = vmatprep.subr.bf16.mxu0 0
  %3874 = vmatpush1.bf16.msra.mxu0 0
  %3875 = vmatprep.subr.bf16.mxu0 0
  %3876 = vmatpush1.bf16.msra.mxu0 0
  %3877 = vmatprep.subr.bf16.mxu0 0
  %3878 = vmatpush1.bf16.msra.mxu0 0
  %3879 = vmatprep.subr.bf16.mxu0 0
  %3880 = vmatpush1.bf16.msra.mxu0 0
  %3881 = vmatprep.subr.bf16.mxu0 0
  %3882 = vmatpush1.bf16.msra.mxu0 0
  %3883 = vmatprep.subr.bf16.mxu0 0
  %3884 = vmatpush1.bf16.msra.mxu0 0
  %3885 = vmatprep.subr.bf16.mxu0 0
  %3886 = vmatpush1.bf16.msra.mxu0 0
  %3887 = vmatprep.subr.bf16.mxu0 0
  %3888 = vmatpush1.bf16.msra.mxu0 0
  %3889 = vmatprep.subr.bf16.mxu0 0
  %3890 = vmatpush1.bf16.msra.mxu0 0
  %3891 = vmatprep.mubr.bf16.mxu0 0
  %3892 = vmatmul.mubr.bf16.gmra.mrb[0].mxu0 %v3757
  %v3893 = vpop.f32.mrb[0].mxu0
  %v3894 = vadd.f32 0.0, %v3893
  %v3895 = vpop.f32.mrb[0].mxu0
  %v3896 = vadd.f32 0.0, %v3895
  %v3897 = vpop.f32.mrb[0].mxu0
  %v3898 = vpop.f32.mrb[0].mxu0
  %3899 = vdwg.mxu0
  %v3900 = vadd.f32 %v3726, %v3812
  %v3901 = vadd.f32 %v3727, %v3814
  %v3902 = vadd.f32 %v3728, %v3853
  %v3903 = vadd.f32 %v3729, %v3855
  %v3904 = vadd.f32 %v3730, %v3894
  %v3905 = vadd.f32 %v3731, %v3896
  %s3906 = scalar_lea.vmem %s7, 16
  %v3907 = vld [vmem:[%s3906] sm:$0xf]
  %v3908 = vpack.c.bf16 %v3205, %v3205
  %v3909 = vpack.c.bf16 %v3206, %v3206
  %v3910 = vpack.c.bf16 %v3207, %v3207
  %v3911 = vpack.c.bf16 %v3208, %v3208
  %v3912 = vpack.c.bf16 %v3210, %v3210
  %v3914 = vsel %vm106, %v3907, 0
  %v3917 = vsel %vm110, %v3908, 0
  %v3920 = vsel %vm110, %v3909, 0
  %v3923 = vsel %vm110, %v3910, 0
  %v3926 = vsel %vm110, %v3911, 0
  %v3929 = vsel %vm110, %v3227, 0
  %v3932 = vsel %vm110, %v3912, 0
  %3934 = vmatprep.subr.bf16.mxu0 %v3920
  %3935 = vmatpush1.bf16.msra.mxu0 %v3917
  %3936 = vmatprep.subr.bf16.mxu0 0
  %3937 = vmatpush1.bf16.msra.mxu0 0
  %3938 = vmatprep.subr.bf16.mxu0 0
  %3939 = vmatpush1.bf16.msra.mxu0 0
  %3940 = vmatprep.subr.bf16.mxu0 0
  %3941 = vmatpush1.bf16.msra.mxu0 0
  %3942 = vmatprep.subr.bf16.mxu0 0
  %3943 = vmatpush1.bf16.msra.mxu0 0
  %3944 = vmatprep.subr.bf16.mxu0 0
  %3945 = vmatpush1.bf16.msra.mxu0 0
  %3946 = vmatprep.subr.bf16.mxu0 0
  %3947 = vmatpush1.bf16.msra.mxu0 0
  %3948 = vmatprep.subr.bf16.mxu0 0
  %3949 = vmatpush1.bf16.msra.mxu0 0
  %3950 = vmatprep.subr.bf16.mxu0 0
  %3951 = vmatpush1.bf16.msra.mxu0 0
  %3952 = vmatprep.subr.bf16.mxu0 0
  %3953 = vmatpush1.bf16.msra.mxu0 0
  %3954 = vmatprep.subr.bf16.mxu0 0
  %3955 = vmatpush1.bf16.msra.mxu0 0
  %3956 = vmatprep.subr.bf16.mxu0 0
  %3957 = vmatpush1.bf16.msra.mxu0 0
  %3958 = vmatprep.subr.bf16.mxu0 0
  %3959 = vmatpush1.bf16.msra.mxu0 0
  %3960 = vmatprep.subr.bf16.mxu0 0
  %3961 = vmatpush1.bf16.msra.mxu0 0
  %3962 = vmatprep.subr.bf16.mxu0 0
  %3963 = vmatpush1.bf16.msra.mxu0 0
  %3964 = vmatprep.subr.bf16.mxu0 0
  %3965 = vmatpush1.bf16.msra.mxu0 0
  %3966 = vmatprep.mubr.bf16.mxu0 0
  %3967 = vmatmul.mubr.bf16.gmra.mrb[0].mxu0 %v3914
  %v3968 = vpop.f32.mrb[0].mxu0
  %v3969 = vadd.f32 0.0, %v3968
  %v3970 = vpop.f32.mrb[0].mxu0
  %v3971 = vadd.f32 0.0, %v3970
  %v3972 = vpop.f32.mrb[0].mxu0
  %v3973 = vpop.f32.mrb[0].mxu0
  %3974 = vdwg.mxu0
  %3975 = vmatprep.subr.bf16.mxu0 %v3926
  %3976 = vmatpush1.bf16.msra.mxu0 %v3923
  %3977 = vmatprep.subr.bf16.mxu0 0
  %3978 = vmatpush1.bf16.msra.mxu0 0
  %3979 = vmatprep.subr.bf16.mxu0 0
  %3980 = vmatpush1.bf16.msra.mxu0 0
  %3981 = vmatprep.subr.bf16.mxu0 0
  %3982 = vmatpush1.bf16.msra.mxu0 0
  %3983 = vmatprep.subr.bf16.mxu0 0
  %3984 = vmatpush1.bf16.msra.mxu0 0
  %3985 = vmatprep.subr.bf16.mxu0 0
  %3986 = vmatpush1.bf16.msra.mxu0 0
  %3987 = vmatprep.subr.bf16.mxu0 0
  %3988 = vmatpush1.bf16.msra.mxu0 0
  %3989 = vmatprep.subr.bf16.mxu0 0
  %3990 = vmatpush1.bf16.msra.mxu0 0
  %3991 = vmatprep.subr.bf16.mxu0 0
  %3992 = vmatpush1.bf16.msra.mxu0 0
  %3993 = vmatprep.subr.bf16.mxu0 0
  %3994 = vmatpush1.bf16.msra.mxu0 0
  %3995 = vmatprep.subr.bf16.mxu0 0
  %3996 = vmatpush1.bf16.msra.mxu0 0
  %3997 = vmatprep.subr.bf16.mxu0 0
  %3998 = vmatpush1.bf16.msra.mxu0 0
  %3999 = vmatprep.subr.bf16.mxu0 0
  %4000 = vmatpush1.bf16.msra.mxu0 0
  %4001 = vmatprep.subr.bf16.mxu0 0
  %4002 = vmatpush1.bf16.msra.mxu0 0
  %4003 = vmatprep.subr.bf16.mxu0 0
  %4004 = vmatpush1.bf16.msra.mxu0 0
  %4005 = vmatprep.subr.bf16.mxu0 0
  %4006 = vmatpush1.bf16.msra.mxu0 0
  %4007 = vmatprep.mubr.bf16.mxu0 0
  %4008 = vmatmul.mubr.bf16.gmra.mrb[0].mxu0 %v3914
  %v4009 = vpop.f32.mrb[0].mxu0
  %v4010 = vadd.f32 0.0, %v4009
  %v4011 = vpop.f32.mrb[0].mxu0
  %v4012 = vadd.f32 0.0, %v4011
  %v4013 = vpop.f32.mrb[0].mxu0
  %v4014 = vpop.f32.mrb[0].mxu0
  %4015 = vdwg.mxu0
  %4016 = vmatprep.subr.bf16.mxu0 %v3932
  %4017 = vmatpush1.bf16.msra.mxu0 %v3929
  %4018 = vmatprep.subr.bf16.mxu0 0
  %4019 = vmatpush1.bf16.msra.mxu0 0
  %4020 = vmatprep.subr.bf16.mxu0 0
  %4021 = vmatpush1.bf16.msra.mxu0 0
  %4022 = vmatprep.subr.bf16.mxu0 0
  %4023 = vmatpush1.bf16.msra.mxu0 0
  %4024 = vmatprep.subr.bf16.mxu0 0
  %4025 = vmatpush1.bf16.msra.mxu0 0
  %4026 = vmatprep.subr.bf16.mxu0 0
  %4027 = vmatpush1.bf16.msra.mxu0 0
  %4028 = vmatprep.subr.bf16.mxu0 0
  %4029 = vmatpush1.bf16.msra.mxu0 0
  %4030 = vmatprep.subr.bf16.mxu0 0
  %4031 = vmatpush1.bf16.msra.mxu0 0
  %4032 = vmatprep.subr.bf16.mxu0 0
  %4033 = vmatpush1.bf16.msra.mxu0 0
  %4034 = vmatprep.subr.bf16.mxu0 0
  %4035 = vmatpush1.bf16.msra.mxu0 0
  %4036 = vmatprep.subr.bf16.mxu0 0
  %4037 = vmatpush1.bf16.msra.mxu0 0
  %4038 = vmatprep.subr.bf16.mxu0 0
  %4039 = vmatpush1.bf16.msra.mxu0 0
  %4040 = vmatprep.subr.bf16.mxu0 0
  %4041 = vmatpush1.bf16.msra.mxu0 0
  %4042 = vmatprep.subr.bf16.mxu0 0
  %4043 = vmatpush1.bf16.msra.mxu0 0
  %4044 = vmatprep.subr.bf16.mxu0 0
  %4045 = vmatpush1.bf16.msra.mxu0 0
  %4046 = vmatprep.subr.bf16.mxu0 0
  %4047 = vmatpush1.bf16.msra.mxu0 0
  %4048 = vmatprep.mubr.bf16.mxu0 0
  %4049 = vmatmul.mubr.bf16.gmra.mrb[0].mxu0 %v3914
  %v4050 = vpop.f32.mrb[0].mxu0
  %v4051 = vadd.f32 0.0, %v4050
  %v4052 = vpop.f32.mrb[0].mxu0
  %v4053 = vadd.f32 0.0, %v4052
  %v4054 = vpop.f32.mrb[0].mxu0
  %v4055 = vpop.f32.mrb[0].mxu0
  %4056 = vdwg.mxu0
  %v4057 = vadd.f32 %v3900, %v3969
  %v4058 = vadd.f32 %v3901, %v3971
  %v4059 = vadd.f32 %v3902, %v4010
  %v4060 = vadd.f32 %v3903, %v4012
  %v4061 = vadd.f32 %v3904, %v4051
  %v4062 = vadd.f32 %v3905, %v4053
  %s4063 = scalar_lea.vmem %s7, 20
  %v4064 = vld [vmem:[%s4063] sm:$0xf]
  %4069 = vrot.lane.b32.xlu0 %v3908, 127
  %v4070 = vpop.permute.xlu0 %4069
  %4071 = vrot.lane.b32.xlu0 %v3909, 127
  %v4072 = vpop.permute.xlu0 %4071
  %4073 = vrot.lane.b32.xlu0 %v3910, 127
  %v4074 = vpop.permute.xlu0 %4073
  %4075 = vrot.lane.b32.xlu0 %v3911, 127
  %v4076 = vpop.permute.xlu0 %4075
  %4077 = vrot.lane.b32.xlu0 %v3227, 127
  %v4078 = vpop.permute.xlu0 %4077
  %4079 = vrot.lane.b32.xlu0 %v3228, 127
  %v4080 = vpop.permute.xlu0 %4079
  %v4081 = vsel %vm934, %v4070, %v4072
  %v4082 = vsel %vm934, %v4072, %v4074
  %v4083 = vsel %vm934, %v4074, %v4076
  %v4084 = vsel %vm934, %v4076, %v4078
  %v4085 = vsel %vm934, %v4078, %v4080
  %v4087 = vsel %vm106, %v4064, 0
  %v4090 = vsel %vm110, %v4081, 0
  %v4093 = vsel %vm110, %v4082, 0
  %v4096 = vsel %vm110, %v4083, 0
  %v4099 = vsel %vm110, %v4084, 0
  %v4102 = vsel %vm110, %v4085, 0
  %v4105 = vsel %vm110, %v4080, 0
  %4107 = vmatprep.subr.bf16.mxu0 %v4093
  %4108 = vmatpush1.bf16.msra.mxu0 %v4090
  %4109 = vmatprep.subr.bf16.mxu0 0
  %4110 = vmatpush1.bf16.msra.mxu0 0
  %4111 = vmatprep.subr.bf16.mxu0 0
  %4112 = vmatpush1.bf16.msra.mxu0 0
  %4113 = vmatprep.subr.bf16.mxu0 0
  %4114 = vmatpush1.bf16.msra.mxu0 0
  %4115 = vmatprep.subr.bf16.mxu0 0
  %4116 = vmatpush1.bf16.msra.mxu0 0
  %4117 = vmatprep.subr.bf16.mxu0 0
  %4118 = vmatpush1.bf16.msra.mxu0 0
  %4119 = vmatprep.subr.bf16.mxu0 0
  %4120 = vmatpush1.bf16.msra.mxu0 0
  %4121 = vmatprep.subr.bf16.mxu0 0
  %4122 = vmatpush1.bf16.msra.mxu0 0
  %4123 = vmatprep.subr.bf16.mxu0 0
  %4124 = vmatpush1.bf16.msra.mxu0 0
  %4125 = vmatprep.subr.bf16.mxu0 0
  %4126 = vmatpush1.bf16.msra.mxu0 0
  %4127 = vmatprep.subr.bf16.mxu0 0
  %4128 = vmatpush1.bf16.msra.mxu0 0
  %4129 = vmatprep.subr.bf16.mxu0 0
  %4130 = vmatpush1.bf16.msra.mxu0 0
  %4131 = vmatprep.subr.bf16.mxu0 0
  %4132 = vmatpush1.bf16.msra.mxu0 0
  %4133 = vmatprep.subr.bf16.mxu0 0
  %4134 = vmatpush1.bf16.msra.mxu0 0
  %4135 = vmatprep.subr.bf16.mxu0 0
  %4136 = vmatpush1.bf16.msra.mxu0 0
  %4137 = vmatprep.subr.bf16.mxu0 0
  %4138 = vmatpush1.bf16.msra.mxu0 0
  %4139 = vmatprep.mubr.bf16.mxu0 0
  %4140 = vmatmul.mubr.bf16.gmra.mrb[0].mxu0 %v4087
  %v4141 = vpop.f32.mrb[0].mxu0
  %v4142 = vadd.f32 0.0, %v4141
  %v4143 = vpop.f32.mrb[0].mxu0
  %v4144 = vadd.f32 0.0, %v4143
  %v4145 = vpop.f32.mrb[0].mxu0
  %v4146 = vpop.f32.mrb[0].mxu0
  %4147 = vdwg.mxu0
  %4148 = vmatprep.subr.bf16.mxu0 %v4099
  %4149 = vmatpush1.bf16.msra.mxu0 %v4096
  %4150 = vmatprep.subr.bf16.mxu0 0
  %4151 = vmatpush1.bf16.msra.mxu0 0
  %4152 = vmatprep.subr.bf16.mxu0 0
  %4153 = vmatpush1.bf16.msra.mxu0 0
  %4154 = vmatprep.subr.bf16.mxu0 0
  %4155 = vmatpush1.bf16.msra.mxu0 0
  %4156 = vmatprep.subr.bf16.mxu0 0
  %4157 = vmatpush1.bf16.msra.mxu0 0
  %4158 = vmatprep.subr.bf16.mxu0 0
  %4159 = vmatpush1.bf16.msra.mxu0 0
  %4160 = vmatprep.subr.bf16.mxu0 0
  %4161 = vmatpush1.bf16.msra.mxu0 0
  %4162 = vmatprep.subr.bf16.mxu0 0
  %4163 = vmatpush1.bf16.msra.mxu0 0
  %4164 = vmatprep.subr.bf16.mxu0 0
  %4165 = vmatpush1.bf16.msra.mxu0 0
  %4166 = vmatprep.subr.bf16.mxu0 0
  %4167 = vmatpush1.bf16.msra.mxu0 0
  %4168 = vmatprep.subr.bf16.mxu0 0
  %4169 = vmatpush1.bf16.msra.mxu0 0
  %4170 = vmatprep.subr.bf16.mxu0 0
  %4171 = vmatpush1.bf16.msra.mxu0 0
  %4172 = vmatprep.subr.bf16.mxu0 0
  %4173 = vmatpush1.bf16.msra.mxu0 0
  %4174 = vmatprep.subr.bf16.mxu0 0
  %4175 = vmatpush1.bf16.msra.mxu0 0
  %4176 = vmatprep.subr.bf16.mxu0 0
  %4177 = vmatpush1.bf16.msra.mxu0 0
  %4178 = vmatprep.subr.bf16.mxu0 0
  %4179 = vmatpush1.bf16.msra.mxu0 0
  %4180 = vmatprep.mubr.bf16.mxu0 0
  %4181 = vmatmul.mubr.bf16.gmra.mrb[0].mxu0 %v4087
  %v4182 = vpop.f32.mrb[0].mxu0
  %v4183 = vadd.f32 0.0, %v4182
  %v4184 = vpop.f32.mrb[0].mxu0
  %v4185 = vadd.f32 0.0, %v4184
  %v4186 = vpop.f32.mrb[0].mxu0
  %v4187 = vpop.f32.mrb[0].mxu0
  %4188 = vdwg.mxu0
  %4189 = vmatprep.subr.bf16.mxu0 %v4105
  %4190 = vmatpush1.bf16.msra.mxu0 %v4102
  %4191 = vmatprep.subr.bf16.mxu0 0
  %4192 = vmatpush1.bf16.msra.mxu0 0
  %4193 = vmatprep.subr.bf16.mxu0 0
  %4194 = vmatpush1.bf16.msra.mxu0 0
  %4195 = vmatprep.subr.bf16.mxu0 0
  %4196 = vmatpush1.bf16.msra.mxu0 0
  %4197 = vmatprep.subr.bf16.mxu0 0
  %4198 = vmatpush1.bf16.msra.mxu0 0
  %4199 = vmatprep.subr.bf16.mxu0 0
  %4200 = vmatpush1.bf16.msra.mxu0 0
  %4201 = vmatprep.subr.bf16.mxu0 0
  %4202 = vmatpush1.bf16.msra.mxu0 0
  %4203 = vmatprep.subr.bf16.mxu0 0
  %4204 = vmatpush1.bf16.msra.mxu0 0
  %4205 = vmatprep.subr.bf16.mxu0 0
  %4206 = vmatpush1.bf16.msra.mxu0 0
  %4207 = vmatprep.subr.bf16.mxu0 0
  %4208 = vmatpush1.bf16.msra.mxu0 0
  %4209 = vmatprep.subr.bf16.mxu0 0
  %4210 = vmatpush1.bf16.msra.mxu0 0
  %4211 = vmatprep.subr.bf16.mxu0 0
  %4212 = vmatpush1.bf16.msra.mxu0 0
  %4213 = vmatprep.subr.bf16.mxu0 0
  %4214 = vmatpush1.bf16.msra.mxu0 0
  %4215 = vmatprep.subr.bf16.mxu0 0
  %4216 = vmatpush1.bf16.msra.mxu0 0
  %4217 = vmatprep.subr.bf16.mxu0 0
  %4218 = vmatpush1.bf16.msra.mxu0 0
  %4219 = vmatprep.subr.bf16.mxu0 0
  %4220 = vmatpush1.bf16.msra.mxu0 0
  %4221 = vmatprep.mubr.bf16.mxu0 0
  %4222 = vmatmul.mubr.bf16.gmra.mrb[0].mxu0 %v4087
  %v4223 = vpop.f32.mrb[0].mxu0
  %v4224 = vadd.f32 0.0, %v4223
  %v4225 = vpop.f32.mrb[0].mxu0
  %v4226 = vadd.f32 0.0, %v4225
  %v4227 = vpop.f32.mrb[0].mxu0
  %v4228 = vpop.f32.mrb[0].mxu0
  %4229 = vdwg.mxu0
  %v4230 = vadd.f32 %v4057, %v4142
  %v4231 = vadd.f32 %v4058, %v4144
  %v4232 = vadd.f32 %v4059, %v4183
  %v4233 = vadd.f32 %v4060, %v4185
  %v4234 = vadd.f32 %v4061, %v4224
  %v4235 = vadd.f32 %v4062, %v4226
  %s4236 = scalar_lea.vmem %s7, 24
  %v4237 = vld [vmem:[%s4236] sm:$0xf]
  %4238 = vrot.lane.b32.xlu0 %v3908, 111
  %v4239 = vpop.permute.xlu0 %4238
  %4240 = vrot.lane.b32.xlu0 %v3909, 111
  %v4241 = vpop.permute.xlu0 %4240
  %4242 = vrot.lane.b32.xlu0 %v3910, 111
  %v4243 = vpop.permute.xlu0 %4242
  %4244 = vrot.lane.b32.xlu0 %v3911, 111
  %v4245 = vpop.permute.xlu0 %4244
  %4246 = vrot.lane.b32.xlu0 %v3227, 111
  %v4247 = vpop.permute.xlu0 %4246
  %4248 = vrot.lane.b32.xlu0 %v3228, 111
  %v4249 = vpop.permute.xlu0 %4248
  %v4250 = vsel %vm1104, %v4239, %v4241
  %v4251 = vsel %vm1104, %v4241, %v4243
  %v4252 = vsel %vm1104, %v4243, %v4245
  %v4253 = vsel %vm1104, %v4245, %v4247
  %v4254 = vsel %vm1104, %v4247, %v4249
  %v4256 = vsel %vm106, %v4237, 0
  %v4259 = vsel %vm110, %v4250, 0
  %v4262 = vsel %vm110, %v4251, 0
  %v4265 = vsel %vm110, %v4252, 0
  %v4268 = vsel %vm110, %v4253, 0
  %v4271 = vsel %vm110, %v4254, 0
  %v4274 = vsel %vm110, %v4249, 0
  %4276 = vmatprep.subr.bf16.mxu0 %v4262
  %4277 = vmatpush1.bf16.msra.mxu0 %v4259
  %4278 = vmatprep.subr.bf16.mxu0 0
  %4279 = vmatpush1.bf16.msra.mxu0 0
  %4280 = vmatprep.subr.bf16.mxu0 0
  %4281 = vmatpush1.bf16.msra.mxu0 0
  %4282 = vmatprep.subr.bf16.mxu0 0
  %4283 = vmatpush1.bf16.msra.mxu0 0
  %4284 = vmatprep.subr.bf16.mxu0 0
  %4285 = vmatpush1.bf16.msra.mxu0 0
  %4286 = vmatprep.subr.bf16.mxu0 0
  %4287 = vmatpush1.bf16.msra.mxu0 0
  %4288 = vmatprep.subr.bf16.mxu0 0
  %4289 = vmatpush1.bf16.msra.mxu0 0
  %4290 = vmatprep.subr.bf16.mxu0 0
  %4291 = vmatpush1.bf16.msra.mxu0 0
  %4292 = vmatprep.subr.bf16.mxu0 0
  %4293 = vmatpush1.bf16.msra.mxu0 0
  %4294 = vmatprep.subr.bf16.mxu0 0
  %4295 = vmatpush1.bf16.msra.mxu0 0
  %4296 = vmatprep.subr.bf16.mxu0 0
  %4297 = vmatpush1.bf16.msra.mxu0 0
  %4298 = vmatprep.subr.bf16.mxu0 0
  %4299 = vmatpush1.bf16.msra.mxu0 0
  %4300 = vmatprep.subr.bf16.mxu0 0
  %4301 = vmatpush1.bf16.msra.mxu0 0
  %4302 = vmatprep.subr.bf16.mxu0 0
  %4303 = vmatpush1.bf16.msra.mxu0 0
  %4304 = vmatprep.subr.bf16.mxu0 0
  %4305 = vmatpush1.bf16.msra.mxu0 0
  %4306 = vmatprep.subr.bf16.mxu0 0
  %4307 = vmatpush1.bf16.msra.mxu0 0
  %4308 = vmatprep.mubr.bf16.mxu0 0
  %4309 = vmatmul.mubr.bf16.gmra.mrb[0].mxu0 %v4256
  %v4310 = vpop.f32.mrb[0].mxu0
  %v4311 = vadd.f32 0.0, %v4310
  %v4312 = vpop.f32.mrb[0].mxu0
  %v4313 = vadd.f32 0.0, %v4312
  %v4314 = vpop.f32.mrb[0].mxu0
  %v4315 = vpop.f32.mrb[0].mxu0
  %4316 = vdwg.mxu0
  %4317 = vmatprep.subr.bf16.mxu0 %v4268
  %4318 = vmatpush1.bf16.msra.mxu0 %v4265
  %4319 = vmatprep.subr.bf16.mxu0 0
  %4320 = vmatpush1.bf16.msra.mxu0 0
  %4321 = vmatprep.subr.bf16.mxu0 0
  %4322 = vmatpush1.bf16.msra.mxu0 0
  %4323 = vmatprep.subr.bf16.mxu0 0
  %4324 = vmatpush1.bf16.msra.mxu0 0
  %4325 = vmatprep.subr.bf16.mxu0 0
  %4326 = vmatpush1.bf16.msra.mxu0 0
  %4327 = vmatprep.subr.bf16.mxu0 0
  %4328 = vmatpush1.bf16.msra.mxu0 0
  %4329 = vmatprep.subr.bf16.mxu0 0
  %4330 = vmatpush1.bf16.msra.mxu0 0
  %4331 = vmatprep.subr.bf16.mxu0 0
  %4332 = vmatpush1.bf16.msra.mxu0 0
  %4333 = vmatprep.subr.bf16.mxu0 0
  %4334 = vmatpush1.bf16.msra.mxu0 0
  %4335 = vmatprep.subr.bf16.mxu0 0
  %4336 = vmatpush1.bf16.msra.mxu0 0
  %4337 = vmatprep.subr.bf16.mxu0 0
  %4338 = vmatpush1.bf16.msra.mxu0 0
  %4339 = vmatprep.subr.bf16.mxu0 0
  %4340 = vmatpush1.bf16.msra.mxu0 0
  %4341 = vmatprep.subr.bf16.mxu0 0
  %4342 = vmatpush1.bf16.msra.mxu0 0
  %4343 = vmatprep.subr.bf16.mxu0 0
  %4344 = vmatpush1.bf16.msra.mxu0 0
  %4345 = vmatprep.subr.bf16.mxu0 0
  %4346 = vmatpush1.bf16.msra.mxu0 0
  %4347 = vmatprep.subr.bf16.mxu0 0
  %4348 = vmatpush1.bf16.msra.mxu0 0
  %4349 = vmatprep.mubr.bf16.mxu0 0
  %4350 = vmatmul.mubr.bf16.gmra.mrb[0].mxu0 %v4256
  %v4351 = vpop.f32.mrb[0].mxu0
  %v4352 = vadd.f32 0.0, %v4351
  %v4353 = vpop.f32.mrb[0].mxu0
  %v4354 = vadd.f32 0.0, %v4353
  %v4355 = vpop.f32.mrb[0].mxu0
  %v4356 = vpop.f32.mrb[0].mxu0
  %4357 = vdwg.mxu0
  %4358 = vmatprep.subr.bf16.mxu0 %v4274
  %4359 = vmatpush1.bf16.msra.mxu0 %v4271
  %4360 = vmatprep.subr.bf16.mxu0 0
  %4361 = vmatpush1.bf16.msra.mxu0 0
  %4362 = vmatprep.subr.bf16.mxu0 0
  %4363 = vmatpush1.bf16.msra.mxu0 0
  %4364 = vmatprep.subr.bf16.mxu0 0
  %4365 = vmatpush1.bf16.msra.mxu0 0
  %4366 = vmatprep.subr.bf16.mxu0 0
  %4367 = vmatpush1.bf16.msra.mxu0 0
  %4368 = vmatprep.subr.bf16.mxu0 0
  %4369 = vmatpush1.bf16.msra.mxu0 0
  %4370 = vmatprep.subr.bf16.mxu0 0
  %4371 = vmatpush1.bf16.msra.mxu0 0
  %4372 = vmatprep.subr.bf16.mxu0 0
  %4373 = vmatpush1.bf16.msra.mxu0 0
  %4374 = vmatprep.subr.bf16.mxu0 0
  %4375 = vmatpush1.bf16.msra.mxu0 0
  %4376 = vmatprep.subr.bf16.mxu0 0
  %4377 = vmatpush1.bf16.msra.mxu0 0
  %4378 = vmatprep.subr.bf16.mxu0 0
  %4379 = vmatpush1.bf16.msra.mxu0 0
  %4380 = vmatprep.subr.bf16.mxu0 0
  %4381 = vmatpush1.bf16.msra.mxu0 0
  %4382 = vmatprep.subr.bf16.mxu0 0
  %4383 = vmatpush1.bf16.msra.mxu0 0
  %4384 = vmatprep.subr.bf16.mxu0 0
  %4385 = vmatpush1.bf16.msra.mxu0 0
  %4386 = vmatprep.subr.bf16.mxu0 0
  %4387 = vmatpush1.bf16.msra.mxu0 0
  %4388 = vmatprep.subr.bf16.mxu0 0
  %4389 = vmatpush1.bf16.msra.mxu0 0
  %4390 = vmatprep.mubr.bf16.mxu0 0
  %4391 = vmatmul.mubr.bf16.gmra.mrb[0].mxu0 %v4256
  %v4392 = vpop.f32.mrb[0].mxu0
  %v4393 = vadd.f32 0.0, %v4392
  %v4394 = vpop.f32.mrb[0].mxu0
  %v4395 = vadd.f32 0.0, %v4394
  %v4396 = vpop.f32.mrb[0].mxu0
  %v4397 = vpop.f32.mrb[0].mxu0
  %4398 = vdwg.mxu0
  %v4399 = vadd.f32 %v4230, %v4311
  %v4400 = vadd.f32 %v4231, %v4313
  %v4401 = vadd.f32 %v4232, %v4352
  %v4402 = vadd.f32 %v4233, %v4354
  %v4403 = vadd.f32 %v4234, %v4393
  %v4404 = vadd.f32 %v4235, %v4395
  %s4405 = scalar_lea.vmem %s7, 28
  %v4406 = vld [vmem:[%s4405] sm:$0xf]
  %4407 = vrot.lane.b32.xlu0 %v3908, 110
  %v4408 = vpop.permute.xlu0 %4407
  %4409 = vrot.lane.b32.xlu0 %v3909, 110
  %v4410 = vpop.permute.xlu0 %4409
  %4411 = vrot.lane.b32.xlu0 %v3910, 110
  %v4412 = vpop.permute.xlu0 %4411
  %4413 = vrot.lane.b32.xlu0 %v3911, 110
  %v4414 = vpop.permute.xlu0 %4413
  %4415 = vrot.lane.b32.xlu0 %v3227, 110
  %v4416 = vpop.permute.xlu0 %4415
  %4417 = vrot.lane.b32.xlu0 %v3228, 110
  %v4418 = vpop.permute.xlu0 %4417
  %v4419 = vsel %vm1274, %v4408, %v4410
  %v4420 = vsel %vm1274, %v4410, %v4412
  %v4421 = vsel %vm1274, %v4412, %v4414
  %v4422 = vsel %vm1274, %v4414, %v4416
  %v4423 = vsel %vm1274, %v4416, %v4418
  %v4425 = vsel %vm106, %v4406, 0
  %v4428 = vsel %vm110, %v4419, 0
  %v4431 = vsel %vm110, %v4420, 0
  %v4434 = vsel %vm110, %v4421, 0
  %v4437 = vsel %vm110, %v4422, 0
  %v4440 = vsel %vm110, %v4423, 0
  %v4443 = vsel %vm110, %v4418, 0
  %4445 = vmatprep.subr.bf16.mxu0 %v4431
  %4446 = vmatpush1.bf16.msra.mxu0 %v4428
  %4447 = vmatprep.subr.bf16.mxu0 0
  %4448 = vmatpush1.bf16.msra.mxu0 0
  %4449 = vmatprep.subr.bf16.mxu0 0
  %4450 = vmatpush1.bf16.msra.mxu0 0
  %4451 = vmatprep.subr.bf16.mxu0 0
  %4452 = vmatpush1.bf16.msra.mxu0 0
  %4453 = vmatprep.subr.bf16.mxu0 0
  %4454 = vmatpush1.bf16.msra.mxu0 0
  %4455 = vmatprep.subr.bf16.mxu0 0
  %4456 = vmatpush1.bf16.msra.mxu0 0
  %4457 = vmatprep.subr.bf16.mxu0 0
  %4458 = vmatpush1.bf16.msra.mxu0 0
  %4459 = vmatprep.subr.bf16.mxu0 0
  %4460 = vmatpush1.bf16.msra.mxu0 0
  %4461 = vmatprep.subr.bf16.mxu0 0
  %4462 = vmatpush1.bf16.msra.mxu0 0
  %4463 = vmatprep.subr.bf16.mxu0 0
  %4464 = vmatpush1.bf16.msra.mxu0 0
  %4465 = vmatprep.subr.bf16.mxu0 0
  %4466 = vmatpush1.bf16.msra.mxu0 0
  %4467 = vmatprep.subr.bf16.mxu0 0
  %4468 = vmatpush1.bf16.msra.mxu0 0
  %4469 = vmatprep.subr.bf16.mxu0 0
  %4470 = vmatpush1.bf16.msra.mxu0 0
  %4471 = vmatprep.subr.bf16.mxu0 0
  %4472 = vmatpush1.bf16.msra.mxu0 0
  %4473 = vmatprep.subr.bf16.mxu0 0
  %4474 = vmatpush1.bf16.msra.mxu0 0
  %4475 = vmatprep.subr.bf16.mxu0 0
  %4476 = vmatpush1.bf16.msra.mxu0 0
  %4477 = vmatprep.mubr.bf16.mxu0 0
  %4478 = vmatmul.mubr.bf16.gmra.mrb[0].mxu0 %v4425
  %v4479 = vpop.f32.mrb[0].mxu0
  %v4480 = vadd.f32 0.0, %v4479
  %v4481 = vpop.f32.mrb[0].mxu0
  %v4482 = vadd.f32 0.0, %v4481
  %v4483 = vpop.f32.mrb[0].mxu0
  %v4484 = vpop.f32.mrb[0].mxu0
  %4485 = vdwg.mxu0
  %4486 = vmatprep.subr.bf16.mxu0 %v4437
  %4487 = vmatpush1.bf16.msra.mxu0 %v4434
  %4488 = vmatprep.subr.bf16.mxu0 0
  %4489 = vmatpush1.bf16.msra.mxu0 0
  %4490 = vmatprep.subr.bf16.mxu0 0
  %4491 = vmatpush1.bf16.msra.mxu0 0
  %4492 = vmatprep.subr.bf16.mxu0 0
  %4493 = vmatpush1.bf16.msra.mxu0 0
  %4494 = vmatprep.subr.bf16.mxu0 0
  %4495 = vmatpush1.bf16.msra.mxu0 0
  %4496 = vmatprep.subr.bf16.mxu0 0
  %4497 = vmatpush1.bf16.msra.mxu0 0
  %4498 = vmatprep.subr.bf16.mxu0 0
  %4499 = vmatpush1.bf16.msra.mxu0 0
  %4500 = vmatprep.subr.bf16.mxu0 0
  %4501 = vmatpush1.bf16.msra.mxu0 0
  %4502 = vmatprep.subr.bf16.mxu0 0
  %4503 = vmatpush1.bf16.msra.mxu0 0
  %4504 = vmatprep.subr.bf16.mxu0 0
  %4505 = vmatpush1.bf16.msra.mxu0 0
  %4506 = vmatprep.subr.bf16.mxu0 0
  %4507 = vmatpush1.bf16.msra.mxu0 0
  %4508 = vmatprep.subr.bf16.mxu0 0
  %4509 = vmatpush1.bf16.msra.mxu0 0
  %4510 = vmatprep.subr.bf16.mxu0 0
  %4511 = vmatpush1.bf16.msra.mxu0 0
  %4512 = vmatprep.subr.bf16.mxu0 0
  %4513 = vmatpush1.bf16.msra.mxu0 0
  %4514 = vmatprep.subr.bf16.mxu0 0
  %4515 = vmatpush1.bf16.msra.mxu0 0
  %4516 = vmatprep.subr.bf16.mxu0 0
  %4517 = vmatpush1.bf16.msra.mxu0 0
  %4518 = vmatprep.mubr.bf16.mxu0 0
  %4519 = vmatmul.mubr.bf16.gmra.mrb[0].mxu0 %v4425
  %v4520 = vpop.f32.mrb[0].mxu0
  %v4521 = vadd.f32 0.0, %v4520
  %v4522 = vpop.f32.mrb[0].mxu0
  %v4523 = vadd.f32 0.0, %v4522
  %v4524 = vpop.f32.mrb[0].mxu0
  %v4525 = vpop.f32.mrb[0].mxu0
  %4526 = vdwg.mxu0
  %4527 = vmatprep.subr.bf16.mxu0 %v4443
  %4528 = vmatpush1.bf16.msra.mxu0 %v4440
  %4529 = vmatprep.subr.bf16.mxu0 0
  %4530 = vmatpush1.bf16.msra.mxu0 0
  %4531 = vmatprep.subr.bf16.mxu0 0
  %4532 = vmatpush1.bf16.msra.mxu0 0
  %4533 = vmatprep.subr.bf16.mxu0 0
  %4534 = vmatpush1.bf16.msra.mxu0 0
  %4535 = vmatprep.subr.bf16.mxu0 0
  %4536 = vmatpush1.bf16.msra.mxu0 0
  %4537 = vmatprep.subr.bf16.mxu0 0
  %4538 = vmatpush1.bf16.msra.mxu0 0
  %4539 = vmatprep.subr.bf16.mxu0 0
  %4540 = vmatpush1.bf16.msra.mxu0 0
  %4541 = vmatprep.subr.bf16.mxu0 0
  %4542 = vmatpush1.bf16.msra.mxu0 0
  %4543 = vmatprep.subr.bf16.mxu0 0
  %4544 = vmatpush1.bf16.msra.mxu0 0
  %4545 = vmatprep.subr.bf16.mxu0 0
  %4546 = vmatpush1.bf16.msra.mxu0 0
  %4547 = vmatprep.subr.bf16.mxu0 0
  %4548 = vmatpush1.bf16.msra.mxu0 0
  %4549 = vmatprep.subr.bf16.mxu0 0
  %4550 = vmatpush1.bf16.msra.mxu0 0
  %4551 = vmatprep.subr.bf16.mxu0 0
  %4552 = vmatpush1.bf16.msra.mxu0 0
  %4553 = vmatprep.subr.bf16.mxu0 0
  %4554 = vmatpush1.bf16.msra.mxu0 0
  %4555 = vmatprep.subr.bf16.mxu0 0
  %4556 = vmatpush1.bf16.msra.mxu0 0
  %4557 = vmatprep.subr.bf16.mxu0 0
  %4558 = vmatpush1.bf16.msra.mxu0 0
  %4559 = vmatprep.mubr.bf16.mxu0 0
  %4560 = vmatmul.mubr.bf16.gmra.mrb[0].mxu0 %v4425
  %v4561 = vpop.f32.mrb[0].mxu0
  %v4562 = vadd.f32 0.0, %v4561
  %v4563 = vpop.f32.mrb[0].mxu0
  %v4564 = vadd.f32 0.0, %v4563
  %v4565 = vpop.f32.mrb[0].mxu0
  %v4566 = vpop.f32.mrb[0].mxu0
  %4567 = vdwg.mxu0
  %v4568 = vadd.f32 %v4399, %v4480
  %v4569 = vadd.f32 %v4400, %v4482
  %v4570 = vadd.f32 %v4401, %v4521
  %v4571 = vadd.f32 %v4402, %v4523
  %v4572 = vadd.f32 %v4403, %v4562
  %v4573 = vadd.f32 %v4404, %v4564
  %s4574 = scalar_lea.vmem %s7, 32
  %v4575 = vld [vmem:[%s4574] sm:$0xf]
  %4576 = vrot.lane.b32.xlu0 %v3908, 109
  %v4577 = vpop.permute.xlu0 %4576
  %4578 = vrot.lane.b32.xlu0 %v3909, 109
  %v4579 = vpop.permute.xlu0 %4578
  %4580 = vrot.lane.b32.xlu0 %v3910, 109
  %v4581 = vpop.permute.xlu0 %4580
  %4582 = vrot.lane.b32.xlu0 %v3911, 109
  %v4583 = vpop.permute.xlu0 %4582
  %4584 = vrot.lane.b32.xlu0 %v3227, 109
  %v4585 = vpop.permute.xlu0 %4584
  %4586 = vrot.lane.b32.xlu0 %v3228, 109
  %v4587 = vpop.permute.xlu0 %4586
  %v4588 = vsel %vm1444, %v4577, %v4579
  %v4589 = vsel %vm1444, %v4579, %v4581
  %v4590 = vsel %vm1444, %v4581, %v4583
  %v4591 = vsel %vm1444, %v4583, %v4585
  %v4592 = vsel %vm1444, %v4585, %v4587
  %v4594 = vsel %vm106, %v4575, 0
  %v4597 = vsel %vm110, %v4588, 0
  %v4600 = vsel %vm110, %v4589, 0
  %v4603 = vsel %vm110, %v4590, 0
  %v4606 = vsel %vm110, %v4591, 0
  %v4609 = vsel %vm110, %v4592, 0
  %v4612 = vsel %vm110, %v4587, 0
  %4614 = vmatprep.subr.bf16.mxu0 %v4600
  %4615 = vmatpush1.bf16.msra.mxu0 %v4597
  %4616 = vmatprep.subr.bf16.mxu0 0
  %4617 = vmatpush1.bf16.msra.mxu0 0
  %4618 = vmatprep.subr.bf16.mxu0 0
  %4619 = vmatpush1.bf16.msra.mxu0 0
  %4620 = vmatprep.subr.bf16.mxu0 0
  %4621 = vmatpush1.bf16.msra.mxu0 0
  %4622 = vmatprep.subr.bf16.mxu0 0
  %4623 = vmatpush1.bf16.msra.mxu0 0
  %4624 = vmatprep.subr.bf16.mxu0 0
  %4625 = vmatpush1.bf16.msra.mxu0 0
  %4626 = vmatprep.subr.bf16.mxu0 0
  %4627 = vmatpush1.bf16.msra.mxu0 0
  %4628 = vmatprep.subr.bf16.mxu0 0
  %4629 = vmatpush1.bf16.msra.mxu0 0
  %4630 = vmatprep.subr.bf16.mxu0 0
  %4631 = vmatpush1.bf16.msra.mxu0 0
  %4632 = vmatprep.subr.bf16.mxu0 0
  %4633 = vmatpush1.bf16.msra.mxu0 0
  %4634 = vmatprep.subr.bf16.mxu0 0
  %4635 = vmatpush1.bf16.msra.mxu0 0
  %4636 = vmatprep.subr.bf16.mxu0 0
  %4637 = vmatpush1.bf16.msra.mxu0 0
  %4638 = vmatprep.subr.bf16.mxu0 0
  %4639 = vmatpush1.bf16.msra.mxu0 0
  %4640 = vmatprep.subr.bf16.mxu0 0
  %4641 = vmatpush1.bf16.msra.mxu0 0
  %4642 = vmatprep.subr.bf16.mxu0 0
  %4643 = vmatpush1.bf16.msra.mxu0 0
  %4644 = vmatprep.subr.bf16.mxu0 0
  %4645 = vmatpush1.bf16.msra.mxu0 0
  %4646 = vmatprep.mubr.bf16.mxu0 0
  %4647 = vmatmul.mubr.bf16.gmra.mrb[0].mxu0 %v4594
  %v4648 = vpop.f32.mrb[0].mxu0
  %v4649 = vadd.f32 0.0, %v4648
  %v4650 = vpop.f32.mrb[0].mxu0
  %v4651 = vadd.f32 0.0, %v4650
  %v4652 = vpop.f32.mrb[0].mxu0
  %v4653 = vpop.f32.mrb[0].mxu0
  %4654 = vdwg.mxu0
  %4655 = vmatprep.subr.bf16.mxu0 %v4606
  %4656 = vmatpush1.bf16.msra.mxu0 %v4603
  %4657 = vmatprep.subr.bf16.mxu0 0
  %4658 = vmatpush1.bf16.msra.mxu0 0
  %4659 = vmatprep.subr.bf16.mxu0 0
  %4660 = vmatpush1.bf16.msra.mxu0 0
  %4661 = vmatprep.subr.bf16.mxu0 0
  %4662 = vmatpush1.bf16.msra.mxu0 0
  %4663 = vmatprep.subr.bf16.mxu0 0
  %4664 = vmatpush1.bf16.msra.mxu0 0
  %4665 = vmatprep.subr.bf16.mxu0 0
  %4666 = vmatpush1.bf16.msra.mxu0 0
  %4667 = vmatprep.subr.bf16.mxu0 0
  %4668 = vmatpush1.bf16.msra.mxu0 0
  %4669 = vmatprep.subr.bf16.mxu0 0
  %4670 = vmatpush1.bf16.msra.mxu0 0
  %4671 = vmatprep.subr.bf16.mxu0 0
  %4672 = vmatpush1.bf16.msra.mxu0 0
  %4673 = vmatprep.subr.bf16.mxu0 0
  %4674 = vmatpush1.bf16.msra.mxu0 0
  %4675 = vmatprep.subr.bf16.mxu0 0
  %4676 = vmatpush1.bf16.msra.mxu0 0
  %4677 = vmatprep.subr.bf16.mxu0 0
  %4678 = vmatpush1.bf16.msra.mxu0 0
  %4679 = vmatprep.subr.bf16.mxu0 0
  %4680 = vmatpush1.bf16.msra.mxu0 0
  %4681 = vmatprep.subr.bf16.mxu0 0
  %4682 = vmatpush1.bf16.msra.mxu0 0
  %4683 = vmatprep.subr.bf16.mxu0 0
  %4684 = vmatpush1.bf16.msra.mxu0 0
  %4685 = vmatprep.subr.bf16.mxu0 0
  %4686 = vmatpush1.bf16.msra.mxu0 0
  %4687 = vmatprep.mubr.bf16.mxu0 0
  %4688 = vmatmul.mubr.bf16.gmra.mrb[0].mxu0 %v4594
  %v4689 = vpop.f32.mrb[0].mxu0
  %v4690 = vadd.f32 0.0, %v4689
  %v4691 = vpop.f32.mrb[0].mxu0
  %v4692 = vadd.f32 0.0, %v4691
  %v4693 = vpop.f32.mrb[0].mxu0
  %v4694 = vpop.f32.mrb[0].mxu0
  %4695 = vdwg.mxu0
  %4696 = vmatprep.subr.bf16.mxu0 %v4612
  %4697 = vmatpush1.bf16.msra.mxu0 %v4609
  %4698 = vmatprep.subr.bf16.mxu0 0
  %4699 = vmatpush1.bf16.msra.mxu0 0
  %4700 = vmatprep.subr.bf16.mxu0 0
  %4701 = vmatpush1.bf16.msra.mxu0 0
  %4702 = vmatprep.subr.bf16.mxu0 0
  %4703 = vmatpush1.bf16.msra.mxu0 0
  %4704 = vmatprep.subr.bf16.mxu0 0
  %4705 = vmatpush1.bf16.msra.mxu0 0
  %4706 = vmatprep.subr.bf16.mxu0 0
  %4707 = vmatpush1.bf16.msra.mxu0 0
  %4708 = vmatprep.subr.bf16.mxu0 0
  %4709 = vmatpush1.bf16.msra.mxu0 0
  %4710 = vmatprep.subr.bf16.mxu0 0
  %4711 = vmatpush1.bf16.msra.mxu0 0
  %4712 = vmatprep.subr.bf16.mxu0 0
  %4713 = vmatpush1.bf16.msra.mxu0 0
  %4714 = vmatprep.subr.bf16.mxu0 0
  %4715 = vmatpush1.bf16.msra.mxu0 0
  %4716 = vmatprep.subr.bf16.mxu0 0
  %4717 = vmatpush1.bf16.msra.mxu0 0
  %4718 = vmatprep.subr.bf16.mxu0 0
  %4719 = vmatpush1.bf16.msra.mxu0 0
  %4720 = vmatprep.subr.bf16.mxu0 0
  %4721 = vmatpush1.bf16.msra.mxu0 0
  %4722 = vmatprep.subr.bf16.mxu0 0
  %4723 = vmatpush1.bf16.msra.mxu0 0
  %4724 = vmatprep.subr.bf16.mxu0 0
  %4725 = vmatpush1.bf16.msra.mxu0 0
  %4726 = vmatprep.subr.bf16.mxu0 0
  %4727 = vmatpush1.bf16.msra.mxu0 0
  %4728 = vmatprep.mubr.bf16.mxu0 0
  %4729 = vmatmul.mubr.bf16.gmra.mrb[0].mxu0 %v4594
  %v4730 = vpop.f32.mrb[0].mxu0
  %v4731 = vadd.f32 0.0, %v4730
  %v4732 = vpop.f32.mrb[0].mxu0
  %v4733 = vadd.f32 0.0, %v4732
  %v4734 = vpop.f32.mrb[0].mxu0
  %v4735 = vpop.f32.mrb[0].mxu0
  %4736 = vdwg.mxu0
  %v4737 = vadd.f32 %v4568, %v4649
  %v4738 = vadd.f32 %v4569, %v4651
  %v4739 = vadd.f32 %v4570, %v4690
  %v4740 = vadd.f32 %v4571, %v4692
  %v4741 = vadd.f32 %v4572, %v4731
  %v4742 = vadd.f32 %v4573, %v4733
  %v4743 = vld [vmem:[%s8] sm:$0xff]
  %4745 = vset.pattern.permute.xlu0 0
  %4746 = vperm.xlu0 %4745, %v4743
  %v4747 = vpop.permute.xlu0 %4746
  %v4749 = vadd.f32 %v4737, %v4747
  %v4750 = vadd.f32 %v4738, %v4747
  %v4751 = vadd.f32 %v4739, %v4747
  %v4752 = vadd.f32 %v4740, %v4747
  %v4753 = vadd.f32 %v4741, %v4747
  %v4754 = vadd.f32 %v4742, %v4747
  %v4755 = vadd.f32 %v4749, %v1649
  %v4756 = vadd.f32 %v4750, %v1650
  %v4757 = vadd.f32 %v4751, %v1651
  %v4758 = vadd.f32 %v4752, %v1652
  %v4759 = vadd.f32 %v4753, %v1653
  %v4760 = vadd.f32 %v4754, %v1654
  %v4761 = vmax.f32 %v4755, 0.0
  %v4762 = vmax.f32 %v4756, 0.0
  %v4763 = vmax.f32 %v4757, 0.0
  %v4764 = vmax.f32 %v4758, 0.0
  %v4765 = vmax.f32 %v4759, 0.0
  %v4766 = vmax.f32 %v4760, 0.0
  %v4767 = vmul.f32 %v4761, %v1622
  %v4768 = vmul.f32 %v4762, %v1626
  %v4769 = vmul.f32 %v4763, %v1630
  %v4770 = vmul.f32 %v4764, %v1634
  %v4771 = vmul.f32 %v4765, %v1638
  %v4772 = vmul.f32 %v4766, %v1642
  %4773 = vrot.lane.b32.xlu0 %v4767, 8
  %v4774 = vpop.permute.xlu0 %4773
  %4775 = vrot.lane.b32.xlu0 %v4768, 8
  %v4776 = vpop.permute.xlu0 %4775
  %4777 = vrot.lane.b32.xlu0 %v4769, 8
  %v4778 = vpop.permute.xlu0 %4777
  %4779 = vrot.lane.b32.xlu0 %v4770, 8
  %v4780 = vpop.permute.xlu0 %4779
  %4781 = vrot.lane.b32.xlu0 %v4771, 8
  %v4782 = vpop.permute.xlu0 %4781
  %v4783 = vsel %vm57, %v4774, %v4772
  %v4784 = vsel %vm57, %v4776, %v4774
  %v4785 = vsel %vm57, %v4778, %v4776
  %v4786 = vsel %vm57, %v4780, %v4778
  %v4787 = vsel %vm57, %v4782, %v4780
  %v4788 = vld [vmem:[%s9] sm:$0xf]
  %v4789 = vld [vmem:[%s9 + $0x4] sm:$0xf]
  %v4790 = vpack.c.bf16 %v4771, %v4771
  %v4791 = vpack.c.bf16 %v4783, %v4783
  %v4792 = vpack.c.bf16 %v4784, %v4784
  %v4793 = vpack.c.bf16 %v4785, %v4785
  %v4794 = vpack.c.bf16 %v4786, %v4786
  %v4795 = vpack.c.bf16 %v4787, %v4787
  %s4796 = scalar_lea.vmem %s9, 8
  %v4797 = vld [vmem:[%s4796] sm:$0xf]
  %v4798 = vld [vmem:[%s4796 + $0x4] sm:$0xf]
  %v4801 = vunpack.c.l.b16 %v4797
  %v4802 = vunpack.c.l.b16 %v4798
  %v4803 = vpack.c.b16 %v4802, %v4801
  %4810 = vrot.lane.b32.xlu0 %v4790, 10
  %v4811 = vpop.permute.xlu0 %4810
  %4812 = vrot.lane.b32.xlu0 %v4791, 10
  %v4813 = vpop.permute.xlu0 %4812
  %4814 = vrot.lane.b32.xlu0 %v4792, 10
  %v4815 = vpop.permute.xlu0 %4814
  %4816 = vrot.lane.b32.xlu0 %v4793, 10
  %v4817 = vpop.permute.xlu0 %4816
  %4818 = vrot.lane.b32.xlu0 %v4794, 10
  %v4819 = vpop.permute.xlu0 %4818
  %4820 = vrot.lane.b32.xlu0 %v4795, 10
  %v4821 = vpop.permute.xlu0 %4820
  %v4822 = vsel %vm100, %v4811, %v4813
  %v4823 = vsel %vm100, %v4813, %v4815
  %v4824 = vsel %vm100, %v4815, %v4817
  %v4825 = vsel %vm100, %v4817, %v4819
  %v4826 = vsel %vm100, %v4819, %v4821
  %v4828 = vsel %vm106, %v4803, 0
  %v4831 = vsel %vm110, %v4822, 0
  %v4834 = vsel %vm110, %v4823, 0
  %v4837 = vsel %vm110, %v4824, 0
  %v4840 = vsel %vm110, %v4825, 0
  %v4843 = vsel %vm110, %v4826, 0
  %v4846 = vsel %vm110, %v4821, 0
  %4848 = vmatprep.subr.bf16.mxu0 %v4834
  %4849 = vmatpush1.bf16.msra.mxu0 %v4831
  %4850 = vmatprep.subr.bf16.mxu0 0
  %4851 = vmatpush1.bf16.msra.mxu0 0
  %4852 = vmatprep.subr.bf16.mxu0 0
  %4853 = vmatpush1.bf16.msra.mxu0 0
  %4854 = vmatprep.subr.bf16.mxu0 0
  %4855 = vmatpush1.bf16.msra.mxu0 0
  %4856 = vmatprep.subr.bf16.mxu0 0
  %4857 = vmatpush1.bf16.msra.mxu0 0
  %4858 = vmatprep.subr.bf16.mxu0 0
  %4859 = vmatpush1.bf16.msra.mxu0 0
  %4860 = vmatprep.subr.bf16.mxu0 0
  %4861 = vmatpush1.bf16.msra.mxu0 0
  %4862 = vmatprep.subr.bf16.mxu0 0
  %4863 = vmatpush1.bf16.msra.mxu0 0
  %4864 = vmatprep.subr.bf16.mxu0 0
  %4865 = vmatpush1.bf16.msra.mxu0 0
  %4866 = vmatprep.subr.bf16.mxu0 0
  %4867 = vmatpush1.bf16.msra.mxu0 0
  %4868 = vmatprep.subr.bf16.mxu0 0
  %4869 = vmatpush1.bf16.msra.mxu0 0
  %4870 = vmatprep.subr.bf16.mxu0 0
  %4871 = vmatpush1.bf16.msra.mxu0 0
  %4872 = vmatprep.subr.bf16.mxu0 0
  %4873 = vmatpush1.bf16.msra.mxu0 0
  %4874 = vmatprep.subr.bf16.mxu0 0
  %4875 = vmatpush1.bf16.msra.mxu0 0
  %4876 = vmatprep.subr.bf16.mxu0 0
  %4877 = vmatpush1.bf16.msra.mxu0 0
  %4878 = vmatprep.subr.bf16.mxu0 0
  %4879 = vmatpush1.bf16.msra.mxu0 0
  %4880 = vmatprep.mubr.bf16.mxu0 0
  %4881 = vmatmul.mubr.bf16.gmra.mrb[0].mxu0 %v4828
  %v4882 = vpop.f32.mrb[0].mxu0
  %v4883 = vadd.f32 0.0, %v4882
  %v4884 = vpop.f32.mrb[0].mxu0
  %v4885 = vadd.f32 0.0, %v4884
  %v4886 = vpop.f32.mrb[0].mxu0
  %v4887 = vadd.f32 0.0, %v4886
  %v4888 = vpop.f32.mrb[0].mxu0
  %v4889 = vadd.f32 0.0, %v4888
  %4890 = vdwg.mxu0
  %4891 = vmatprep.subr.bf16.mxu0 %v4840
  %4892 = vmatpush1.bf16.msra.mxu0 %v4837
  %4893 = vmatprep.subr.bf16.mxu0 0
  %4894 = vmatpush1.bf16.msra.mxu0 0
  %4895 = vmatprep.subr.bf16.mxu0 0
  %4896 = vmatpush1.bf16.msra.mxu0 0
  %4897 = vmatprep.subr.bf16.mxu0 0
  %4898 = vmatpush1.bf16.msra.mxu0 0
  %4899 = vmatprep.subr.bf16.mxu0 0
  %4900 = vmatpush1.bf16.msra.mxu0 0
  %4901 = vmatprep.subr.bf16.mxu0 0
  %4902 = vmatpush1.bf16.msra.mxu0 0
  %4903 = vmatprep.subr.bf16.mxu0 0
  %4904 = vmatpush1.bf16.msra.mxu0 0
  %4905 = vmatprep.subr.bf16.mxu0 0
  %4906 = vmatpush1.bf16.msra.mxu0 0
  %4907 = vmatprep.subr.bf16.mxu0 0
  %4908 = vmatpush1.bf16.msra.mxu0 0
  %4909 = vmatprep.subr.bf16.mxu0 0
  %4910 = vmatpush1.bf16.msra.mxu0 0
  %4911 = vmatprep.subr.bf16.mxu0 0
  %4912 = vmatpush1.bf16.msra.mxu0 0
  %4913 = vmatprep.subr.bf16.mxu0 0
  %4914 = vmatpush1.bf16.msra.mxu0 0
  %4915 = vmatprep.subr.bf16.mxu0 0
  %4916 = vmatpush1.bf16.msra.mxu0 0
  %4917 = vmatprep.subr.bf16.mxu0 0
  %4918 = vmatpush1.bf16.msra.mxu0 0
  %4919 = vmatprep.subr.bf16.mxu0 0
  %4920 = vmatpush1.bf16.msra.mxu0 0
  %4921 = vmatprep.subr.bf16.mxu0 0
  %4922 = vmatpush1.bf16.msra.mxu0 0
  %4923 = vmatprep.mubr.bf16.mxu0 0
  %4924 = vmatmul.mubr.bf16.gmra.mrb[0].mxu0 %v4828
  %v4925 = vpop.f32.mrb[0].mxu0
  %v4926 = vadd.f32 0.0, %v4925
  %v4927 = vpop.f32.mrb[0].mxu0
  %v4928 = vadd.f32 0.0, %v4927
  %v4929 = vpop.f32.mrb[0].mxu0
  %v4930 = vadd.f32 0.0, %v4929
  %v4931 = vpop.f32.mrb[0].mxu0
  %v4932 = vadd.f32 0.0, %v4931
  %4933 = vdwg.mxu0
  %4934 = vmatprep.subr.bf16.mxu0 %v4846
  %4935 = vmatpush1.bf16.msra.mxu0 %v4843
  %4936 = vmatprep.subr.bf16.mxu0 0
  %4937 = vmatpush1.bf16.msra.mxu0 0
  %4938 = vmatprep.subr.bf16.mxu0 0
  %4939 = vmatpush1.bf16.msra.mxu0 0
  %4940 = vmatprep.subr.bf16.mxu0 0
  %4941 = vmatpush1.bf16.msra.mxu0 0
  %4942 = vmatprep.subr.bf16.mxu0 0
  %4943 = vmatpush1.bf16.msra.mxu0 0
  %4944 = vmatprep.subr.bf16.mxu0 0
  %4945 = vmatpush1.bf16.msra.mxu0 0
  %4946 = vmatprep.subr.bf16.mxu0 0
  %4947 = vmatpush1.bf16.msra.mxu0 0
  %4948 = vmatprep.subr.bf16.mxu0 0
  %4949 = vmatpush1.bf16.msra.mxu0 0
  %4950 = vmatprep.subr.bf16.mxu0 0
  %4951 = vmatpush1.bf16.msra.mxu0 0
  %4952 = vmatprep.subr.bf16.mxu0 0
  %4953 = vmatpush1.bf16.msra.mxu0 0
  %4954 = vmatprep.subr.bf16.mxu0 0
  %4955 = vmatpush1.bf16.msra.mxu0 0
  %4956 = vmatprep.subr.bf16.mxu0 0
  %4957 = vmatpush1.bf16.msra.mxu0 0
  %4958 = vmatprep.subr.bf16.mxu0 0
  %4959 = vmatpush1.bf16.msra.mxu0 0
  %4960 = vmatprep.subr.bf16.mxu0 0
  %4961 = vmatpush1.bf16.msra.mxu0 0
  %4962 = vmatprep.subr.bf16.mxu0 0
  %4963 = vmatpush1.bf16.msra.mxu0 0
  %4964 = vmatprep.subr.bf16.mxu0 0
  %4965 = vmatpush1.bf16.msra.mxu0 0
  %4966 = vmatprep.mubr.bf16.mxu0 0
  %4967 = vmatmul.mubr.bf16.gmra.mrb[0].mxu0 %v4828
  %v4968 = vpop.f32.mrb[0].mxu0
  %v4969 = vadd.f32 0.0, %v4968
  %v4970 = vpop.f32.mrb[0].mxu0
  %v4971 = vadd.f32 0.0, %v4970
  %v4972 = vpop.f32.mrb[0].mxu0
  %v4973 = vadd.f32 0.0, %v4972
  %v4974 = vpop.f32.mrb[0].mxu0
  %v4975 = vadd.f32 0.0, %v4974
  %4976 = vdwg.mxu0
  %v4979 = vunpack.c.l.b16 %v4788
  %v4980 = vunpack.c.l.b16 %v4789
  %v4981 = vpack.c.b16 %v4980, %v4979
  %4982 = vrot.lane.b32.xlu0 %v4790, 11
  %v4983 = vpop.permute.xlu0 %4982
  %4984 = vrot.lane.b32.xlu0 %v4791, 11
  %v4985 = vpop.permute.xlu0 %4984
  %4986 = vrot.lane.b32.xlu0 %v4792, 11
  %v4987 = vpop.permute.xlu0 %4986
  %4988 = vrot.lane.b32.xlu0 %v4793, 11
  %v4989 = vpop.permute.xlu0 %4988
  %4990 = vrot.lane.b32.xlu0 %v4794, 11
  %v4991 = vpop.permute.xlu0 %4990
  %4992 = vrot.lane.b32.xlu0 %v4795, 11
  %v4993 = vpop.permute.xlu0 %4992
  %v4994 = vsel %vm264, %v4983, %v4985
  %v4995 = vsel %vm264, %v4985, %v4987
  %v4996 = vsel %vm264, %v4987, %v4989
  %v4997 = vsel %vm264, %v4989, %v4991
  %v4998 = vsel %vm264, %v4991, %v4993
  %v5000 = vsel %vm106, %v4981, 0
  %v5003 = vsel %vm110, %v4994, 0
  %v5006 = vsel %vm110, %v4995, 0
  %v5009 = vsel %vm110, %v4996, 0
  %v5012 = vsel %vm110, %v4997, 0
  %v5015 = vsel %vm110, %v4998, 0
  %v5018 = vsel %vm110, %v4993, 0
  %5020 = vmatprep.subr.bf16.mxu0 %v5006
  %5021 = vmatpush1.bf16.msra.mxu0 %v5003
  %5022 = vmatprep.subr.bf16.mxu0 0
  %5023 = vmatpush1.bf16.msra.mxu0 0
  %5024 = vmatprep.subr.bf16.mxu0 0
  %5025 = vmatpush1.bf16.msra.mxu0 0
  %5026 = vmatprep.subr.bf16.mxu0 0
  %5027 = vmatpush1.bf16.msra.mxu0 0
  %5028 = vmatprep.subr.bf16.mxu0 0
  %5029 = vmatpush1.bf16.msra.mxu0 0
  %5030 = vmatprep.subr.bf16.mxu0 0
  %5031 = vmatpush1.bf16.msra.mxu0 0
  %5032 = vmatprep.subr.bf16.mxu0 0
  %5033 = vmatpush1.bf16.msra.mxu0 0
  %5034 = vmatprep.subr.bf16.mxu0 0
  %5035 = vmatpush1.bf16.msra.mxu0 0
  %5036 = vmatprep.subr.bf16.mxu0 0
  %5037 = vmatpush1.bf16.msra.mxu0 0
  %5038 = vmatprep.subr.bf16.mxu0 0
  %5039 = vmatpush1.bf16.msra.mxu0 0
  %5040 = vmatprep.subr.bf16.mxu0 0
  %5041 = vmatpush1.bf16.msra.mxu0 0
  %5042 = vmatprep.subr.bf16.mxu0 0
  %5043 = vmatpush1.bf16.msra.mxu0 0
  %5044 = vmatprep.subr.bf16.mxu0 0
  %5045 = vmatpush1.bf16.msra.mxu0 0
  %5046 = vmatprep.subr.bf16.mxu0 0
  %5047 = vmatpush1.bf16.msra.mxu0 0
  %5048 = vmatprep.subr.bf16.mxu0 0
  %5049 = vmatpush1.bf16.msra.mxu0 0
  %5050 = vmatprep.subr.bf16.mxu0 0
  %5051 = vmatpush1.bf16.msra.mxu0 0
  %5052 = vmatprep.mubr.bf16.mxu0 0
  %5053 = vmatmul.mubr.bf16.gmra.mrb[0].mxu0 %v5000
  %v5054 = vpop.f32.mrb[0].mxu0
  %v5055 = vadd.f32 %v4883, %v5054
  %v5056 = vpop.f32.mrb[0].mxu0
  %v5057 = vadd.f32 %v4885, %v5056
  %v5058 = vpop.f32.mrb[0].mxu0
  %v5059 = vadd.f32 %v4887, %v5058
  %v5060 = vpop.f32.mrb[0].mxu0
  %v5061 = vadd.f32 %v4889, %v5060
  %5062 = vdwg.mxu0
  %5063 = vmatprep.subr.bf16.mxu0 %v5012
  %5064 = vmatpush1.bf16.msra.mxu0 %v5009
  %5065 = vmatprep.subr.bf16.mxu0 0
  %5066 = vmatpush1.bf16.msra.mxu0 0
  %5067 = vmatprep.subr.bf16.mxu0 0
  %5068 = vmatpush1.bf16.msra.mxu0 0
  %5069 = vmatprep.subr.bf16.mxu0 0
  %5070 = vmatpush1.bf16.msra.mxu0 0
  %5071 = vmatprep.subr.bf16.mxu0 0
  %5072 = vmatpush1.bf16.msra.mxu0 0
  %5073 = vmatprep.subr.bf16.mxu0 0
  %5074 = vmatpush1.bf16.msra.mxu0 0
  %5075 = vmatprep.subr.bf16.mxu0 0
  %5076 = vmatpush1.bf16.msra.mxu0 0
  %5077 = vmatprep.subr.bf16.mxu0 0
  %5078 = vmatpush1.bf16.msra.mxu0 0
  %5079 = vmatprep.subr.bf16.mxu0 0
  %5080 = vmatpush1.bf16.msra.mxu0 0
  %5081 = vmatprep.subr.bf16.mxu0 0
  %5082 = vmatpush1.bf16.msra.mxu0 0
  %5083 = vmatprep.subr.bf16.mxu0 0
  %5084 = vmatpush1.bf16.msra.mxu0 0
  %5085 = vmatprep.subr.bf16.mxu0 0
  %5086 = vmatpush1.bf16.msra.mxu0 0
  %5087 = vmatprep.subr.bf16.mxu0 0
  %5088 = vmatpush1.bf16.msra.mxu0 0
  %5089 = vmatprep.subr.bf16.mxu0 0
  %5090 = vmatpush1.bf16.msra.mxu0 0
  %5091 = vmatprep.subr.bf16.mxu0 0
  %5092 = vmatpush1.bf16.msra.mxu0 0
  %5093 = vmatprep.subr.bf16.mxu0 0
  %5094 = vmatpush1.bf16.msra.mxu0 0
  %5095 = vmatprep.mubr.bf16.mxu0 0
  %5096 = vmatmul.mubr.bf16.gmra.mrb[0].mxu0 %v5000
  %v5097 = vpop.f32.mrb[0].mxu0
  %v5098 = vadd.f32 %v4926, %v5097
  %v5099 = vpop.f32.mrb[0].mxu0
  %v5100 = vadd.f32 %v4928, %v5099
  %v5101 = vpop.f32.mrb[0].mxu0
  %v5102 = vadd.f32 %v4930, %v5101
  %v5103 = vpop.f32.mrb[0].mxu0
  %v5104 = vadd.f32 %v4932, %v5103
  %5105 = vdwg.mxu0
  %5106 = vmatprep.subr.bf16.mxu0 %v5018
  %5107 = vmatpush1.bf16.msra.mxu0 %v5015
  %5108 = vmatprep.subr.bf16.mxu0 0
  %5109 = vmatpush1.bf16.msra.mxu0 0
  %5110 = vmatprep.subr.bf16.mxu0 0
  %5111 = vmatpush1.bf16.msra.mxu0 0
  %5112 = vmatprep.subr.bf16.mxu0 0
  %5113 = vmatpush1.bf16.msra.mxu0 0
  %5114 = vmatprep.subr.bf16.mxu0 0
  %5115 = vmatpush1.bf16.msra.mxu0 0
  %5116 = vmatprep.subr.bf16.mxu0 0
  %5117 = vmatpush1.bf16.msra.mxu0 0
  %5118 = vmatprep.subr.bf16.mxu0 0
  %5119 = vmatpush1.bf16.msra.mxu0 0
  %5120 = vmatprep.subr.bf16.mxu0 0
  %5121 = vmatpush1.bf16.msra.mxu0 0
  %5122 = vmatprep.subr.bf16.mxu0 0
  %5123 = vmatpush1.bf16.msra.mxu0 0
  %5124 = vmatprep.subr.bf16.mxu0 0
  %5125 = vmatpush1.bf16.msra.mxu0 0
  %5126 = vmatprep.subr.bf16.mxu0 0
  %5127 = vmatpush1.bf16.msra.mxu0 0
  %5128 = vmatprep.subr.bf16.mxu0 0
  %5129 = vmatpush1.bf16.msra.mxu0 0
  %5130 = vmatprep.subr.bf16.mxu0 0
  %5131 = vmatpush1.bf16.msra.mxu0 0
  %5132 = vmatprep.subr.bf16.mxu0 0
  %5133 = vmatpush1.bf16.msra.mxu0 0
  %5134 = vmatprep.subr.bf16.mxu0 0
  %5135 = vmatpush1.bf16.msra.mxu0 0
  %5136 = vmatprep.subr.bf16.mxu0 0
  %5137 = vmatpush1.bf16.msra.mxu0 0
  %5138 = vmatprep.mubr.bf16.mxu0 0
  %5139 = vmatmul.mubr.bf16.gmra.mrb[0].mxu0 %v5000
  %v5140 = vpop.f32.mrb[0].mxu0
  %v5141 = vadd.f32 %v4969, %v5140
  %v5142 = vpop.f32.mrb[0].mxu0
  %v5143 = vadd.f32 %v4971, %v5142
  %v5144 = vpop.f32.mrb[0].mxu0
  %v5145 = vadd.f32 %v4973, %v5144
  %v5146 = vpop.f32.mrb[0].mxu0
  %v5147 = vadd.f32 %v4975, %v5146
  %5148 = vdwg.mxu0
  %s5149 = scalar_lea.vmem %s9, 16
  %v5150 = vld [vmem:[%s5149] sm:$0xf]
  %v5151 = vld [vmem:[%s5149 + $0x4] sm:$0xf]
  %v5154 = vunpack.c.l.b16 %v5150
  %v5155 = vunpack.c.l.b16 %v5151
  %v5156 = vpack.c.b16 %v5155, %v5154
  %5157 = vrot.lane.b32.xlu0 %v4790, 9
  %v5158 = vpop.permute.xlu0 %5157
  %5159 = vrot.lane.b32.xlu0 %v4791, 9
  %v5160 = vpop.permute.xlu0 %5159
  %5161 = vrot.lane.b32.xlu0 %v4792, 9
  %v5162 = vpop.permute.xlu0 %5161
  %5163 = vrot.lane.b32.xlu0 %v4793, 9
  %v5164 = vpop.permute.xlu0 %5163
  %5165 = vrot.lane.b32.xlu0 %v4794, 9
  %v5166 = vpop.permute.xlu0 %5165
  %5167 = vrot.lane.b32.xlu0 %v4795, 9
  %v5168 = vpop.permute.xlu0 %5167
  %v5169 = vsel %vm428, %v5158, %v5160
  %v5170 = vsel %vm428, %v5160, %v5162
  %v5171 = vsel %vm428, %v5162, %v5164
  %v5172 = vsel %vm428, %v5164, %v5166
  %v5173 = vsel %vm428, %v5166, %v5168
  %v5175 = vsel %vm106, %v5156, 0
  %v5178 = vsel %vm110, %v5169, 0
  %v5181 = vsel %vm110, %v5170, 0
  %v5184 = vsel %vm110, %v5171, 0
  %v5187 = vsel %vm110, %v5172, 0
  %v5190 = vsel %vm110, %v5173, 0
  %v5193 = vsel %vm110, %v5168, 0
  %5195 = vmatprep.subr.bf16.mxu0 %v5181
  %5196 = vmatpush1.bf16.msra.mxu0 %v5178
  %5197 = vmatprep.subr.bf16.mxu0 0
  %5198 = vmatpush1.bf16.msra.mxu0 0
  %5199 = vmatprep.subr.bf16.mxu0 0
  %5200 = vmatpush1.bf16.msra.mxu0 0
  %5201 = vmatprep.subr.bf16.mxu0 0
  %5202 = vmatpush1.bf16.msra.mxu0 0
  %5203 = vmatprep.subr.bf16.mxu0 0
  %5204 = vmatpush1.bf16.msra.mxu0 0
  %5205 = vmatprep.subr.bf16.mxu0 0
  %5206 = vmatpush1.bf16.msra.mxu0 0
  %5207 = vmatprep.subr.bf16.mxu0 0
  %5208 = vmatpush1.bf16.msra.mxu0 0
  %5209 = vmatprep.subr.bf16.mxu0 0
  %5210 = vmatpush1.bf16.msra.mxu0 0
  %5211 = vmatprep.subr.bf16.mxu0 0
  %5212 = vmatpush1.bf16.msra.mxu0 0
  %5213 = vmatprep.subr.bf16.mxu0 0
  %5214 = vmatpush1.bf16.msra.mxu0 0
  %5215 = vmatprep.subr.bf16.mxu0 0
  %5216 = vmatpush1.bf16.msra.mxu0 0
  %5217 = vmatprep.subr.bf16.mxu0 0
  %5218 = vmatpush1.bf16.msra.mxu0 0
  %5219 = vmatprep.subr.bf16.mxu0 0
  %5220 = vmatpush1.bf16.msra.mxu0 0
  %5221 = vmatprep.subr.bf16.mxu0 0
  %5222 = vmatpush1.bf16.msra.mxu0 0
  %5223 = vmatprep.subr.bf16.mxu0 0
  %5224 = vmatpush1.bf16.msra.mxu0 0
  %5225 = vmatprep.subr.bf16.mxu0 0
  %5226 = vmatpush1.bf16.msra.mxu0 0
  %5227 = vmatprep.mubr.bf16.mxu0 0
  %5228 = vmatmul.mubr.bf16.gmra.mrb[0].mxu0 %v5175
  %v5229 = vpop.f32.mrb[0].mxu0
  %v5230 = vadd.f32 0.0, %v5229
  %v5231 = vpop.f32.mrb[0].mxu0
  %v5232 = vadd.f32 0.0, %v5231
  %v5233 = vpop.f32.mrb[0].mxu0
  %v5234 = vadd.f32 0.0, %v5233
  %v5235 = vpop.f32.mrb[0].mxu0
  %v5236 = vadd.f32 0.0, %v5235
  %5237 = vdwg.mxu0
  %5238 = vmatprep.subr.bf16.mxu0 %v5187
  %5239 = vmatpush1.bf16.msra.mxu0 %v5184
  %5240 = vmatprep.subr.bf16.mxu0 0
  %5241 = vmatpush1.bf16.msra.mxu0 0
  %5242 = vmatprep.subr.bf16.mxu0 0
  %5243 = vmatpush1.bf16.msra.mxu0 0
  %5244 = vmatprep.subr.bf16.mxu0 0
  %5245 = vmatpush1.bf16.msra.mxu0 0
  %5246 = vmatprep.subr.bf16.mxu0 0
  %5247 = vmatpush1.bf16.msra.mxu0 0
  %5248 = vmatprep.subr.bf16.mxu0 0
  %5249 = vmatpush1.bf16.msra.mxu0 0
  %5250 = vmatprep.subr.bf16.mxu0 0
  %5251 = vmatpush1.bf16.msra.mxu0 0
  %5252 = vmatprep.subr.bf16.mxu0 0
  %5253 = vmatpush1.bf16.msra.mxu0 0
  %5254 = vmatprep.subr.bf16.mxu0 0
  %5255 = vmatpush1.bf16.msra.mxu0 0
  %5256 = vmatprep.subr.bf16.mxu0 0
  %5257 = vmatpush1.bf16.msra.mxu0 0
  %5258 = vmatprep.subr.bf16.mxu0 0
  %5259 = vmatpush1.bf16.msra.mxu0 0
  %5260 = vmatprep.subr.bf16.mxu0 0
  %5261 = vmatpush1.bf16.msra.mxu0 0
  %5262 = vmatprep.subr.bf16.mxu0 0
  %5263 = vmatpush1.bf16.msra.mxu0 0
  %5264 = vmatprep.subr.bf16.mxu0 0
  %5265 = vmatpush1.bf16.msra.mxu0 0
  %5266 = vmatprep.subr.bf16.mxu0 0
  %5267 = vmatpush1.bf16.msra.mxu0 0
  %5268 = vmatprep.subr.bf16.mxu0 0
  %5269 = vmatpush1.bf16.msra.mxu0 0
  %5270 = vmatprep.mubr.bf16.mxu0 0
  %5271 = vmatmul.mubr.bf16.gmra.mrb[0].mxu0 %v5175
  %v5272 = vpop.f32.mrb[0].mxu0
  %v5273 = vadd.f32 0.0, %v5272
  %v5274 = vpop.f32.mrb[0].mxu0
  %v5275 = vadd.f32 0.0, %v5274
  %v5276 = vpop.f32.mrb[0].mxu0
  %v5277 = vadd.f32 0.0, %v5276
  %v5278 = vpop.f32.mrb[0].mxu0
  %v5279 = vadd.f32 0.0, %v5278
  %5280 = vdwg.mxu0
  %5281 = vmatprep.subr.bf16.mxu0 %v5193
  %5282 = vmatpush1.bf16.msra.mxu0 %v5190
  %5283 = vmatprep.subr.bf16.mxu0 0
  %5284 = vmatpush1.bf16.msra.mxu0 0
  %5285 = vmatprep.subr.bf16.mxu0 0
  %5286 = vmatpush1.bf16.msra.mxu0 0
  %5287 = vmatprep.subr.bf16.mxu0 0
  %5288 = vmatpush1.bf16.msra.mxu0 0
  %5289 = vmatprep.subr.bf16.mxu0 0
  %5290 = vmatpush1.bf16.msra.mxu0 0
  %5291 = vmatprep.subr.bf16.mxu0 0
  %5292 = vmatpush1.bf16.msra.mxu0 0
  %5293 = vmatprep.subr.bf16.mxu0 0
  %5294 = vmatpush1.bf16.msra.mxu0 0
  %5295 = vmatprep.subr.bf16.mxu0 0
  %5296 = vmatpush1.bf16.msra.mxu0 0
  %5297 = vmatprep.subr.bf16.mxu0 0
  %5298 = vmatpush1.bf16.msra.mxu0 0
  %5299 = vmatprep.subr.bf16.mxu0 0
  %5300 = vmatpush1.bf16.msra.mxu0 0
  %5301 = vmatprep.subr.bf16.mxu0 0
  %5302 = vmatpush1.bf16.msra.mxu0 0
  %5303 = vmatprep.subr.bf16.mxu0 0
  %5304 = vmatpush1.bf16.msra.mxu0 0
  %5305 = vmatprep.subr.bf16.mxu0 0
  %5306 = vmatpush1.bf16.msra.mxu0 0
  %5307 = vmatprep.subr.bf16.mxu0 0
  %5308 = vmatpush1.bf16.msra.mxu0 0
  %5309 = vmatprep.subr.bf16.mxu0 0
  %5310 = vmatpush1.bf16.msra.mxu0 0
  %5311 = vmatprep.subr.bf16.mxu0 0
  %5312 = vmatpush1.bf16.msra.mxu0 0
  %5313 = vmatprep.mubr.bf16.mxu0 0
  %5314 = vmatmul.mubr.bf16.gmra.mrb[0].mxu0 %v5175
  %v5315 = vpop.f32.mrb[0].mxu0
  %v5316 = vadd.f32 0.0, %v5315
  %v5317 = vpop.f32.mrb[0].mxu0
  %v5318 = vadd.f32 0.0, %v5317
  %v5319 = vpop.f32.mrb[0].mxu0
  %v5320 = vadd.f32 0.0, %v5319
  %v5321 = vpop.f32.mrb[0].mxu0
  %v5322 = vadd.f32 0.0, %v5321
  %5323 = vdwg.mxu0
  %v5324 = vadd.f32 %v5055, %v5230
  %v5325 = vadd.f32 %v5057, %v5232
  %v5326 = vadd.f32 %v5098, %v5273
  %v5327 = vadd.f32 %v5100, %v5275
  %v5328 = vadd.f32 %v5141, %v5316
  %v5329 = vadd.f32 %v5143, %v5318
  %v5330 = vadd.f32 %v5059, %v5234
  %v5331 = vadd.f32 %v5061, %v5236
  %v5332 = vadd.f32 %v5102, %v5277
  %v5333 = vadd.f32 %v5104, %v5279
  %v5334 = vadd.f32 %v5145, %v5320
  %v5335 = vadd.f32 %v5147, %v5322
  %5336 = vrot.lane.b32.xlu0 %v4783, 8
  %v5337 = vpop.permute.xlu0 %5336
  %v5338 = vsel %vm57, %v5337, %v4782
  %s5339 = scalar_lea.vmem %s9, 24
  %v5340 = vld [vmem:[%s5339] sm:$0xf]
  %v5341 = vld [vmem:[%s5339 + $0x4] sm:$0xf]
  %v5342 = vpack.c.bf16 %v5338, %v5338
  %v5345 = vunpack.c.l.b16 %v5340
  %v5346 = vunpack.c.l.b16 %v5341
  %v5347 = vpack.c.b16 %v5346, %v5345
  %5349 = vrot.lane.b32.xlu0 %v4791, 121
  %v5350 = vpop.permute.xlu0 %5349
  %5351 = vrot.lane.b32.xlu0 %v4792, 121
  %v5352 = vpop.permute.xlu0 %5351
  %5353 = vrot.lane.b32.xlu0 %v4793, 121
  %v5354 = vpop.permute.xlu0 %5353
  %5355 = vrot.lane.b32.xlu0 %v4794, 121
  %v5356 = vpop.permute.xlu0 %5355
  %5357 = vrot.lane.b32.xlu0 %v4795, 121
  %v5358 = vpop.permute.xlu0 %5357
  %5359 = vrot.lane.b32.xlu0 %v5342, 121
  %v5360 = vpop.permute.xlu0 %5359
  %v5361 = vsel %vm603, %v5350, %v5352
  %v5362 = vsel %vm603, %v5352, %v5354
  %v5363 = vsel %vm603, %v5354, %v5356
  %v5364 = vsel %vm603, %v5356, %v5358
  %v5365 = vsel %vm603, %v5358, %v5360
  %v5367 = vsel %vm106, %v5347, 0
  %v5370 = vsel %vm110, %v5361, 0
  %v5373 = vsel %vm110, %v5362, 0
  %v5376 = vsel %vm110, %v5363, 0
  %v5379 = vsel %vm110, %v5364, 0
  %v5382 = vsel %vm110, %v5365, 0
  %v5385 = vsel %vm110, %v5360, 0
  %5387 = vmatprep.subr.bf16.mxu0 %v5373
  %5388 = vmatpush1.bf16.msra.mxu0 %v5370
  %5389 = vmatprep.subr.bf16.mxu0 0
  %5390 = vmatpush1.bf16.msra.mxu0 0
  %5391 = vmatprep.subr.bf16.mxu0 0
  %5392 = vmatpush1.bf16.msra.mxu0 0
  %5393 = vmatprep.subr.bf16.mxu0 0
  %5394 = vmatpush1.bf16.msra.mxu0 0
  %5395 = vmatprep.subr.bf16.mxu0 0
  %5396 = vmatpush1.bf16.msra.mxu0 0
  %5397 = vmatprep.subr.bf16.mxu0 0
  %5398 = vmatpush1.bf16.msra.mxu0 0
  %5399 = vmatprep.subr.bf16.mxu0 0
  %5400 = vmatpush1.bf16.msra.mxu0 0
  %5401 = vmatprep.subr.bf16.mxu0 0
  %5402 = vmatpush1.bf16.msra.mxu0 0
  %5403 = vmatprep.subr.bf16.mxu0 0
  %5404 = vmatpush1.bf16.msra.mxu0 0
  %5405 = vmatprep.subr.bf16.mxu0 0
  %5406 = vmatpush1.bf16.msra.mxu0 0
  %5407 = vmatprep.subr.bf16.mxu0 0
  %5408 = vmatpush1.bf16.msra.mxu0 0
  %5409 = vmatprep.subr.bf16.mxu0 0
  %5410 = vmatpush1.bf16.msra.mxu0 0
  %5411 = vmatprep.subr.bf16.mxu0 0
  %5412 = vmatpush1.bf16.msra.mxu0 0
  %5413 = vmatprep.subr.bf16.mxu0 0
  %5414 = vmatpush1.bf16.msra.mxu0 0
  %5415 = vmatprep.subr.bf16.mxu0 0
  %5416 = vmatpush1.bf16.msra.mxu0 0
  %5417 = vmatprep.subr.bf16.mxu0 0
  %5418 = vmatpush1.bf16.msra.mxu0 0
  %5419 = vmatprep.mubr.bf16.mxu0 0
  %5420 = vmatmul.mubr.bf16.gmra.mrb[0].mxu0 %v5367
  %v5421 = vpop.f32.mrb[0].mxu0
  %v5422 = vadd.f32 0.0, %v5421
  %v5423 = vpop.f32.mrb[0].mxu0
  %v5424 = vadd.f32 0.0, %v5423
  %v5425 = vpop.f32.mrb[0].mxu0
  %v5426 = vadd.f32 0.0, %v5425
  %v5427 = vpop.f32.mrb[0].mxu0
  %v5428 = vadd.f32 0.0, %v5427
  %5429 = vdwg.mxu0
  %5430 = vmatprep.subr.bf16.mxu0 %v5379
  %5431 = vmatpush1.bf16.msra.mxu0 %v5376
  %5432 = vmatprep.subr.bf16.mxu0 0
  %5433 = vmatpush1.bf16.msra.mxu0 0
  %5434 = vmatprep.subr.bf16.mxu0 0
  %5435 = vmatpush1.bf16.msra.mxu0 0
  %5436 = vmatprep.subr.bf16.mxu0 0
  %5437 = vmatpush1.bf16.msra.mxu0 0
  %5438 = vmatprep.subr.bf16.mxu0 0
  %5439 = vmatpush1.bf16.msra.mxu0 0
  %5440 = vmatprep.subr.bf16.mxu0 0
  %5441 = vmatpush1.bf16.msra.mxu0 0
  %5442 = vmatprep.subr.bf16.mxu0 0
  %5443 = vmatpush1.bf16.msra.mxu0 0
  %5444 = vmatprep.subr.bf16.mxu0 0
  %5445 = vmatpush1.bf16.msra.mxu0 0
  %5446 = vmatprep.subr.bf16.mxu0 0
  %5447 = vmatpush1.bf16.msra.mxu0 0
  %5448 = vmatprep.subr.bf16.mxu0 0
  %5449 = vmatpush1.bf16.msra.mxu0 0
  %5450 = vmatprep.subr.bf16.mxu0 0
  %5451 = vmatpush1.bf16.msra.mxu0 0
  %5452 = vmatprep.subr.bf16.mxu0 0
  %5453 = vmatpush1.bf16.msra.mxu0 0
  %5454 = vmatprep.subr.bf16.mxu0 0
  %5455 = vmatpush1.bf16.msra.mxu0 0
  %5456 = vmatprep.subr.bf16.mxu0 0
  %5457 = vmatpush1.bf16.msra.mxu0 0
  %5458 = vmatprep.subr.bf16.mxu0 0
  %5459 = vmatpush1.bf16.msra.mxu0 0
  %5460 = vmatprep.subr.bf16.mxu0 0
  %5461 = vmatpush1.bf16.msra.mxu0 0
  %5462 = vmatprep.mubr.bf16.mxu0 0
  %5463 = vmatmul.mubr.bf16.gmra.mrb[0].mxu0 %v5367
  %v5464 = vpop.f32.mrb[0].mxu0
  %v5465 = vadd.f32 0.0, %v5464
  %v5466 = vpop.f32.mrb[0].mxu0
  %v5467 = vadd.f32 0.0, %v5466
  %v5468 = vpop.f32.mrb[0].mxu0
  %v5469 = vadd.f32 0.0, %v5468
  %v5470 = vpop.f32.mrb[0].mxu0
  %v5471 = vadd.f32 0.0, %v5470
  %5472 = vdwg.mxu0
  %5473 = vmatprep.subr.bf16.mxu0 %v5385
  %5474 = vmatpush1.bf16.msra.mxu0 %v5382
  %5475 = vmatprep.subr.bf16.mxu0 0
  %5476 = vmatpush1.bf16.msra.mxu0 0
  %5477 = vmatprep.subr.bf16.mxu0 0
  %5478 = vmatpush1.bf16.msra.mxu0 0
  %5479 = vmatprep.subr.bf16.mxu0 0
  %5480 = vmatpush1.bf16.msra.mxu0 0
  %5481 = vmatprep.subr.bf16.mxu0 0
  %5482 = vmatpush1.bf16.msra.mxu0 0
  %5483 = vmatprep.subr.bf16.mxu0 0
  %5484 = vmatpush1.bf16.msra.mxu0 0
  %5485 = vmatprep.subr.bf16.mxu0 0
  %5486 = vmatpush1.bf16.msra.mxu0 0
  %5487 = vmatprep.subr.bf16.mxu0 0
  %5488 = vmatpush1.bf16.msra.mxu0 0
  %5489 = vmatprep.subr.bf16.mxu0 0
  %5490 = vmatpush1.bf16.msra.mxu0 0
  %5491 = vmatprep.subr.bf16.mxu0 0
  %5492 = vmatpush1.bf16.msra.mxu0 0
  %5493 = vmatprep.subr.bf16.mxu0 0
  %5494 = vmatpush1.bf16.msra.mxu0 0
  %5495 = vmatprep.subr.bf16.mxu0 0
  %5496 = vmatpush1.bf16.msra.mxu0 0
  %5497 = vmatprep.subr.bf16.mxu0 0
  %5498 = vmatpush1.bf16.msra.mxu0 0
  %5499 = vmatprep.subr.bf16.mxu0 0
  %5500 = vmatpush1.bf16.msra.mxu0 0
  %5501 = vmatprep.subr.bf16.mxu0 0
  %5502 = vmatpush1.bf16.msra.mxu0 0
  %5503 = vmatprep.subr.bf16.mxu0 0
  %5504 = vmatpush1.bf16.msra.mxu0 0
  %5505 = vmatprep.mubr.bf16.mxu0 0
  %5506 = vmatmul.mubr.bf16.gmra.mrb[0].mxu0 %v5367
  %v5507 = vpop.f32.mrb[0].mxu0
  %v5508 = vadd.f32 0.0, %v5507
  %v5509 = vpop.f32.mrb[0].mxu0
  %v5510 = vadd.f32 0.0, %v5509
  %v5511 = vpop.f32.mrb[0].mxu0
  %v5512 = vadd.f32 0.0, %v5511
  %v5513 = vpop.f32.mrb[0].mxu0
  %v5514 = vadd.f32 0.0, %v5513
  %5515 = vdwg.mxu0
  %v5516 = vadd.f32 %v5324, %v5422
  %v5517 = vadd.f32 %v5325, %v5424
  %v5518 = vadd.f32 %v5326, %v5465
  %v5519 = vadd.f32 %v5327, %v5467
  %v5520 = vadd.f32 %v5328, %v5508
  %v5521 = vadd.f32 %v5329, %v5510
  %v5522 = vadd.f32 %v5330, %v5426
  %v5523 = vadd.f32 %v5331, %v5428
  %v5524 = vadd.f32 %v5332, %v5469
  %v5525 = vadd.f32 %v5333, %v5471
  %v5526 = vadd.f32 %v5334, %v5512
  %v5527 = vadd.f32 %v5335, %v5514
  %s5528 = scalar_lea.vmem %s9, 32
  %v5529 = vld [vmem:[%s5528] sm:$0xf]
  %v5530 = vld [vmem:[%s5528 + $0x4] sm:$0xf]
  %v5531 = vpack.c.bf16 %v4767, %v4767
  %v5532 = vpack.c.bf16 %v4768, %v4768
  %v5533 = vpack.c.bf16 %v4769, %v4769
  %v5534 = vpack.c.bf16 %v4770, %v4770
  %v5535 = vpack.c.bf16 %v4772, %v4772
  %v5538 = vunpack.c.l.b16 %v5529
  %v5539 = vunpack.c.l.b16 %v5530
  %v5540 = vpack.c.b16 %v5539, %v5538
  %v5542 = vsel %vm106, %v5540, 0
  %v5545 = vsel %vm110, %v5531, 0
  %v5548 = vsel %vm110, %v5532, 0
  %v5551 = vsel %vm110, %v5533, 0
  %v5554 = vsel %vm110, %v5534, 0
  %v5557 = vsel %vm110, %v4790, 0
  %v5560 = vsel %vm110, %v5535, 0
  %5562 = vmatprep.subr.bf16.mxu0 %v5548
  %5563 = vmatpush1.bf16.msra.mxu0 %v5545
  %5564 = vmatprep.subr.bf16.mxu0 0
  %5565 = vmatpush1.bf16.msra.mxu0 0
  %5566 = vmatprep.subr.bf16.mxu0 0
  %5567 = vmatpush1.bf16.msra.mxu0 0
  %5568 = vmatprep.subr.bf16.mxu0 0
  %5569 = vmatpush1.bf16.msra.mxu0 0
  %5570 = vmatprep.subr.bf16.mxu0 0
  %5571 = vmatpush1.bf16.msra.mxu0 0
  %5572 = vmatprep.subr.bf16.mxu0 0
  %5573 = vmatpush1.bf16.msra.mxu0 0
  %5574 = vmatprep.subr.bf16.mxu0 0
  %5575 = vmatpush1.bf16.msra.mxu0 0
  %5576 = vmatprep.subr.bf16.mxu0 0
  %5577 = vmatpush1.bf16.msra.mxu0 0
  %5578 = vmatprep.subr.bf16.mxu0 0
  %5579 = vmatpush1.bf16.msra.mxu0 0
  %5580 = vmatprep.subr.bf16.mxu0 0
  %5581 = vmatpush1.bf16.msra.mxu0 0
  %5582 = vmatprep.subr.bf16.mxu0 0
  %5583 = vmatpush1.bf16.msra.mxu0 0
  %5584 = vmatprep.subr.bf16.mxu0 0
  %5585 = vmatpush1.bf16.msra.mxu0 0
  %5586 = vmatprep.subr.bf16.mxu0 0
  %5587 = vmatpush1.bf16.msra.mxu0 0
  %5588 = vmatprep.subr.bf16.mxu0 0
  %5589 = vmatpush1.bf16.msra.mxu0 0
  %5590 = vmatprep.subr.bf16.mxu0 0
  %5591 = vmatpush1.bf16.msra.mxu0 0
  %5592 = vmatprep.subr.bf16.mxu0 0
  %5593 = vmatpush1.bf16.msra.mxu0 0
  %5594 = vmatprep.mubr.bf16.mxu0 0
  %5595 = vmatmul.mubr.bf16.gmra.mrb[0].mxu0 %v5542
  %v5596 = vpop.f32.mrb[0].mxu0
  %v5597 = vadd.f32 0.0, %v5596
  %v5598 = vpop.f32.mrb[0].mxu0
  %v5599 = vadd.f32 0.0, %v5598
  %v5600 = vpop.f32.mrb[0].mxu0
  %v5601 = vadd.f32 0.0, %v5600
  %v5602 = vpop.f32.mrb[0].mxu0
  %v5603 = vadd.f32 0.0, %v5602
  %5604 = vdwg.mxu0
  %5605 = vmatprep.subr.bf16.mxu0 %v5554
  %5606 = vmatpush1.bf16.msra.mxu0 %v5551
  %5607 = vmatprep.subr.bf16.mxu0 0
  %5608 = vmatpush1.bf16.msra.mxu0 0
  %5609 = vmatprep.subr.bf16.mxu0 0
  %5610 = vmatpush1.bf16.msra.mxu0 0
  %5611 = vmatprep.subr.bf16.mxu0 0
  %5612 = vmatpush1.bf16.msra.mxu0 0
  %5613 = vmatprep.subr.bf16.mxu0 0
  %5614 = vmatpush1.bf16.msra.mxu0 0
  %5615 = vmatprep.subr.bf16.mxu0 0
  %5616 = vmatpush1.bf16.msra.mxu0 0
  %5617 = vmatprep.subr.bf16.mxu0 0
  %5618 = vmatpush1.bf16.msra.mxu0 0
  %5619 = vmatprep.subr.bf16.mxu0 0
  %5620 = vmatpush1.bf16.msra.mxu0 0
  %5621 = vmatprep.subr.bf16.mxu0 0
  %5622 = vmatpush1.bf16.msra.mxu0 0
  %5623 = vmatprep.subr.bf16.mxu0 0
  %5624 = vmatpush1.bf16.msra.mxu0 0
  %5625 = vmatprep.subr.bf16.mxu0 0
  %5626 = vmatpush1.bf16.msra.mxu0 0
  %5627 = vmatprep.subr.bf16.mxu0 0
  %5628 = vmatpush1.bf16.msra.mxu0 0
  %5629 = vmatprep.subr.bf16.mxu0 0
  %5630 = vmatpush1.bf16.msra.mxu0 0
  %5631 = vmatprep.subr.bf16.mxu0 0
  %5632 = vmatpush1.bf16.msra.mxu0 0
  %5633 = vmatprep.subr.bf16.mxu0 0
  %5634 = vmatpush1.bf16.msra.mxu0 0
  %5635 = vmatprep.subr.bf16.mxu0 0
  %5636 = vmatpush1.bf16.msra.mxu0 0
  %5637 = vmatprep.mubr.bf16.mxu0 0
  %5638 = vmatmul.mubr.bf16.gmra.mrb[0].mxu0 %v5542
  %v5639 = vpop.f32.mrb[0].mxu0
  %v5640 = vadd.f32 0.0, %v5639
  %v5641 = vpop.f32.mrb[0].mxu0
  %v5642 = vadd.f32 0.0, %v5641
  %v5643 = vpop.f32.mrb[0].mxu0
  %v5644 = vadd.f32 0.0, %v5643
  %v5645 = vpop.f32.mrb[0].mxu0
  %v5646 = vadd.f32 0.0, %v5645
  %5647 = vdwg.mxu0
  %5648 = vmatprep.subr.bf16.mxu0 %v5560
  %5649 = vmatpush1.bf16.msra.mxu0 %v5557
  %5650 = vmatprep.subr.bf16.mxu0 0
  %5651 = vmatpush1.bf16.msra.mxu0 0
  %5652 = vmatprep.subr.bf16.mxu0 0
  %5653 = vmatpush1.bf16.msra.mxu0 0
  %5654 = vmatprep.subr.bf16.mxu0 0
  %5655 = vmatpush1.bf16.msra.mxu0 0
  %5656 = vmatprep.subr.bf16.mxu0 0
  %5657 = vmatpush1.bf16.msra.mxu0 0
  %5658 = vmatprep.subr.bf16.mxu0 0
  %5659 = vmatpush1.bf16.msra.mxu0 0
  %5660 = vmatprep.subr.bf16.mxu0 0
  %5661 = vmatpush1.bf16.msra.mxu0 0
  %5662 = vmatprep.subr.bf16.mxu0 0
  %5663 = vmatpush1.bf16.msra.mxu0 0
  %5664 = vmatprep.subr.bf16.mxu0 0
  %5665 = vmatpush1.bf16.msra.mxu0 0
  %5666 = vmatprep.subr.bf16.mxu0 0
  %5667 = vmatpush1.bf16.msra.mxu0 0
  %5668 = vmatprep.subr.bf16.mxu0 0
  %5669 = vmatpush1.bf16.msra.mxu0 0
  %5670 = vmatprep.subr.bf16.mxu0 0
  %5671 = vmatpush1.bf16.msra.mxu0 0
  %5672 = vmatprep.subr.bf16.mxu0 0
  %5673 = vmatpush1.bf16.msra.mxu0 0
  %5674 = vmatprep.subr.bf16.mxu0 0
  %5675 = vmatpush1.bf16.msra.mxu0 0
  %5676 = vmatprep.subr.bf16.mxu0 0
  %5677 = vmatpush1.bf16.msra.mxu0 0
  %5678 = vmatprep.subr.bf16.mxu0 0
  %5679 = vmatpush1.bf16.msra.mxu0 0
  %5680 = vmatprep.mubr.bf16.mxu0 0
  %5681 = vmatmul.mubr.bf16.gmra.mrb[0].mxu0 %v5542
  %v5682 = vpop.f32.mrb[0].mxu0
  %v5683 = vadd.f32 0.0, %v5682
  %v5684 = vpop.f32.mrb[0].mxu0
  %v5685 = vadd.f32 0.0, %v5684
  %v5686 = vpop.f32.mrb[0].mxu0
  %v5687 = vadd.f32 0.0, %v5686
  %v5688 = vpop.f32.mrb[0].mxu0
  %v5689 = vadd.f32 0.0, %v5688
  %5690 = vdwg.mxu0
  %v5691 = vadd.f32 %v5516, %v5597
  %v5692 = vadd.f32 %v5517, %v5599
  %v5693 = vadd.f32 %v5518, %v5640
  %v5694 = vadd.f32 %v5519, %v5642
  %v5695 = vadd.f32 %v5520, %v5683
  %v5696 = vadd.f32 %v5521, %v5685
  %v5697 = vadd.f32 %v5522, %v5601
  %v5698 = vadd.f32 %v5523, %v5603
  %v5699 = vadd.f32 %v5524, %v5644
  %v5700 = vadd.f32 %v5525, %v5646
  %v5701 = vadd.f32 %v5526, %v5687
  %v5702 = vadd.f32 %v5527, %v5689
  %s5703 = scalar_lea.vmem %s9, 40
  %v5704 = vld [vmem:[%s5703] sm:$0xf]
  %v5705 = vld [vmem:[%s5703 + $0x4] sm:$0xf]
  %v5708 = vunpack.c.l.b16 %v5704
  %v5709 = vunpack.c.l.b16 %v5705
  %v5710 = vpack.c.b16 %v5709, %v5708
  %5715 = vrot.lane.b32.xlu0 %v5531, 127
  %v5716 = vpop.permute.xlu0 %5715
  %5717 = vrot.lane.b32.xlu0 %v5532, 127
  %v5718 = vpop.permute.xlu0 %5717
  %5719 = vrot.lane.b32.xlu0 %v5533, 127
  %v5720 = vpop.permute.xlu0 %5719
  %5721 = vrot.lane.b32.xlu0 %v5534, 127
  %v5722 = vpop.permute.xlu0 %5721
  %5723 = vrot.lane.b32.xlu0 %v4790, 127
  %v5724 = vpop.permute.xlu0 %5723
  %5725 = vrot.lane.b32.xlu0 %v4791, 127
  %v5726 = vpop.permute.xlu0 %5725
  %v5727 = vsel %vm934, %v5716, %v5718
  %v5728 = vsel %vm934, %v5718, %v5720
  %v5729 = vsel %vm934, %v5720, %v5722
  %v5730 = vsel %vm934, %v5722, %v5724
  %v5731 = vsel %vm934, %v5724, %v5726
  %v5733 = vsel %vm106, %v5710, 0
  %v5736 = vsel %vm110, %v5727, 0
  %v5739 = vsel %vm110, %v5728, 0
  %v5742 = vsel %vm110, %v5729, 0
  %v5745 = vsel %vm110, %v5730, 0
  %v5748 = vsel %vm110, %v5731, 0
  %v5751 = vsel %vm110, %v5726, 0
  %5753 = vmatprep.subr.bf16.mxu0 %v5739
  %5754 = vmatpush1.bf16.msra.mxu0 %v5736
  %5755 = vmatprep.subr.bf16.mxu0 0
  %5756 = vmatpush1.bf16.msra.mxu0 0
  %5757 = vmatprep.subr.bf16.mxu0 0
  %5758 = vmatpush1.bf16.msra.mxu0 0
  %5759 = vmatprep.subr.bf16.mxu0 0
  %5760 = vmatpush1.bf16.msra.mxu0 0
  %5761 = vmatprep.subr.bf16.mxu0 0
  %5762 = vmatpush1.bf16.msra.mxu0 0
  %5763 = vmatprep.subr.bf16.mxu0 0
  %5764 = vmatpush1.bf16.msra.mxu0 0
  %5765 = vmatprep.subr.bf16.mxu0 0
  %5766 = vmatpush1.bf16.msra.mxu0 0
  %5767 = vmatprep.subr.bf16.mxu0 0
  %5768 = vmatpush1.bf16.msra.mxu0 0
  %5769 = vmatprep.subr.bf16.mxu0 0
  %5770 = vmatpush1.bf16.msra.mxu0 0
  %5771 = vmatprep.subr.bf16.mxu0 0
  %5772 = vmatpush1.bf16.msra.mxu0 0
  %5773 = vmatprep.subr.bf16.mxu0 0
  %5774 = vmatpush1.bf16.msra.mxu0 0
  %5775 = vmatprep.subr.bf16.mxu0 0
  %5776 = vmatpush1.bf16.msra.mxu0 0
  %5777 = vmatprep.subr.bf16.mxu0 0
  %5778 = vmatpush1.bf16.msra.mxu0 0
  %5779 = vmatprep.subr.bf16.mxu0 0
  %5780 = vmatpush1.bf16.msra.mxu0 0
  %5781 = vmatprep.subr.bf16.mxu0 0
  %5782 = vmatpush1.bf16.msra.mxu0 0
  %5783 = vmatprep.subr.bf16.mxu0 0
  %5784 = vmatpush1.bf16.msra.mxu0 0
  %5785 = vmatprep.mubr.bf16.mxu0 0
  %5786 = vmatmul.mubr.bf16.gmra.mrb[0].mxu0 %v5733
  %v5787 = vpop.f32.mrb[0].mxu0
  %v5788 = vadd.f32 0.0, %v5787
  %v5789 = vpop.f32.mrb[0].mxu0
  %v5790 = vadd.f32 0.0, %v5789
  %v5791 = vpop.f32.mrb[0].mxu0
  %v5792 = vadd.f32 0.0, %v5791
  %v5793 = vpop.f32.mrb[0].mxu0
  %v5794 = vadd.f32 0.0, %v5793
  %5795 = vdwg.mxu0
  %5796 = vmatprep.subr.bf16.mxu0 %v5745
  %5797 = vmatpush1.bf16.msra.mxu0 %v5742
  %5798 = vmatprep.subr.bf16.mxu0 0
  %5799 = vmatpush1.bf16.msra.mxu0 0
  %5800 = vmatprep.subr.bf16.mxu0 0
  %5801 = vmatpush1.bf16.msra.mxu0 0
  %5802 = vmatprep.subr.bf16.mxu0 0
  %5803 = vmatpush1.bf16.msra.mxu0 0
  %5804 = vmatprep.subr.bf16.mxu0 0
  %5805 = vmatpush1.bf16.msra.mxu0 0
  %5806 = vmatprep.subr.bf16.mxu0 0
  %5807 = vmatpush1.bf16.msra.mxu0 0
  %5808 = vmatprep.subr.bf16.mxu0 0
  %5809 = vmatpush1.bf16.msra.mxu0 0
  %5810 = vmatprep.subr.bf16.mxu0 0
  %5811 = vmatpush1.bf16.msra.mxu0 0
  %5812 = vmatprep.subr.bf16.mxu0 0
  %5813 = vmatpush1.bf16.msra.mxu0 0
  %5814 = vmatprep.subr.bf16.mxu0 0
  %5815 = vmatpush1.bf16.msra.mxu0 0
  %5816 = vmatprep.subr.bf16.mxu0 0
  %5817 = vmatpush1.bf16.msra.mxu0 0
  %5818 = vmatprep.subr.bf16.mxu0 0
  %5819 = vmatpush1.bf16.msra.mxu0 0
  %5820 = vmatprep.subr.bf16.mxu0 0
  %5821 = vmatpush1.bf16.msra.mxu0 0
  %5822 = vmatprep.subr.bf16.mxu0 0
  %5823 = vmatpush1.bf16.msra.mxu0 0
  %5824 = vmatprep.subr.bf16.mxu0 0
  %5825 = vmatpush1.bf16.msra.mxu0 0
  %5826 = vmatprep.subr.bf16.mxu0 0
  %5827 = vmatpush1.bf16.msra.mxu0 0
  %5828 = vmatprep.mubr.bf16.mxu0 0
  %5829 = vmatmul.mubr.bf16.gmra.mrb[0].mxu0 %v5733
  %v5830 = vpop.f32.mrb[0].mxu0
  %v5831 = vadd.f32 0.0, %v5830
  %v5832 = vpop.f32.mrb[0].mxu0
  %v5833 = vadd.f32 0.0, %v5832
  %v5834 = vpop.f32.mrb[0].mxu0
  %v5835 = vadd.f32 0.0, %v5834
  %v5836 = vpop.f32.mrb[0].mxu0
  %v5837 = vadd.f32 0.0, %v5836
  %5838 = vdwg.mxu0
  %5839 = vmatprep.subr.bf16.mxu0 %v5751
  %5840 = vmatpush1.bf16.msra.mxu0 %v5748
  %5841 = vmatprep.subr.bf16.mxu0 0
  %5842 = vmatpush1.bf16.msra.mxu0 0
  %5843 = vmatprep.subr.bf16.mxu0 0
  %5844 = vmatpush1.bf16.msra.mxu0 0
  %5845 = vmatprep.subr.bf16.mxu0 0
  %5846 = vmatpush1.bf16.msra.mxu0 0
  %5847 = vmatprep.subr.bf16.mxu0 0
  %5848 = vmatpush1.bf16.msra.mxu0 0
  %5849 = vmatprep.subr.bf16.mxu0 0
  %5850 = vmatpush1.bf16.msra.mxu0 0
  %5851 = vmatprep.subr.bf16.mxu0 0
  %5852 = vmatpush1.bf16.msra.mxu0 0
  %5853 = vmatprep.subr.bf16.mxu0 0
  %5854 = vmatpush1.bf16.msra.mxu0 0
  %5855 = vmatprep.subr.bf16.mxu0 0
  %5856 = vmatpush1.bf16.msra.mxu0 0
  %5857 = vmatprep.subr.bf16.mxu0 0
  %5858 = vmatpush1.bf16.msra.mxu0 0
  %5859 = vmatprep.subr.bf16.mxu0 0
  %5860 = vmatpush1.bf16.msra.mxu0 0
  %5861 = vmatprep.subr.bf16.mxu0 0
  %5862 = vmatpush1.bf16.msra.mxu0 0
  %5863 = vmatprep.subr.bf16.mxu0 0
  %5864 = vmatpush1.bf16.msra.mxu0 0
  %5865 = vmatprep.subr.bf16.mxu0 0
  %5866 = vmatpush1.bf16.msra.mxu0 0
  %5867 = vmatprep.subr.bf16.mxu0 0
  %5868 = vmatpush1.bf16.msra.mxu0 0
  %5869 = vmatprep.subr.bf16.mxu0 0
  %5870 = vmatpush1.bf16.msra.mxu0 0
  %5871 = vmatprep.mubr.bf16.mxu0 0
  %5872 = vmatmul.mubr.bf16.gmra.mrb[0].mxu0 %v5733
  %v5873 = vpop.f32.mrb[0].mxu0
  %v5874 = vadd.f32 0.0, %v5873
  %v5875 = vpop.f32.mrb[0].mxu0
  %v5876 = vadd.f32 0.0, %v5875
  %v5877 = vpop.f32.mrb[0].mxu0
  %v5878 = vadd.f32 0.0, %v5877
  %v5879 = vpop.f32.mrb[0].mxu0
  %v5880 = vadd.f32 0.0, %v5879
  %5881 = vdwg.mxu0
  %v5882 = vadd.f32 %v5691, %v5788
  %v5883 = vadd.f32 %v5692, %v5790
  %v5884 = vadd.f32 %v5693, %v5831
  %v5885 = vadd.f32 %v5694, %v5833
  %v5886 = vadd.f32 %v5695, %v5874
  %v5887 = vadd.f32 %v5696, %v5876
  %v5888 = vadd.f32 %v5697, %v5792
  %v5889 = vadd.f32 %v5698, %v5794
  %v5890 = vadd.f32 %v5699, %v5835
  %v5891 = vadd.f32 %v5700, %v5837
  %v5892 = vadd.f32 %v5701, %v5878
  %v5893 = vadd.f32 %v5702, %v5880
  %s5894 = scalar_lea.vmem %s9, 48
  %v5895 = vld [vmem:[%s5894] sm:$0xf]
  %v5896 = vld [vmem:[%s5894 + $0x4] sm:$0xf]
  %v5899 = vunpack.c.l.b16 %v5895
  %v5900 = vunpack.c.l.b16 %v5896
  %v5901 = vpack.c.b16 %v5900, %v5899
  %5902 = vrot.lane.b32.xlu0 %v5531, 111
  %v5903 = vpop.permute.xlu0 %5902
  %5904 = vrot.lane.b32.xlu0 %v5532, 111
  %v5905 = vpop.permute.xlu0 %5904
  %5906 = vrot.lane.b32.xlu0 %v5533, 111
  %v5907 = vpop.permute.xlu0 %5906
  %5908 = vrot.lane.b32.xlu0 %v5534, 111
  %v5909 = vpop.permute.xlu0 %5908
  %5910 = vrot.lane.b32.xlu0 %v4790, 111
  %v5911 = vpop.permute.xlu0 %5910
  %5912 = vrot.lane.b32.xlu0 %v4791, 111
  %v5913 = vpop.permute.xlu0 %5912
  %v5914 = vsel %vm1104, %v5903, %v5905
  %v5915 = vsel %vm1104, %v5905, %v5907
  %v5916 = vsel %vm1104, %v5907, %v5909
  %v5917 = vsel %vm1104, %v5909, %v5911
  %v5918 = vsel %vm1104, %v5911, %v5913
  %v5920 = vsel %vm106, %v5901, 0
  %v5923 = vsel %vm110, %v5914, 0
  %v5926 = vsel %vm110, %v5915, 0
  %v5929 = vsel %vm110, %v5916, 0
  %v5932 = vsel %vm110, %v5917, 0
  %v5935 = vsel %vm110, %v5918, 0
  %v5938 = vsel %vm110, %v5913, 0
  %5940 = vmatprep.subr.bf16.mxu0 %v5926
  %5941 = vmatpush1.bf16.msra.mxu0 %v5923
  %5942 = vmatprep.subr.bf16.mxu0 0
  %5943 = vmatpush1.bf16.msra.mxu0 0
  %5944 = vmatprep.subr.bf16.mxu0 0
  %5945 = vmatpush1.bf16.msra.mxu0 0
  %5946 = vmatprep.subr.bf16.mxu0 0
  %5947 = vmatpush1.bf16.msra.mxu0 0
  %5948 = vmatprep.subr.bf16.mxu0 0
  %5949 = vmatpush1.bf16.msra.mxu0 0
  %5950 = vmatprep.subr.bf16.mxu0 0
  %5951 = vmatpush1.bf16.msra.mxu0 0
  %5952 = vmatprep.subr.bf16.mxu0 0
  %5953 = vmatpush1.bf16.msra.mxu0 0
  %5954 = vmatprep.subr.bf16.mxu0 0
  %5955 = vmatpush1.bf16.msra.mxu0 0
  %5956 = vmatprep.subr.bf16.mxu0 0
  %5957 = vmatpush1.bf16.msra.mxu0 0
  %5958 = vmatprep.subr.bf16.mxu0 0
  %5959 = vmatpush1.bf16.msra.mxu0 0
  %5960 = vmatprep.subr.bf16.mxu0 0
  %5961 = vmatpush1.bf16.msra.mxu0 0
  %5962 = vmatprep.subr.bf16.mxu0 0
  %5963 = vmatpush1.bf16.msra.mxu0 0
  %5964 = vmatprep.subr.bf16.mxu0 0
  %5965 = vmatpush1.bf16.msra.mxu0 0
  %5966 = vmatprep.subr.bf16.mxu0 0
  %5967 = vmatpush1.bf16.msra.mxu0 0
  %5968 = vmatprep.subr.bf16.mxu0 0
  %5969 = vmatpush1.bf16.msra.mxu0 0
  %5970 = vmatprep.subr.bf16.mxu0 0
  %5971 = vmatpush1.bf16.msra.mxu0 0
  %5972 = vmatprep.mubr.bf16.mxu0 0
  %5973 = vmatmul.mubr.bf16.gmra.mrb[0].mxu0 %v5920
  %v5974 = vpop.f32.mrb[0].mxu0
  %v5975 = vadd.f32 0.0, %v5974
  %v5976 = vpop.f32.mrb[0].mxu0
  %v5977 = vadd.f32 0.0, %v5976
  %v5978 = vpop.f32.mrb[0].mxu0
  %v5979 = vadd.f32 0.0, %v5978
  %v5980 = vpop.f32.mrb[0].mxu0
  %v5981 = vadd.f32 0.0, %v5980
  %5982 = vdwg.mxu0
  %5983 = vmatprep.subr.bf16.mxu0 %v5932
  %5984 = vmatpush1.bf16.msra.mxu0 %v5929
  %5985 = vmatprep.subr.bf16.mxu0 0
  %5986 = vmatpush1.bf16.msra.mxu0 0
  %5987 = vmatprep.subr.bf16.mxu0 0
  %5988 = vmatpush1.bf16.msra.mxu0 0
  %5989 = vmatprep.subr.bf16.mxu0 0
  %5990 = vmatpush1.bf16.msra.mxu0 0
  %5991 = vmatprep.subr.bf16.mxu0 0
  %5992 = vmatpush1.bf16.msra.mxu0 0
  %5993 = vmatprep.subr.bf16.mxu0 0
  %5994 = vmatpush1.bf16.msra.mxu0 0
  %5995 = vmatprep.subr.bf16.mxu0 0
  %5996 = vmatpush1.bf16.msra.mxu0 0
  %5997 = vmatprep.subr.bf16.mxu0 0
  %5998 = vmatpush1.bf16.msra.mxu0 0
  %5999 = vmatprep.subr.bf16.mxu0 0
  %6000 = vmatpush1.bf16.msra.mxu0 0
  %6001 = vmatprep.subr.bf16.mxu0 0
  %6002 = vmatpush1.bf16.msra.mxu0 0
  %6003 = vmatprep.subr.bf16.mxu0 0
  %6004 = vmatpush1.bf16.msra.mxu0 0
  %6005 = vmatprep.subr.bf16.mxu0 0
  %6006 = vmatpush1.bf16.msra.mxu0 0
  %6007 = vmatprep.subr.bf16.mxu0 0
  %6008 = vmatpush1.bf16.msra.mxu0 0
  %6009 = vmatprep.subr.bf16.mxu0 0
  %6010 = vmatpush1.bf16.msra.mxu0 0
  %6011 = vmatprep.subr.bf16.mxu0 0
  %6012 = vmatpush1.bf16.msra.mxu0 0
  %6013 = vmatprep.subr.bf16.mxu0 0
  %6014 = vmatpush1.bf16.msra.mxu0 0
  %6015 = vmatprep.mubr.bf16.mxu0 0
  %6016 = vmatmul.mubr.bf16.gmra.mrb[0].mxu0 %v5920
  %v6017 = vpop.f32.mrb[0].mxu0
  %v6018 = vadd.f32 0.0, %v6017
  %v6019 = vpop.f32.mrb[0].mxu0
  %v6020 = vadd.f32 0.0, %v6019
  %v6021 = vpop.f32.mrb[0].mxu0
  %v6022 = vadd.f32 0.0, %v6021
  %v6023 = vpop.f32.mrb[0].mxu0
  %v6024 = vadd.f32 0.0, %v6023
  %6025 = vdwg.mxu0
  %6026 = vmatprep.subr.bf16.mxu0 %v5938
  %6027 = vmatpush1.bf16.msra.mxu0 %v5935
  %6028 = vmatprep.subr.bf16.mxu0 0
  %6029 = vmatpush1.bf16.msra.mxu0 0
  %6030 = vmatprep.subr.bf16.mxu0 0
  %6031 = vmatpush1.bf16.msra.mxu0 0
  %6032 = vmatprep.subr.bf16.mxu0 0
  %6033 = vmatpush1.bf16.msra.mxu0 0
  %6034 = vmatprep.subr.bf16.mxu0 0
  %6035 = vmatpush1.bf16.msra.mxu0 0
  %6036 = vmatprep.subr.bf16.mxu0 0
  %6037 = vmatpush1.bf16.msra.mxu0 0
  %6038 = vmatprep.subr.bf16.mxu0 0
  %6039 = vmatpush1.bf16.msra.mxu0 0
  %6040 = vmatprep.subr.bf16.mxu0 0
  %6041 = vmatpush1.bf16.msra.mxu0 0
  %6042 = vmatprep.subr.bf16.mxu0 0
  %6043 = vmatpush1.bf16.msra.mxu0 0
  %6044 = vmatprep.subr.bf16.mxu0 0
  %6045 = vmatpush1.bf16.msra.mxu0 0
  %6046 = vmatprep.subr.bf16.mxu0 0
  %6047 = vmatpush1.bf16.msra.mxu0 0
  %6048 = vmatprep.subr.bf16.mxu0 0
  %6049 = vmatpush1.bf16.msra.mxu0 0
  %6050 = vmatprep.subr.bf16.mxu0 0
  %6051 = vmatpush1.bf16.msra.mxu0 0
  %6052 = vmatprep.subr.bf16.mxu0 0
  %6053 = vmatpush1.bf16.msra.mxu0 0
  %6054 = vmatprep.subr.bf16.mxu0 0
  %6055 = vmatpush1.bf16.msra.mxu0 0
  %6056 = vmatprep.subr.bf16.mxu0 0
  %6057 = vmatpush1.bf16.msra.mxu0 0
  %6058 = vmatprep.mubr.bf16.mxu0 0
  %6059 = vmatmul.mubr.bf16.gmra.mrb[0].mxu0 %v5920
  %v6060 = vpop.f32.mrb[0].mxu0
  %v6061 = vadd.f32 0.0, %v6060
  %v6062 = vpop.f32.mrb[0].mxu0
  %v6063 = vadd.f32 0.0, %v6062
  %v6064 = vpop.f32.mrb[0].mxu0
  %v6065 = vadd.f32 0.0, %v6064
  %v6066 = vpop.f32.mrb[0].mxu0
  %v6067 = vadd.f32 0.0, %v6066
  %6068 = vdwg.mxu0
  %v6069 = vadd.f32 %v5882, %v5975
  %v6070 = vadd.f32 %v5883, %v5977
  %v6071 = vadd.f32 %v5884, %v6018
  %v6072 = vadd.f32 %v5885, %v6020
  %v6073 = vadd.f32 %v5886, %v6061
  %v6074 = vadd.f32 %v5887, %v6063
  %v6075 = vadd.f32 %v5888, %v5979
  %v6076 = vadd.f32 %v5889, %v5981
  %v6077 = vadd.f32 %v5890, %v6022
  %v6078 = vadd.f32 %v5891, %v6024
  %v6079 = vadd.f32 %v5892, %v6065
  %v6080 = vadd.f32 %v5893, %v6067
  %s6081 = scalar_lea.vmem %s9, 56
  %v6082 = vld [vmem:[%s6081] sm:$0xf]
  %v6083 = vld [vmem:[%s6081 + $0x4] sm:$0xf]
  %v6086 = vunpack.c.l.b16 %v6082
  %v6087 = vunpack.c.l.b16 %v6083
  %v6088 = vpack.c.b16 %v6087, %v6086
  %6089 = vrot.lane.b32.xlu0 %v5531, 110
  %v6090 = vpop.permute.xlu0 %6089
  %6091 = vrot.lane.b32.xlu0 %v5532, 110
  %v6092 = vpop.permute.xlu0 %6091
  %6093 = vrot.lane.b32.xlu0 %v5533, 110
  %v6094 = vpop.permute.xlu0 %6093
  %6095 = vrot.lane.b32.xlu0 %v5534, 110
  %v6096 = vpop.permute.xlu0 %6095
  %6097 = vrot.lane.b32.xlu0 %v4790, 110
  %v6098 = vpop.permute.xlu0 %6097
  %6099 = vrot.lane.b32.xlu0 %v4791, 110
  %v6100 = vpop.permute.xlu0 %6099
  %v6101 = vsel %vm1274, %v6090, %v6092
  %v6102 = vsel %vm1274, %v6092, %v6094
  %v6103 = vsel %vm1274, %v6094, %v6096
  %v6104 = vsel %vm1274, %v6096, %v6098
  %v6105 = vsel %vm1274, %v6098, %v6100
  %v6107 = vsel %vm106, %v6088, 0
  %v6110 = vsel %vm110, %v6101, 0
  %v6113 = vsel %vm110, %v6102, 0
  %v6116 = vsel %vm110, %v6103, 0
  %v6119 = vsel %vm110, %v6104, 0
  %v6122 = vsel %vm110, %v6105, 0
  %v6125 = vsel %vm110, %v6100, 0
  %6127 = vmatprep.subr.bf16.mxu0 %v6113
  %6128 = vmatpush1.bf16.msra.mxu0 %v6110
  %6129 = vmatprep.subr.bf16.mxu0 0
  %6130 = vmatpush1.bf16.msra.mxu0 0
  %6131 = vmatprep.subr.bf16.mxu0 0
  %6132 = vmatpush1.bf16.msra.mxu0 0
  %6133 = vmatprep.subr.bf16.mxu0 0
  %6134 = vmatpush1.bf16.msra.mxu0 0
  %6135 = vmatprep.subr.bf16.mxu0 0
  %6136 = vmatpush1.bf16.msra.mxu0 0
  %6137 = vmatprep.subr.bf16.mxu0 0
  %6138 = vmatpush1.bf16.msra.mxu0 0
  %6139 = vmatprep.subr.bf16.mxu0 0
  %6140 = vmatpush1.bf16.msra.mxu0 0
  %6141 = vmatprep.subr.bf16.mxu0 0
  %6142 = vmatpush1.bf16.msra.mxu0 0
  %6143 = vmatprep.subr.bf16.mxu0 0
  %6144 = vmatpush1.bf16.msra.mxu0 0
  %6145 = vmatprep.subr.bf16.mxu0 0
  %6146 = vmatpush1.bf16.msra.mxu0 0
  %6147 = vmatprep.subr.bf16.mxu0 0
  %6148 = vmatpush1.bf16.msra.mxu0 0
  %6149 = vmatprep.subr.bf16.mxu0 0
  %6150 = vmatpush1.bf16.msra.mxu0 0
  %6151 = vmatprep.subr.bf16.mxu0 0
  %6152 = vmatpush1.bf16.msra.mxu0 0
  %6153 = vmatprep.subr.bf16.mxu0 0
  %6154 = vmatpush1.bf16.msra.mxu0 0
  %6155 = vmatprep.subr.bf16.mxu0 0
  %6156 = vmatpush1.bf16.msra.mxu0 0
  %6157 = vmatprep.subr.bf16.mxu0 0
  %6158 = vmatpush1.bf16.msra.mxu0 0
  %6159 = vmatprep.mubr.bf16.mxu0 0
  %6160 = vmatmul.mubr.bf16.gmra.mrb[0].mxu0 %v6107
  %v6161 = vpop.f32.mrb[0].mxu0
  %v6162 = vadd.f32 0.0, %v6161
  %v6163 = vpop.f32.mrb[0].mxu0
  %v6164 = vadd.f32 0.0, %v6163
  %v6165 = vpop.f32.mrb[0].mxu0
  %v6166 = vadd.f32 0.0, %v6165
  %v6167 = vpop.f32.mrb[0].mxu0
  %v6168 = vadd.f32 0.0, %v6167
  %6169 = vdwg.mxu0
  %6170 = vmatprep.subr.bf16.mxu0 %v6119
  %6171 = vmatpush1.bf16.msra.mxu0 %v6116
  %6172 = vmatprep.subr.bf16.mxu0 0
  %6173 = vmatpush1.bf16.msra.mxu0 0
  %6174 = vmatprep.subr.bf16.mxu0 0
  %6175 = vmatpush1.bf16.msra.mxu0 0
  %6176 = vmatprep.subr.bf16.mxu0 0
  %6177 = vmatpush1.bf16.msra.mxu0 0
  %6178 = vmatprep.subr.bf16.mxu0 0
  %6179 = vmatpush1.bf16.msra.mxu0 0
  %6180 = vmatprep.subr.bf16.mxu0 0
  %6181 = vmatpush1.bf16.msra.mxu0 0
  %6182 = vmatprep.subr.bf16.mxu0 0
  %6183 = vmatpush1.bf16.msra.mxu0 0
  %6184 = vmatprep.subr.bf16.mxu0 0
  %6185 = vmatpush1.bf16.msra.mxu0 0
  %6186 = vmatprep.subr.bf16.mxu0 0
  %6187 = vmatpush1.bf16.msra.mxu0 0
  %6188 = vmatprep.subr.bf16.mxu0 0
  %6189 = vmatpush1.bf16.msra.mxu0 0
  %6190 = vmatprep.subr.bf16.mxu0 0
  %6191 = vmatpush1.bf16.msra.mxu0 0
  %6192 = vmatprep.subr.bf16.mxu0 0
  %6193 = vmatpush1.bf16.msra.mxu0 0
  %6194 = vmatprep.subr.bf16.mxu0 0
  %6195 = vmatpush1.bf16.msra.mxu0 0
  %6196 = vmatprep.subr.bf16.mxu0 0
  %6197 = vmatpush1.bf16.msra.mxu0 0
  %6198 = vmatprep.subr.bf16.mxu0 0
  %6199 = vmatpush1.bf16.msra.mxu0 0
  %6200 = vmatprep.subr.bf16.mxu0 0
  %6201 = vmatpush1.bf16.msra.mxu0 0
  %6202 = vmatprep.mubr.bf16.mxu0 0
  %6203 = vmatmul.mubr.bf16.gmra.mrb[0].mxu0 %v6107
  %v6204 = vpop.f32.mrb[0].mxu0
  %v6205 = vadd.f32 0.0, %v6204
  %v6206 = vpop.f32.mrb[0].mxu0
  %v6207 = vadd.f32 0.0, %v6206
  %v6208 = vpop.f32.mrb[0].mxu0
  %v6209 = vadd.f32 0.0, %v6208
  %v6210 = vpop.f32.mrb[0].mxu0
  %v6211 = vadd.f32 0.0, %v6210
  %6212 = vdwg.mxu0
  %6213 = vmatprep.subr.bf16.mxu0 %v6125
  %6214 = vmatpush1.bf16.msra.mxu0 %v6122
  %6215 = vmatprep.subr.bf16.mxu0 0
  %6216 = vmatpush1.bf16.msra.mxu0 0
  %6217 = vmatprep.subr.bf16.mxu0 0
  %6218 = vmatpush1.bf16.msra.mxu0 0
  %6219 = vmatprep.subr.bf16.mxu0 0
  %6220 = vmatpush1.bf16.msra.mxu0 0
  %6221 = vmatprep.subr.bf16.mxu0 0
  %6222 = vmatpush1.bf16.msra.mxu0 0
  %6223 = vmatprep.subr.bf16.mxu0 0
  %6224 = vmatpush1.bf16.msra.mxu0 0
  %6225 = vmatprep.subr.bf16.mxu0 0
  %6226 = vmatpush1.bf16.msra.mxu0 0
  %6227 = vmatprep.subr.bf16.mxu0 0
  %6228 = vmatpush1.bf16.msra.mxu0 0
  %6229 = vmatprep.subr.bf16.mxu0 0
  %6230 = vmatpush1.bf16.msra.mxu0 0
  %6231 = vmatprep.subr.bf16.mxu0 0
  %6232 = vmatpush1.bf16.msra.mxu0 0
  %6233 = vmatprep.subr.bf16.mxu0 0
  %6234 = vmatpush1.bf16.msra.mxu0 0
  %6235 = vmatprep.subr.bf16.mxu0 0
  %6236 = vmatpush1.bf16.msra.mxu0 0
  %6237 = vmatprep.subr.bf16.mxu0 0
  %6238 = vmatpush1.bf16.msra.mxu0 0
  %6239 = vmatprep.subr.bf16.mxu0 0
  %6240 = vmatpush1.bf16.msra.mxu0 0
  %6241 = vmatprep.subr.bf16.mxu0 0
  %6242 = vmatpush1.bf16.msra.mxu0 0
  %6243 = vmatprep.subr.bf16.mxu0 0
  %6244 = vmatpush1.bf16.msra.mxu0 0
  %6245 = vmatprep.mubr.bf16.mxu0 0
  %6246 = vmatmul.mubr.bf16.gmra.mrb[0].mxu0 %v6107
  %v6247 = vpop.f32.mrb[0].mxu0
  %v6248 = vadd.f32 0.0, %v6247
  %v6249 = vpop.f32.mrb[0].mxu0
  %v6250 = vadd.f32 0.0, %v6249
  %v6251 = vpop.f32.mrb[0].mxu0
  %v6252 = vadd.f32 0.0, %v6251
  %v6253 = vpop.f32.mrb[0].mxu0
  %v6254 = vadd.f32 0.0, %v6253
  %6255 = vdwg.mxu0
  %v6256 = vadd.f32 %v6069, %v6162
  %v6257 = vadd.f32 %v6070, %v6164
  %v6258 = vadd.f32 %v6071, %v6205
  %v6259 = vadd.f32 %v6072, %v6207
  %v6260 = vadd.f32 %v6073, %v6248
  %v6261 = vadd.f32 %v6074, %v6250
  %v6262 = vadd.f32 %v6075, %v6166
  %v6263 = vadd.f32 %v6076, %v6168
  %v6264 = vadd.f32 %v6077, %v6209
  %v6265 = vadd.f32 %v6078, %v6211
  %v6266 = vadd.f32 %v6079, %v6252
  %v6267 = vadd.f32 %v6080, %v6254
  %s6268 = scalar_lea.vmem %s9, 64
  %v6269 = vld [vmem:[%s6268] sm:$0xf]
  %v6270 = vld [vmem:[%s6268 + $0x4] sm:$0xf]
  %v6273 = vunpack.c.l.b16 %v6269
  %v6274 = vunpack.c.l.b16 %v6270
  %v6275 = vpack.c.b16 %v6274, %v6273
  %6276 = vrot.lane.b32.xlu0 %v5531, 109
  %v6277 = vpop.permute.xlu0 %6276
  %6278 = vrot.lane.b32.xlu0 %v5532, 109
  %v6279 = vpop.permute.xlu0 %6278
  %6280 = vrot.lane.b32.xlu0 %v5533, 109
  %v6281 = vpop.permute.xlu0 %6280
  %6282 = vrot.lane.b32.xlu0 %v5534, 109
  %v6283 = vpop.permute.xlu0 %6282
  %6284 = vrot.lane.b32.xlu0 %v4790, 109
  %v6285 = vpop.permute.xlu0 %6284
  %6286 = vrot.lane.b32.xlu0 %v4791, 109
  %v6287 = vpop.permute.xlu0 %6286
  %v6288 = vsel %vm1444, %v6277, %v6279
  %v6289 = vsel %vm1444, %v6279, %v6281
  %v6290 = vsel %vm1444, %v6281, %v6283
  %v6291 = vsel %vm1444, %v6283, %v6285
  %v6292 = vsel %vm1444, %v6285, %v6287
  %v6294 = vsel %vm106, %v6275, 0
  %v6297 = vsel %vm110, %v6288, 0
  %v6300 = vsel %vm110, %v6289, 0
  %v6303 = vsel %vm110, %v6290, 0
  %v6306 = vsel %vm110, %v6291, 0
  %v6309 = vsel %vm110, %v6292, 0
  %v6312 = vsel %vm110, %v6287, 0
  %6314 = vmatprep.subr.bf16.mxu0 %v6300
  %6315 = vmatpush1.bf16.msra.mxu0 %v6297
  %6316 = vmatprep.subr.bf16.mxu0 0
  %6317 = vmatpush1.bf16.msra.mxu0 0
  %6318 = vmatprep.subr.bf16.mxu0 0
  %6319 = vmatpush1.bf16.msra.mxu0 0
  %6320 = vmatprep.subr.bf16.mxu0 0
  %6321 = vmatpush1.bf16.msra.mxu0 0
  %6322 = vmatprep.subr.bf16.mxu0 0
  %6323 = vmatpush1.bf16.msra.mxu0 0
  %6324 = vmatprep.subr.bf16.mxu0 0
  %6325 = vmatpush1.bf16.msra.mxu0 0
  %6326 = vmatprep.subr.bf16.mxu0 0
  %6327 = vmatpush1.bf16.msra.mxu0 0
  %6328 = vmatprep.subr.bf16.mxu0 0
  %6329 = vmatpush1.bf16.msra.mxu0 0
  %6330 = vmatprep.subr.bf16.mxu0 0
  %6331 = vmatpush1.bf16.msra.mxu0 0
  %6332 = vmatprep.subr.bf16.mxu0 0
  %6333 = vmatpush1.bf16.msra.mxu0 0
  %6334 = vmatprep.subr.bf16.mxu0 0
  %6335 = vmatpush1.bf16.msra.mxu0 0
  %6336 = vmatprep.subr.bf16.mxu0 0
  %6337 = vmatpush1.bf16.msra.mxu0 0
  %6338 = vmatprep.subr.bf16.mxu0 0
  %6339 = vmatpush1.bf16.msra.mxu0 0
  %6340 = vmatprep.subr.bf16.mxu0 0
  %6341 = vmatpush1.bf16.msra.mxu0 0
  %6342 = vmatprep.subr.bf16.mxu0 0
  %6343 = vmatpush1.bf16.msra.mxu0 0
  %6344 = vmatprep.subr.bf16.mxu0 0
  %6345 = vmatpush1.bf16.msra.mxu0 0
  %6346 = vmatprep.mubr.bf16.mxu0 0
  %6347 = vmatmul.mubr.bf16.gmra.mrb[0].mxu0 %v6294
  %v6348 = vpop.f32.mrb[0].mxu0
  %v6349 = vadd.f32 0.0, %v6348
  %v6350 = vpop.f32.mrb[0].mxu0
  %v6351 = vadd.f32 0.0, %v6350
  %v6352 = vpop.f32.mrb[0].mxu0
  %v6353 = vadd.f32 0.0, %v6352
  %v6354 = vpop.f32.mrb[0].mxu0
  %v6355 = vadd.f32 0.0, %v6354
  %6356 = vdwg.mxu0
  %6357 = vmatprep.subr.bf16.mxu0 %v6306
  %6358 = vmatpush1.bf16.msra.mxu0 %v6303
  %6359 = vmatprep.subr.bf16.mxu0 0
  %6360 = vmatpush1.bf16.msra.mxu0 0
  %6361 = vmatprep.subr.bf16.mxu0 0
  %6362 = vmatpush1.bf16.msra.mxu0 0
  %6363 = vmatprep.subr.bf16.mxu0 0
  %6364 = vmatpush1.bf16.msra.mxu0 0
  %6365 = vmatprep.subr.bf16.mxu0 0
  %6366 = vmatpush1.bf16.msra.mxu0 0
  %6367 = vmatprep.subr.bf16.mxu0 0
  %6368 = vmatpush1.bf16.msra.mxu0 0
  %6369 = vmatprep.subr.bf16.mxu0 0
  %6370 = vmatpush1.bf16.msra.mxu0 0
  %6371 = vmatprep.subr.bf16.mxu0 0
  %6372 = vmatpush1.bf16.msra.mxu0 0
  %6373 = vmatprep.subr.bf16.mxu0 0
  %6374 = vmatpush1.bf16.msra.mxu0 0
  %6375 = vmatprep.subr.bf16.mxu0 0
  %6376 = vmatpush1.bf16.msra.mxu0 0
  %6377 = vmatprep.subr.bf16.mxu0 0
  %6378 = vmatpush1.bf16.msra.mxu0 0
  %6379 = vmatprep.subr.bf16.mxu0 0
  %6380 = vmatpush1.bf16.msra.mxu0 0
  %6381 = vmatprep.subr.bf16.mxu0 0
  %6382 = vmatpush1.bf16.msra.mxu0 0
  %6383 = vmatprep.subr.bf16.mxu0 0
  %6384 = vmatpush1.bf16.msra.mxu0 0
  %6385 = vmatprep.subr.bf16.mxu0 0
  %6386 = vmatpush1.bf16.msra.mxu0 0
  %6387 = vmatprep.subr.bf16.mxu0 0
  %6388 = vmatpush1.bf16.msra.mxu0 0
  %6389 = vmatprep.mubr.bf16.mxu0 0
  %6390 = vmatmul.mubr.bf16.gmra.mrb[0].mxu0 %v6294
  %v6391 = vpop.f32.mrb[0].mxu0
  %v6392 = vadd.f32 0.0, %v6391
  %v6393 = vpop.f32.mrb[0].mxu0
  %v6394 = vadd.f32 0.0, %v6393
  %v6395 = vpop.f32.mrb[0].mxu0
  %v6396 = vadd.f32 0.0, %v6395
  %v6397 = vpop.f32.mrb[0].mxu0
  %v6398 = vadd.f32 0.0, %v6397
  %6399 = vdwg.mxu0
  %6400 = vmatprep.subr.bf16.mxu0 %v6312
  %6401 = vmatpush1.bf16.msra.mxu0 %v6309
  %6402 = vmatprep.subr.bf16.mxu0 0
  %6403 = vmatpush1.bf16.msra.mxu0 0
  %6404 = vmatprep.subr.bf16.mxu0 0
  %6405 = vmatpush1.bf16.msra.mxu0 0
  %6406 = vmatprep.subr.bf16.mxu0 0
  %6407 = vmatpush1.bf16.msra.mxu0 0
  %6408 = vmatprep.subr.bf16.mxu0 0
  %6409 = vmatpush1.bf16.msra.mxu0 0
  %6410 = vmatprep.subr.bf16.mxu0 0
  %6411 = vmatpush1.bf16.msra.mxu0 0
  %6412 = vmatprep.subr.bf16.mxu0 0
  %6413 = vmatpush1.bf16.msra.mxu0 0
  %6414 = vmatprep.subr.bf16.mxu0 0
  %6415 = vmatpush1.bf16.msra.mxu0 0
  %6416 = vmatprep.subr.bf16.mxu0 0
  %6417 = vmatpush1.bf16.msra.mxu0 0
  %6418 = vmatprep.subr.bf16.mxu0 0
  %6419 = vmatpush1.bf16.msra.mxu0 0
  %6420 = vmatprep.subr.bf16.mxu0 0
  %6421 = vmatpush1.bf16.msra.mxu0 0
  %6422 = vmatprep.subr.bf16.mxu0 0
  %6423 = vmatpush1.bf16.msra.mxu0 0
  %6424 = vmatprep.subr.bf16.mxu0 0
  %6425 = vmatpush1.bf16.msra.mxu0 0
  %6426 = vmatprep.subr.bf16.mxu0 0
  %6427 = vmatpush1.bf16.msra.mxu0 0
  %6428 = vmatprep.subr.bf16.mxu0 0
  %6429 = vmatpush1.bf16.msra.mxu0 0
  %6430 = vmatprep.subr.bf16.mxu0 0
  %6431 = vmatpush1.bf16.msra.mxu0 0
  %6432 = vmatprep.mubr.bf16.mxu0 0
  %6433 = vmatmul.mubr.bf16.gmra.mrb[0].mxu0 %v6294
  %v6434 = vpop.f32.mrb[0].mxu0
  %v6435 = vadd.f32 0.0, %v6434
  %v6436 = vpop.f32.mrb[0].mxu0
  %v6437 = vadd.f32 0.0, %v6436
  %v6438 = vpop.f32.mrb[0].mxu0
  %v6439 = vadd.f32 0.0, %v6438
  %v6440 = vpop.f32.mrb[0].mxu0
  %v6441 = vadd.f32 0.0, %v6440
  %6442 = vdwg.mxu0
  %v6443 = vadd.f32 %v6256, %v6349
  %v6444 = vadd.f32 %v6257, %v6351
  %v6445 = vadd.f32 %v6258, %v6392
  %v6446 = vadd.f32 %v6259, %v6394
  %v6447 = vadd.f32 %v6260, %v6435
  %v6448 = vadd.f32 %v6261, %v6437
  %v6449 = vadd.f32 %v6262, %v6353
  %v6450 = vadd.f32 %v6263, %v6355
  %v6451 = vadd.f32 %v6264, %v6396
  %v6452 = vadd.f32 %v6265, %v6398
  %v6453 = vadd.f32 %v6266, %v6439
  %v6454 = vadd.f32 %v6267, %v6441
  %v6455 = vld [vmem:[%s10] sm:$0xff]
  %v6456 = vld [vmem:[%s10 + $0x8] sm:$0xff]
  %6458 = vset.pattern.permute.xlu0 0
  %6459 = vperm.xlu0 %6458, %v6455
  %v6460 = vpop.permute.xlu0 %6459
  %6463 = vset.pattern.permute.xlu0 0
  %6464 = vperm.xlu0 %6463, %v6456
  %v6465 = vpop.permute.xlu0 %6464
  %v6467 = vadd.f32 %v6443, %v6460
  %v6468 = vadd.f32 %v6444, %v6460
  %v6469 = vadd.f32 %v6445, %v6460
  %v6470 = vadd.f32 %v6446, %v6460
  %v6471 = vadd.f32 %v6447, %v6460
  %v6472 = vadd.f32 %v6448, %v6460
  %v6473 = vadd.f32 %v6449, %v6465
  %v6474 = vadd.f32 %v6450, %v6465
  %v6475 = vadd.f32 %v6451, %v6465
  %v6476 = vadd.f32 %v6452, %v6465
  %v6477 = vadd.f32 %v6453, %v6465
  %v6478 = vadd.f32 %v6454, %v6465
  %v6479 = vmax.f32 %v6467, 0.0
  %v6480 = vmax.f32 %v6468, 0.0
  %v6481 = vmax.f32 %v6469, 0.0
  %v6482 = vmax.f32 %v6470, 0.0
  %v6483 = vmax.f32 %v6471, 0.0
  %v6484 = vmax.f32 %v6472, 0.0
  %v6485 = vmax.f32 %v6473, 0.0
  %v6486 = vmax.f32 %v6474, 0.0
  %v6487 = vmax.f32 %v6475, 0.0
  %v6488 = vmax.f32 %v6476, 0.0
  %v6489 = vmax.f32 %v6477, 0.0
  %v6490 = vmax.f32 %v6478, 0.0
  %v6491 = vmul.f32 %v6479, %v1622
  %v6492 = vmul.f32 %v6480, %v1626
  %v6493 = vmul.f32 %v6481, %v1630
  %v6494 = vmul.f32 %v6482, %v1634
  %v6495 = vmul.f32 %v6483, %v1638
  %v6496 = vmul.f32 %v6484, %v1642
  %v6497 = vmul.f32 %v6485, %v1622
  %v6498 = vmul.f32 %v6486, %v1626
  %v6499 = vmul.f32 %v6487, %v1630
  %v6500 = vmul.f32 %v6488, %v1634
  %v6501 = vmul.f32 %v6489, %v1638
  %v6502 = vmul.f32 %v6490, %v1642
  %6503 = vst [vmem:[%s13] sm:$0xff] %v1649
  %6504 = vst [vmem:[%s13 + $0x8] sm:$0xff] %v1650
  %6505 = vst [vmem:[%s13 + $0x10] sm:$0xff] %v1651
  %6506 = vst [vmem:[%s13 + $0x18] sm:$0xff] %v1652
  %6507 = vst [vmem:[%s13 + $0x20] sm:$0xff] %v1653
  %6508 = vst.msk [vmem:[%s13 + $0x28] sm:$0xff] %vm106, %v1654
  %6509 = vst [vmem:[%s14] sm:$0xff] %v4767
  %6510 = vst [vmem:[%s14 + $0x8] sm:$0xff] %v4768
  %6511 = vst [vmem:[%s14 + $0x10] sm:$0xff] %v4769
  %6512 = vst [vmem:[%s14 + $0x18] sm:$0xff] %v4770
  %6513 = vst [vmem:[%s14 + $0x20] sm:$0xff] %v4771
  %6514 = vst.msk [vmem:[%s14 + $0x28] sm:$0xff] %vm106, %v4772
  %6515 = vst [vmem:[%s15] sm:$0xff] %v6491
  %6516 = vst [vmem:[%s15 + $0x8] sm:$0xff] %v6492
  %6517 = vst [vmem:[%s15 + $0x10] sm:$0xff] %v6493
  %6518 = vst [vmem:[%s15 + $0x18] sm:$0xff] %v6494
  %6519 = vst [vmem:[%s15 + $0x20] sm:$0xff] %v6495
  %6520 = vst.msk [vmem:[%s15 + $0x28] sm:$0xff] %vm106, %v6496
  %6521 = vst [vmem:[%s15 + $0x30] sm:$0xff] %v6497
  %6522 = vst [vmem:[%s15 + $0x38] sm:$0xff] %v6498
  %6523 = vst [vmem:[%s15 + $0x40] sm:$0xff] %v6499
  %6524 = vst [vmem:[%s15 + $0x48] sm:$0xff] %v6500
  %6525 = vst [vmem:[%s15 + $0x50] sm:$0xff] %v6501
  %6526 = vst.msk [vmem:[%s15 + $0x58] sm:$0xff] %vm106, %v6502
  %v6527 = vld [vmem:[%s2] sm:$0xff]
  %v6528 = vld [vmem:[%s2 + $0x8] sm:$0xf]
  %v6531 = vlaneseq
  %v6532 = vshrl.u32 %v6531, 7
  %v6533 = vsub.s32 0, %v6532
  %v6534 = vrot.slane %v6527, %v6533
  %v6535 = vlaneseq
  %v6536 = vshrl.u32 %v6535, 7
  %v6537 = vsub.s32 2, %v6536
  %v6538 = vrot.slane %v6527, %v6537
  %v6539 = vlaneseq
  %v6540 = vshrl.u32 %v6539, 7
  %v6541 = vsub.s32 4, %v6540
  %v6542 = vrot.slane %v6527, %v6541
  %v6543 = vlaneseq
  %v6544 = vshrl.u32 %v6543, 7
  %v6545 = vsub.s32 6, %v6544
  %v6546 = vrot.slane %v6527, %v6545
  %v6547 = vlaneseq
  %v6548 = vshrl.u32 %v6547, 7
  %v6549 = vsub.s32 0, %v6548
  %v6550 = vrot.slane %v6528, %v6549
  %v6551 = vlaneseq
  %v6552 = vshrl.u32 %v6551, 7
  %v6553 = vsub.s32 2, %v6552
  %v6554 = vrot.slane %v6528, %v6553
  %v6561 = vlaneseq
  %v6562 = vshrl.u32 %v6561, 7
  %v6563 = vsub.s32 0, %v6562
  %v6564 = vrot.slane %v6534, %v6563
  %v6565 = vlaneseq
  %v6566 = vshrl.u32 %v6565, 7
  %v6567 = vsub.s32 0, %v6566
  %v6568 = vrot.slane %v6538, %v6567
  %v6569 = vlaneseq
  %v6570 = vshrl.u32 %v6569, 7
  %v6571 = vsub.s32 0, %v6570
  %v6572 = vrot.slane %v6542, %v6571
  %v6573 = vlaneseq
  %v6574 = vshrl.u32 %v6573, 7
  %v6575 = vsub.s32 0, %v6574
  %v6576 = vrot.slane %v6546, %v6575
  %v6577 = vlaneseq
  %v6578 = vshrl.u32 %v6577, 7
  %v6579 = vsub.s32 0, %v6578
  %v6580 = vrot.slane %v6550, %v6579
  %v6581 = vlaneseq
  %v6582 = vshrl.u32 %v6581, 7
  %v6583 = vsub.s32 0, %v6582
  %v6584 = vrot.slane %v6554, %v6583
  %v6585 = vmul.f32 %v6491, %v6564
  %v6586 = vmul.f32 %v6492, %v6568
  %v6587 = vmul.f32 %v6493, %v6572
  %v6588 = vmul.f32 %v6494, %v6576
  %v6589 = vmul.f32 %v6495, %v6580
  %v6590 = vmul.f32 %v6496, %v6584
  %v6591 = vmul.f32 %v6497, %v6564
  %v6592 = vmul.f32 %v6498, %v6568
  %v6593 = vmul.f32 %v6499, %v6572
  %v6594 = vmul.f32 %v6500, %v6576
  %v6595 = vmul.f32 %v6501, %v6580
  %v6596 = vmul.f32 %v6502, %v6584
  %v6597 = vadd.f32 %v6585, %v6586
  %v6598 = vadd.f32 %v6597, %v6587
  %v6599 = vadd.f32 %v6598, %v6588
  %v6600 = vadd.f32 %v6599, %v6589
  %v6601 = vsel %vm106, %v6590, 0.0
  %v6602 = vadd.f32 %v6600, %v6601
  %6603 = vadd.xlane.f32.xlu0 %v6602
  %v6604 = vpop.xlane.xlu0 %6603
  %v6605 = vadd.f32 %v6591, %v6592
  %v6606 = vadd.f32 %v6605, %v6593
  %v6607 = vadd.f32 %v6606, %v6594
  %v6608 = vadd.f32 %v6607, %v6595
  %v6609 = vsel %vm106, %v6596, 0.0
  %v6610 = vadd.f32 %v6608, %v6609
  %6611 = vadd.xlane.f32.xlu0 %v6610
  %v6612 = vpop.xlane.xlu0 %6611
  %v6613 = vlaneseq
  %v6614 = vshrl.u32 %v6613, 7
  %v6615 = vsub.s32 1, %v6614
  %v6616 = vrot.slane %v6527, %v6615
  %v6617 = vlaneseq
  %v6618 = vshrl.u32 %v6617, 7
  %v6619 = vsub.s32 3, %v6618
  %v6620 = vrot.slane %v6527, %v6619
  %v6621 = vlaneseq
  %v6622 = vshrl.u32 %v6621, 7
  %v6623 = vsub.s32 5, %v6622
  %v6624 = vrot.slane %v6527, %v6623
  %v6625 = vlaneseq
  %v6626 = vshrl.u32 %v6625, 7
  %v6627 = vsub.s32 7, %v6626
  %v6628 = vrot.slane %v6527, %v6627
  %v6629 = vlaneseq
  %v6630 = vshrl.u32 %v6629, 7
  %v6631 = vsub.s32 1, %v6630
  %v6632 = vrot.slane %v6528, %v6631
  %v6633 = vlaneseq
  %v6634 = vshrl.u32 %v6633, 7
  %v6635 = vsub.s32 3, %v6634
  %v6636 = vrot.slane %v6528, %v6635
  %v6643 = vlaneseq
  %v6644 = vshrl.u32 %v6643, 7
  %v6645 = vsub.s32 1, %v6644
  %v6646 = vrot.slane %v6616, %v6645
  %v6647 = vlaneseq
  %v6648 = vshrl.u32 %v6647, 7
  %v6649 = vsub.s32 1, %v6648
  %v6650 = vrot.slane %v6620, %v6649
  %v6651 = vlaneseq
  %v6652 = vshrl.u32 %v6651, 7
  %v6653 = vsub.s32 1, %v6652
  %v6654 = vrot.slane %v6624, %v6653
  %v6655 = vlaneseq
  %v6656 = vshrl.u32 %v6655, 7
  %v6657 = vsub.s32 1, %v6656
  %v6658 = vrot.slane %v6628, %v6657
  %v6659 = vlaneseq
  %v6660 = vshrl.u32 %v6659, 7
  %v6661 = vsub.s32 1, %v6660
  %v6662 = vrot.slane %v6632, %v6661
  %v6663 = vlaneseq
  %v6664 = vshrl.u32 %v6663, 7
  %v6665 = vsub.s32 1, %v6664
  %v6666 = vrot.slane %v6636, %v6665
  %v6667 = vmul.f32 %v6491, %v6646
  %v6668 = vmul.f32 %v6492, %v6650
  %v6669 = vmul.f32 %v6493, %v6654
  %v6670 = vmul.f32 %v6494, %v6658
  %v6671 = vmul.f32 %v6495, %v6662
  %v6672 = vmul.f32 %v6496, %v6666
  %v6673 = vmul.f32 %v6497, %v6646
  %v6674 = vmul.f32 %v6498, %v6650
  %v6675 = vmul.f32 %v6499, %v6654
  %v6676 = vmul.f32 %v6500, %v6658
  %v6677 = vmul.f32 %v6501, %v6662
  %v6678 = vmul.f32 %v6502, %v6666
  %v6679 = vadd.f32 %v6667, %v6668
  %v6680 = vadd.f32 %v6679, %v6669
  %v6681 = vadd.f32 %v6680, %v6670
  %v6682 = vadd.f32 %v6681, %v6671
  %v6683 = vsel %vm106, %v6672, 0.0
  %v6684 = vadd.f32 %v6682, %v6683
  %6685 = vadd.xlane.f32.xlu0 %v6684
  %v6686 = vpop.xlane.xlu0 %6685
  %v6687 = vadd.f32 %v6673, %v6674
  %v6688 = vadd.f32 %v6687, %v6675
  %v6689 = vadd.f32 %v6688, %v6676
  %v6690 = vadd.f32 %v6689, %v6677
  %v6691 = vsel %vm106, %v6678, 0.0
  %v6692 = vadd.f32 %v6690, %v6691
  %6693 = vadd.xlane.f32.xlu0 %v6692
  %v6694 = vpop.xlane.xlu0 %6693
  %vm6695 = vcmask 7168
  %v6696 = vsel %vm6695, %v6604, %v6686
  %v6697 = vsel %vm6695, %v6612, %v6694
  %vm6698 = vcmask 15360
  %6699 = vst.msk [vmem:[%s16] sm:$0xff] %vm6698, %v6696
  %6700 = vst.msk [vmem:[%s16 + $0x8] sm:$0xff] %vm6698, %v6697
  %v6701 = vld [vmem:[%s11] sm:$0xff]
  %v6702 = vld [vmem:[%s11 + $0x8] sm:$0x3]
  %v6703 = vld [vmem:[%s12] sm:$0xff]
  %v6704 = vld [vmem:[%s12 + $0x8] sm:$0x3]
  %6706 = vset.pattern.permute.xlu0 0
  %6707 = vperm.xlu0 %6706, %v6703
  %v6708 = vpop.permute.xlu0 %6707
  %6711 = vset.pattern.permute.xlu0 0
  %6712 = vperm.xlu0 %6711, %v6704
  %v6713 = vpop.permute.xlu0 %6712
  %vm6715 = vcmask 130048
  %v6717 = vsel %vm6715, %v6701, 0
  %v6720 = vsel %vm6715, %v6702, 0
  %6722 = vmatprep.subr.mxu0 0.0
  %6723 = vmatpush1.msra.mxu0 %v6696
  %6724 = vmatprep.subr.mxu0 0.0
  %6725 = vmatpush1.msra.mxu0 %v6697
  %6726 = vmatprep.subr.mxu0 0.0
  %6727 = vmatpush1.msra.mxu0 0.0
  %6728 = vmatprep.subr.mxu0 0.0
  %6729 = vmatpush1.msra.mxu0 0.0
  %6730 = vmatprep.subr.mxu0 0.0
  %6731 = vmatpush1.msra.mxu0 0.0
  %6732 = vmatprep.subr.mxu0 0.0
  %6733 = vmatpush1.msra.mxu0 0.0
  %6734 = vmatprep.subr.mxu0 0.0
  %6735 = vmatpush1.msra.mxu0 0.0
  %6736 = vmatprep.subr.mxu0 0.0
  %6737 = vmatpush1.msra.mxu0 0.0
  %6738 = vmatprep.subr.mxu0 0.0
  %6739 = vmatpush1.msra.mxu0 0.0
  %6740 = vmatprep.subr.mxu0 0.0
  %6741 = vmatpush1.msra.mxu0 0.0
  %6742 = vmatprep.subr.mxu0 0.0
  %6743 = vmatpush1.msra.mxu0 0.0
  %6744 = vmatprep.subr.mxu0 0.0
  %6745 = vmatpush1.msra.mxu0 0.0
  %6746 = vmatprep.subr.mxu0 0.0
  %6747 = vmatpush1.msra.mxu0 0.0
  %6748 = vmatprep.subr.mxu0 0.0
  %6749 = vmatpush1.msra.mxu0 0.0
  %6750 = vmatprep.subr.mxu0 0.0
  %6751 = vmatpush1.msra.mxu0 0.0
  %6752 = vmatprep.subr.mxu0 0.0
  %6753 = vmatpush1.msra.mxu0 0.0
  %6754 = vmatprep.subr.mxu0 0.0
  %6755 = vmatpush1.msra.mxu0 0.0
  %6756 = vmatprep.subr.mxu0 0.0
  %6757 = vmatpush1.msra.mxu0 0.0
  %6758 = vmatprep.subr.mxu0 0.0
  %6759 = vmatpush1.msra.mxu0 0.0
  %6760 = vmatprep.subr.mxu0 0.0
  %6761 = vmatpush1.msra.mxu0 0.0
  %6762 = vmatprep.subr.mxu0 0.0
  %6763 = vmatpush1.msra.mxu0 0.0
  %6764 = vmatprep.subr.mxu0 0.0
  %6765 = vmatpush1.msra.mxu0 0.0
  %6766 = vmatprep.subr.mxu0 0.0
  %6767 = vmatpush1.msra.mxu0 0.0
  %6768 = vmatprep.subr.mxu0 0.0
  %6769 = vmatpush1.msra.mxu0 0.0
  %6770 = vmatprep.subr.mxu0 0.0
  %6771 = vmatpush1.msra.mxu0 0.0
  %6772 = vmatprep.subr.mxu0 0.0
  %6773 = vmatpush1.msra.mxu0 0.0
  %6774 = vmatprep.subr.mxu0 0.0
  %6775 = vmatpush1.msra.mxu0 0.0
  %6776 = vmatprep.subr.mxu0 0.0
  %6777 = vmatpush1.msra.mxu0 0.0
  %6778 = vmatprep.subr.mxu0 0.0
  %6779 = vmatpush1.msra.mxu0 0.0
  %6780 = vmatprep.subr.mxu0 0.0
  %6781 = vmatpush1.msra.mxu0 0.0
  %6782 = vmatprep.subr.mxu0 0.0
  %6783 = vmatpush1.msra.mxu0 0.0
  %6784 = vmatprep.subr.mxu0 0.0
  %6785 = vmatpush1.msra.mxu0 0.0
  %6786 = vmatprep.mubr.f32.mxu0 0.0
  %6787 = vmatmul.mubr.f32.gmra.mrb[0].mxu0 %v6717
  %v6788 = vpop.f32.mrb[0].mxu0
  %v6789 = vadd.f32 %v6708, %v6788
  %v6790 = vpop.f32.mrb[0].mxu0
  %6791 = vmatprep.mubr.f32.mxu0 0.0
  %6792 = vmatmul.mubr.f32.gmra.mrb[0].mxu0 %v6720
  %v6793 = vpop.f32.mrb[0].mxu0
  %v6794 = vadd.f32 %v6713, %v6793
  %v6795 = vpop.f32.mrb[0].mxu0
  %6796 = vdwg.mxu0
  %6797 = vst.msk [vmem:[%s17] sm:$0xff] %vm6698, %v6789
  %vm6798 = vcmask 9216
  %6799 = vst.msk [vmem:[%s17 + $0x8] sm:$0x3] %vm6798, %v6794
  // Predicated region
  $region54: #{incremental_net_forward.1} parent=0 // pred_check
    _
  $region55: #{incremental_net_forward.1} parent=0 // pred_check_branch
    %6801 = sbr.rel (0) target = $region57
  $region56: #{incremental_net_forward.1} parent=0 // pred_region
    _
  $region57: #{incremental_net_forward.1} parent=0 // pred_fallthru
    _
  // Predicated region
  $region58: #{incremental_net_forward.1} parent=0 // pred_check
    _
  $region59: #{incremental_net_forward.1} parent=0 // pred_check_branch
    %6803 = sbr.rel (0) target = $region61
  $region60: #{incremental_net_forward.1} parent=0 // pred_region
    _
  $region61: #{incremental_net_forward.1} parent=0 // pred_fallthru
    _
  // Predicated region
  $region62: #{incremental_net_forward.1} parent=0 // pred_check
    _
  $region63: #{incremental_net_forward.1} parent=0 // pred_check_branch
    %6805 = sbr.rel (0) target = $region65
  $region64: #{incremental_net_forward.1} parent=0 // pred_region
    _
  $region65: #{incremental_net_forward.1} parent=0 // pred_fallthru
    _
  // Predicated region
  $region66: #{incremental_net_forward.1} parent=0 // pred_check
    _
  $region67: #{incremental_net_forward.1} parent=0 // pred_check_branch
    %6807 = sbr.rel (0) target = $region69
  $region68: #{incremental_net_forward.1} parent=0 // pred_region
    _
  $region69: #{incremental_net_forward.1} parent=0 // pred_fallthru
    _
  // Predicated region
  $region70: #{incremental_net_forward.1} parent=0 // pred_check
    _
  $region71: #{incremental_net_forward.1} parent=0 // pred_check_branch
    %6809 = sbr.rel (0) target = $region73
  $region72: #{incremental_net_forward.1} parent=0 // pred_region
    _
  $region73: #{incremental_net_forward.1} parent=0 // pred_fallthru
    _
  // Predicated region
  $region74: #{incremental_net_forward.1} parent=0 // pred_check
    _
  $region75: #{incremental_net_forward.1} parent=0 // pred_check_branch
    %6811 = sbr.rel (0) target = $region77
  $region76: #{incremental_net_forward.1} parent=0 // pred_region
    _
  $region77: #{incremental_net_forward.1} parent=0 // pred_fallthru
    _
  // Predicated region
  $region78: #{incremental_net_forward.1} parent=0 // pred_check
    _
  $region79: #{incremental_net_forward.1} parent=0 // pred_check_branch
    %6813 = sbr.rel (0) target = $region81
  $region80: #{incremental_net_forward.1} parent=0 // pred_region
    _
  $region81: #{incremental_net_forward.1} parent=0 // pred_fallthru
    _
  // Predicated region
  $region82: #{incremental_net_forward.1} parent=0 // pred_check
    _
  $region83: #{incremental_net_forward.1} parent=0 // pred_check_branch
    %6815 = sbr.rel (0) target = $region85
  $region84: #{incremental_net_forward.1} parent=0 // pred_region
    _
  $region85: #{incremental_net_forward.1} parent=0 // pred_fallthru
    _
  // Predicated region
  $region86: #{incremental_net_forward.1} parent=0 // pred_check
    _
  $region87: #{incremental_net_forward.1} parent=0 // pred_check_branch
    %6817 = sbr.rel (0) target = $region89
  $region88: #{incremental_net_forward.1} parent=0 // pred_region
    _
  $region89: #{incremental_net_forward.1} parent=0 // pred_fallthru
    _
  // Predicated region
  $region90: #{incremental_net_forward.1} parent=0 // pred_check
    _
  $region91: #{incremental_net_forward.1} parent=0 // pred_check_branch
    %6819 = sbr.rel (0) target = $region93
  $region92: #{incremental_net_forward.1} parent=0 // pred_region
    _
  $region93: #{incremental_net_forward.1} parent=0 // pred_fallthru
    _

</llo_original>
